<compile_context>
chip_gen: v7x
topology: tpu7x:2x2x1
jax: 0.10.0
libtpu: 0.0.40
codegen_flags: <defaults>
</compile_context>

<pallas_src>
import jax
import jax.numpy as jnp
from jax import lax
from jax.experimental import pallas as pl
from jax.experimental.pallas import tpu as pltpu

EPS = 1e-10
TINY = 1e-30


def parse_1dstr(sstr):
    return list(map(int, sstr.split(',')))


def _sigmoid(v):
    # exact identity 1/(1+e^-v) == 0.5*(tanh(v/2)+1); tanh runs on the EUP.
    return 0.5 * (jnp.tanh(0.5 * v) + 1.0)


def _sem(n):
    return pltpu.CompilerParams(dimension_semantics=("parallel",) * n)


def _const_spec(a):
    nd = a.ndim
    return pl.BlockSpec(a.shape, lambda *_: (0,) * nd)


def _choose_tile(n, unit=128, cap=512):
    """Largest multiple of `unit` that divides n and is <= cap (else n)."""
    if n % unit != 0:
        return n
    t = cap - (cap % unit)
    while t >= unit:
        if n % t == 0:
            return t
        t -= unit
    return unit


# ----------------------------- Pallas kernels ------------------------------

def _k1_pe_bank_kernel(x_ref, bank_ref, brs_ref, pe_w_ref, pe_b_ref, erb_ref):
    # x_ref:   [1, 2, F, Tt]; bank_ref: [E, F]; brs_ref: [E, 1] (bank row sums)
    # pe_w (SMEM flat [2*C0]); pe_b (SMEM [C0]); erb_ref: [1, C0, E, Tt]
    xr = x_ref[0, 0]
    xi = x_ref[0, 1]
    bank = bank_ref[...]
    # ERB.amp2bank: contraction over F done ONCE per real/imag plane (MXU).
    bxr = jnp.dot(bank, xr, preferred_element_type=jnp.float32)
    bxi = jnp.dot(bank, xi, preferred_element_type=jnp.float32)
    brs = brs_ref[...]                       # bank @ ones -> bias pass-through
    c0 = erb_ref.shape[1]
    # TODO(synk): PhaseEncoder (complex conv stack) definition not provided;
    # surrogate = 1x1 mix of the (real, imag) channels, applied on the reduced
    # [E, Tt] planes (valid because the ERB bank is linear).
    for c in range(c0):
        erb_ref[0, c] = (pe_w_ref[2 * c] * bxr + pe_w_ref[2 * c + 1] * bxi
                         + pe_b_ref[c] * brs)


def _make_k2_kernel(n_enc):
    def kernel(*refs):
        e_ref = refs[0]
        fd_w = refs[1:1 + n_enc]
        fd_b = refs[1 + n_enc:1 + 2 * n_enc]
        fu_wd = refs[1 + 2 * n_enc:1 + 3 * n_enc]
        fu_ws = refs[1 + 3 * n_enc:1 + 4 * n_enc]
        fu_b = refs[1 + 4 * n_enc:1 + 5 * n_enc]
        dec_ref = refs[1 + 5 * n_enc]

        out = e_ref[0]                               # [C0, Nt]  (lane-dense N tile)
        enc = []
        for i in range(n_enc):
            # TODO(synk): FD (strided freq conv + BN + PReLU) not provided;
            # surrogate = 1x1 channel mix as an MXU matmul.
            out = jnp.dot(fd_w[i][...], out,
                          preferred_element_type=jnp.float32) + fd_b[i][...]
            enc.append(out)
            # TODO(synk): encoder_bn (TFCM + ASA) definitions not provided; identity.
        # TODO(synk): bottleneck (TFCM + ASA) definitions not provided; identity.
        for j in range(n_enc):
            skip = enc[n_enc - 1 - j]
            # TODO(synk): FU (gated skip fusion + transposed freq conv) not
            # provided; surrogate = split-weight 1x1 mix (no concat needed).
            out = (jnp.dot(fu_wd[j][...], out, preferred_element_type=jnp.float32)
                   + jnp.dot(fu_ws[j][...], skip, preferred_element_type=jnp.float32)
                   + fu_b[j][...])
            # TODO(synk): decoder_bn (TFCM + ASA) not provided; identity.
        dec_ref[0] = out                             # [4, Nt]
    return kernel


def _k3_mask_kernel(x_ref, dec_ref, m_ref, bb_ref, s_ref, real_ref, imag_ref):
    # x_ref:   [1, 2, F, Tt]   (real / imag planes of X)
    # dec_ref: [1, 4*E, Tt]    (decoder output, channel-major rows)
    # m_ref:   [(K+2)*F, 4*E]  (ERB.bank2amp folded with the three mask heads)
    # bb_ref:  [(K+2)*F, 1]    (head biases, row-broadcast)
    # s_ref:   [K*F, F]        (frequency shift matrix for the deep filter)
    F = real_ref.shape[1]
    K = s_ref.shape[0] // F

    xr = x_ref[0, 0]
    xi = x_ref[0, 1]
    r2 = xr * xr + xi * xi
    inv = lax.rsqrt(jnp.maximum(r2, TINY))           # EUP
    nz = r2 > 0.0
    mag = r2 * inv                                   # |X|
    cosp = jnp.where(nz, xr * inv, 1.0)              # cos(atan2(xi, xr))
    sinp = jnp.where(nz, xi * inv, 0.0)              # sin(atan2(xi, xr))

    # bank2amp + mag/real/imag mask heads in one MXU matmul.
    heads = jnp.dot(m_ref[...], dec_ref[0],
                    preferred_element_type=jnp.float32) + bb_ref[...]
    # identity-kernel deep filter: frequency-shifted copies of |X| via matmul.
    mshift = jnp.dot(s_ref[...], mag, preferred_element_type=jnp.float32)

    mag_df = jnp.zeros_like(mag)
    for k in range(K):
        mag_df = mag_df + (mshift[k * F:(k + 1) * F, :]
                           * _sigmoid(heads[k * F:(k + 1) * F, :]))

    rm = heads[K * F:(K + 1) * F, :]                 # real_mask
    im = heads[(K + 1) * F:(K + 2) * F, :]           # imag_mask
    mmask = jnp.sqrt(jnp.maximum(rm * rm + im * im, EPS))
    rme = rm + EPS
    ime = im + EPS
    s2 = rme * rme + ime * ime
    invs = lax.rsqrt(jnp.maximum(s2, TINY))          # EUP
    nz2 = s2 > 0.0
    cpm = jnp.where(nz2, rme * invs, 1.0)            # cos(atan2(ime, rme))
    spm = jnp.where(nz2, ime * invs, 0.0)            # sin(atan2(ime, rme))
    t = mag_df * jnp.tanh(mmask)
    # cos/sin(pha + pha_mask) via angle-addition identities.
    real_ref[0] = t * (cosp * cpm - sinp * spm)
    imag_ref[0] = t * (sinp * cpm + cosp * spm)


# ------------------------------ parameters ---------------------------------

def make_banks(nerb, F):
    # TODO(synk): exact ERB filterbank construction (Banks) not provided in the
    # reference; deterministic triangular filterbank used instead.
    centers = jnp.linspace(0.0, F - 1.0, nerb)
    width = max((F - 1.0) / max(nerb - 1, 1), 1.0)
    f = jnp.arange(F, dtype=jnp.float32)[None, :]
    bank = jnp.maximum(0.0, 1.0 - jnp.abs(f - centers[:, None]) / width)
    bank = bank.astype(jnp.float32)                                    # [E, F]
    syn = (bank / (jnp.sum(bank, axis=0, keepdims=True) + EPS)).T      # [F, E]
    return bank, syn.astype(jnp.float32)


def init_params(key, F, nerb, Co, mag_f_dim=3, PEc=4, n_sig=1):
    C_en = [PEc // 2 * n_sig] + list(Co)
    C_de = [4] + list(Co)
    keys = iter(jax.random.split(key, 64))

    def rnd(shape, scale=0.2):
        return (scale * jax.random.normal(next(keys), shape)).astype(jnp.float32)

    p = {}
    p['pe_w'] = rnd((C_en[0], 2))
    p['pe_b'] = rnd((C_en[0],), 0.05)
    p['bank'], p['bank_syn'] = make_banks(nerb, F)
    for i in range(len(C_en) - 1):
        p[f'fd_w_{i}'] = rnd((C_en[i + 1], C_en[i]))
        p[f'fd_b_{i}'] = rnd((C_en[i + 1],), 0.05)
    for j, idx in enumerate(range(len(C_de) - 1, 0, -1)):
        cin = C_de[idx] + C_en[idx]          # decoder features + encoder skip
        p[f'fu_w_{j}'] = rnd((C_de[idx - 1], cin))
        p[f'fu_b_{j}'] = rnd((C_de[idx - 1],), 0.05)
    # fused heads: mag_mask (mag_f_dim ch) + real_mask (1) + imag_mask (1),
    # each Conv2d(4, ., kernel=(3,1), padding=(1,0))
    hw = rnd((mag_f_dim + 2, 4, mag_f_dim))
    p['head_w'] = hw.reshape(mag_f_dim + 2, 4 * mag_f_dim)
    p['head_b'] = rnd((mag_f_dim + 2,), 0.05)
    return p


# ------------------------------- forward -----------------------------------

def mtfaa_forward(X, params, mag_f_dim=3):
    """X: [B, 2, F, T] float32 (real/imag channels). Returns complex64 [B, F, T]."""
    B, _, F, T = X.shape
    E = params['bank'].shape[0]
    K = mag_f_dim
    pad = (K - 1) // 2
    n_enc = len([k for k in params if k.startswith('fd_w_')])
    C0 = params['pe_w'].shape[0]
    t_tile = _choose_tile(T, unit=128, cap=512)      # lane-dense T tiles
    n_t = T // t_tile

    # ---- K1: ERB.amp2bank (MXU) + PhaseEncoder surrogate (VPU) ----
    brs = jnp.sum(params['bank'], axis=1, keepdims=True)        # [E, 1]
    erb = pl.pallas_call(
        _k1_pe_bank_kernel,
        grid=(B, n_t),
        in_specs=[
            pl.BlockSpec((1, 2, F, t_tile), lambda b, t: (b, 0, 0, t)),
            _const_spec(params['bank']),
            _const_spec(brs),
            pl.BlockSpec(memory_space=pltpu.MemorySpace.SMEM),
            pl.BlockSpec(memory_space=pltpu.MemorySpace.SMEM),
        ],
        out_specs=pl.BlockSpec((1, C0, E, t_tile), lambda b, t: (b, 0, 0, t)),
        out_shape=jax.ShapeDtypeStruct((B, C0, E, T), jnp.float32),
        compiler_params=_sem(2),
    )(X, params['bank'], brs, params['pe_w'].reshape(-1), params['pe_b'])

    # ---- K2: encoder / decoder 1x1 channel mixes on [C, E*T] ----
    N = E * T
    enc_in = erb.reshape(B, C0, N)                   # free contiguous reshape
    n_tile = _choose_tile(N, unit=128, cap=2048)     # bound VMEM at any length
    n_n = N // n_tile

    fd_w = [params[f'fd_w_{i}'] for i in range(n_enc)]
    fd_b = [params[f'fd_b_{i}'].reshape(-1, 1) for i in range(n_enc)]
    fu_wd, fu_ws, fu_b = [], [], []
    dec_ch = fd_w[n_enc - 1].shape[0]
    for j in range(n_enc):
        w = params[f'fu_w_{j}']
        fu_wd.append(w[:, :dec_ch])                  # decoder-stream part
        fu_ws.append(w[:, dec_ch:])                  # encoder-skip part
        fu_b.append(params[f'fu_b_{j}'].reshape(-1, 1))
        dec_ch = w.shape[0]
    C_dec = dec_ch                                   # == 4

    k2_weights = fd_w + fd_b + fu_wd + fu_ws + fu_b
    dec = pl.pallas_call(
        _make_k2_kernel(n_enc),
        grid=(B, n_n),
        in_specs=[pl.BlockSpec((1, C0, n_tile), lambda b, n: (b, 0, n))]
                 + [_const_spec(a) for a in k2_weights],
        out_specs=pl.BlockSpec((1, C_dec, n_tile), lambda b, n: (b, 0, n)),
        out_shape=jax.ShapeDtypeStruct((B, C_dec, N), jnp.float32),
        compiler_params=_sem(2),
    )(enc_in, *k2_weights)

    # ---- K3: bank2amp + mask heads + deep filter + complex mask ----
    # Fold ERB.bank2amp and the three (3,1)-kernel heads into one matrix
    # (weight-only precompute; equivalent to conv-folding).
    syn = params['bank_syn']                                       # [F, E]
    syn_pad = jnp.pad(syn, ((pad, pad), (0, 0)))
    syn_shift = jnp.stack([syn_pad[k:k + F] for k in range(K)], axis=0)  # [K,F,E]
    W = params['head_w'].reshape(K + 2, C_dec, K)
    M = jnp.einsum('ock,kfe->ofce', W, syn_shift).reshape((K + 2) * F, C_dec * E)
    bb = jnp.repeat(params['head_b'], F).reshape((K + 2) * F, 1)
    eye_pad = jnp.pad(jnp.eye(F, dtype=jnp.float32), ((pad, pad), (0, 0)))
    S = jnp.concatenate([eye_pad[k:k + F] for k in range(K)], axis=0)    # [K*F,F]

    dec_r = dec.reshape(B, C_dec * E, T)             # free contiguous reshape

    real, imag = pl.pallas_call(
        _k3_mask_kernel,
        grid=(B, n_t),
        in_specs=[
            pl.BlockSpec((1, 2, F, t_tile), lambda b, t: (b, 0, 0, t)),
            pl.BlockSpec((1, C_dec * E, t_tile), lambda b, t: (b, 0, t)),
            _const_spec(M),
            _const_spec(bb),
            _const_spec(S),
        ],
        out_specs=(pl.BlockSpec((1, F, t_tile), lambda b, t: (b, 0, t)),) * 2,
        out_shape=(jax.ShapeDtypeStruct((B, F, T), jnp.float32),) * 2,
        compiler_params=_sem(2),
    )(X, dec_r, M, bb, S)

    return lax.complex(real, imag)


# -------------------------- pure-JAX reference ------------------------------

def forward_reference(X, p, mag_f_dim=3):
    B, _, F, T = X.shape
    mag = jnp.sqrt(jnp.sum(X * X, axis=1))
    pha = jnp.arctan2(X[:, -1], X[:, 0])

    def mix(x, w, b):
        return jnp.einsum('oc,bcft->boft', w, x) + b[None, :, None, None]

    out = mix(X, p['pe_w'], p['pe_b'])
    out = jnp.einsum('ef,bcft->bcet', p['bank'], out)
    enc = []
    n_enc = len([k for k in p if k.startswith('fd_w_')])
    for i in range(n_enc):
        out = mix(out, p[f'fd_w_{i}'], p[f'fd_b_{i}'])
        enc.append(out)
    for j in range(n_enc):
        out = mix(jnp.concatenate([out, enc[-1 - j]], axis=1),
                  p[f'fu_w_{j}'], p[f'fu_b_{j}'])
    out = jnp.einsum('fe,bcet->bcft', p['bank_syn'], out)

    W = p['head_w'].reshape(p['head_w'].shape[0], 4, mag_f_dim)
    op = jnp.pad(out, ((0, 0), (0, 0), (1, 1), (0, 0)))
    head = []
    for o in range(W.shape[0]):
        acc = jnp.zeros((B, F, T), jnp.float32) + p['head_b'][o]
        for c in range(4):
            for k in range(mag_f_dim):
                acc = acc + W[o, c, k] * op[:, c, k:k + F, :]
        head.append(acc)
    head = jnp.stack(head, axis=1)
    mm = head[:, :mag_f_dim]
    rm = head[:, mag_f_dim]
    im = head[:, mag_f_dim + 1]
    pad = (mag_f_dim - 1) // 2
    magp = jnp.pad(mag, ((0, 0), (pad, pad), (0, 0)))
    shift = jnp.stack([magp[:, k:k + F, :] for k in range(mag_f_dim)], axis=1)
    magd = jnp.sum(shift * jax.nn.sigmoid(mm), axis=1)
    mmask = jnp.sqrt(jnp.maximum(rm * rm + im * im, EPS))
    pmask = jnp.arctan2(im + EPS, rm + EPS)
    real = magd * jnp.tanh(mmask) * jnp.cos(pha + pmask)
    imag = magd * jnp.tanh(mmask) * jnp.sin(pha + pmask)
    return real + 1j * imag


# --------------------------------- main -------------------------------------

if __name__ == "__main__":
    B, F, T = 2, 64, 256       # small demo shapes (T a multiple of 128 -> lane-dense)
    nerb = 32
    Co = [4, 6, 8]             # small channel config (constructor arg of MTFAANet)

    key = jax.random.PRNGKey(0)
    kx, kp = jax.random.split(key)
    X = jax.random.normal(kx, (B, 2, F, T), dtype=jnp.float32)
    params = init_params(kp, F, nerb, Co)

    Y = jax.jit(mtfaa_forward)(X, params)
    Y = jax.block_until_ready(Y)

    assert Y.shape == (B, F, T) and Y.dtype == jnp.complex64

    Y_ref = forward_reference(X, params)
    err = float(jnp.max(jnp.abs(Y - Y_ref)))
    scale = float(jnp.max(jnp.abs(Y_ref))) + 1.0
    assert err < 1e-3 * scale, f"mismatch vs reference: {err}"

    print("KERNEL_OK")
</pallas_src>

<mosaic_0001>
module attributes {stable_mosaic.version = 11 : i64} {
  func.func @_k1_pe_bank_kernel(%arg0: i32, %arg1: i32, %arg2: memref<1x2x64x256xf32, #tpu.memory_space<vmem>>, %arg3: memref<32x64xf32, #tpu.memory_space<vmem>>, %arg4: memref<32x1xf32, #tpu.memory_space<vmem>>, %arg5: memref<4xf32, #tpu.memory_space<smem>>, %arg6: memref<2xf32, #tpu.memory_space<smem>>, %arg7: memref<1x2x32x256xf32, #tpu.memory_space<vmem>>) attributes {dimension_semantics = [#tpu.dimension_semantics<parallel>, #tpu.dimension_semantics<parallel>], iteration_bounds = array<i64: 2, 1>, scalar_prefetch = 0 : i64, scratch_operands = 0 : i64, tpu.core_type = #tpu.core_type<tc>, window_params = [{transform_indices = @transform_0, window_bounds = array<i64: 1, 2, 64, 256>}, {pipeline_mode = #tpu.pipeline_mode<synchronous>, transform_indices = @transform_1, window_bounds = array<i64: 32, 64>}, {pipeline_mode = #tpu.pipeline_mode<synchronous>, transform_indices = @transform_2, window_bounds = array<i64: 32, 1>}, {transform_indices = @transform_3, window_bounds = array<i64: 4>}, {transform_indices = @transform_4, window_bounds = array<i64: 2>}, {transform_indices = @transform_5, window_bounds = array<i64: 1, 2, 32, 256>}]} {
    %c0 = arith.constant 0 : index
    %c0_0 = arith.constant 0 : index
    %c0_1 = arith.constant 0 : index
    %c0_2 = arith.constant 0 : index
    %0 = vector.load %arg2[%c0, %c0_0, %c0_1, %c0_2] : memref<1x2x64x256xf32, #tpu.memory_space<vmem>>, vector<1x1x64x256xf32>
    %1 = vector.shape_cast %0 : vector<1x1x64x256xf32> to vector<64x256xf32>
    %c0_3 = arith.constant 0 : index
    %c1 = arith.constant 1 : index
    %c0_4 = arith.constant 0 : index
    %c0_5 = arith.constant 0 : index
    %2 = vector.load %arg2[%c0_3, %c1, %c0_4, %c0_5] : memref<1x2x64x256xf32, #tpu.memory_space<vmem>>, vector<1x1x64x256xf32>
    %3 = vector.shape_cast %2 : vector<1x1x64x256xf32> to vector<64x256xf32>
    %c0_6 = arith.constant 0 : index
    %c0_7 = arith.constant 0 : index
    %4 = vector.load %arg3[%c0_6, %c0_7] : memref<32x64xf32, #tpu.memory_space<vmem>>, vector<32x64xf32>
    %cst = arith.constant dense<0.000000e+00> : vector<32x256xf32>
    %5 = tpu.matmul %4, %1, %cst {dimension_numbers = #tpu.dot_dimension_numbers<[1], [0], [0], [1], [0, 0, 1, 1], [], []>} : vector<32x64xf32>, vector<64x256xf32>, vector<32x256xf32> -> vector<32x256xf32>
    %cst_8 = arith.constant dense<0.000000e+00> : vector<32x256xf32>
    %6 = tpu.matmul %4, %3, %cst_8 {dimension_numbers = #tpu.dot_dimension_numbers<[1], [0], [0], [1], [0, 0, 1, 1], [], []>} : vector<32x64xf32>, vector<64x256xf32>, vector<32x256xf32> -> vector<32x256xf32>
    %c0_9 = arith.constant 0 : index
    %c0_10 = arith.constant 0 : index
    %7 = vector.load %arg4[%c0_9, %c0_10] : memref<32x1xf32, #tpu.memory_space<vmem>>, vector<32x1xf32>
    %c0_11 = arith.constant 0 : index
    %8 = memref.load %arg5[%c0_11] : memref<4xf32, #tpu.memory_space<smem>>
    %9 = vector.broadcast %8 : f32 to vector<32x256xf32>
    %10 = arith.mulf %9, %5 : vector<32x256xf32>
    %c1_12 = arith.constant 1 : index
    %11 = memref.load %arg5[%c1_12] : memref<4xf32, #tpu.memory_space<smem>>
    %12 = vector.broadcast %11 : f32 to vector<32x256xf32>
    %13 = arith.mulf %12, %6 : vector<32x256xf32>
    %14 = arith.addf %10, %13 : vector<32x256xf32>
    %c0_13 = arith.constant 0 : index
    %15 = memref.load %arg6[%c0_13] : memref<2xf32, #tpu.memory_space<smem>>
    %16 = vector.broadcast %15 : f32 to vector<32x1xf32>
    %17 = arith.mulf %16, %7 : vector<32x1xf32>
    %18 = vector.broadcast %17 : vector<32x1xf32> to vector<32x256xf32>
    %19 = arith.addf %14, %18 : vector<32x256xf32>
    %c0_14 = arith.constant 0 : index
    %c0_15 = arith.constant 0 : index
    %c0_16 = arith.constant 0 : index
    %c0_17 = arith.constant 0 : index
    %20 = vector.load %arg7[%c0_14, %c0_15, %c0_16, %c0_17] : memref<1x2x32x256xf32, #tpu.memory_space<vmem>>, vector<1x1x32x256xf32>
    %21 = vector.shape_cast %20 : vector<1x1x32x256xf32> to vector<32x256xf32>
    %22 = vector.shape_cast %19 : vector<32x256xf32> to vector<1x1x32x256xf32>
    tpu.vector_store %arg7[%c0_14, %c0_15, %c0_16, %c0_17], %22 {strides = array<i32>} : memref<1x2x32x256xf32, #tpu.memory_space<vmem>>, vector<1x1x32x256xf32>,
    %c2 = arith.constant 2 : index
    %23 = memref.load %arg5[%c2] : memref<4xf32, #tpu.memory_space<smem>>
    %24 = vector.broadcast %23 : f32 to vector<32x256xf32>
    %25 = arith.mulf %24, %5 : vector<32x256xf32>
    %c3 = arith.constant 3 : index
    %26 = memref.load %arg5[%c3] : memref<4xf32, #tpu.memory_space<smem>>
    %27 = vector.broadcast %26 : f32 to vector<32x256xf32>
    %28 = arith.mulf %27, %6 : vector<32x256xf32>
    %29 = arith.addf %25, %28 : vector<32x256xf32>
    %c1_18 = arith.constant 1 : index
    %30 = memref.load %arg6[%c1_18] : memref<2xf32, #tpu.memory_space<smem>>
    %31 = vector.broadcast %30 : f32 to vector<32x1xf32>
    %32 = arith.mulf %31, %7 : vector<32x1xf32>
    %33 = vector.broadcast %32 : vector<32x1xf32> to vector<32x256xf32>
    %34 = arith.addf %29, %33 : vector<32x256xf32>
    %c0_19 = arith.constant 0 : index
    %c1_20 = arith.constant 1 : index
    %c0_21 = arith.constant 0 : index
    %c0_22 = arith.constant 0 : index
    %35 = vector.load %arg7[%c0_19, %c1_20, %c0_21, %c0_22] : memref<1x2x32x256xf32, #tpu.memory_space<vmem>>, vector<1x1x32x256xf32>
    %36 = vector.shape_cast %35 : vector<1x1x32x256xf32> to vector<32x256xf32>
    %37 = vector.shape_cast %34 : vector<32x256xf32> to vector<1x1x32x256xf32>
    tpu.vector_store %arg7[%c0_19, %c1_20, %c0_21, %c0_22], %37 {strides = array<i32>} : memref<1x2x32x256xf32, #tpu.memory_space<vmem>>, vector<1x1x32x256xf32>,
    return
  }
  func.func @transform_0(%arg0: i32, %arg1: i32) -> (i32, i32, i32, i32) {
    %c0_i32 = arith.constant 0 : i32
    %c0_i32_0 = arith.constant 0 : i32
    %c0_i32_1 = arith.constant 0 : i32
    return %arg0, %c0_i32, %c0_i32_0, %arg1 : i32, i32, i32, i32
  }
  func.func @transform_1(%arg0: i32, %arg1: i32) -> (i32, i32) {
    %c0_i32 = arith.constant 0 : i32
    %c0_i32_0 = arith.constant 0 : i32
    %c0_i32_1 = arith.constant 0 : i32
    return %c0_i32, %c0_i32_0 : i32, i32
  }
  func.func @transform_2(%arg0: i32, %arg1: i32) -> (i32, i32) {
    %c0_i32 = arith.constant 0 : i32
    %c0_i32_0 = arith.constant 0 : i32
    %c0_i32_1 = arith.constant 0 : i32
    return %c0_i32, %c0_i32_0 : i32, i32
  }
  func.func @transform_3(%arg0: i32, %arg1: i32) -> i32 {
    %c0_i32 = arith.constant 0 : i32
    %c0_i32_0 = arith.constant 0 : i32
    return %c0_i32 : i32
  }
  func.func @transform_4(%arg0: i32, %arg1: i32) -> i32 {
    %c0_i32 = arith.constant 0 : i32
    %c0_i32_0 = arith.constant 0 : i32
    return %c0_i32 : i32
  }
  func.func @transform_5(%arg0: i32, %arg1: i32) -> (i32, i32, i32, i32) {
    %c0_i32 = arith.constant 0 : i32
    %c0_i32_0 = arith.constant 0 : i32
    %c0_i32_1 = arith.constant 0 : i32
    return %arg0, %c0_i32, %c0_i32_0, %arg1 : i32, i32, i32, i32
  }
}

module attributes {stable_mosaic.version = 11 : i64} {
  func.func @kernel(%arg0: i32, %arg1: i32, %arg2: memref<1x2x2048xf32, #tpu.memory_space<vmem>>, %arg3: memref<4x2xf32, #tpu.memory_space<vmem>>, %arg4: memref<6x4xf32, #tpu.memory_space<vmem>>, %arg5: memref<8x6xf32, #tpu.memory_space<vmem>>, %arg6: memref<4x1xf32, #tpu.memory_space<vmem>>, %arg7: memref<6x1xf32, #tpu.memory_space<vmem>>, %arg8: memref<8x1xf32, #tpu.memory_space<vmem>>, %arg9: memref<6x8xf32, #tpu.memory_space<vmem>>, %arg10: memref<4x6xf32, #tpu.memory_space<vmem>>, %arg11: memref<4x4xf32, #tpu.memory_space<vmem>>, %arg12: memref<6x8xf32, #tpu.memory_space<vmem>>, %arg13: memref<4x6xf32, #tpu.memory_space<vmem>>, %arg14: memref<4x4xf32, #tpu.memory_space<vmem>>, %arg15: memref<6x1xf32, #tpu.memory_space<vmem>>, %arg16: memref<4x1xf32, #tpu.memory_space<vmem>>, %arg17: memref<4x1xf32, #tpu.memory_space<vmem>>, %arg18: memref<1x4x2048xf32, #tpu.memory_space<vmem>>) attributes {dimension_semantics = [#tpu.dimension_semantics<parallel>, #tpu.dimension_semantics<parallel>], iteration_bounds = array<i64: 2, 4>, scalar_prefetch = 0 : i64, scratch_operands = 0 : i64, tpu.core_type = #tpu.core_type<tc>, window_params = [{transform_indices = @transform_0, window_bounds = array<i64: 1, 2, 2048>}, {pipeline_mode = #tpu.pipeline_mode<synchronous>, transform_indices = @transform_1, window_bounds = array<i64: 4, 2>}, {pipeline_mode = #tpu.pipeline_mode<synchronous>, transform_indices = @transform_2, window_bounds = array<i64: 6, 4>}, {pipeline_mode = #tpu.pipeline_mode<synchronous>, transform_indices = @transform_3, window_bounds = array<i64: 8, 6>}, {pipeline_mode = #tpu.pipeline_mode<synchronous>, transform_indices = @transform_4, window_bounds = array<i64: 4, 1>}, {pipeline_mode = #tpu.pipeline_mode<synchronous>, transform_indices = @transform_5, window_bounds = array<i64: 6, 1>}, {pipeline_mode = #tpu.pipeline_mode<synchronous>, transform_indices = @transform_6, window_bounds = array<i64: 8, 1>}, {pipeline_mode = #tpu.pipeline_mode<synchronous>, transform_indices = @transform_7, window_bounds = array<i64: 6, 8>}, {pipeline_mode = #tpu.pipeline_mode<synchronous>, transform_indices = @transform_8, window_bounds = array<i64: 4, 6>}, {pipeline_mode = #tpu.pipeline_mode<synchronous>, transform_indices = @transform_9, window_bounds = array<i64: 4, 4>}, {pipeline_mode = #tpu.pipeline_mode<synchronous>, transform_indices = @transform_10, window_bounds = array<i64: 6, 8>}, {pipeline_mode = #tpu.pipeline_mode<synchronous>, transform_indices = @transform_11, window_bounds = array<i64: 4, 6>}, {pipeline_mode = #tpu.pipeline_mode<synchronous>, transform_indices = @transform_12, window_bounds = array<i64: 4, 4>}, {pipeline_mode = #tpu.pipeline_mode<synchronous>, transform_indices = @transform_13, window_bounds = array<i64: 6, 1>}, {pipeline_mode = #tpu.pipeline_mode<synchronous>, transform_indices = @transform_14, window_bounds = array<i64: 4, 1>}, {pipeline_mode = #tpu.pipeline_mode<synchronous>, transform_indices = @transform_15, window_bounds = array<i64: 4, 1>}, {transform_indices = @transform_16, window_bounds = array<i64: 1, 4, 2048>}]} {
    %c0 = arith.constant 0 : index
    %c0_0 = arith.constant 0 : index
    %c0_1 = arith.constant 0 : index
    %0 = vector.load %arg2[%c0, %c0_0, %c0_1] : memref<1x2x2048xf32, #tpu.memory_space<vmem>>, vector<1x2x2048xf32>
    %1 = vector.shape_cast %0 : vector<1x2x2048xf32> to vector<2x2048xf32>
    %c0_2 = arith.constant 0 : index
    %c0_3 = arith.constant 0 : index
    %2 = vector.load %arg3[%c0_2, %c0_3] : memref<4x2xf32, #tpu.memory_space<vmem>>, vector<4x2xf32>
    %cst = arith.constant dense<0.000000e+00> : vector<4x2048xf32>
    %3 = tpu.matmul %2, %1, %cst {dimension_numbers = #tpu.dot_dimension_numbers<[1], [0], [0], [1], [0, 0, 1, 1], [], []>} : vector<4x2xf32>, vector<2x2048xf32>, vector<4x2048xf32> -> vector<4x2048xf32>
    %c0_4 = arith.constant 0 : index
    %c0_5 = arith.constant 0 : index
    %4 = vector.load %arg6[%c0_4, %c0_5] : memref<4x1xf32, #tpu.memory_space<vmem>>, vector<4x1xf32>
    %5 = vector.broadcast %4 : vector<4x1xf32> to vector<4x2048xf32>
    %6 = arith.addf %3, %5 : vector<4x2048xf32>
    %c0_6 = arith.constant 0 : index
    %c0_7 = arith.constant 0 : index
    %7 = vector.load %arg4[%c0_6, %c0_7] : memref<6x4xf32, #tpu.memory_space<vmem>>, vector<6x4xf32>
    %cst_8 = arith.constant dense<0.000000e+00> : vector<6x2048xf32>
    %8 = tpu.matmul %7, %6, %cst_8 {dimension_numbers = #tpu.dot_dimension_numbers<[1], [0], [0], [1], [0, 0, 1, 1], [], []>} : vector<6x4xf32>, vector<4x2048xf32>, vector<6x2048xf32> -> vector<6x2048xf32>
    %c0_9 = arith.constant 0 : index
    %c0_10 = arith.constant 0 : index
    %9 = vector.load %arg7[%c0_9, %c0_10] : memref<6x1xf32, #tpu.memory_space<vmem>>, vector<6x1xf32>
    %10 = vector.broadcast %9 : vector<6x1xf32> to vector<6x2048xf32>
    %11 = arith.addf %8, %10 : vector<6x2048xf32>
    %c0_11 = arith.constant 0 : index
    %c0_12 = arith.constant 0 : index
    %12 = vector.load %arg5[%c0_11, %c0_12] : memref<8x6xf32, #tpu.memory_space<vmem>>, vector<8x6xf32>
    %cst_13 = arith.constant dense<0.000000e+00> : vector<8x2048xf32>
    %13 = tpu.matmul %12, %11, %cst_13 {dimension_numbers = #tpu.dot_dimension_numbers<[1], [0], [0], [1], [0, 0, 1, 1], [], []>} : vector<8x6xf32>, vector<6x2048xf32>, vector<8x2048xf32> -> vector<8x2048xf32>
    %c0_14 = arith.constant 0 : index
    %c0_15 = arith.constant 0 : index
    %14 = vector.load %arg8[%c0_14, %c0_15] : memref<8x1xf32, #tpu.memory_space<vmem>>, vector<8x1xf32>
    %15 = vector.broadcast %14 : vector<8x1xf32> to vector<8x2048xf32>
    %16 = arith.addf %13, %15 : vector<8x2048xf32>
    %c0_16 = arith.constant 0 : index
    %c0_17 = arith.constant 0 : index
    %17 = vector.load %arg9[%c0_16, %c0_17] : memref<6x8xf32, #tpu.memory_space<vmem>>, vector<6x8xf32>
    %cst_18 = arith.constant dense<0.000000e+00> : vector<6x2048xf32>
    %18 = tpu.matmul %17, %16, %cst_18 {dimension_numbers = #tpu.dot_dimension_numbers<[1], [0], [0], [1], [0, 0, 1, 1], [], []>} : vector<6x8xf32>, vector<8x2048xf32>, vector<6x2048xf32> -> vector<6x2048xf32>
    %c0_19 = arith.constant 0 : index
    %c0_20 = arith.constant 0 : index
    %19 = vector.load %arg12[%c0_19, %c0_20] : memref<6x8xf32, #tpu.memory_space<vmem>>, vector<6x8xf32>
    %cst_21 = arith.constant dense<0.000000e+00> : vector<6x2048xf32>
    %20 = tpu.matmul %19, %16, %cst_21 {dimension_numbers = #tpu.dot_dimension_numbers<[1], [0], [0], [1], [0, 0, 1, 1], [], []>} : vector<6x8xf32>, vector<8x2048xf32>, vector<6x2048xf32> -> vector<6x2048xf32>
    %21 = arith.addf %18, %20 : vector<6x2048xf32>
    %c0_22 = arith.constant 0 : index
    %c0_23 = arith.constant 0 : index
    %22 = vector.load %arg15[%c0_22, %c0_23] : memref<6x1xf32, #tpu.memory_space<vmem>>, vector<6x1xf32>
    %23 = vector.broadcast %22 : vector<6x1xf32> to vector<6x2048xf32>
    %24 = arith.addf %21, %23 : vector<6x2048xf32>
    %c0_24 = arith.constant 0 : index
    %c0_25 = arith.constant 0 : index
    %25 = vector.load %arg10[%c0_24, %c0_25] : memref<4x6xf32, #tpu.memory_space<vmem>>, vector<4x6xf32>
    %cst_26 = arith.constant dense<0.000000e+00> : vector<4x2048xf32>
    %26 = tpu.matmul %25, %24, %cst_26 {dimension_numbers = #tpu.dot_dimension_numbers<[1], [0], [0], [1], [0, 0, 1, 1], [], []>} : vector<4x6xf32>, vector<6x2048xf32>, vector<4x2048xf32> -> vector<4x2048xf32>
    %c0_27 = arith.constant 0 : index
    %c0_28 = arith.constant 0 : index
    %27 = vector.load %arg13[%c0_27, %c0_28] : memref<4x6xf32, #tpu.memory_space<vmem>>, vector<4x6xf32>
    %cst_29 = arith.constant dense<0.000000e+00> : vector<4x2048xf32>
    %28 = tpu.matmul %27, %11, %cst_29 {dimension_numbers = #tpu.dot_dimension_numbers<[1], [0], [0], [1], [0, 0, 1, 1], [], []>} : vector<4x6xf32>, vector<6x2048xf32>, vector<4x2048xf32> -> vector<4x2048xf32>
    %29 = arith.addf %26, %28 : vector<4x2048xf32>
    %c0_30 = arith.constant 0 : index
    %c0_31 = arith.constant 0 : index
    %30 = vector.load %arg16[%c0_30, %c0_31] : memref<4x1xf32, #tpu.memory_space<vmem>>, vector<4x1xf32>
    %31 = vector.broadcast %30 : vector<4x1xf32> to vector<4x2048xf32>
    %32 = arith.addf %29, %31 : vector<4x2048xf32>
    %c0_32 = arith.constant 0 : index
    %c0_33 = arith.constant 0 : index
    %33 = vector.load %arg11[%c0_32, %c0_33] : memref<4x4xf32, #tpu.memory_space<vmem>>, vector<4x4xf32>
    %cst_34 = arith.constant dense<0.000000e+00> : vector<4x2048xf32>
    %34 = tpu.matmul %33, %32, %cst_34 {dimension_numbers = #tpu.dot_dimension_numbers<[1], [0], [0], [1], [0, 0, 1, 1], [], []>} : vector<4x4xf32>, vector<4x2048xf32>, vector<4x2048xf32> -> vector<4x2048xf32>
    %c0_35 = arith.constant 0 : index
    %c0_36 = arith.constant 0 : index
    %35 = vector.load %arg14[%c0_35, %c0_36] : memref<4x4xf32, #tpu.memory_space<vmem>>, vector<4x4xf32>
    %cst_37 = arith.constant dense<0.000000e+00> : vector<4x2048xf32>
    %36 = tpu.matmul %35, %6, %cst_37 {dimension_numbers = #tpu.dot_dimension_numbers<[1], [0], [0], [1], [0, 0, 1, 1], [], []>} : vector<4x4xf32>, vector<4x2048xf32>, vector<4x2048xf32> -> vector<4x2048xf32>
    %37 = arith.addf %34, %36 : vector<4x2048xf32>
    %c0_38 = arith.constant 0 : index
    %c0_39 = arith.constant 0 : index
    %38 = vector.load %arg17[%c0_38, %c0_39] : memref<4x1xf32, #tpu.memory_space<vmem>>, vector<4x1xf32>
    %39 = vector.broadcast %38 : vector<4x1xf32> to vector<4x2048xf32>
    %40 = arith.addf %37, %39 : vector<4x2048xf32>
    %c0_40 = arith.constant 0 : index
    %c0_41 = arith.constant 0 : index
    %c0_42 = arith.constant 0 : index
    %41 = vector.load %arg18[%c0_40, %c0_41, %c0_42] : memref<1x4x2048xf32, #tpu.memory_space<vmem>>, vector<1x4x2048xf32>
    %42 = vector.shape_cast %41 : vector<1x4x2048xf32> to vector<4x2048xf32>
    %43 = vector.shape_cast %40 : vector<4x2048xf32> to vector<1x4x2048xf32>
    tpu.vector_store %arg18[%c0_40, %c0_41, %c0_42], %43 {strides = array<i32>} : memref<1x4x2048xf32, #tpu.memory_space<vmem>>, vector<1x4x2048xf32>,
    return
  }
  func.func @transform_0(%arg0: i32, %arg1: i32) -> (i32, i32, i32) {
    %c0_i32 = arith.constant 0 : i32
    %c0_i32_0 = arith.constant 0 : i32
    return %arg0, %c0_i32, %arg1 : i32, i32, i32
  }
  func.func @transform_1(%arg0: i32, %arg1: i32) -> (i32, i32) {
    %c0_i32 = arith.constant 0 : i32
    %c0_i32_0 = arith.constant 0 : i32
    %c0_i32_1 = arith.constant 0 : i32
    return %c0_i32, %c0_i32_0 : i32, i32
  }
  func.func @transform_2(%arg0: i32, %arg1: i32) -> (i32, i32) {
    %c0_i32 = arith.constant 0 : i32
    %c0_i32_0 = arith.constant 0 : i32
    %c0_i32_1 = arith.constant 0 : i32
    return %c0_i32, %c0_i32_0 : i32, i32
  }
  func.func @transform_3(%arg0: i32, %arg1: i32) -> (i32, i32) {
    %c0_i32 = arith.constant 0 : i32
    %c0_i32_0 = arith.constant 0 : i32
    %c0_i32_1 = arith.constant 0 : i32
    return %c0_i32, %c0_i32_0 : i32, i32
  }
  func.func @transform_4(%arg0: i32, %arg1: i32) -> (i32, i32) {
    %c0_i32 = arith.constant 0 : i32
    %c0_i32_0 = arith.constant 0 : i32
    %c0_i32_1 = arith.constant 0 : i32
    return %c0_i32, %c0_i32_0 : i32, i32
  }
  func.func @transform_5(%arg0: i32, %arg1: i32) -> (i32, i32) {
    %c0_i32 = arith.constant 0 : i32
    %c0_i32_0 = arith.constant 0 : i32
    %c0_i32_1 = arith.constant 0 : i32
    return %c0_i32, %c0_i32_0 : i32, i32
  }
  func.func @transform_6(%arg0: i32, %arg1: i32) -> (i32, i32) {
    %c0_i32 = arith.constant 0 : i32
    %c0_i32_0 = arith.constant 0 : i32
    %c0_i32_1 = arith.constant 0 : i32
    return %c0_i32, %c0_i32_0 : i32, i32
  }
  func.func @transform_7(%arg0: i32, %arg1: i32) -> (i32, i32) {
    %c0_i32 = arith.constant 0 : i32
    %c0_i32_0 = arith.constant 0 : i32
    %c0_i32_1 = arith.constant 0 : i32
    return %c0_i32, %c0_i32_0 : i32, i32
  }
  func.func @transform_8(%arg0: i32, %arg1: i32) -> (i32, i32) {
    %c0_i32 = arith.constant 0 : i32
    %c0_i32_0 = arith.constant 0 : i32
    %c0_i32_1 = arith.constant 0 : i32
    return %c0_i32, %c0_i32_0 : i32, i32
  }
  func.func @transform_9(%arg0: i32, %arg1: i32) -> (i32, i32) {
    %c0_i32 = arith.constant 0 : i32
    %c0_i32_0 = arith.constant 0 : i32
    %c0_i32_1 = arith.constant 0 : i32
    return %c0_i32, %c0_i32_0 : i32, i32
  }
  func.func @transform_10(%arg0: i32, %arg1: i32) -> (i32, i32) {
    %c0_i32 = arith.constant 0 : i32
    %c0_i32_0 = arith.constant 0 : i32
    %c0_i32_1 = arith.constant 0 : i32
    return %c0_i32, %c0_i32_0 : i32, i32
  }
  func.func @transform_11(%arg0: i32, %arg1: i32) -> (i32, i32) {
    %c0_i32 = arith.constant 0 : i32
    %c0_i32_0 = arith.constant 0 : i32
    %c0_i32_1 = arith.constant 0 : i32
    return %c0_i32, %c0_i32_0 : i32, i32
  }
  func.func @transform_12(%arg0: i32, %arg1: i32) -> (i32, i32) {
    %c0_i32 = arith.constant 0 : i32
    %c0_i32_0 = arith.constant 0 : i32
    %c0_i32_1 = arith.constant 0 : i32
    return %c0_i32, %c0_i32_0 : i32, i32
  }
  func.func @transform_13(%arg0: i32, %arg1: i32) -> (i32, i32) {
    %c0_i32 = arith.constant 0 : i32
    %c0_i32_0 = arith.constant 0 : i32
    %c0_i32_1 = arith.constant 0 : i32
    return %c0_i32, %c0_i32_0 : i32, i32
  }
  func.func @transform_14(%arg0: i32, %arg1: i32) -> (i32, i32) {
    %c0_i32 = arith.constant 0 : i32
    %c0_i32_0 = arith.constant 0 : i32
    %c0_i32_1 = arith.constant 0 : i32
    return %c0_i32, %c0_i32_0 : i32, i32
  }
  func.func @transform_15(%arg0: i32, %arg1: i32) -> (i32, i32) {
    %c0_i32 = arith.constant 0 : i32
    %c0_i32_0 = arith.constant 0 : i32
    %c0_i32_1 = arith.constant 0 : i32
    return %c0_i32, %c0_i32_0 : i32, i32
  }
  func.func @transform_16(%arg0: i32, %arg1: i32) -> (i32, i32, i32) {
    %c0_i32 = arith.constant 0 : i32
    %c0_i32_0 = arith.constant 0 : i32
    return %arg0, %c0_i32, %arg1 : i32, i32, i32
  }
}

module attributes {stable_mosaic.version = 11 : i64} {
  func.func @_k3_mask_kernel(%arg0: i32, %arg1: i32, %arg2: memref<1x2x64x256xf32, #tpu.memory_space<vmem>>, %arg3: memref<1x128x256xf32, #tpu.memory_space<vmem>>, %arg4: memref<320x128xf32, #tpu.memory_space<vmem>>, %arg5: memref<320x1xf32, #tpu.memory_space<vmem>>, %arg6: memref<192x64xf32, #tpu.memory_space<vmem>>, %arg7: memref<1x64x256xf32, #tpu.memory_space<vmem>>, %arg8: memref<1x64x256xf32, #tpu.memory_space<vmem>>) attributes {dimension_semantics = [#tpu.dimension_semantics<parallel>, #tpu.dimension_semantics<parallel>], iteration_bounds = array<i64: 2, 1>, scalar_prefetch = 0 : i64, scratch_operands = 0 : i64, tpu.core_type = #tpu.core_type<tc>, window_params = [{transform_indices = @transform_0, window_bounds = array<i64: 1, 2, 64, 256>}, {transform_indices = @transform_1, window_bounds = array<i64: 1, 128, 256>}, {pipeline_mode = #tpu.pipeline_mode<synchronous>, transform_indices = @transform_2, window_bounds = array<i64: 320, 128>}, {pipeline_mode = #tpu.pipeline_mode<synchronous>, transform_indices = @transform_3, window_bounds = array<i64: 320, 1>}, {pipeline_mode = #tpu.pipeline_mode<synchronous>, transform_indices = @transform_4, window_bounds = array<i64: 192, 64>}, {transform_indices = @transform_5, window_bounds = array<i64: 1, 64, 256>}, {transform_indices = @transform_6, window_bounds = array<i64: 1, 64, 256>}]} {
    %c0 = arith.constant 0 : index
    %c0_0 = arith.constant 0 : index
    %c0_1 = arith.constant 0 : index
    %c0_2 = arith.constant 0 : index
    %0 = vector.load %arg2[%c0, %c0_0, %c0_1, %c0_2] : memref<1x2x64x256xf32, #tpu.memory_space<vmem>>, vector<1x1x64x256xf32>
    %1 = vector.shape_cast %0 : vector<1x1x64x256xf32> to vector<64x256xf32>
    %c0_3 = arith.constant 0 : index
    %c1 = arith.constant 1 : index
    %c0_4 = arith.constant 0 : index
    %c0_5 = arith.constant 0 : index
    %2 = vector.load %arg2[%c0_3, %c1, %c0_4, %c0_5] : memref<1x2x64x256xf32, #tpu.memory_space<vmem>>, vector<1x1x64x256xf32>
    %3 = vector.shape_cast %2 : vector<1x1x64x256xf32> to vector<64x256xf32>
    %4 = arith.mulf %1, %1 : vector<64x256xf32>
    %5 = arith.mulf %3, %3 : vector<64x256xf32>
    %6 = arith.addf %4, %5 : vector<64x256xf32>
    %cst = arith.constant 1.000000e-30 : f32
    %7 = vector.broadcast %cst : f32 to vector<64x256xf32>
    %8 = arith.maximumf %6, %7 : vector<64x256xf32>
    %9 = math.rsqrt %8 : vector<64x256xf32>
    %cst_6 = arith.constant 0.000000e+00 : f32
    %10 = vector.broadcast %cst_6 : f32 to vector<64x256xf32>
    %11 = arith.cmpf ogt, %6, %10 : vector<64x256xf32>
    %12 = arith.mulf %6, %9 : vector<64x256xf32>
    %13 = arith.mulf %1, %9 : vector<64x256xf32>
    %cst_7 = arith.constant 1.000000e+00 : f32
    %14 = vector.broadcast %cst_7 : f32 to vector<64x256xf32>
    %15 = arith.select %11, %13, %14 : vector<64x256xi1>, vector<64x256xf32>
    %16 = arith.mulf %3, %9 : vector<64x256xf32>
    %cst_8 = arith.constant 0.000000e+00 : f32
    %17 = vector.broadcast %cst_8 : f32 to vector<64x256xf32>
    %18 = arith.select %11, %16, %17 : vector<64x256xi1>, vector<64x256xf32>
    %c0_9 = arith.constant 0 : index
    %c0_10 = arith.constant 0 : index
    %19 = vector.load %arg4[%c0_9, %c0_10] : memref<320x128xf32, #tpu.memory_space<vmem>>, vector<320x128xf32>
    %c0_11 = arith.constant 0 : index
    %c0_12 = arith.constant 0 : index
    %c0_13 = arith.constant 0 : index
    %20 = vector.load %arg3[%c0_11, %c0_12, %c0_13] : memref<1x128x256xf32, #tpu.memory_space<vmem>>, vector<1x128x256xf32>
    %21 = vector.shape_cast %20 : vector<1x128x256xf32> to vector<128x256xf32>
    %cst_14 = arith.constant dense<0.000000e+00> : vector<320x256xf32>
    %22 = tpu.matmul %19, %21, %cst_14 {dimension_numbers = #tpu.dot_dimension_numbers<[1], [0], [0], [1], [0, 0, 1, 1], [], []>} : vector<320x128xf32>, vector<128x256xf32>, vector<320x256xf32> -> vector<320x256xf32>
    %c0_15 = arith.constant 0 : index
    %c0_16 = arith.constant 0 : index
    %23 = vector.load %arg5[%c0_15, %c0_16] : memref<320x1xf32, #tpu.memory_space<vmem>>, vector<320x1xf32>
    %24 = vector.broadcast %23 : vector<320x1xf32> to vector<320x256xf32>
    %25 = arith.addf %22, %24 : vector<320x256xf32>
    %c0_17 = arith.constant 0 : index
    %c0_18 = arith.constant 0 : index
    %26 = vector.load %arg6[%c0_17, %c0_18] : memref<192x64xf32, #tpu.memory_space<vmem>>, vector<192x64xf32>
    %cst_19 = arith.constant dense<0.000000e+00> : vector<192x256xf32>
    %27 = tpu.matmul %26, %12, %cst_19 {dimension_numbers = #tpu.dot_dimension_numbers<[1], [0], [0], [1], [0, 0, 1, 1], [], []>} : vector<192x64xf32>, vector<64x256xf32>, vector<192x256xf32> -> vector<192x256xf32>
    %cst_20 = arith.constant 0.000000e+00 : f32
    %28 = vector.broadcast %cst_20 : f32 to vector<64x256xf32>
    %29 = vector.extract_strided_slice %27 {offsets = [0, 0], sizes = [64, 256], strides = [1, 1]} : vector<192x256xf32> to vector<64x256xf32>
    %30 = vector.extract_strided_slice %25 {offsets = [0, 0], sizes = [64, 256], strides = [1, 1]} : vector<320x256xf32> to vector<64x256xf32>
    %cst_21 = arith.constant 5.000000e-01 : f32
    %31 = vector.broadcast %cst_21 : f32 to vector<64x256xf32>
    %32 = arith.mulf %31, %30 : vector<64x256xf32>
    %33 = math.tanh %32 : vector<64x256xf32>
    %cst_22 = arith.constant 1.000000e+00 : f32
    %34 = vector.broadcast %cst_22 : f32 to vector<64x256xf32>
    %35 = arith.addf %33, %34 : vector<64x256xf32>
    %cst_23 = arith.constant 5.000000e-01 : f32
    %36 = vector.broadcast %cst_23 : f32 to vector<64x256xf32>
    %37 = arith.mulf %36, %35 : vector<64x256xf32>
    %38 = arith.mulf %29, %37 : vector<64x256xf32>
    %39 = arith.addf %28, %38 : vector<64x256xf32>
    %40 = vector.extract_strided_slice %27 {offsets = [64, 0], sizes = [64, 256], strides = [1, 1]} : vector<192x256xf32> to vector<64x256xf32>
    %41 = vector.extract_strided_slice %25 {offsets = [64, 0], sizes = [64, 256], strides = [1, 1]} : vector<320x256xf32> to vector<64x256xf32>
    %cst_24 = arith.constant 5.000000e-01 : f32
    %42 = vector.broadcast %cst_24 : f32 to vector<64x256xf32>
    %43 = arith.mulf %42, %41 : vector<64x256xf32>
    %44 = math.tanh %43 : vector<64x256xf32>
    %cst_25 = arith.constant 1.000000e+00 : f32
    %45 = vector.broadcast %cst_25 : f32 to vector<64x256xf32>
    %46 = arith.addf %44, %45 : vector<64x256xf32>
    %cst_26 = arith.constant 5.000000e-01 : f32
    %47 = vector.broadcast %cst_26 : f32 to vector<64x256xf32>
    %48 = arith.mulf %47, %46 : vector<64x256xf32>
    %49 = arith.mulf %40, %48 : vector<64x256xf32>
    %50 = arith.addf %39, %49 : vector<64x256xf32>
    %51 = vector.extract_strided_slice %27 {offsets = [128, 0], sizes = [64, 256], strides = [1, 1]} : vector<192x256xf32> to vector<64x256xf32>
    %52 = vector.extract_strided_slice %25 {offsets = [128, 0], sizes = [64, 256], strides = [1, 1]} : vector<320x256xf32> to vector<64x256xf32>
    %cst_27 = arith.constant 5.000000e-01 : f32
    %53 = vector.broadcast %cst_27 : f32 to vector<64x256xf32>
    %54 = arith.mulf %53, %52 : vector<64x256xf32>
    %55 = math.tanh %54 : vector<64x256xf32>
    %cst_28 = arith.constant 1.000000e+00 : f32
    %56 = vector.broadcast %cst_28 : f32 to vector<64x256xf32>
    %57 = arith.addf %55, %56 : vector<64x256xf32>
    %cst_29 = arith.constant 5.000000e-01 : f32
    %58 = vector.broadcast %cst_29 : f32 to vector<64x256xf32>
    %59 = arith.mulf %58, %57 : vector<64x256xf32>
    %60 = arith.mulf %51, %59 : vector<64x256xf32>
    %61 = arith.addf %50, %60 : vector<64x256xf32>
    %62 = vector.extract_strided_slice %25 {offsets = [192, 0], sizes = [64, 256], strides = [1, 1]} : vector<320x256xf32> to vector<64x256xf32>
    %63 = vector.extract_strided_slice %25 {offsets = [256, 0], sizes = [64, 256], strides = [1, 1]} : vector<320x256xf32> to vector<64x256xf32>
    %64 = arith.mulf %62, %62 : vector<64x256xf32>
    %65 = arith.mulf %63, %63 : vector<64x256xf32>
    %66 = arith.addf %64, %65 : vector<64x256xf32>
    %cst_30 = arith.constant 1.000000e-10 : f32
    %67 = vector.broadcast %cst_30 : f32 to vector<64x256xf32>
    %68 = arith.maximumf %66, %67 : vector<64x256xf32>
    %69 = math.sqrt %68 : vector<64x256xf32>
    %cst_31 = arith.constant 1.000000e-10 : f32
    %70 = vector.broadcast %cst_31 : f32 to vector<64x256xf32>
    %71 = arith.addf %62, %70 : vector<64x256xf32>
    %cst_32 = arith.constant 1.000000e-10 : f32
    %72 = vector.broadcast %cst_32 : f32 to vector<64x256xf32>
    %73 = arith.addf %63, %72 : vector<64x256xf32>
    %74 = arith.mulf %71, %71 : vector<64x256xf32>
    %75 = arith.mulf %73, %73 : vector<64x256xf32>
    %76 = arith.addf %74, %75 : vector<64x256xf32>
    %cst_33 = arith.constant 1.000000e-30 : f32
    %77 = vector.broadcast %cst_33 : f32 to vector<64x256xf32>
    %78 = arith.maximumf %76, %77 : vector<64x256xf32>
    %79 = math.rsqrt %78 : vector<64x256xf32>
    %cst_34 = arith.constant 0.000000e+00 : f32
    %80 = vector.broadcast %cst_34 : f32 to vector<64x256xf32>
    %81 = arith.cmpf ogt, %76, %80 : vector<64x256xf32>
    %82 = arith.mulf %71, %79 : vector<64x256xf32>
    %cst_35 = arith.constant 1.000000e+00 : f32
    %83 = vector.broadcast %cst_35 : f32 to vector<64x256xf32>
    %84 = arith.select %81, %82, %83 : vector<64x256xi1>, vector<64x256xf32>
    %85 = arith.mulf %73, %79 : vector<64x256xf32>
    %cst_36 = arith.constant 0.000000e+00 : f32
    %86 = vector.broadcast %cst_36 : f32 to vector<64x256xf32>
    %87 = arith.select %81, %85, %86 : vector<64x256xi1>, vector<64x256xf32>
    %88 = math.tanh %69 : vector<64x256xf32>
    %89 = arith.mulf %61, %88 : vector<64x256xf32>
    %90 = arith.mulf %15, %84 : vector<64x256xf32>
    %91 = arith.mulf %18, %87 : vector<64x256xf32>
    %92 = arith.subf %90, %91 : vector<64x256xf32>
    %93 = arith.mulf %89, %92 : vector<64x256xf32>
    %c0_37 = arith.constant 0 : index
    %c0_38 = arith.constant 0 : index
    %c0_39 = arith.constant 0 : index
    %94 = vector.load %arg7[%c0_37, %c0_38, %c0_39] : memref<1x64x256xf32, #tpu.memory_space<vmem>>, vector<1x64x256xf32>
    %95 = vector.shape_cast %94 : vector<1x64x256xf32> to vector<64x256xf32>
    %96 = vector.shape_cast %93 : vector<64x256xf32> to vector<1x64x256xf32>
    tpu.vector_store %arg7[%c0_37, %c0_38, %c0_39], %96 {strides = array<i32>} : memref<1x64x256xf32, #tpu.memory_space<vmem>>, vector<1x64x256xf32>,
    %97 = arith.mulf %18, %84 : vector<64x256xf32>
    %98 = arith.mulf %15, %87 : vector<64x256xf32>
    %99 = arith.addf %97, %98 : vector<64x256xf32>
    %100 = arith.mulf %89, %99 : vector<64x256xf32>
    %c0_40 = arith.constant 0 : index
    %c0_41 = arith.constant 0 : index
    %c0_42 = arith.constant 0 : index
    %101 = vector.load %arg8[%c0_40, %c0_41, %c0_42] : memref<1x64x256xf32, #tpu.memory_space<vmem>>, vector<1x64x256xf32>
    %102 = vector.shape_cast %101 : vector<1x64x256xf32> to vector<64x256xf32>
    %103 = vector.shape_cast %100 : vector<64x256xf32> to vector<1x64x256xf32>
    tpu.vector_store %arg8[%c0_40, %c0_41, %c0_42], %103 {strides = array<i32>} : memref<1x64x256xf32, #tpu.memory_space<vmem>>, vector<1x64x256xf32>,
    return
  }
  func.func @transform_0(%arg0: i32, %arg1: i32) -> (i32, i32, i32, i32) {
    %c0_i32 = arith.constant 0 : i32
    %c0_i32_0 = arith.constant 0 : i32
    %c0_i32_1 = arith.constant 0 : i32
    return %arg0, %c0_i32, %c0_i32_0, %arg1 : i32, i32, i32, i32
  }
  func.func @transform_1(%arg0: i32, %arg1: i32) -> (i32, i32, i32) {
    %c0_i32 = arith.constant 0 : i32
    %c0_i32_0 = arith.constant 0 : i32
    return %arg0, %c0_i32, %arg1 : i32, i32, i32
  }
  func.func @transform_2(%arg0: i32, %arg1: i32) -> (i32, i32) {
    %c0_i32 = arith.constant 0 : i32
    %c0_i32_0 = arith.constant 0 : i32
    %c0_i32_1 = arith.constant 0 : i32
    return %c0_i32, %c0_i32_0 : i32, i32
  }
  func.func @transform_3(%arg0: i32, %arg1: i32) -> (i32, i32) {
    %c0_i32 = arith.constant 0 : i32
    %c0_i32_0 = arith.constant 0 : i32
    %c0_i32_1 = arith.constant 0 : i32
    return %c0_i32, %c0_i32_0 : i32, i32
  }
  func.func @transform_4(%arg0: i32, %arg1: i32) -> (i32, i32) {
    %c0_i32 = arith.constant 0 : i32
    %c0_i32_0 = arith.constant 0 : i32
    %c0_i32_1 = arith.constant 0 : i32
    return %c0_i32, %c0_i32_0 : i32, i32
  }
  func.func @transform_5(%arg0: i32, %arg1: i32) -> (i32, i32, i32) {
    %c0_i32 = arith.constant 0 : i32
    %c0_i32_0 = arith.constant 0 : i32
    return %arg0, %c0_i32, %arg1 : i32, i32, i32
  }
  func.func @transform_6(%arg0: i32, %arg1: i32) -> (i32, i32, i32) {
    %c0_i32 = arith.constant 0 : i32
    %c0_i32_0 = arith.constant 0 : i32
    return %arg0, %c0_i32, %arg1 : i32, i32, i32
  }
}

</mosaic_0001>

<llo_original>
// kernel: mtfaa_forward.3
$region0: #{mtfaa_forward.3}
  #allocation0 [shape = 'u32[]', space=smem, size = 0x4, offset = 0x4, fixed_abs, tag = 'smem constant byte address 0x4 - core index']
  #allocation1 [shape = 'u32[144,128]{1,0:T(1,128)}', space=vmem, size = 0x12000, scoped, tag = 'internal scratch']
  %s0 = inlined_call_operand.hbm [shape: f32[2,2,64,256], index: 0, kind: input, shape index: {}]
  %s1 = inlined_call_operand.vmem [shape: f32[32,64], index: 1, kind: input, shape index: {}]
  %s2 = inlined_call_operand.vmem [shape: f32[32,1], index: 2, kind: input, shape index: {}]
  %s3 = inlined_call_operand.vmem [shape: f32[4], index: 3, kind: input, shape index: {}]
  %s4 = inlined_call_operand.vmem [shape: f32[2], index: 4, kind: input, shape index: {}]
  %s5 = inlined_call_operand.vmem [shape: f32[2,2,32,256], index: 5, kind: output, shape index: {}]
  %s6 = sld [smem:[#allocation0]]
  $region65: #{mtfaa_forward.3} parent=0
    _
  %s8 = ssub.s32 1, %s6
  %s9 = scalar_select 0, %s8, %s6
  $region1: #{mtfaa_forward.3} parent=0
    #allocation2 [shape = 'u8[262144]{0}', space=vmem, size = 0x40000, scoped, tag = 'input window, operand 0']
    #allocation3 [shape = 's32[2]{0}', space=sflag, size = 0x8, scoped, tag = 'scoped memory for mtfaa_forward.3']
    #allocation4 [shape = 's32[2]{0}', space=sflag, size = 0x8, scoped, tag = 'scoped memory for mtfaa_forward.3']
    #allocation5 [shape = 'u8[512]{0}', space=smem, size = 0x200, scoped, tag = 'input window, operand 3, single buffered']
    #allocation6 [shape = 'u8[512]{0}', space=smem, size = 0x200, scoped, tag = 'input window, operand 4, single buffered']
    #allocation7 [shape = 's32[1]{0}', space=sflag, size = 0x4, scoped, tag = 'scoped memory for mtfaa_forward.3']
    %10 = vsyncpa [#allocation3], 0
    %s11 = scalar_lea.sflag [#allocation3], 1
    %12 = vsyncpa %s11, 0
    %13 = vsyncpa [#allocation4], 0
    %14 = vsyncpa [#allocation7], 0
    loop: start=0, step=1, limit=4
    $region2: #{mtfaa_forward.3} parent=1 // loop_pre_header
      _
    $region3: #{mtfaa_forward.3} parent=1 // loop_header
      %s16 = sphi 0, %s20
      %p17 = scmp.ge.s32.totalorder %s16, 4
      %s23 = sphi 0, %s35
      %s24 = sphi 0, %s31
      %s25 = sphi 0, %s23
      %s26 = sphi 0, %s24
      %s27 = sphi 0, %s25
      %s28 = sphi 0, %s26
      %s40 = sphi 0, %s42
      %s43 = sphi 0, %s40
      %s44 = sphi 0, %s43
      %s60 = sphi 0, %s44
      %s64 = sphi 0, %s64
      %s66 = sphi 0, %s64
      %s67 = sphi 0, %s66
      %s81 = sphi 0, %s67
      %s85 = sphi 0, %s85
      %s87 = sphi 0, %s85
      %s88 = sphi 0, %s87
      %s102 = sphi 0, %s88
      %s106 = sphi 0, %s106
      %s108 = sphi 0, %s106
      %s109 = sphi 0, %s108
      %s123 = sphi 0, %s109
      %s127 = sphi 0, %s127
      %s129 = sphi 0, %s127
      %s130 = sphi 0, %s129
      %s144 = sphi 0, %s130
      %s152 = sphi 0, %s154
      %s155 = sphi 0, %s152
      %s156 = sphi 0, %s155
      %s172 = sphi 0, %s156
    $region4: #{mtfaa_forward.3} parent=1 // loop_header_branch
      %19 = sbr.rel (%p17) target = $region8
    $region5: #{mtfaa_forward.3} parent=1 // loop_body
      %s21 = ssub.s32 %s16, 1
      %s22 = ssub.s32 %s16, 2
      %s29 = sadd.s32 1, %s24
      %p30 = scmp.ge.s32.totalorder %s29, 1
      %s31 = scalar_select %p30, 0, %s29
      %s32 = sadd.s32 1, %s23
      %s33 = scalar_select %p30, %s32, %s23
      %p34 = scmp.ge.s32.totalorder %s33, 2
      %s35 = scalar_select %p34, 0, %s33
      %s36 = ssub.s32 %s23, %s35
      %s37 = ssub.s32 %s24, %s31
      %s38 = sor.u32 %s36, %s37
      %p39 = scmp.eq.s32.totalorder %s38, 0
      %s41 = sadd.s32 %s40, 1
      %s42 = scalar_select %p39, %s40, %s41
      %p45 = pneg %p39
      %p46 = scmp.eq.s32.totalorder %s16, 1
      %p47 = por %p45, %p46
      %p48 = scmp.ne.s32.totalorder %s40, %s43
      %p49 = scmp.eq.s32.totalorder %s16, 0
      %p50 = por %p48, %p49
      %p51 = scmp.ne.s32.totalorder %s40, %s43
      %p52 = scmp.eq.s32.totalorder %s21, 1
      %p53 = por %p51, %p52
      %p54 = scmp.ne.s32.totalorder %s43, %s44
      %p55 = scmp.eq.s32.totalorder %s21, 0
      %p56 = por %p54, %p55
      %p57 = scmp.ne.s32.totalorder %s43, %s44
      %p58 = scmp.eq.s32.totalorder %s22, 1
      %p59 = por %p57, %p58
      %p61 = scmp.ne.s32.totalorder %s44, %s60
      %p62 = scmp.eq.s32.totalorder %s22, 0
      %p63 = por %p61, %p62
      %s65 = sadd.s32 %s64, 1
      %p68 = scmp.eq.s32.totalorder %s16, 1
      %p69 = scmp.ne.s32.totalorder %s64, %s66
      %p70 = scmp.eq.s32.totalorder %s16, 0
      %p71 = por %p69, %p70
      %p72 = scmp.ne.s32.totalorder %s64, %s66
      %p73 = scmp.eq.s32.totalorder %s21, 1
      %p74 = por %p72, %p73
      %p75 = scmp.ne.s32.totalorder %s66, %s67
      %p76 = scmp.eq.s32.totalorder %s21, 0
      %p77 = por %p75, %p76
      %p78 = scmp.ne.s32.totalorder %s66, %s67
      %p79 = scmp.eq.s32.totalorder %s22, 1
      %p80 = por %p78, %p79
      %p82 = scmp.ne.s32.totalorder %s67, %s81
      %p83 = scmp.eq.s32.totalorder %s22, 0
      %p84 = por %p82, %p83
      %s86 = sadd.s32 %s85, 1
      %p89 = scmp.eq.s32.totalorder %s16, 1
      %p90 = scmp.ne.s32.totalorder %s85, %s87
      %p91 = scmp.eq.s32.totalorder %s16, 0
      %p92 = por %p90, %p91
      %p93 = scmp.ne.s32.totalorder %s85, %s87
      %p94 = scmp.eq.s32.totalorder %s21, 1
      %p95 = por %p93, %p94
      %p96 = scmp.ne.s32.totalorder %s87, %s88
      %p97 = scmp.eq.s32.totalorder %s21, 0
      %p98 = por %p96, %p97
      %p99 = scmp.ne.s32.totalorder %s87, %s88
      %p100 = scmp.eq.s32.totalorder %s22, 1
      %p101 = por %p99, %p100
      %p103 = scmp.ne.s32.totalorder %s88, %s102
      %p104 = scmp.eq.s32.totalorder %s22, 0
      %p105 = por %p103, %p104
      %s107 = sadd.s32 %s106, 1
      %p110 = scmp.eq.s32.totalorder %s16, 1
      %p111 = scmp.ne.s32.totalorder %s106, %s108
      %p112 = scmp.eq.s32.totalorder %s16, 0
      %p113 = por %p111, %p112
      %p114 = scmp.ne.s32.totalorder %s106, %s108
      %p115 = scmp.eq.s32.totalorder %s21, 1
      %p116 = por %p114, %p115
      %p117 = scmp.ne.s32.totalorder %s108, %s109
      %p118 = scmp.eq.s32.totalorder %s21, 0
      %p119 = por %p117, %p118
      %p120 = scmp.ne.s32.totalorder %s108, %s109
      %p121 = scmp.eq.s32.totalorder %s22, 1
      %p122 = por %p120, %p121
      %p124 = scmp.ne.s32.totalorder %s109, %s123
      %p125 = scmp.eq.s32.totalorder %s22, 0
      %p126 = por %p124, %p125
      %s128 = sadd.s32 %s127, 1
      %p131 = scmp.eq.s32.totalorder %s16, 1
      %p132 = scmp.ne.s32.totalorder %s127, %s129
      %p133 = scmp.eq.s32.totalorder %s16, 0
      %p134 = por %p132, %p133
      %p135 = scmp.ne.s32.totalorder %s127, %s129
      %p136 = scmp.eq.s32.totalorder %s21, 1
      %p137 = por %p135, %p136
      %p138 = scmp.ne.s32.totalorder %s129, %s130
      %p139 = scmp.eq.s32.totalorder %s21, 0
      %p140 = por %p138, %p139
      %p141 = scmp.ne.s32.totalorder %s129, %s130
      %p142 = scmp.eq.s32.totalorder %s22, 1
      %p143 = por %p141, %p142
      %p145 = scmp.ne.s32.totalorder %s130, %s144
      %p146 = scmp.eq.s32.totalorder %s22, 0
      %p147 = por %p145, %p146
      %s148 = ssub.s32 %s23, %s35
      %s149 = ssub.s32 %s24, %s31
      %s150 = sor.u32 %s148, %s149
      %p151 = scmp.eq.s32.totalorder %s150, 0
      %s153 = sadd.s32 %s152, 1
      %s154 = scalar_select %p151, %s152, %s153
      %p157 = pneg %p151
      %p158 = scmp.eq.s32.totalorder %s16, 1
      %p159 = por %p157, %p158
      %p160 = scmp.ne.s32.totalorder %s152, %s155
      %p161 = scmp.eq.s32.totalorder %s16, 0
      %p162 = por %p160, %p161
      %p163 = scmp.ne.s32.totalorder %s152, %s155
      %p164 = scmp.eq.s32.totalorder %s21, 1
      %p165 = por %p163, %p164
      %p166 = scmp.ne.s32.totalorder %s155, %s156
      %p167 = scmp.eq.s32.totalorder %s21, 0
      %p168 = por %p166, %p167
      %p169 = scmp.ne.s32.totalorder %s155, %s156
      %p170 = scmp.eq.s32.totalorder %s22, 1
      %p171 = por %p169, %p170
      %p173 = scmp.ne.s32.totalorder %s156, %s172
      %p174 = scmp.eq.s32.totalorder %s22, 0
      %p175 = por %p173, %p174
      %p176 = scmp.le.s32.totalorder 1, %s16
      %p177 = scmp.lt.s32.totalorder %s16, 3
      %p178 = pnand %p176, %p177
      %p179 = pneg %p178
      // Predicated region
      $region9: #{mtfaa_forward.3} parent=5 // pred_check
        _
      $region10: #{mtfaa_forward.3} parent=5 // pred_check_branch
        %181 = sbr.rel (%p178) target = $region12
      $region11: #{mtfaa_forward.3} parent=5 // pred_region
        %s182 = ssub.s32 %s16, 1
        // Predicated region
        $region13: #{mtfaa_forward.3} parent=11 // pred_check
          %p183 = pneg %p77
        $region14: #{mtfaa_forward.3} parent=11 // pred_check_branch
          %185 = sbr.rel (%p183) target = $region16
        $region15: #{mtfaa_forward.3} parent=11 // pred_region
          _
        $region16: #{mtfaa_forward.3} parent=11 // pred_fallthru
          _
        // Predicated region
        $region17: #{mtfaa_forward.3} parent=11 // pred_check
          %p186 = pneg %p98
        $region18: #{mtfaa_forward.3} parent=11 // pred_check_branch
          %188 = sbr.rel (%p186) target = $region20
        $region19: #{mtfaa_forward.3} parent=11 // pred_region
          _
        $region20: #{mtfaa_forward.3} parent=11 // pred_fallthru
          _
        // Predicated region
        $region21: #{mtfaa_forward.3} parent=11 // pred_check
          %p189 = pneg %p119
        $region22: #{mtfaa_forward.3} parent=11 // pred_check_branch
          %191 = sbr.rel (%p189) target = $region24
        $region23: #{mtfaa_forward.3} parent=11 // pred_region
          %s193 = ssub.s32 16, 16
          %194 = vsyncadd [#allocation4], %s193
          %s196 = sshll.u32 %s3, 4
          %s197 = int_to_ptr.vmem [resolvable:$true] %s196
          %199 = dma.vmem_to_smem %s197, 16, [#allocation5], [#allocation4]
        $region24: #{mtfaa_forward.3} parent=11 // pred_fallthru
          _
        // Predicated region
        $region25: #{mtfaa_forward.3} parent=11 // pred_check
          %p200 = pneg %p140
        $region26: #{mtfaa_forward.3} parent=11 // pred_check_branch
          %202 = sbr.rel (%p200) target = $region28
        $region27: #{mtfaa_forward.3} parent=11 // pred_region
          %s204 = ssub.s32 16, 16
          %205 = vsyncadd [#allocation7], %s204
          %s207 = sshll.u32 %s4, 4
          %s208 = int_to_ptr.vmem [resolvable:$true] %s207
          %210 = dma.vmem_to_smem %s208, 16, [#allocation6], [#allocation7]
        $region28: #{mtfaa_forward.3} parent=11 // pred_fallthru
          _
      $region12: #{mtfaa_forward.3} parent=5 // pred_fallthru
        _
      %p211 = scmp.lt.s32.totalorder %s16, 2
      // Predicated region
      $region29: #{mtfaa_forward.3} parent=5 // pred_check
        %p212 = pneg %p211
      $region30: #{mtfaa_forward.3} parent=5 // pred_check_branch
        %214 = sbr.rel (%p212) target = $region32
      $region31: #{mtfaa_forward.3} parent=5 // pred_region
        // Predicated region
        $region33: #{mtfaa_forward.3} parent=31 // pred_check
          %p215 = pneg %p50
        $region34: #{mtfaa_forward.3} parent=31 // pred_check_branch
          %217 = sbr.rel (%p215) target = $region36
        $region35: #{mtfaa_forward.3} parent=31 // pred_region
          %s218 = sand.u32 %s40, 1
          %s219 = scalar_lea.sflag [#allocation3], %s218
          %s220 = sand.u32 %s40, 1
          %s221 = smul.addr %s220, 256
          %s222 = scalar_lea.vmem [#allocation2], %s221
          %s223 = smul.u32 2, %s24
          %s225 = ssub.s32 4096, 4096
          %226 = vsyncadd %s219, %s225
          %s227 = smul.addr %s23, 32
          %s228 = sadd.s32 %s223, %s227
          %s229 = smul.addr %s228, 128
          %s230 = scalar_lea.hbm %s0, %s229
          %s231 = sshll.u32 %s222, 4
          %s232 = int_to_ptr.vmem [resolvable:$true] %s231
          %237 = dma.hbm_to_vmem [thread:$0]  %s230, 4096, %s232, %s219, 256, 256, 16
        $region36: #{mtfaa_forward.3} parent=31 // pred_fallthru
          _
      $region32: #{mtfaa_forward.3} parent=5 // pred_fallthru
        _
      %p238 = scmp.le.s32.totalorder 1, %s16
      %p239 = scmp.lt.s32.totalorder %s16, 3
      %p240 = pnand %p238, %p239
      %p241 = pneg %p240
      // Predicated region
      $region37: #{mtfaa_forward.3} parent=5 // pred_check
        _
      $region38: #{mtfaa_forward.3} parent=5 // pred_check_branch
        %243 = sbr.rel (%p240) target = $region40
      $region39: #{mtfaa_forward.3} parent=5 // pred_region
        %s244 = ssub.s32 %s16, 1
        %s245 = sand.u32 %s43, 1
        %s246 = scalar_lea.sflag [#allocation3], %s245
        %s247 = sand.u32 %s43, 1
        %s248 = smul.addr %s247, 256
        %s249 = scalar_lea.vmem [#allocation2], %s248
        // Predicated region
        $region41: #{mtfaa_forward.3} parent=39 // pred_check
          %p250 = pneg %p56
        $region42: #{mtfaa_forward.3} parent=39 // pred_check_branch
          %252 = sbr.rel (%p250) target = $region44
        $region43: #{mtfaa_forward.3} parent=39 // pred_region
          %253 = dma.done %s246, 4096
        $region44: #{mtfaa_forward.3} parent=39 // pred_fallthru
          _
        // Predicated region
        $region45: #{mtfaa_forward.3} parent=39 // pred_check
          %p254 = pneg %p119
        $region46: #{mtfaa_forward.3} parent=39 // pred_check_branch
          %256 = sbr.rel (%p254) target = $region48
        $region47: #{mtfaa_forward.3} parent=39 // pred_region
          %257 = dma.done [#allocation4], 16
        $region48: #{mtfaa_forward.3} parent=39 // pred_fallthru
          _
        // Predicated region
        $region49: #{mtfaa_forward.3} parent=39 // pred_check
          %p258 = pneg %p140
        $region50: #{mtfaa_forward.3} parent=39 // pred_check_branch
          %260 = sbr.rel (%p258) target = $region52
        $region51: #{mtfaa_forward.3} parent=39 // pred_region
          %261 = dma.done [#allocation7], 16
        $region52: #{mtfaa_forward.3} parent=39 // pred_fallthru
          _
        %262 = sfence
        %s263 = sand.u32 %s43, 1
        %s264 = scalar_lea.sflag [#allocation3], %s263
        %s265 = sand.u32 %s43, 1
        %s266 = smul.addr %s265, 256
        %s267 = scalar_lea.vmem [#allocation2], %s266
        %p268 = pneg %p56
        %p269 = pneg %p53
        %p270 = pneg %p77
        %p271 = pneg %p74
        %p272 = pneg %p98
        %p273 = pneg %p95
        %p274 = pneg %p119
        %p275 = pneg %p116
        %p276 = pneg %p140
        %p277 = pneg %p137
        %p278 = pneg %p168
        %p279 = pneg %p165
        %s280 = smul.u32 2, %s26
        %p281 = scmp.lt.s32.totalorder %s25, 1
        %s282 = scalar_select %p281, %s25, 1
        %p283 = scmp.lt.s32.totalorder %s280, 1
        %s284 = scalar_select %p283, %s280, 1
        %s285 = smul.addr %s282, 16
        %s286 = sadd.s32 %s284, %s285
        %s287 = smul.addr %s286, 8
        %s288 = scalar_lea.vmem %s5, %s287
        %s289 = smul.u32 2, %s26
        %s290 = smul.u32 2, %s26
        %p291 = scmp.lt.s32.totalorder %s25, 1
        %s292 = scalar_select %p291, %s25, 1
        %p293 = scmp.lt.s32.totalorder %s290, 1
        %s294 = scalar_select %p293, %s290, 1
        %s295 = smul.addr %s292, 16
        %s296 = sadd.s32 %s294, %s295
        %s297 = smul.addr %s296, 8
        %s298 = scalar_lea.vmem %s5, %s297
        %s299 = smul.u32 2, %s26
        %v300 = vld [vmem:[%s249] sm:$0xff]
        %v301 = vld [vmem:[%s249 + $0x8] sm:$0xff]
        %v302 = vld [vmem:[%s249 + $0x10] sm:$0xff]
        %v303 = vld [vmem:[%s249 + $0x18] sm:$0xff]
        %v304 = vld [vmem:[%s249 + $0x20] sm:$0xff]
        %v305 = vld [vmem:[%s249 + $0x28] sm:$0xff]
        %v306 = vld [vmem:[%s249 + $0x30] sm:$0xff]
        %v307 = vld [vmem:[%s249 + $0x38] sm:$0xff]
        %v308 = vld [vmem:[%s249 + $0x40] sm:$0xff]
        %v309 = vld [vmem:[%s249 + $0x48] sm:$0xff]
        %v310 = vld [vmem:[%s249 + $0x50] sm:$0xff]
        %v311 = vld [vmem:[%s249 + $0x58] sm:$0xff]
        %v312 = vld [vmem:[%s249 + $0x60] sm:$0xff]
        %v313 = vld [vmem:[%s249 + $0x68] sm:$0xff]
        %v314 = vld [vmem:[%s249 + $0x70] sm:$0xff]
        %v315 = vld [vmem:[%s249 + $0x78] sm:$0xff]
        %s316 = scalar_lea.vmem %s249, 128 [#allocation2]
        %v317 = vld [vmem:[%s316] sm:$0xff]
        %v318 = vld [vmem:[%s316 + $0x8] sm:$0xff]
        %v319 = vld [vmem:[%s316 + $0x10] sm:$0xff]
        %v320 = vld [vmem:[%s316 + $0x18] sm:$0xff]
        %v321 = vld [vmem:[%s316 + $0x20] sm:$0xff]
        %v322 = vld [vmem:[%s316 + $0x28] sm:$0xff]
        %v323 = vld [vmem:[%s316 + $0x30] sm:$0xff]
        %v324 = vld [vmem:[%s316 + $0x38] sm:$0xff]
        %v325 = vld [vmem:[%s316 + $0x40] sm:$0xff]
        %v326 = vld [vmem:[%s316 + $0x48] sm:$0xff]
        %v327 = vld [vmem:[%s316 + $0x50] sm:$0xff]
        %v328 = vld [vmem:[%s316 + $0x58] sm:$0xff]
        %v329 = vld [vmem:[%s316 + $0x60] sm:$0xff]
        %v330 = vld [vmem:[%s316 + $0x68] sm:$0xff]
        %v331 = vld [vmem:[%s316 + $0x70] sm:$0xff]
        %v332 = vld [vmem:[%s316 + $0x78] sm:$0xff]
        %v333 = vld [vmem:[%s1] sm:$0xff]
        %v334 = vld [vmem:[%s1 + $0x8] sm:$0xff]
        %v335 = vld [vmem:[%s1 + $0x10] sm:$0xff]
        %v336 = vld [vmem:[%s1 + $0x18] sm:$0xff]
        %vm337 = vcmask 523264
        %v339 = vsel %vm337, %v333, 0
        %v342 = vsel %vm337, %v334, 0
        %v345 = vsel %vm337, %v335, 0
        %v348 = vsel %vm337, %v336, 0
        %350 = vmatprep.subr.mxu0 %v301
        %351 = vmatpush1.msra.mxu0 %v300
        %352 = vmatprep.subr.mxu0 %v303
        %353 = vmatpush1.msra.mxu0 %v302
        %354 = vmatprep.subr.mxu0 %v305
        %355 = vmatpush1.msra.mxu0 %v304
        %356 = vmatprep.subr.mxu0 %v307
        %357 = vmatpush1.msra.mxu0 %v306
        %358 = vmatprep.subr.mxu0 %v309
        %359 = vmatpush1.msra.mxu0 %v308
        %360 = vmatprep.subr.mxu0 %v311
        %361 = vmatpush1.msra.mxu0 %v310
        %362 = vmatprep.subr.mxu0 %v313
        %363 = vmatpush1.msra.mxu0 %v312
        %364 = vmatprep.subr.mxu0 %v315
        %365 = vmatpush1.msra.mxu0 %v314
        %366 = vmatprep.subr.mxu0 0.0
        %367 = vmatpush1.msra.mxu0 0.0
        %368 = vmatprep.subr.mxu0 0.0
        %369 = vmatpush1.msra.mxu0 0.0
        %370 = vmatprep.subr.mxu0 0.0
        %371 = vmatpush1.msra.mxu0 0.0
        %372 = vmatprep.subr.mxu0 0.0
        %373 = vmatpush1.msra.mxu0 0.0
        %374 = vmatprep.subr.mxu0 0.0
        %375 = vmatpush1.msra.mxu0 0.0
        %376 = vmatprep.subr.mxu0 0.0
        %377 = vmatpush1.msra.mxu0 0.0
        %378 = vmatprep.subr.mxu0 0.0
        %379 = vmatpush1.msra.mxu0 0.0
        %380 = vmatprep.subr.mxu0 0.0
        %381 = vmatpush1.msra.mxu0 0.0
        %382 = vmatprep.subr.mxu0 0.0
        %383 = vmatpush1.msra.mxu0 0.0
        %384 = vmatprep.subr.mxu0 0.0
        %385 = vmatpush1.msra.mxu0 0.0
        %386 = vmatprep.subr.mxu0 0.0
        %387 = vmatpush1.msra.mxu0 0.0
        %388 = vmatprep.subr.mxu0 0.0
        %389 = vmatpush1.msra.mxu0 0.0
        %390 = vmatprep.subr.mxu0 0.0
        %391 = vmatpush1.msra.mxu0 0.0
        %392 = vmatprep.subr.mxu0 0.0
        %393 = vmatpush1.msra.mxu0 0.0
        %394 = vmatprep.subr.mxu0 0.0
        %395 = vmatpush1.msra.mxu0 0.0
        %396 = vmatprep.subr.mxu0 0.0
        %397 = vmatpush1.msra.mxu0 0.0
        %398 = vmatprep.subr.mxu0 0.0
        %399 = vmatpush1.msra.mxu0 0.0
        %400 = vmatprep.subr.mxu0 0.0
        %401 = vmatpush1.msra.mxu0 0.0
        %402 = vmatprep.subr.mxu0 0.0
        %403 = vmatpush1.msra.mxu0 0.0
        %404 = vmatprep.subr.mxu0 0.0
        %405 = vmatpush1.msra.mxu0 0.0
        %406 = vmatprep.subr.mxu0 0.0
        %407 = vmatpush1.msra.mxu0 0.0
        %408 = vmatprep.subr.mxu0 0.0
        %409 = vmatpush1.msra.mxu0 0.0
        %410 = vmatprep.subr.mxu0 0.0
        %411 = vmatpush1.msra.mxu0 0.0
        %412 = vmatprep.subr.mxu0 0.0
        %413 = vmatpush1.msra.mxu0 0.0
        %414 = vmatprep.mubr.f32.mxu0 0.0
        %415 = vmatmul.mubr.f32.gmra.mrb[0].mxu0 %v339
        %v416 = vpop.f32.mrb[0].mxu0
        %v417 = vadd.f32 0.0, %v416
        %v418 = vpop.f32.mrb[0].mxu0
        %v419 = vadd.f32 0.0, %v418
        %420 = vmatprep.mubr.f32.mxu0 0.0
        %421 = vmatmul.mubr.f32.gmra.mrb[0].mxu0 %v342
        %v422 = vpop.f32.mrb[0].mxu0
        %v423 = vadd.f32 0.0, %v422
        %v424 = vpop.f32.mrb[0].mxu0
        %v425 = vadd.f32 0.0, %v424
        %426 = vmatprep.mubr.f32.mxu0 0.0
        %427 = vmatmul.mubr.f32.gmra.mrb[0].mxu0 %v345
        %v428 = vpop.f32.mrb[0].mxu0
        %v429 = vadd.f32 0.0, %v428
        %v430 = vpop.f32.mrb[0].mxu0
        %v431 = vadd.f32 0.0, %v430
        %432 = vmatprep.mubr.f32.mxu0 0.0
        %433 = vmatmul.mubr.f32.gmra.mrb[0].mxu0 %v348
        %v434 = vpop.f32.mrb[0].mxu0
        %v435 = vadd.f32 0.0, %v434
        %v436 = vpop.f32.mrb[0].mxu0
        %v437 = vadd.f32 0.0, %v436
        %438 = vdwg.mxu0
        %439 = vmatprep.subr.mxu0 %v318
        %440 = vmatpush1.msra.mxu0 %v317
        %441 = vmatprep.subr.mxu0 %v320
        %442 = vmatpush1.msra.mxu0 %v319
        %443 = vmatprep.subr.mxu0 %v322
        %444 = vmatpush1.msra.mxu0 %v321
        %445 = vmatprep.subr.mxu0 %v324
        %446 = vmatpush1.msra.mxu0 %v323
        %447 = vmatprep.subr.mxu0 %v326
        %448 = vmatpush1.msra.mxu0 %v325
        %449 = vmatprep.subr.mxu0 %v328
        %450 = vmatpush1.msra.mxu0 %v327
        %451 = vmatprep.subr.mxu0 %v330
        %452 = vmatpush1.msra.mxu0 %v329
        %453 = vmatprep.subr.mxu0 %v332
        %454 = vmatpush1.msra.mxu0 %v331
        %455 = vmatprep.subr.mxu0 0.0
        %456 = vmatpush1.msra.mxu0 0.0
        %457 = vmatprep.subr.mxu0 0.0
        %458 = vmatpush1.msra.mxu0 0.0
        %459 = vmatprep.subr.mxu0 0.0
        %460 = vmatpush1.msra.mxu0 0.0
        %461 = vmatprep.subr.mxu0 0.0
        %462 = vmatpush1.msra.mxu0 0.0
        %463 = vmatprep.subr.mxu0 0.0
        %464 = vmatpush1.msra.mxu0 0.0
        %465 = vmatprep.subr.mxu0 0.0
        %466 = vmatpush1.msra.mxu0 0.0
        %467 = vmatprep.subr.mxu0 0.0
        %468 = vmatpush1.msra.mxu0 0.0
        %469 = vmatprep.subr.mxu0 0.0
        %470 = vmatpush1.msra.mxu0 0.0
        %471 = vmatprep.subr.mxu0 0.0
        %472 = vmatpush1.msra.mxu0 0.0
        %473 = vmatprep.subr.mxu0 0.0
        %474 = vmatpush1.msra.mxu0 0.0
        %475 = vmatprep.subr.mxu0 0.0
        %476 = vmatpush1.msra.mxu0 0.0
        %477 = vmatprep.subr.mxu0 0.0
        %478 = vmatpush1.msra.mxu0 0.0
        %479 = vmatprep.subr.mxu0 0.0
        %480 = vmatpush1.msra.mxu0 0.0
        %481 = vmatprep.subr.mxu0 0.0
        %482 = vmatpush1.msra.mxu0 0.0
        %483 = vmatprep.subr.mxu0 0.0
        %484 = vmatpush1.msra.mxu0 0.0
        %485 = vmatprep.subr.mxu0 0.0
        %486 = vmatpush1.msra.mxu0 0.0
        %487 = vmatprep.subr.mxu0 0.0
        %488 = vmatpush1.msra.mxu0 0.0
        %489 = vmatprep.subr.mxu0 0.0
        %490 = vmatpush1.msra.mxu0 0.0
        %491 = vmatprep.subr.mxu0 0.0
        %492 = vmatpush1.msra.mxu0 0.0
        %493 = vmatprep.subr.mxu0 0.0
        %494 = vmatpush1.msra.mxu0 0.0
        %495 = vmatprep.subr.mxu0 0.0
        %496 = vmatpush1.msra.mxu0 0.0
        %497 = vmatprep.subr.mxu0 0.0
        %498 = vmatpush1.msra.mxu0 0.0
        %499 = vmatprep.subr.mxu0 0.0
        %500 = vmatpush1.msra.mxu0 0.0
        %501 = vmatprep.subr.mxu0 0.0
        %502 = vmatpush1.msra.mxu0 0.0
        %503 = vmatprep.mubr.f32.mxu0 0.0
        %504 = vmatmul.mubr.f32.gmra.mrb[0].mxu0 %v339
        %v505 = vpop.f32.mrb[0].mxu0
        %v506 = vadd.f32 0.0, %v505
        %v507 = vpop.f32.mrb[0].mxu0
        %v508 = vadd.f32 0.0, %v507
        %509 = vmatprep.mubr.f32.mxu0 0.0
        %510 = vmatmul.mubr.f32.gmra.mrb[0].mxu0 %v342
        %v511 = vpop.f32.mrb[0].mxu0
        %v512 = vadd.f32 0.0, %v511
        %v513 = vpop.f32.mrb[0].mxu0
        %v514 = vadd.f32 0.0, %v513
        %515 = vmatprep.mubr.f32.mxu0 0.0
        %516 = vmatmul.mubr.f32.gmra.mrb[0].mxu0 %v345
        %v517 = vpop.f32.mrb[0].mxu0
        %v518 = vadd.f32 0.0, %v517
        %v519 = vpop.f32.mrb[0].mxu0
        %v520 = vadd.f32 0.0, %v519
        %521 = vmatprep.mubr.f32.mxu0 0.0
        %522 = vmatmul.mubr.f32.gmra.mrb[0].mxu0 %v348
        %v523 = vpop.f32.mrb[0].mxu0
        %v524 = vadd.f32 0.0, %v523
        %v525 = vpop.f32.mrb[0].mxu0
        %v526 = vadd.f32 0.0, %v525
        %527 = vdwg.mxu0
        %v528 = vld [vmem:[%s2] sm:$0xff]
        %v529 = vld [vmem:[%s2 + $0x8] sm:$0xff]
        %v530 = vld [vmem:[%s2 + $0x10] sm:$0xff]
        %v531 = vld [vmem:[%s2 + $0x18] sm:$0xff]
        %s532 = sld [smem:[#allocation5]]
        %v533 = vstv %s532
        %v534 = vmul.f32 %v533, %v417
        %v535 = vmul.f32 %v533, %v419
        %v536 = vmul.f32 %v533, %v423
        %v537 = vmul.f32 %v533, %v425
        %v538 = vmul.f32 %v533, %v429
        %v539 = vmul.f32 %v533, %v431
        %v540 = vmul.f32 %v533, %v435
        %v541 = vmul.f32 %v533, %v437
        %s542 = sld [smem:[#allocation5 + $0x1]]
        %v543 = vstv %s542
        %v544 = vmul.f32 %v543, %v506
        %v545 = vmul.f32 %v543, %v508
        %v546 = vmul.f32 %v543, %v512
        %v547 = vmul.f32 %v543, %v514
        %v548 = vmul.f32 %v543, %v518
        %v549 = vmul.f32 %v543, %v520
        %v550 = vmul.f32 %v543, %v524
        %v551 = vmul.f32 %v543, %v526
        %v552 = vadd.f32 %v534, %v544
        %v553 = vadd.f32 %v535, %v545
        %v554 = vadd.f32 %v536, %v546
        %v555 = vadd.f32 %v537, %v547
        %v556 = vadd.f32 %v538, %v548
        %v557 = vadd.f32 %v539, %v549
        %v558 = vadd.f32 %v540, %v550
        %v559 = vadd.f32 %v541, %v551
        %s560 = sld [smem:[#allocation6]]
        %v561 = vstv %s560
        %v562 = vmul.f32 %v561, %v528
        %v563 = vmul.f32 %v561, %v529
        %v564 = vmul.f32 %v561, %v530
        %v565 = vmul.f32 %v561, %v531
        %567 = vset.pattern.permute.xlu0 0
        %568 = vperm.xlu0 %567, %v562
        %v569 = vpop.permute.xlu0 %568
        %572 = vset.pattern.permute.xlu0 0
        %573 = vperm.xlu0 %572, %v563
        %v574 = vpop.permute.xlu0 %573
        %577 = vset.pattern.permute.xlu0 0
        %578 = vperm.xlu0 %577, %v564
        %v579 = vpop.permute.xlu0 %578
        %582 = vset.pattern.permute.xlu0 0
        %583 = vperm.xlu0 %582, %v565
        %v584 = vpop.permute.xlu0 %583
        %v586 = vadd.f32 %v552, %v569
        %v587 = vadd.f32 %v553, %v569
        %v588 = vadd.f32 %v554, %v574
        %v589 = vadd.f32 %v555, %v574
        %v590 = vadd.f32 %v556, %v579
        %v591 = vadd.f32 %v557, %v579
        %v592 = vadd.f32 %v558, %v584
        %v593 = vadd.f32 %v559, %v584
        %594 = vst [vmem:[%s298] sm:$0xff] %v586
        %595 = vst [vmem:[%s298 + $0x8] sm:$0xff] %v587
        %596 = vst [vmem:[%s298 + $0x10] sm:$0xff] %v588
        %597 = vst [vmem:[%s298 + $0x18] sm:$0xff] %v589
        %598 = vst [vmem:[%s298 + $0x20] sm:$0xff] %v590
        %599 = vst [vmem:[%s298 + $0x28] sm:$0xff] %v591
        %600 = vst [vmem:[%s298 + $0x30] sm:$0xff] %v592
        %601 = vst [vmem:[%s298 + $0x38] sm:$0xff] %v593
        %s602 = sld [smem:[#allocation5 + $0x2]]
        %v603 = vstv %s602
        %v604 = vmul.f32 %v603, %v417
        %v605 = vmul.f32 %v603, %v419
        %v606 = vmul.f32 %v603, %v423
        %v607 = vmul.f32 %v603, %v425
        %v608 = vmul.f32 %v603, %v429
        %v609 = vmul.f32 %v603, %v431
        %v610 = vmul.f32 %v603, %v435
        %v611 = vmul.f32 %v603, %v437
        %s612 = sld [smem:[#allocation5 + $0x3]]
        %v613 = vstv %s612
        %v614 = vmul.f32 %v613, %v506
        %v615 = vmul.f32 %v613, %v508
        %v616 = vmul.f32 %v613, %v512
        %v617 = vmul.f32 %v613, %v514
        %v618 = vmul.f32 %v613, %v518
        %v619 = vmul.f32 %v613, %v520
        %v620 = vmul.f32 %v613, %v524
        %v621 = vmul.f32 %v613, %v526
        %v622 = vadd.f32 %v604, %v614
        %v623 = vadd.f32 %v605, %v615
        %v624 = vadd.f32 %v606, %v616
        %v625 = vadd.f32 %v607, %v617
        %v626 = vadd.f32 %v608, %v618
        %v627 = vadd.f32 %v609, %v619
        %v628 = vadd.f32 %v610, %v620
        %v629 = vadd.f32 %v611, %v621
        %s630 = sld [smem:[#allocation6 + $0x1]]
        %v631 = vstv %s630
        %v632 = vmul.f32 %v631, %v528
        %v633 = vmul.f32 %v631, %v529
        %v634 = vmul.f32 %v631, %v530
        %v635 = vmul.f32 %v631, %v531
        %637 = vset.pattern.permute.xlu0 0
        %638 = vperm.xlu0 %637, %v632
        %v639 = vpop.permute.xlu0 %638
        %642 = vset.pattern.permute.xlu0 0
        %643 = vperm.xlu0 %642, %v633
        %v644 = vpop.permute.xlu0 %643
        %647 = vset.pattern.permute.xlu0 0
        %648 = vperm.xlu0 %647, %v634
        %v649 = vpop.permute.xlu0 %648
        %652 = vset.pattern.permute.xlu0 0
        %653 = vperm.xlu0 %652, %v635
        %v654 = vpop.permute.xlu0 %653
        %v656 = vadd.f32 %v622, %v639
        %v657 = vadd.f32 %v623, %v639
        %v658 = vadd.f32 %v624, %v644
        %v659 = vadd.f32 %v625, %v644
        %v660 = vadd.f32 %v626, %v649
        %v661 = vadd.f32 %v627, %v649
        %v662 = vadd.f32 %v628, %v654
        %v663 = vadd.f32 %v629, %v654
        %s664 = scalar_lea.vmem %s298, 64
        %665 = vst [vmem:[%s664] sm:$0xff] %v656
        %666 = vst [vmem:[%s664 + $0x8] sm:$0xff] %v657
        %667 = vst [vmem:[%s664 + $0x10] sm:$0xff] %v658
        %668 = vst [vmem:[%s664 + $0x18] sm:$0xff] %v659
        %669 = vst [vmem:[%s664 + $0x20] sm:$0xff] %v660
        %670 = vst [vmem:[%s664 + $0x28] sm:$0xff] %v661
        %671 = vst [vmem:[%s664 + $0x30] sm:$0xff] %v662
        %672 = vst [vmem:[%s664 + $0x38] sm:$0xff] %v663
        %s673 = smul.u32 2, %s26
        %p674 = scmp.lt.s32.totalorder %s25, 1
        %s675 = scalar_select %p674, %s25, 1
        %p676 = scmp.lt.s32.totalorder %s673, 1
        %s677 = scalar_select %p676, %s673, 1
        %s678 = smul.addr %s675, 16
        %s679 = sadd.s32 %s677, %s678
        %s680 = smul.addr %s679, 8
        %s681 = scalar_lea.vmem %s5, %s680
        // Predicated region
        $region53: #{mtfaa_forward.3} parent=39 // pred_check
          %p682 = pneg %p165
        $region54: #{mtfaa_forward.3} parent=39 // pred_check_branch
          %684 = sbr.rel (%p682) target = $region56
        $region55: #{mtfaa_forward.3} parent=39 // pred_region
          %s685 = smul.u32 2, %s26
        $region56: #{mtfaa_forward.3} parent=39 // pred_fallthru
          _
      $region40: #{mtfaa_forward.3} parent=5 // pred_fallthru
        _
      %p686 = scmp.le.s32.totalorder 2, %s16
      // Predicated region
      $region57: #{mtfaa_forward.3} parent=5 // pred_check
        %p687 = pneg %p686
      $region58: #{mtfaa_forward.3} parent=5 // pred_check_branch
        %689 = sbr.rel (%p687) target = $region60
      $region59: #{mtfaa_forward.3} parent=5 // pred_region
        %s690 = ssub.s32 %s16, 2
        // Predicated region
        $region61: #{mtfaa_forward.3} parent=59 // pred_check
          %p691 = pneg %p171
        $region62: #{mtfaa_forward.3} parent=59 // pred_check_branch
          %693 = sbr.rel (%p691) target = $region64
        $region63: #{mtfaa_forward.3} parent=59 // pred_region
          %s694 = smul.u32 2, %s28
          %p695 = scmp.lt.s32.totalorder %s27, 1
          %s696 = scalar_select %p695, %s27, 1
          %p697 = scmp.lt.s32.totalorder %s694, 1
          %s698 = scalar_select %p697, %s694, 1
          %s699 = smul.addr %s696, 16
          %s700 = sadd.s32 %s698, %s699
          %s701 = smul.addr %s700, 8
          %s702 = scalar_lea.vmem %s5, %s701
        $region64: #{mtfaa_forward.3} parent=59 // pred_fallthru
          _
      $region60: #{mtfaa_forward.3} parent=5 // pred_fallthru
        _
    $region6: #{mtfaa_forward.3} parent=1 // loop_footer
      %s20 = sadd.s32 1, %s16
    $region7: #{mtfaa_forward.3} parent=1 // loop_footer_branch
      %15 = sbr.rel target = $region3
    $region8: #{mtfaa_forward.3} parent=1 // loop_exit
      _
    %703 = vsyncpa [#allocation3], 1
    %s704 = scalar_lea.sflag [#allocation3], 1
    %705 = vsyncpa %s704, 1
    %706 = vsyncpa [#allocation4], 1
    %s707 = scalar_lea.sflag [#allocation4], 1
    %708 = vsyncpa %s707, 1
    %709 = vsyncpa [#allocation7], 1

// kernel: custom-call
$region0: #{custom-call}
  %s0 = inlined_call_operand.vmem [shape: f32[2,64,256], index: 0, kind: input, shape index: {}]
  %s1 = inlined_call_operand.vmem [shape: f32[2,64,256], index: 1, kind: input, shape index: {}]
  %s2 = inlined_call_operand.hbm [shape: c64[2,64,256], index: 2, kind: output, shape index: {}]
  %s3 = scalar_lea.hbm %s2, 4096
  $region1: #{custom-call} parent=0
    #allocation0 [shape = 's32[1]{0}', space=sflag, size = 0x4, scoped, tag = 'scoped memory for custom-call']
    %4 = vsyncpa [#allocation0], 0
    %s5 = sshll.u32 %s0, 4
    %s6 = int_to_ptr.vmem [resolvable:$true] %s5
    %8 = dma.vmem_to_hbm [thread:$0]  %s6, 4096, %s2, [#allocation0]
    %9 = dma.done [#allocation0], 4096
    %10 = vsyncpa [#allocation0], 1
  $region2: #{custom-call} parent=0
    #allocation1 [shape = 's32[1]{0}', space=sflag, size = 0x4, scoped, tag = 'scoped memory for custom-call']
    %11 = vsyncpa [#allocation1], 0
    %s12 = sshll.u32 %s1, 4
    %s13 = int_to_ptr.vmem [resolvable:$true] %s12
    %15 = dma.vmem_to_hbm [thread:$0]  %s13, 4096, %s3, [#allocation1]
    %16 = dma.done [#allocation1], 4096
    %17 = vsyncpa [#allocation1], 1

// kernel: mtfaa_forward.4
$region0: #{mtfaa_forward.4}
  #allocation0 [shape = 'u32[]', space=smem, size = 0x4, offset = 0x4, fixed_abs, tag = 'smem constant byte address 0x4 - core index']
  #allocation1 [shape = 'u32[144,128]{1,0:T(1,128)}', space=vmem, size = 0x12000, scoped, tag = 'internal scratch']
  %s0 = inlined_call_operand.vmem [shape: f32[2,2,8192], index: 0, kind: input, shape index: {}]
  %s1 = inlined_call_operand.vmem [shape: f32[4,2], index: 1, kind: input, shape index: {}]
  %s2 = inlined_call_operand.vmem [shape: f32[6,4], index: 2, kind: input, shape index: {}]
  %s3 = inlined_call_operand.vmem [shape: f32[8,6], index: 3, kind: input, shape index: {}]
  %s4 = inlined_call_operand.vmem [shape: f32[4,1], index: 4, kind: input, shape index: {}]
  %s5 = inlined_call_operand.vmem [shape: f32[6,1], index: 5, kind: input, shape index: {}]
  %s6 = inlined_call_operand.vmem [shape: f32[8,1], index: 6, kind: input, shape index: {}]
  %s7 = inlined_call_operand.vmem [shape: f32[6,8], index: 7, kind: input, shape index: {}]
  %s8 = inlined_call_operand.vmem [shape: f32[4,6], index: 8, kind: input, shape index: {}]
  %s9 = inlined_call_operand.vmem [shape: f32[4,4], index: 9, kind: input, shape index: {}]
  %s10 = inlined_call_operand.vmem [shape: f32[6,8], index: 10, kind: input, shape index: {}]
  %s11 = inlined_call_operand.vmem [shape: f32[4,6], index: 11, kind: input, shape index: {}]
  %s12 = inlined_call_operand.vmem [shape: f32[4,4], index: 12, kind: input, shape index: {}]
  %s13 = inlined_call_operand.vmem [shape: f32[6,1], index: 13, kind: input, shape index: {}]
  %s14 = inlined_call_operand.vmem [shape: f32[4,1], index: 14, kind: input, shape index: {}]
  %s15 = inlined_call_operand.vmem [shape: f32[4,1], index: 15, kind: input, shape index: {}]
  %s16 = inlined_call_operand.vmem [shape: f32[2,4,8192], index: 16, kind: output, shape index: {}]
  %s17 = sld [smem:[#allocation0]]
  $region97: #{mtfaa_forward.4} parent=0
    _
  %s19 = ssub.s32 1, %s17
  %s20 = scalar_select 0, %s19, %s17
  loop: start=0, step=1, limit=10
  $region2: #{mtfaa_forward.4} parent=0 // loop_pre_header
    _
  $region3: #{mtfaa_forward.4} parent=0 // loop_header
    %s22 = sphi 0, %s26
    %p23 = scmp.ge.s32.totalorder %s22, 10
    %s29 = sphi 0, %s41
    %s30 = sphi 0, %s37
    %s31 = sphi 0, %s29
    %s32 = sphi 0, %s30
    %s33 = sphi 0, %s31
    %s34 = sphi 0, %s32
    %s46 = sphi 0, %s48
    %s49 = sphi 0, %s46
    %s50 = sphi 0, %s49
    %s66 = sphi 0, %s50
    %s70 = sphi 0, %s70
    %s72 = sphi 0, %s70
    %s73 = sphi 0, %s72
    %s87 = sphi 0, %s73
    %s91 = sphi 0, %s91
    %s93 = sphi 0, %s91
    %s94 = sphi 0, %s93
    %s108 = sphi 0, %s94
    %s112 = sphi 0, %s112
    %s114 = sphi 0, %s112
    %s115 = sphi 0, %s114
    %s129 = sphi 0, %s115
    %s133 = sphi 0, %s133
    %s135 = sphi 0, %s133
    %s136 = sphi 0, %s135
    %s150 = sphi 0, %s136
    %s154 = sphi 0, %s154
    %s156 = sphi 0, %s154
    %s157 = sphi 0, %s156
    %s171 = sphi 0, %s157
    %s175 = sphi 0, %s175
    %s177 = sphi 0, %s175
    %s178 = sphi 0, %s177
    %s192 = sphi 0, %s178
    %s196 = sphi 0, %s196
    %s198 = sphi 0, %s196
    %s199 = sphi 0, %s198
    %s213 = sphi 0, %s199
    %s217 = sphi 0, %s217
    %s219 = sphi 0, %s217
    %s220 = sphi 0, %s219
    %s234 = sphi 0, %s220
    %s238 = sphi 0, %s238
    %s240 = sphi 0, %s238
    %s241 = sphi 0, %s240
    %s255 = sphi 0, %s241
    %s259 = sphi 0, %s259
    %s261 = sphi 0, %s259
    %s262 = sphi 0, %s261
    %s276 = sphi 0, %s262
    %s280 = sphi 0, %s280
    %s282 = sphi 0, %s280
    %s283 = sphi 0, %s282
    %s297 = sphi 0, %s283
    %s301 = sphi 0, %s301
    %s303 = sphi 0, %s301
    %s304 = sphi 0, %s303
    %s318 = sphi 0, %s304
    %s322 = sphi 0, %s322
    %s324 = sphi 0, %s322
    %s325 = sphi 0, %s324
    %s339 = sphi 0, %s325
    %s343 = sphi 0, %s343
    %s345 = sphi 0, %s343
    %s346 = sphi 0, %s345
    %s360 = sphi 0, %s346
    %s364 = sphi 0, %s364
    %s366 = sphi 0, %s364
    %s367 = sphi 0, %s366
    %s381 = sphi 0, %s367
    %s389 = sphi 0, %s391
    %s392 = sphi 0, %s389
    %s393 = sphi 0, %s392
    %s409 = sphi 0, %s393
  $region4: #{mtfaa_forward.4} parent=0 // loop_header_branch
    %25 = sbr.rel (%p23) target = $region8
  $region5: #{mtfaa_forward.4} parent=0 // loop_body
    %s27 = ssub.s32 %s22, 1
    %s28 = ssub.s32 %s22, 2
    %s35 = sadd.s32 1, %s30
    %p36 = scmp.ge.s32.totalorder %s35, 4
    %s37 = scalar_select %p36, 0, %s35
    %s38 = sadd.s32 1, %s29
    %s39 = scalar_select %p36, %s38, %s29
    %p40 = scmp.ge.s32.totalorder %s39, 2
    %s41 = scalar_select %p40, 0, %s39
    %s42 = ssub.s32 %s29, %s41
    %s43 = ssub.s32 %s30, %s37
    %s44 = sor.u32 %s42, %s43
    %p45 = scmp.eq.s32.totalorder %s44, 0
    %s47 = sadd.s32 %s46, 1
    %s48 = scalar_select %p45, %s46, %s47
    %p51 = pneg %p45
    %p52 = scmp.eq.s32.totalorder %s22, 7
    %p53 = por %p51, %p52
    %p54 = scmp.ne.s32.totalorder %s46, %s49
    %p55 = scmp.eq.s32.totalorder %s22, 0
    %p56 = por %p54, %p55
    %p57 = scmp.ne.s32.totalorder %s46, %s49
    %p58 = scmp.eq.s32.totalorder %s27, 7
    %p59 = por %p57, %p58
    %p60 = scmp.ne.s32.totalorder %s49, %s50
    %p61 = scmp.eq.s32.totalorder %s27, 0
    %p62 = por %p60, %p61
    %p63 = scmp.ne.s32.totalorder %s49, %s50
    %p64 = scmp.eq.s32.totalorder %s28, 7
    %p65 = por %p63, %p64
    %p67 = scmp.ne.s32.totalorder %s50, %s66
    %p68 = scmp.eq.s32.totalorder %s28, 0
    %p69 = por %p67, %p68
    %s71 = sadd.s32 %s70, 1
    %p74 = scmp.eq.s32.totalorder %s22, 7
    %p75 = scmp.ne.s32.totalorder %s70, %s72
    %p76 = scmp.eq.s32.totalorder %s22, 0
    %p77 = por %p75, %p76
    %p78 = scmp.ne.s32.totalorder %s70, %s72
    %p79 = scmp.eq.s32.totalorder %s27, 7
    %p80 = por %p78, %p79
    %p81 = scmp.ne.s32.totalorder %s72, %s73
    %p82 = scmp.eq.s32.totalorder %s27, 0
    %p83 = por %p81, %p82
    %p84 = scmp.ne.s32.totalorder %s72, %s73
    %p85 = scmp.eq.s32.totalorder %s28, 7
    %p86 = por %p84, %p85
    %p88 = scmp.ne.s32.totalorder %s73, %s87
    %p89 = scmp.eq.s32.totalorder %s28, 0
    %p90 = por %p88, %p89
    %s92 = sadd.s32 %s91, 1
    %p95 = scmp.eq.s32.totalorder %s22, 7
    %p96 = scmp.ne.s32.totalorder %s91, %s93
    %p97 = scmp.eq.s32.totalorder %s22, 0
    %p98 = por %p96, %p97
    %p99 = scmp.ne.s32.totalorder %s91, %s93
    %p100 = scmp.eq.s32.totalorder %s27, 7
    %p101 = por %p99, %p100
    %p102 = scmp.ne.s32.totalorder %s93, %s94
    %p103 = scmp.eq.s32.totalorder %s27, 0
    %p104 = por %p102, %p103
    %p105 = scmp.ne.s32.totalorder %s93, %s94
    %p106 = scmp.eq.s32.totalorder %s28, 7
    %p107 = por %p105, %p106
    %p109 = scmp.ne.s32.totalorder %s94, %s108
    %p110 = scmp.eq.s32.totalorder %s28, 0
    %p111 = por %p109, %p110
    %s113 = sadd.s32 %s112, 1
    %p116 = scmp.eq.s32.totalorder %s22, 7
    %p117 = scmp.ne.s32.totalorder %s112, %s114
    %p118 = scmp.eq.s32.totalorder %s22, 0
    %p119 = por %p117, %p118
    %p120 = scmp.ne.s32.totalorder %s112, %s114
    %p121 = scmp.eq.s32.totalorder %s27, 7
    %p122 = por %p120, %p121
    %p123 = scmp.ne.s32.totalorder %s114, %s115
    %p124 = scmp.eq.s32.totalorder %s27, 0
    %p125 = por %p123, %p124
    %p126 = scmp.ne.s32.totalorder %s114, %s115
    %p127 = scmp.eq.s32.totalorder %s28, 7
    %p128 = por %p126, %p127
    %p130 = scmp.ne.s32.totalorder %s115, %s129
    %p131 = scmp.eq.s32.totalorder %s28, 0
    %p132 = por %p130, %p131
    %s134 = sadd.s32 %s133, 1
    %p137 = scmp.eq.s32.totalorder %s22, 7
    %p138 = scmp.ne.s32.totalorder %s133, %s135
    %p139 = scmp.eq.s32.totalorder %s22, 0
    %p140 = por %p138, %p139
    %p141 = scmp.ne.s32.totalorder %s133, %s135
    %p142 = scmp.eq.s32.totalorder %s27, 7
    %p143 = por %p141, %p142
    %p144 = scmp.ne.s32.totalorder %s135, %s136
    %p145 = scmp.eq.s32.totalorder %s27, 0
    %p146 = por %p144, %p145
    %p147 = scmp.ne.s32.totalorder %s135, %s136
    %p148 = scmp.eq.s32.totalorder %s28, 7
    %p149 = por %p147, %p148
    %p151 = scmp.ne.s32.totalorder %s136, %s150
    %p152 = scmp.eq.s32.totalorder %s28, 0
    %p153 = por %p151, %p152
    %s155 = sadd.s32 %s154, 1
    %p158 = scmp.eq.s32.totalorder %s22, 7
    %p159 = scmp.ne.s32.totalorder %s154, %s156
    %p160 = scmp.eq.s32.totalorder %s22, 0
    %p161 = por %p159, %p160
    %p162 = scmp.ne.s32.totalorder %s154, %s156
    %p163 = scmp.eq.s32.totalorder %s27, 7
    %p164 = por %p162, %p163
    %p165 = scmp.ne.s32.totalorder %s156, %s157
    %p166 = scmp.eq.s32.totalorder %s27, 0
    %p167 = por %p165, %p166
    %p168 = scmp.ne.s32.totalorder %s156, %s157
    %p169 = scmp.eq.s32.totalorder %s28, 7
    %p170 = por %p168, %p169
    %p172 = scmp.ne.s32.totalorder %s157, %s171
    %p173 = scmp.eq.s32.totalorder %s28, 0
    %p174 = por %p172, %p173
    %s176 = sadd.s32 %s175, 1
    %p179 = scmp.eq.s32.totalorder %s22, 7
    %p180 = scmp.ne.s32.totalorder %s175, %s177
    %p181 = scmp.eq.s32.totalorder %s22, 0
    %p182 = por %p180, %p181
    %p183 = scmp.ne.s32.totalorder %s175, %s177
    %p184 = scmp.eq.s32.totalorder %s27, 7
    %p185 = por %p183, %p184
    %p186 = scmp.ne.s32.totalorder %s177, %s178
    %p187 = scmp.eq.s32.totalorder %s27, 0
    %p188 = por %p186, %p187
    %p189 = scmp.ne.s32.totalorder %s177, %s178
    %p190 = scmp.eq.s32.totalorder %s28, 7
    %p191 = por %p189, %p190
    %p193 = scmp.ne.s32.totalorder %s178, %s192
    %p194 = scmp.eq.s32.totalorder %s28, 0
    %p195 = por %p193, %p194
    %s197 = sadd.s32 %s196, 1
    %p200 = scmp.eq.s32.totalorder %s22, 7
    %p201 = scmp.ne.s32.totalorder %s196, %s198
    %p202 = scmp.eq.s32.totalorder %s22, 0
    %p203 = por %p201, %p202
    %p204 = scmp.ne.s32.totalorder %s196, %s198
    %p205 = scmp.eq.s32.totalorder %s27, 7
    %p206 = por %p204, %p205
    %p207 = scmp.ne.s32.totalorder %s198, %s199
    %p208 = scmp.eq.s32.totalorder %s27, 0
    %p209 = por %p207, %p208
    %p210 = scmp.ne.s32.totalorder %s198, %s199
    %p211 = scmp.eq.s32.totalorder %s28, 7
    %p212 = por %p210, %p211
    %p214 = scmp.ne.s32.totalorder %s199, %s213
    %p215 = scmp.eq.s32.totalorder %s28, 0
    %p216 = por %p214, %p215
    %s218 = sadd.s32 %s217, 1
    %p221 = scmp.eq.s32.totalorder %s22, 7
    %p222 = scmp.ne.s32.totalorder %s217, %s219
    %p223 = scmp.eq.s32.totalorder %s22, 0
    %p224 = por %p222, %p223
    %p225 = scmp.ne.s32.totalorder %s217, %s219
    %p226 = scmp.eq.s32.totalorder %s27, 7
    %p227 = por %p225, %p226
    %p228 = scmp.ne.s32.totalorder %s219, %s220
    %p229 = scmp.eq.s32.totalorder %s27, 0
    %p230 = por %p228, %p229
    %p231 = scmp.ne.s32.totalorder %s219, %s220
    %p232 = scmp.eq.s32.totalorder %s28, 7
    %p233 = por %p231, %p232
    %p235 = scmp.ne.s32.totalorder %s220, %s234
    %p236 = scmp.eq.s32.totalorder %s28, 0
    %p237 = por %p235, %p236
    %s239 = sadd.s32 %s238, 1
    %p242 = scmp.eq.s32.totalorder %s22, 7
    %p243 = scmp.ne.s32.totalorder %s238, %s240
    %p244 = scmp.eq.s32.totalorder %s22, 0
    %p245 = por %p243, %p244
    %p246 = scmp.ne.s32.totalorder %s238, %s240
    %p247 = scmp.eq.s32.totalorder %s27, 7
    %p248 = por %p246, %p247
    %p249 = scmp.ne.s32.totalorder %s240, %s241
    %p250 = scmp.eq.s32.totalorder %s27, 0
    %p251 = por %p249, %p250
    %p252 = scmp.ne.s32.totalorder %s240, %s241
    %p253 = scmp.eq.s32.totalorder %s28, 7
    %p254 = por %p252, %p253
    %p256 = scmp.ne.s32.totalorder %s241, %s255
    %p257 = scmp.eq.s32.totalorder %s28, 0
    %p258 = por %p256, %p257
    %s260 = sadd.s32 %s259, 1
    %p263 = scmp.eq.s32.totalorder %s22, 7
    %p264 = scmp.ne.s32.totalorder %s259, %s261
    %p265 = scmp.eq.s32.totalorder %s22, 0
    %p266 = por %p264, %p265
    %p267 = scmp.ne.s32.totalorder %s259, %s261
    %p268 = scmp.eq.s32.totalorder %s27, 7
    %p269 = por %p267, %p268
    %p270 = scmp.ne.s32.totalorder %s261, %s262
    %p271 = scmp.eq.s32.totalorder %s27, 0
    %p272 = por %p270, %p271
    %p273 = scmp.ne.s32.totalorder %s261, %s262
    %p274 = scmp.eq.s32.totalorder %s28, 7
    %p275 = por %p273, %p274
    %p277 = scmp.ne.s32.totalorder %s262, %s276
    %p278 = scmp.eq.s32.totalorder %s28, 0
    %p279 = por %p277, %p278
    %s281 = sadd.s32 %s280, 1
    %p284 = scmp.eq.s32.totalorder %s22, 7
    %p285 = scmp.ne.s32.totalorder %s280, %s282
    %p286 = scmp.eq.s32.totalorder %s22, 0
    %p287 = por %p285, %p286
    %p288 = scmp.ne.s32.totalorder %s280, %s282
    %p289 = scmp.eq.s32.totalorder %s27, 7
    %p290 = por %p288, %p289
    %p291 = scmp.ne.s32.totalorder %s282, %s283
    %p292 = scmp.eq.s32.totalorder %s27, 0
    %p293 = por %p291, %p292
    %p294 = scmp.ne.s32.totalorder %s282, %s283
    %p295 = scmp.eq.s32.totalorder %s28, 7
    %p296 = por %p294, %p295
    %p298 = scmp.ne.s32.totalorder %s283, %s297
    %p299 = scmp.eq.s32.totalorder %s28, 0
    %p300 = por %p298, %p299
    %s302 = sadd.s32 %s301, 1
    %p305 = scmp.eq.s32.totalorder %s22, 7
    %p306 = scmp.ne.s32.totalorder %s301, %s303
    %p307 = scmp.eq.s32.totalorder %s22, 0
    %p308 = por %p306, %p307
    %p309 = scmp.ne.s32.totalorder %s301, %s303
    %p310 = scmp.eq.s32.totalorder %s27, 7
    %p311 = por %p309, %p310
    %p312 = scmp.ne.s32.totalorder %s303, %s304
    %p313 = scmp.eq.s32.totalorder %s27, 0
    %p314 = por %p312, %p313
    %p315 = scmp.ne.s32.totalorder %s303, %s304
    %p316 = scmp.eq.s32.totalorder %s28, 7
    %p317 = por %p315, %p316
    %p319 = scmp.ne.s32.totalorder %s304, %s318
    %p320 = scmp.eq.s32.totalorder %s28, 0
    %p321 = por %p319, %p320
    %s323 = sadd.s32 %s322, 1
    %p326 = scmp.eq.s32.totalorder %s22, 7
    %p327 = scmp.ne.s32.totalorder %s322, %s324
    %p328 = scmp.eq.s32.totalorder %s22, 0
    %p329 = por %p327, %p328
    %p330 = scmp.ne.s32.totalorder %s322, %s324
    %p331 = scmp.eq.s32.totalorder %s27, 7
    %p332 = por %p330, %p331
    %p333 = scmp.ne.s32.totalorder %s324, %s325
    %p334 = scmp.eq.s32.totalorder %s27, 0
    %p335 = por %p333, %p334
    %p336 = scmp.ne.s32.totalorder %s324, %s325
    %p337 = scmp.eq.s32.totalorder %s28, 7
    %p338 = por %p336, %p337
    %p340 = scmp.ne.s32.totalorder %s325, %s339
    %p341 = scmp.eq.s32.totalorder %s28, 0
    %p342 = por %p340, %p341
    %s344 = sadd.s32 %s343, 1
    %p347 = scmp.eq.s32.totalorder %s22, 7
    %p348 = scmp.ne.s32.totalorder %s343, %s345
    %p349 = scmp.eq.s32.totalorder %s22, 0
    %p350 = por %p348, %p349
    %p351 = scmp.ne.s32.totalorder %s343, %s345
    %p352 = scmp.eq.s32.totalorder %s27, 7
    %p353 = por %p351, %p352
    %p354 = scmp.ne.s32.totalorder %s345, %s346
    %p355 = scmp.eq.s32.totalorder %s27, 0
    %p356 = por %p354, %p355
    %p357 = scmp.ne.s32.totalorder %s345, %s346
    %p358 = scmp.eq.s32.totalorder %s28, 7
    %p359 = por %p357, %p358
    %p361 = scmp.ne.s32.totalorder %s346, %s360
    %p362 = scmp.eq.s32.totalorder %s28, 0
    %p363 = por %p361, %p362
    %s365 = sadd.s32 %s364, 1
    %p368 = scmp.eq.s32.totalorder %s22, 7
    %p369 = scmp.ne.s32.totalorder %s364, %s366
    %p370 = scmp.eq.s32.totalorder %s22, 0
    %p371 = por %p369, %p370
    %p372 = scmp.ne.s32.totalorder %s364, %s366
    %p373 = scmp.eq.s32.totalorder %s27, 7
    %p374 = por %p372, %p373
    %p375 = scmp.ne.s32.totalorder %s366, %s367
    %p376 = scmp.eq.s32.totalorder %s27, 0
    %p377 = por %p375, %p376
    %p378 = scmp.ne.s32.totalorder %s366, %s367
    %p379 = scmp.eq.s32.totalorder %s28, 7
    %p380 = por %p378, %p379
    %p382 = scmp.ne.s32.totalorder %s367, %s381
    %p383 = scmp.eq.s32.totalorder %s28, 0
    %p384 = por %p382, %p383
    %s385 = ssub.s32 %s29, %s41
    %s386 = ssub.s32 %s30, %s37
    %s387 = sor.u32 %s385, %s386
    %p388 = scmp.eq.s32.totalorder %s387, 0
    %s390 = sadd.s32 %s389, 1
    %s391 = scalar_select %p388, %s389, %s390
    %p394 = pneg %p388
    %p395 = scmp.eq.s32.totalorder %s22, 7
    %p396 = por %p394, %p395
    %p397 = scmp.ne.s32.totalorder %s389, %s392
    %p398 = scmp.eq.s32.totalorder %s22, 0
    %p399 = por %p397, %p398
    %p400 = scmp.ne.s32.totalorder %s389, %s392
    %p401 = scmp.eq.s32.totalorder %s27, 7
    %p402 = por %p400, %p401
    %p403 = scmp.ne.s32.totalorder %s392, %s393
    %p404 = scmp.eq.s32.totalorder %s27, 0
    %p405 = por %p403, %p404
    %p406 = scmp.ne.s32.totalorder %s392, %s393
    %p407 = scmp.eq.s32.totalorder %s28, 7
    %p408 = por %p406, %p407
    %p410 = scmp.ne.s32.totalorder %s393, %s409
    %p411 = scmp.eq.s32.totalorder %s28, 0
    %p412 = por %p410, %p411
    %p413 = scmp.le.s32.totalorder 1, %s22
    %p414 = scmp.lt.s32.totalorder %s22, 9
    %p415 = pnand %p413, %p414
    %p416 = pneg %p415
    // Predicated region
    $region9: #{mtfaa_forward.4} parent=5 // pred_check
      _
    $region10: #{mtfaa_forward.4} parent=5 // pred_check_branch
      %418 = sbr.rel (%p415) target = $region12
    $region11: #{mtfaa_forward.4} parent=5 // pred_region
      %s419 = ssub.s32 %s22, 1
      // Predicated region
      $region13: #{mtfaa_forward.4} parent=11 // pred_check
        %p420 = pneg %p83
      $region14: #{mtfaa_forward.4} parent=11 // pred_check_branch
        %422 = sbr.rel (%p420) target = $region16
      $region15: #{mtfaa_forward.4} parent=11 // pred_region
        _
      $region16: #{mtfaa_forward.4} parent=11 // pred_fallthru
        _
      // Predicated region
      $region17: #{mtfaa_forward.4} parent=11 // pred_check
        %p423 = pneg %p104
      $region18: #{mtfaa_forward.4} parent=11 // pred_check_branch
        %425 = sbr.rel (%p423) target = $region20
      $region19: #{mtfaa_forward.4} parent=11 // pred_region
        _
      $region20: #{mtfaa_forward.4} parent=11 // pred_fallthru
        _
      // Predicated region
      $region21: #{mtfaa_forward.4} parent=11 // pred_check
        %p426 = pneg %p125
      $region22: #{mtfaa_forward.4} parent=11 // pred_check_branch
        %428 = sbr.rel (%p426) target = $region24
      $region23: #{mtfaa_forward.4} parent=11 // pred_region
        _
      $region24: #{mtfaa_forward.4} parent=11 // pred_fallthru
        _
      // Predicated region
      $region25: #{mtfaa_forward.4} parent=11 // pred_check
        %p429 = pneg %p146
      $region26: #{mtfaa_forward.4} parent=11 // pred_check_branch
        %431 = sbr.rel (%p429) target = $region28
      $region27: #{mtfaa_forward.4} parent=11 // pred_region
        _
      $region28: #{mtfaa_forward.4} parent=11 // pred_fallthru
        _
      // Predicated region
      $region29: #{mtfaa_forward.4} parent=11 // pred_check
        %p432 = pneg %p167
      $region30: #{mtfaa_forward.4} parent=11 // pred_check_branch
        %434 = sbr.rel (%p432) target = $region32
      $region31: #{mtfaa_forward.4} parent=11 // pred_region
        _
      $region32: #{mtfaa_forward.4} parent=11 // pred_fallthru
        _
      // Predicated region
      $region33: #{mtfaa_forward.4} parent=11 // pred_check
        %p435 = pneg %p188
      $region34: #{mtfaa_forward.4} parent=11 // pred_check_branch
        %437 = sbr.rel (%p435) target = $region36
      $region35: #{mtfaa_forward.4} parent=11 // pred_region
        _
      $region36: #{mtfaa_forward.4} parent=11 // pred_fallthru
        _
      // Predicated region
      $region37: #{mtfaa_forward.4} parent=11 // pred_check
        %p438 = pneg %p209
      $region38: #{mtfaa_forward.4} parent=11 // pred_check_branch
        %440 = sbr.rel (%p438) target = $region40
      $region39: #{mtfaa_forward.4} parent=11 // pred_region
        _
      $region40: #{mtfaa_forward.4} parent=11 // pred_fallthru
        _
      // Predicated region
      $region41: #{mtfaa_forward.4} parent=11 // pred_check
        %p441 = pneg %p230
      $region42: #{mtfaa_forward.4} parent=11 // pred_check_branch
        %443 = sbr.rel (%p441) target = $region44
      $region43: #{mtfaa_forward.4} parent=11 // pred_region
        _
      $region44: #{mtfaa_forward.4} parent=11 // pred_fallthru
        _
      // Predicated region
      $region45: #{mtfaa_forward.4} parent=11 // pred_check
        %p444 = pneg %p251
      $region46: #{mtfaa_forward.4} parent=11 // pred_check_branch
        %446 = sbr.rel (%p444) target = $region48
      $region47: #{mtfaa_forward.4} parent=11 // pred_region
        _
      $region48: #{mtfaa_forward.4} parent=11 // pred_fallthru
        _
      // Predicated region
      $region49: #{mtfaa_forward.4} parent=11 // pred_check
        %p447 = pneg %p272
      $region50: #{mtfaa_forward.4} parent=11 // pred_check_branch
        %449 = sbr.rel (%p447) target = $region52
      $region51: #{mtfaa_forward.4} parent=11 // pred_region
        _
      $region52: #{mtfaa_forward.4} parent=11 // pred_fallthru
        _
      // Predicated region
      $region53: #{mtfaa_forward.4} parent=11 // pred_check
        %p450 = pneg %p293
      $region54: #{mtfaa_forward.4} parent=11 // pred_check_branch
        %452 = sbr.rel (%p450) target = $region56
      $region55: #{mtfaa_forward.4} parent=11 // pred_region
        _
      $region56: #{mtfaa_forward.4} parent=11 // pred_fallthru
        _
      // Predicated region
      $region57: #{mtfaa_forward.4} parent=11 // pred_check
        %p453 = pneg %p314
      $region58: #{mtfaa_forward.4} parent=11 // pred_check_branch
        %455 = sbr.rel (%p453) target = $region60
      $region59: #{mtfaa_forward.4} parent=11 // pred_region
        _
      $region60: #{mtfaa_forward.4} parent=11 // pred_fallthru
        _
      // Predicated region
      $region61: #{mtfaa_forward.4} parent=11 // pred_check
        %p456 = pneg %p335
      $region62: #{mtfaa_forward.4} parent=11 // pred_check_branch
        %458 = sbr.rel (%p456) target = $region64
      $region63: #{mtfaa_forward.4} parent=11 // pred_region
        _
      $region64: #{mtfaa_forward.4} parent=11 // pred_fallthru
        _
      // Predicated region
      $region65: #{mtfaa_forward.4} parent=11 // pred_check
        %p459 = pneg %p356
      $region66: #{mtfaa_forward.4} parent=11 // pred_check_branch
        %461 = sbr.rel (%p459) target = $region68
      $region67: #{mtfaa_forward.4} parent=11 // pred_region
        _
      $region68: #{mtfaa_forward.4} parent=11 // pred_fallthru
        _
      // Predicated region
      $region69: #{mtfaa_forward.4} parent=11 // pred_check
        %p462 = pneg %p377
      $region70: #{mtfaa_forward.4} parent=11 // pred_check_branch
        %464 = sbr.rel (%p462) target = $region72
      $region71: #{mtfaa_forward.4} parent=11 // pred_region
        _
      $region72: #{mtfaa_forward.4} parent=11 // pred_fallthru
        _
    $region12: #{mtfaa_forward.4} parent=5 // pred_fallthru
      _
    %p465 = scmp.lt.s32.totalorder %s22, 8
    // Predicated region
    $region73: #{mtfaa_forward.4} parent=5 // pred_check
      %p466 = pneg %p465
    $region74: #{mtfaa_forward.4} parent=5 // pred_check_branch
      %468 = sbr.rel (%p466) target = $region76
    $region75: #{mtfaa_forward.4} parent=5 // pred_region
      // Predicated region
      $region77: #{mtfaa_forward.4} parent=75 // pred_check
        %p469 = pneg %p56
      $region78: #{mtfaa_forward.4} parent=75 // pred_check_branch
        %471 = sbr.rel (%p469) target = $region80
      $region79: #{mtfaa_forward.4} parent=75 // pred_region
        %s472 = smul.u32 16, %s30
        %p473 = scmp.lt.s32.totalorder %s29, 1
        %s474 = scalar_select %p473, %s29, 1
        %p475 = scmp.lt.s32.totalorder %s472, 63
        %s476 = scalar_select %p475, %s472, 63
        %s477 = smul.addr %s474, 64
        %s478 = sadd.s32 %s476, %s477
        %s479 = smul.addr %s478, 2
        %s480 = scalar_lea.vmem %s0, %s479
        %s481 = smul.u32 16, %s30
      $region80: #{mtfaa_forward.4} parent=75 // pred_fallthru
        _
    $region76: #{mtfaa_forward.4} parent=5 // pred_fallthru
      _
    %p482 = scmp.le.s32.totalorder 1, %s22
    %p483 = scmp.lt.s32.totalorder %s22, 9
    %p484 = pnand %p482, %p483
    %p485 = pneg %p484
    // Predicated region
    $region81: #{mtfaa_forward.4} parent=5 // pred_check
      _
    $region82: #{mtfaa_forward.4} parent=5 // pred_check_branch
      %487 = sbr.rel (%p484) target = $region84
    $region83: #{mtfaa_forward.4} parent=5 // pred_region
      %s488 = ssub.s32 %s22, 1
      %s489 = smul.u32 16, %s32
      %p490 = scmp.lt.s32.totalorder %s31, 1
      %s491 = scalar_select %p490, %s31, 1
      %p492 = scmp.lt.s32.totalorder %s489, 63
      %s493 = scalar_select %p492, %s489, 63
      %s494 = smul.addr %s491, 64
      %s495 = sadd.s32 %s493, %s494
      %s496 = smul.addr %s495, 2
      %s497 = scalar_lea.vmem %s0, %s496
      %p498 = pneg %p62
      %p499 = pneg %p59
      %p500 = pneg %p83
      %p501 = pneg %p80
      %p502 = pneg %p104
      %p503 = pneg %p101
      %p504 = pneg %p125
      %p505 = pneg %p122
      %p506 = pneg %p146
      %p507 = pneg %p143
      %p508 = pneg %p167
      %p509 = pneg %p164
      %p510 = pneg %p188
      %p511 = pneg %p185
      %p512 = pneg %p209
      %p513 = pneg %p206
      %p514 = pneg %p230
      %p515 = pneg %p227
      %p516 = pneg %p251
      %p517 = pneg %p248
      %p518 = pneg %p272
      %p519 = pneg %p269
      %p520 = pneg %p293
      %p521 = pneg %p290
      %p522 = pneg %p314
      %p523 = pneg %p311
      %p524 = pneg %p335
      %p525 = pneg %p332
      %p526 = pneg %p356
      %p527 = pneg %p353
      %p528 = pneg %p377
      %p529 = pneg %p374
      %p530 = pneg %p405
      %p531 = pneg %p402
      %s532 = smul.u32 16, %s32
      %p533 = scmp.lt.s32.totalorder %s31, 1
      %s534 = scalar_select %p533, %s31, 1
      %p535 = scmp.lt.s32.totalorder %s532, 63
      %s536 = scalar_select %p535, %s532, 63
      %s537 = smul.addr %s534, 64
      %s538 = sadd.s32 %s536, %s537
      %s539 = smul.addr %s538, 4
      %s540 = scalar_lea.vmem %s16, %s539
      %s541 = smul.u32 16, %s32
      %p542 = scmp.lt.s32.totalorder %s31, 1
      %s543 = scalar_select %p542, %s31, 1
      %p544 = scmp.lt.s32.totalorder %s541, 63
      %s545 = scalar_select %p544, %s541, 63
      %s546 = smul.addr %s543, 64
      %s547 = sadd.s32 %s545, %s546
      %s548 = smul.addr %s547, 2
      %s549 = scalar_lea.vmem %s0, %s548
      %s550 = smul.u32 16, %s32
      %s551 = smul.u32 16, %s32
      %p552 = scmp.lt.s32.totalorder %s31, 1
      %s553 = scalar_select %p552, %s31, 1
      %p554 = scmp.lt.s32.totalorder %s551, 63
      %s555 = scalar_select %p554, %s551, 63
      %s556 = smul.addr %s553, 64
      %s557 = sadd.s32 %s555, %s556
      %s558 = smul.addr %s557, 4
      %s559 = scalar_lea.vmem %s16, %s558
      %s560 = smul.u32 16, %s32
      %v561 = vld [vmem:[%s549] sm:$0xff]
      %v562 = vld [vmem:[%s549 + $0x8] sm:$0xff]
      %v563 = vld [vmem:[%s549 + $0x10] sm:$0xff]
      %v564 = vld [vmem:[%s549 + $0x18] sm:$0xff]
      %v565 = vld [vmem:[%s1] sm:$0xf]
      %v566 = vld [vmem:[%s4] sm:$0xf]
      %568 = vset.pattern.permute.xlu0 0
      %569 = vperm.xlu0 %568, %v566
      %v570 = vpop.permute.xlu0 %569
      %v576 = vcombine.high %v561, %v561
      %v578 = vunpack.c.l.s4 1983009808
      %v579 = vunpack.c.0.s8 %v578
      %v580 = vlaneseq
      %v581 = vshrl.u32 %v580, 7
      %v582 = vsub.s32 %v579, %v581
      %v583 = vrot.slane %v561, %v582
      %v585 = vunpack.c.l.s4 1983009808
      %v586 = vunpack.c.0.s8 %v585
      %v587 = vlaneseq
      %v588 = vshrl.u32 %v587, 7
      %v589 = vsub.s32 %v586, %v588
      %v590 = vrot.slane %v576, %v589
      %v591 = vcombine.high %v583, %v583
      %v592 = vcombine.high %v590, %v590
      %v593 = vcombine.high %v562, %v562
      %v595 = vunpack.c.l.s4 1983009808
      %v596 = vunpack.c.0.s8 %v595
      %v597 = vlaneseq
      %v598 = vshrl.u32 %v597, 7
      %v599 = vsub.s32 %v596, %v598
      %v600 = vrot.slane %v562, %v599
      %v602 = vunpack.c.l.s4 1983009808
      %v603 = vunpack.c.0.s8 %v602
      %v604 = vlaneseq
      %v605 = vshrl.u32 %v604, 7
      %v606 = vsub.s32 %v603, %v605
      %v607 = vrot.slane %v593, %v606
      %v608 = vcombine.high %v600, %v600
      %v609 = vcombine.high %v607, %v607
      %v610 = vcombine.high %v563, %v563
      %v612 = vunpack.c.l.s4 1983009808
      %v613 = vunpack.c.0.s8 %v612
      %v614 = vlaneseq
      %v615 = vshrl.u32 %v614, 7
      %v616 = vsub.s32 %v613, %v615
      %v617 = vrot.slane %v563, %v616
      %v619 = vunpack.c.l.s4 1983009808
      %v620 = vunpack.c.0.s8 %v619
      %v621 = vlaneseq
      %v622 = vshrl.u32 %v621, 7
      %v623 = vsub.s32 %v620, %v622
      %v624 = vrot.slane %v610, %v623
      %v625 = vcombine.high %v617, %v617
      %v626 = vcombine.high %v624, %v624
      %v627 = vcombine.high %v564, %v564
      %v629 = vunpack.c.l.s4 1983009808
      %v630 = vunpack.c.0.s8 %v629
      %v631 = vlaneseq
      %v632 = vshrl.u32 %v631, 7
      %v633 = vsub.s32 %v630, %v632
      %v634 = vrot.slane %v564, %v633
      %v636 = vunpack.c.l.s4 1983009808
      %v637 = vunpack.c.0.s8 %v636
      %v638 = vlaneseq
      %v639 = vshrl.u32 %v638, 7
      %v640 = vsub.s32 %v637, %v639
      %v641 = vrot.slane %v627, %v640
      %v642 = vcombine.high %v634, %v634
      %v643 = vcombine.high %v641, %v641
      %vm644 = vcmask 15360
      %v646 = vsel %vm644, %v565, 0
      %vm648 = vcmask 1041408
      %v649 = vsel %vm648, %v583, 0
      %v651 = vsel %vm648, %v591, 0
      %v653 = vsel %vm648, %v590, 0
      %v655 = vsel %vm648, %v592, 0
      %v657 = vsel %vm648, %v600, 0
      %v659 = vsel %vm648, %v608, 0
      %v661 = vsel %vm648, %v607, 0
      %v663 = vsel %vm648, %v609, 0
      %v665 = vsel %vm648, %v617, 0
      %v667 = vsel %vm648, %v625, 0
      %v669 = vsel %vm648, %v624, 0
      %v671 = vsel %vm648, %v626, 0
      %v673 = vsel %vm648, %v634, 0
      %v675 = vsel %vm648, %v642, 0
      %v677 = vsel %vm648, %v641, 0
      %v679 = vsel %vm648, %v643, 0
      %681 = vmatprep.subr.mxu0 %v651
      %682 = vmatpush1.msra.mxu0 %v649
      %683 = vmatprep.subr.mxu0 0.0
      %684 = vmatpush1.msra.mxu0 0.0
      %685 = vmatprep.subr.mxu0 0.0
      %686 = vmatpush1.msra.mxu0 0.0
      %687 = vmatprep.subr.mxu0 0.0
      %688 = vmatpush1.msra.mxu0 0.0
      %689 = vmatprep.subr.mxu0 0.0
      %690 = vmatpush1.msra.mxu0 0.0
      %691 = vmatprep.subr.mxu0 0.0
      %692 = vmatpush1.msra.mxu0 0.0
      %693 = vmatprep.subr.mxu0 0.0
      %694 = vmatpush1.msra.mxu0 0.0
      %695 = vmatprep.subr.mxu0 0.0
      %696 = vmatpush1.msra.mxu0 0.0
      %697 = vmatprep.subr.mxu0 0.0
      %698 = vmatpush1.msra.mxu0 0.0
      %699 = vmatprep.subr.mxu0 0.0
      %700 = vmatpush1.msra.mxu0 0.0
      %701 = vmatprep.subr.mxu0 0.0
      %702 = vmatpush1.msra.mxu0 0.0
      %703 = vmatprep.subr.mxu0 0.0
      %704 = vmatpush1.msra.mxu0 0.0
      %705 = vmatprep.subr.mxu0 0.0
      %706 = vmatpush1.msra.mxu0 0.0
      %707 = vmatprep.subr.mxu0 0.0
      %708 = vmatpush1.msra.mxu0 0.0
      %709 = vmatprep.subr.mxu0 0.0
      %710 = vmatpush1.msra.mxu0 0.0
      %711 = vmatprep.subr.mxu0 0.0
      %712 = vmatpush1.msra.mxu0 0.0
      %713 = vmatprep.subr.mxu0 0.0
      %714 = vmatpush1.msra.mxu0 0.0
      %715 = vmatprep.subr.mxu0 0.0
      %716 = vmatpush1.msra.mxu0 0.0
      %717 = vmatprep.subr.mxu0 0.0
      %718 = vmatpush1.msra.mxu0 0.0
      %719 = vmatprep.subr.mxu0 0.0
      %720 = vmatpush1.msra.mxu0 0.0
      %721 = vmatprep.subr.mxu0 0.0
      %722 = vmatpush1.msra.mxu0 0.0
      %723 = vmatprep.subr.mxu0 0.0
      %724 = vmatpush1.msra.mxu0 0.0
      %725 = vmatprep.subr.mxu0 0.0
      %726 = vmatpush1.msra.mxu0 0.0
      %727 = vmatprep.subr.mxu0 0.0
      %728 = vmatpush1.msra.mxu0 0.0
      %729 = vmatprep.subr.mxu0 0.0
      %730 = vmatpush1.msra.mxu0 0.0
      %731 = vmatprep.subr.mxu0 0.0
      %732 = vmatpush1.msra.mxu0 0.0
      %733 = vmatprep.subr.mxu0 0.0
      %734 = vmatpush1.msra.mxu0 0.0
      %735 = vmatprep.subr.mxu0 0.0
      %736 = vmatpush1.msra.mxu0 0.0
      %737 = vmatprep.subr.mxu0 0.0
      %738 = vmatpush1.msra.mxu0 0.0
      %739 = vmatprep.subr.mxu0 0.0
      %740 = vmatpush1.msra.mxu0 0.0
      %741 = vmatprep.subr.mxu0 0.0
      %742 = vmatpush1.msra.mxu0 0.0
      %743 = vmatprep.subr.mxu0 0.0
      %744 = vmatpush1.msra.mxu0 0.0
      %745 = vmatprep.mubr.f32.mxu0 0.0
      %746 = vmatmul.mubr.f32.gmra.mrb[0].mxu0 %v646
      %v747 = vpop.f32.mrb[0].mxu0
      %v748 = vadd.f32 %v570, %v747
      %v749 = vpop.f32.mrb[0].mxu0
      %v750 = vadd.f32 %v570, %v749
      %751 = vdwg.mxu0
      %752 = vmatprep.subr.mxu0 %v655
      %753 = vmatpush1.msra.mxu0 %v653
      %754 = vmatprep.subr.mxu0 0.0
      %755 = vmatpush1.msra.mxu0 0.0
      %756 = vmatprep.subr.mxu0 0.0
      %757 = vmatpush1.msra.mxu0 0.0
      %758 = vmatprep.subr.mxu0 0.0
      %759 = vmatpush1.msra.mxu0 0.0
      %760 = vmatprep.subr.mxu0 0.0
      %761 = vmatpush1.msra.mxu0 0.0
      %762 = vmatprep.subr.mxu0 0.0
      %763 = vmatpush1.msra.mxu0 0.0
      %764 = vmatprep.subr.mxu0 0.0
      %765 = vmatpush1.msra.mxu0 0.0
      %766 = vmatprep.subr.mxu0 0.0
      %767 = vmatpush1.msra.mxu0 0.0
      %768 = vmatprep.subr.mxu0 0.0
      %769 = vmatpush1.msra.mxu0 0.0
      %770 = vmatprep.subr.mxu0 0.0
      %771 = vmatpush1.msra.mxu0 0.0
      %772 = vmatprep.subr.mxu0 0.0
      %773 = vmatpush1.msra.mxu0 0.0
      %774 = vmatprep.subr.mxu0 0.0
      %775 = vmatpush1.msra.mxu0 0.0
      %776 = vmatprep.subr.mxu0 0.0
      %777 = vmatpush1.msra.mxu0 0.0
      %778 = vmatprep.subr.mxu0 0.0
      %779 = vmatpush1.msra.mxu0 0.0
      %780 = vmatprep.subr.mxu0 0.0
      %781 = vmatpush1.msra.mxu0 0.0
      %782 = vmatprep.subr.mxu0 0.0
      %783 = vmatpush1.msra.mxu0 0.0
      %784 = vmatprep.subr.mxu0 0.0
      %785 = vmatpush1.msra.mxu0 0.0
      %786 = vmatprep.subr.mxu0 0.0
      %787 = vmatpush1.msra.mxu0 0.0
      %788 = vmatprep.subr.mxu0 0.0
      %789 = vmatpush1.msra.mxu0 0.0
      %790 = vmatprep.subr.mxu0 0.0
      %791 = vmatpush1.msra.mxu0 0.0
      %792 = vmatprep.subr.mxu0 0.0
      %793 = vmatpush1.msra.mxu0 0.0
      %794 = vmatprep.subr.mxu0 0.0
      %795 = vmatpush1.msra.mxu0 0.0
      %796 = vmatprep.subr.mxu0 0.0
      %797 = vmatpush1.msra.mxu0 0.0
      %798 = vmatprep.subr.mxu0 0.0
      %799 = vmatpush1.msra.mxu0 0.0
      %800 = vmatprep.subr.mxu0 0.0
      %801 = vmatpush1.msra.mxu0 0.0
      %802 = vmatprep.subr.mxu0 0.0
      %803 = vmatpush1.msra.mxu0 0.0
      %804 = vmatprep.subr.mxu0 0.0
      %805 = vmatpush1.msra.mxu0 0.0
      %806 = vmatprep.subr.mxu0 0.0
      %807 = vmatpush1.msra.mxu0 0.0
      %808 = vmatprep.subr.mxu0 0.0
      %809 = vmatpush1.msra.mxu0 0.0
      %810 = vmatprep.subr.mxu0 0.0
      %811 = vmatpush1.msra.mxu0 0.0
      %812 = vmatprep.subr.mxu0 0.0
      %813 = vmatpush1.msra.mxu0 0.0
      %814 = vmatprep.subr.mxu0 0.0
      %815 = vmatpush1.msra.mxu0 0.0
      %816 = vmatprep.mubr.f32.mxu0 0.0
      %817 = vmatmul.mubr.f32.gmra.mrb[0].mxu0 %v646
      %v818 = vpop.f32.mrb[0].mxu0
      %v819 = vadd.f32 %v570, %v818
      %v820 = vpop.f32.mrb[0].mxu0
      %v821 = vadd.f32 %v570, %v820
      %822 = vdwg.mxu0
      %823 = vmatprep.subr.mxu0 %v659
      %824 = vmatpush1.msra.mxu0 %v657
      %825 = vmatprep.subr.mxu0 0.0
      %826 = vmatpush1.msra.mxu0 0.0
      %827 = vmatprep.subr.mxu0 0.0
      %828 = vmatpush1.msra.mxu0 0.0
      %829 = vmatprep.subr.mxu0 0.0
      %830 = vmatpush1.msra.mxu0 0.0
      %831 = vmatprep.subr.mxu0 0.0
      %832 = vmatpush1.msra.mxu0 0.0
      %833 = vmatprep.subr.mxu0 0.0
      %834 = vmatpush1.msra.mxu0 0.0
      %835 = vmatprep.subr.mxu0 0.0
      %836 = vmatpush1.msra.mxu0 0.0
      %837 = vmatprep.subr.mxu0 0.0
      %838 = vmatpush1.msra.mxu0 0.0
      %839 = vmatprep.subr.mxu0 0.0
      %840 = vmatpush1.msra.mxu0 0.0
      %841 = vmatprep.subr.mxu0 0.0
      %842 = vmatpush1.msra.mxu0 0.0
      %843 = vmatprep.subr.mxu0 0.0
      %844 = vmatpush1.msra.mxu0 0.0
      %845 = vmatprep.subr.mxu0 0.0
      %846 = vmatpush1.msra.mxu0 0.0
      %847 = vmatprep.subr.mxu0 0.0
      %848 = vmatpush1.msra.mxu0 0.0
      %849 = vmatprep.subr.mxu0 0.0
      %850 = vmatpush1.msra.mxu0 0.0
      %851 = vmatprep.subr.mxu0 0.0
      %852 = vmatpush1.msra.mxu0 0.0
      %853 = vmatprep.subr.mxu0 0.0
      %854 = vmatpush1.msra.mxu0 0.0
      %855 = vmatprep.subr.mxu0 0.0
      %856 = vmatpush1.msra.mxu0 0.0
      %857 = vmatprep.subr.mxu0 0.0
      %858 = vmatpush1.msra.mxu0 0.0
      %859 = vmatprep.subr.mxu0 0.0
      %860 = vmatpush1.msra.mxu0 0.0
      %861 = vmatprep.subr.mxu0 0.0
      %862 = vmatpush1.msra.mxu0 0.0
      %863 = vmatprep.subr.mxu0 0.0
      %864 = vmatpush1.msra.mxu0 0.0
      %865 = vmatprep.subr.mxu0 0.0
      %866 = vmatpush1.msra.mxu0 0.0
      %867 = vmatprep.subr.mxu0 0.0
      %868 = vmatpush1.msra.mxu0 0.0
      %869 = vmatprep.subr.mxu0 0.0
      %870 = vmatpush1.msra.mxu0 0.0
      %871 = vmatprep.subr.mxu0 0.0
      %872 = vmatpush1.msra.mxu0 0.0
      %873 = vmatprep.subr.mxu0 0.0
      %874 = vmatpush1.msra.mxu0 0.0
      %875 = vmatprep.subr.mxu0 0.0
      %876 = vmatpush1.msra.mxu0 0.0
      %877 = vmatprep.subr.mxu0 0.0
      %878 = vmatpush1.msra.mxu0 0.0
      %879 = vmatprep.subr.mxu0 0.0
      %880 = vmatpush1.msra.mxu0 0.0
      %881 = vmatprep.subr.mxu0 0.0
      %882 = vmatpush1.msra.mxu0 0.0
      %883 = vmatprep.subr.mxu0 0.0
      %884 = vmatpush1.msra.mxu0 0.0
      %885 = vmatprep.subr.mxu0 0.0
      %886 = vmatpush1.msra.mxu0 0.0
      %887 = vmatprep.mubr.f32.mxu0 0.0
      %888 = vmatmul.mubr.f32.gmra.mrb[0].mxu0 %v646
      %v889 = vpop.f32.mrb[0].mxu0
      %v890 = vadd.f32 %v570, %v889
      %v891 = vpop.f32.mrb[0].mxu0
      %v892 = vadd.f32 %v570, %v891
      %893 = vdwg.mxu0
      %894 = vmatprep.subr.mxu0 %v663
      %895 = vmatpush1.msra.mxu0 %v661
      %896 = vmatprep.subr.mxu0 0.0
      %897 = vmatpush1.msra.mxu0 0.0
      %898 = vmatprep.subr.mxu0 0.0
      %899 = vmatpush1.msra.mxu0 0.0
      %900 = vmatprep.subr.mxu0 0.0
      %901 = vmatpush1.msra.mxu0 0.0
      %902 = vmatprep.subr.mxu0 0.0
      %903 = vmatpush1.msra.mxu0 0.0
      %904 = vmatprep.subr.mxu0 0.0
      %905 = vmatpush1.msra.mxu0 0.0
      %906 = vmatprep.subr.mxu0 0.0
      %907 = vmatpush1.msra.mxu0 0.0
      %908 = vmatprep.subr.mxu0 0.0
      %909 = vmatpush1.msra.mxu0 0.0
      %910 = vmatprep.subr.mxu0 0.0
      %911 = vmatpush1.msra.mxu0 0.0
      %912 = vmatprep.subr.mxu0 0.0
      %913 = vmatpush1.msra.mxu0 0.0
      %914 = vmatprep.subr.mxu0 0.0
      %915 = vmatpush1.msra.mxu0 0.0
      %916 = vmatprep.subr.mxu0 0.0
      %917 = vmatpush1.msra.mxu0 0.0
      %918 = vmatprep.subr.mxu0 0.0
      %919 = vmatpush1.msra.mxu0 0.0
      %920 = vmatprep.subr.mxu0 0.0
      %921 = vmatpush1.msra.mxu0 0.0
      %922 = vmatprep.subr.mxu0 0.0
      %923 = vmatpush1.msra.mxu0 0.0
      %924 = vmatprep.subr.mxu0 0.0
      %925 = vmatpush1.msra.mxu0 0.0
      %926 = vmatprep.subr.mxu0 0.0
      %927 = vmatpush1.msra.mxu0 0.0
      %928 = vmatprep.subr.mxu0 0.0
      %929 = vmatpush1.msra.mxu0 0.0
      %930 = vmatprep.subr.mxu0 0.0
      %931 = vmatpush1.msra.mxu0 0.0
      %932 = vmatprep.subr.mxu0 0.0
      %933 = vmatpush1.msra.mxu0 0.0
      %934 = vmatprep.subr.mxu0 0.0
      %935 = vmatpush1.msra.mxu0 0.0
      %936 = vmatprep.subr.mxu0 0.0
      %937 = vmatpush1.msra.mxu0 0.0
      %938 = vmatprep.subr.mxu0 0.0
      %939 = vmatpush1.msra.mxu0 0.0
      %940 = vmatprep.subr.mxu0 0.0
      %941 = vmatpush1.msra.mxu0 0.0
      %942 = vmatprep.subr.mxu0 0.0
      %943 = vmatpush1.msra.mxu0 0.0
      %944 = vmatprep.subr.mxu0 0.0
      %945 = vmatpush1.msra.mxu0 0.0
      %946 = vmatprep.subr.mxu0 0.0
      %947 = vmatpush1.msra.mxu0 0.0
      %948 = vmatprep.subr.mxu0 0.0
      %949 = vmatpush1.msra.mxu0 0.0
      %950 = vmatprep.subr.mxu0 0.0
      %951 = vmatpush1.msra.mxu0 0.0
      %952 = vmatprep.subr.mxu0 0.0
      %953 = vmatpush1.msra.mxu0 0.0
      %954 = vmatprep.subr.mxu0 0.0
      %955 = vmatpush1.msra.mxu0 0.0
      %956 = vmatprep.subr.mxu0 0.0
      %957 = vmatpush1.msra.mxu0 0.0
      %958 = vmatprep.mubr.f32.mxu0 0.0
      %959 = vmatmul.mubr.f32.gmra.mrb[0].mxu0 %v646
      %v960 = vpop.f32.mrb[0].mxu0
      %v961 = vadd.f32 %v570, %v960
      %v962 = vpop.f32.mrb[0].mxu0
      %v963 = vadd.f32 %v570, %v962
      %964 = vdwg.mxu0
      %965 = vmatprep.subr.mxu0 %v667
      %966 = vmatpush1.msra.mxu0 %v665
      %967 = vmatprep.subr.mxu0 0.0
      %968 = vmatpush1.msra.mxu0 0.0
      %969 = vmatprep.subr.mxu0 0.0
      %970 = vmatpush1.msra.mxu0 0.0
      %971 = vmatprep.subr.mxu0 0.0
      %972 = vmatpush1.msra.mxu0 0.0
      %973 = vmatprep.subr.mxu0 0.0
      %974 = vmatpush1.msra.mxu0 0.0
      %975 = vmatprep.subr.mxu0 0.0
      %976 = vmatpush1.msra.mxu0 0.0
      %977 = vmatprep.subr.mxu0 0.0
      %978 = vmatpush1.msra.mxu0 0.0
      %979 = vmatprep.subr.mxu0 0.0
      %980 = vmatpush1.msra.mxu0 0.0
      %981 = vmatprep.subr.mxu0 0.0
      %982 = vmatpush1.msra.mxu0 0.0
      %983 = vmatprep.subr.mxu0 0.0
      %984 = vmatpush1.msra.mxu0 0.0
      %985 = vmatprep.subr.mxu0 0.0
      %986 = vmatpush1.msra.mxu0 0.0
      %987 = vmatprep.subr.mxu0 0.0
      %988 = vmatpush1.msra.mxu0 0.0
      %989 = vmatprep.subr.mxu0 0.0
      %990 = vmatpush1.msra.mxu0 0.0
      %991 = vmatprep.subr.mxu0 0.0
      %992 = vmatpush1.msra.mxu0 0.0
      %993 = vmatprep.subr.mxu0 0.0
      %994 = vmatpush1.msra.mxu0 0.0
      %995 = vmatprep.subr.mxu0 0.0
      %996 = vmatpush1.msra.mxu0 0.0
      %997 = vmatprep.subr.mxu0 0.0
      %998 = vmatpush1.msra.mxu0 0.0
      %999 = vmatprep.subr.mxu0 0.0
      %1000 = vmatpush1.msra.mxu0 0.0
      %1001 = vmatprep.subr.mxu0 0.0
      %1002 = vmatpush1.msra.mxu0 0.0
      %1003 = vmatprep.subr.mxu0 0.0
      %1004 = vmatpush1.msra.mxu0 0.0
      %1005 = vmatprep.subr.mxu0 0.0
      %1006 = vmatpush1.msra.mxu0 0.0
      %1007 = vmatprep.subr.mxu0 0.0
      %1008 = vmatpush1.msra.mxu0 0.0
      %1009 = vmatprep.subr.mxu0 0.0
      %1010 = vmatpush1.msra.mxu0 0.0
      %1011 = vmatprep.subr.mxu0 0.0
      %1012 = vmatpush1.msra.mxu0 0.0
      %1013 = vmatprep.subr.mxu0 0.0
      %1014 = vmatpush1.msra.mxu0 0.0
      %1015 = vmatprep.subr.mxu0 0.0
      %1016 = vmatpush1.msra.mxu0 0.0
      %1017 = vmatprep.subr.mxu0 0.0
      %1018 = vmatpush1.msra.mxu0 0.0
      %1019 = vmatprep.subr.mxu0 0.0
      %1020 = vmatpush1.msra.mxu0 0.0
      %1021 = vmatprep.subr.mxu0 0.0
      %1022 = vmatpush1.msra.mxu0 0.0
      %1023 = vmatprep.subr.mxu0 0.0
      %1024 = vmatpush1.msra.mxu0 0.0
      %1025 = vmatprep.subr.mxu0 0.0
      %1026 = vmatpush1.msra.mxu0 0.0
      %1027 = vmatprep.subr.mxu0 0.0
      %1028 = vmatpush1.msra.mxu0 0.0
      %1029 = vmatprep.mubr.f32.mxu0 0.0
      %1030 = vmatmul.mubr.f32.gmra.mrb[0].mxu0 %v646
      %v1031 = vpop.f32.mrb[0].mxu0
      %v1032 = vadd.f32 %v570, %v1031
      %v1033 = vpop.f32.mrb[0].mxu0
      %v1034 = vadd.f32 %v570, %v1033
      %1035 = vdwg.mxu0
      %1036 = vmatprep.subr.mxu0 %v671
      %1037 = vmatpush1.msra.mxu0 %v669
      %1038 = vmatprep.subr.mxu0 0.0
      %1039 = vmatpush1.msra.mxu0 0.0
      %1040 = vmatprep.subr.mxu0 0.0
      %1041 = vmatpush1.msra.mxu0 0.0
      %1042 = vmatprep.subr.mxu0 0.0
      %1043 = vmatpush1.msra.mxu0 0.0
      %1044 = vmatprep.subr.mxu0 0.0
      %1045 = vmatpush1.msra.mxu0 0.0
      %1046 = vmatprep.subr.mxu0 0.0
      %1047 = vmatpush1.msra.mxu0 0.0
      %1048 = vmatprep.subr.mxu0 0.0
      %1049 = vmatpush1.msra.mxu0 0.0
      %1050 = vmatprep.subr.mxu0 0.0
      %1051 = vmatpush1.msra.mxu0 0.0
      %1052 = vmatprep.subr.mxu0 0.0
      %1053 = vmatpush1.msra.mxu0 0.0
      %1054 = vmatprep.subr.mxu0 0.0
      %1055 = vmatpush1.msra.mxu0 0.0
      %1056 = vmatprep.subr.mxu0 0.0
      %1057 = vmatpush1.msra.mxu0 0.0
      %1058 = vmatprep.subr.mxu0 0.0
      %1059 = vmatpush1.msra.mxu0 0.0
      %1060 = vmatprep.subr.mxu0 0.0
      %1061 = vmatpush1.msra.mxu0 0.0
      %1062 = vmatprep.subr.mxu0 0.0
      %1063 = vmatpush1.msra.mxu0 0.0
      %1064 = vmatprep.subr.mxu0 0.0
      %1065 = vmatpush1.msra.mxu0 0.0
      %1066 = vmatprep.subr.mxu0 0.0
      %1067 = vmatpush1.msra.mxu0 0.0
      %1068 = vmatprep.subr.mxu0 0.0
      %1069 = vmatpush1.msra.mxu0 0.0
      %1070 = vmatprep.subr.mxu0 0.0
      %1071 = vmatpush1.msra.mxu0 0.0
      %1072 = vmatprep.subr.mxu0 0.0
      %1073 = vmatpush1.msra.mxu0 0.0
      %1074 = vmatprep.subr.mxu0 0.0
      %1075 = vmatpush1.msra.mxu0 0.0
      %1076 = vmatprep.subr.mxu0 0.0
      %1077 = vmatpush1.msra.mxu0 0.0
      %1078 = vmatprep.subr.mxu0 0.0
      %1079 = vmatpush1.msra.mxu0 0.0
      %1080 = vmatprep.subr.mxu0 0.0
      %1081 = vmatpush1.msra.mxu0 0.0
      %1082 = vmatprep.subr.mxu0 0.0
      %1083 = vmatpush1.msra.mxu0 0.0
      %1084 = vmatprep.subr.mxu0 0.0
      %1085 = vmatpush1.msra.mxu0 0.0
      %1086 = vmatprep.subr.mxu0 0.0
      %1087 = vmatpush1.msra.mxu0 0.0
      %1088 = vmatprep.subr.mxu0 0.0
      %1089 = vmatpush1.msra.mxu0 0.0
      %1090 = vmatprep.subr.mxu0 0.0
      %1091 = vmatpush1.msra.mxu0 0.0
      %1092 = vmatprep.subr.mxu0 0.0
      %1093 = vmatpush1.msra.mxu0 0.0
      %1094 = vmatprep.subr.mxu0 0.0
      %1095 = vmatpush1.msra.mxu0 0.0
      %1096 = vmatprep.subr.mxu0 0.0
      %1097 = vmatpush1.msra.mxu0 0.0
      %1098 = vmatprep.subr.mxu0 0.0
      %1099 = vmatpush1.msra.mxu0 0.0
      %1100 = vmatprep.mubr.f32.mxu0 0.0
      %1101 = vmatmul.mubr.f32.gmra.mrb[0].mxu0 %v646
      %v1102 = vpop.f32.mrb[0].mxu0
      %v1103 = vadd.f32 %v570, %v1102
      %v1104 = vpop.f32.mrb[0].mxu0
      %v1105 = vadd.f32 %v570, %v1104
      %1106 = vdwg.mxu0
      %1107 = vmatprep.subr.mxu0 %v675
      %1108 = vmatpush1.msra.mxu0 %v673
      %1109 = vmatprep.subr.mxu0 0.0
      %1110 = vmatpush1.msra.mxu0 0.0
      %1111 = vmatprep.subr.mxu0 0.0
      %1112 = vmatpush1.msra.mxu0 0.0
      %1113 = vmatprep.subr.mxu0 0.0
      %1114 = vmatpush1.msra.mxu0 0.0
      %1115 = vmatprep.subr.mxu0 0.0
      %1116 = vmatpush1.msra.mxu0 0.0
      %1117 = vmatprep.subr.mxu0 0.0
      %1118 = vmatpush1.msra.mxu0 0.0
      %1119 = vmatprep.subr.mxu0 0.0
      %1120 = vmatpush1.msra.mxu0 0.0
      %1121 = vmatprep.subr.mxu0 0.0
      %1122 = vmatpush1.msra.mxu0 0.0
      %1123 = vmatprep.subr.mxu0 0.0
      %1124 = vmatpush1.msra.mxu0 0.0
      %1125 = vmatprep.subr.mxu0 0.0
      %1126 = vmatpush1.msra.mxu0 0.0
      %1127 = vmatprep.subr.mxu0 0.0
      %1128 = vmatpush1.msra.mxu0 0.0
      %1129 = vmatprep.subr.mxu0 0.0
      %1130 = vmatpush1.msra.mxu0 0.0
      %1131 = vmatprep.subr.mxu0 0.0
      %1132 = vmatpush1.msra.mxu0 0.0
      %1133 = vmatprep.subr.mxu0 0.0
      %1134 = vmatpush1.msra.mxu0 0.0
      %1135 = vmatprep.subr.mxu0 0.0
      %1136 = vmatpush1.msra.mxu0 0.0
      %1137 = vmatprep.subr.mxu0 0.0
      %1138 = vmatpush1.msra.mxu0 0.0
      %1139 = vmatprep.subr.mxu0 0.0
      %1140 = vmatpush1.msra.mxu0 0.0
      %1141 = vmatprep.subr.mxu0 0.0
      %1142 = vmatpush1.msra.mxu0 0.0
      %1143 = vmatprep.subr.mxu0 0.0
      %1144 = vmatpush1.msra.mxu0 0.0
      %1145 = vmatprep.subr.mxu0 0.0
      %1146 = vmatpush1.msra.mxu0 0.0
      %1147 = vmatprep.subr.mxu0 0.0
      %1148 = vmatpush1.msra.mxu0 0.0
      %1149 = vmatprep.subr.mxu0 0.0
      %1150 = vmatpush1.msra.mxu0 0.0
      %1151 = vmatprep.subr.mxu0 0.0
      %1152 = vmatpush1.msra.mxu0 0.0
      %1153 = vmatprep.subr.mxu0 0.0
      %1154 = vmatpush1.msra.mxu0 0.0
      %1155 = vmatprep.subr.mxu0 0.0
      %1156 = vmatpush1.msra.mxu0 0.0
      %1157 = vmatprep.subr.mxu0 0.0
      %1158 = vmatpush1.msra.mxu0 0.0
      %1159 = vmatprep.subr.mxu0 0.0
      %1160 = vmatpush1.msra.mxu0 0.0
      %1161 = vmatprep.subr.mxu0 0.0
      %1162 = vmatpush1.msra.mxu0 0.0
      %1163 = vmatprep.subr.mxu0 0.0
      %1164 = vmatpush1.msra.mxu0 0.0
      %1165 = vmatprep.subr.mxu0 0.0
      %1166 = vmatpush1.msra.mxu0 0.0
      %1167 = vmatprep.subr.mxu0 0.0
      %1168 = vmatpush1.msra.mxu0 0.0
      %1169 = vmatprep.subr.mxu0 0.0
      %1170 = vmatpush1.msra.mxu0 0.0
      %1171 = vmatprep.mubr.f32.mxu0 0.0
      %1172 = vmatmul.mubr.f32.gmra.mrb[0].mxu0 %v646
      %v1173 = vpop.f32.mrb[0].mxu0
      %v1174 = vadd.f32 %v570, %v1173
      %v1175 = vpop.f32.mrb[0].mxu0
      %v1176 = vadd.f32 %v570, %v1175
      %1177 = vdwg.mxu0
      %1178 = vmatprep.subr.mxu0 %v679
      %1179 = vmatpush1.msra.mxu0 %v677
      %1180 = vmatprep.subr.mxu0 0.0
      %1181 = vmatpush1.msra.mxu0 0.0
      %1182 = vmatprep.subr.mxu0 0.0
      %1183 = vmatpush1.msra.mxu0 0.0
      %1184 = vmatprep.subr.mxu0 0.0
      %1185 = vmatpush1.msra.mxu0 0.0
      %1186 = vmatprep.subr.mxu0 0.0
      %1187 = vmatpush1.msra.mxu0 0.0
      %1188 = vmatprep.subr.mxu0 0.0
      %1189 = vmatpush1.msra.mxu0 0.0
      %1190 = vmatprep.subr.mxu0 0.0
      %1191 = vmatpush1.msra.mxu0 0.0
      %1192 = vmatprep.subr.mxu0 0.0
      %1193 = vmatpush1.msra.mxu0 0.0
      %1194 = vmatprep.subr.mxu0 0.0
      %1195 = vmatpush1.msra.mxu0 0.0
      %1196 = vmatprep.subr.mxu0 0.0
      %1197 = vmatpush1.msra.mxu0 0.0
      %1198 = vmatprep.subr.mxu0 0.0
      %1199 = vmatpush1.msra.mxu0 0.0
      %1200 = vmatprep.subr.mxu0 0.0
      %1201 = vmatpush1.msra.mxu0 0.0
      %1202 = vmatprep.subr.mxu0 0.0
      %1203 = vmatpush1.msra.mxu0 0.0
      %1204 = vmatprep.subr.mxu0 0.0
      %1205 = vmatpush1.msra.mxu0 0.0
      %1206 = vmatprep.subr.mxu0 0.0
      %1207 = vmatpush1.msra.mxu0 0.0
      %1208 = vmatprep.subr.mxu0 0.0
      %1209 = vmatpush1.msra.mxu0 0.0
      %1210 = vmatprep.subr.mxu0 0.0
      %1211 = vmatpush1.msra.mxu0 0.0
      %1212 = vmatprep.subr.mxu0 0.0
      %1213 = vmatpush1.msra.mxu0 0.0
      %1214 = vmatprep.subr.mxu0 0.0
      %1215 = vmatpush1.msra.mxu0 0.0
      %1216 = vmatprep.subr.mxu0 0.0
      %1217 = vmatpush1.msra.mxu0 0.0
      %1218 = vmatprep.subr.mxu0 0.0
      %1219 = vmatpush1.msra.mxu0 0.0
      %1220 = vmatprep.subr.mxu0 0.0
      %1221 = vmatpush1.msra.mxu0 0.0
      %1222 = vmatprep.subr.mxu0 0.0
      %1223 = vmatpush1.msra.mxu0 0.0
      %1224 = vmatprep.subr.mxu0 0.0
      %1225 = vmatpush1.msra.mxu0 0.0
      %1226 = vmatprep.subr.mxu0 0.0
      %1227 = vmatpush1.msra.mxu0 0.0
      %1228 = vmatprep.subr.mxu0 0.0
      %1229 = vmatpush1.msra.mxu0 0.0
      %1230 = vmatprep.subr.mxu0 0.0
      %1231 = vmatpush1.msra.mxu0 0.0
      %1232 = vmatprep.subr.mxu0 0.0
      %1233 = vmatpush1.msra.mxu0 0.0
      %1234 = vmatprep.subr.mxu0 0.0
      %1235 = vmatpush1.msra.mxu0 0.0
      %1236 = vmatprep.subr.mxu0 0.0
      %1237 = vmatpush1.msra.mxu0 0.0
      %1238 = vmatprep.subr.mxu0 0.0
      %1239 = vmatpush1.msra.mxu0 0.0
      %1240 = vmatprep.subr.mxu0 0.0
      %1241 = vmatpush1.msra.mxu0 0.0
      %1242 = vmatprep.mubr.f32.mxu0 0.0
      %1243 = vmatmul.mubr.f32.gmra.mrb[0].mxu0 %v646
      %v1244 = vpop.f32.mrb[0].mxu0
      %v1245 = vadd.f32 %v570, %v1244
      %v1246 = vpop.f32.mrb[0].mxu0
      %v1247 = vadd.f32 %v570, %v1246
      %1248 = vdwg.mxu0
      %v1249 = vld [vmem:[%s2] sm:$0x3f]
      %v1250 = vld [vmem:[%s5] sm:$0x3f]
      %1252 = vset.pattern.permute.xlu0 0
      %1253 = vperm.xlu0 %1252, %v1250
      %v1254 = vpop.permute.xlu0 %1253
      %vm1256 = vcmask 31744
      %v1258 = vsel %vm1256, %v1249, 0
      %vm1260 = vcmask 1043456
      %v1262 = vsel %vm1260, %v748, 0
      %v1265 = vsel %vm1260, %v750, 0
      %v1268 = vsel %vm1260, %v819, 0
      %v1271 = vsel %vm1260, %v821, 0
      %v1274 = vsel %vm1260, %v890, 0
      %v1277 = vsel %vm1260, %v892, 0
      %v1280 = vsel %vm1260, %v961, 0
      %v1283 = vsel %vm1260, %v963, 0
      %v1286 = vsel %vm1260, %v1032, 0
      %v1289 = vsel %vm1260, %v1034, 0
      %v1292 = vsel %vm1260, %v1103, 0
      %v1295 = vsel %vm1260, %v1105, 0
      %v1298 = vsel %vm1260, %v1174, 0
      %v1301 = vsel %vm1260, %v1176, 0
      %v1304 = vsel %vm1260, %v1245, 0
      %v1307 = vsel %vm1260, %v1247, 0
      %1309 = vmatprep.subr.mxu0 %v1265
      %1310 = vmatpush1.msra.mxu0 %v1262
      %1311 = vmatprep.subr.mxu0 0.0
      %1312 = vmatpush1.msra.mxu0 0.0
      %1313 = vmatprep.subr.mxu0 0.0
      %1314 = vmatpush1.msra.mxu0 0.0
      %1315 = vmatprep.subr.mxu0 0.0
      %1316 = vmatpush1.msra.mxu0 0.0
      %1317 = vmatprep.subr.mxu0 0.0
      %1318 = vmatpush1.msra.mxu0 0.0
      %1319 = vmatprep.subr.mxu0 0.0
      %1320 = vmatpush1.msra.mxu0 0.0
      %1321 = vmatprep.subr.mxu0 0.0
      %1322 = vmatpush1.msra.mxu0 0.0
      %1323 = vmatprep.subr.mxu0 0.0
      %1324 = vmatpush1.msra.mxu0 0.0
      %1325 = vmatprep.subr.mxu0 0.0
      %1326 = vmatpush1.msra.mxu0 0.0
      %1327 = vmatprep.subr.mxu0 0.0
      %1328 = vmatpush1.msra.mxu0 0.0
      %1329 = vmatprep.subr.mxu0 0.0
      %1330 = vmatpush1.msra.mxu0 0.0
      %1331 = vmatprep.subr.mxu0 0.0
      %1332 = vmatpush1.msra.mxu0 0.0
      %1333 = vmatprep.subr.mxu0 0.0
      %1334 = vmatpush1.msra.mxu0 0.0
      %1335 = vmatprep.subr.mxu0 0.0
      %1336 = vmatpush1.msra.mxu0 0.0
      %1337 = vmatprep.subr.mxu0 0.0
      %1338 = vmatpush1.msra.mxu0 0.0
      %1339 = vmatprep.subr.mxu0 0.0
      %1340 = vmatpush1.msra.mxu0 0.0
      %1341 = vmatprep.subr.mxu0 0.0
      %1342 = vmatpush1.msra.mxu0 0.0
      %1343 = vmatprep.subr.mxu0 0.0
      %1344 = vmatpush1.msra.mxu0 0.0
      %1345 = vmatprep.subr.mxu0 0.0
      %1346 = vmatpush1.msra.mxu0 0.0
      %1347 = vmatprep.subr.mxu0 0.0
      %1348 = vmatpush1.msra.mxu0 0.0
      %1349 = vmatprep.subr.mxu0 0.0
      %1350 = vmatpush1.msra.mxu0 0.0
      %1351 = vmatprep.subr.mxu0 0.0
      %1352 = vmatpush1.msra.mxu0 0.0
      %1353 = vmatprep.subr.mxu0 0.0
      %1354 = vmatpush1.msra.mxu0 0.0
      %1355 = vmatprep.subr.mxu0 0.0
      %1356 = vmatpush1.msra.mxu0 0.0
      %1357 = vmatprep.subr.mxu0 0.0
      %1358 = vmatpush1.msra.mxu0 0.0
      %1359 = vmatprep.subr.mxu0 0.0
      %1360 = vmatpush1.msra.mxu0 0.0
      %1361 = vmatprep.subr.mxu0 0.0
      %1362 = vmatpush1.msra.mxu0 0.0
      %1363 = vmatprep.subr.mxu0 0.0
      %1364 = vmatpush1.msra.mxu0 0.0
      %1365 = vmatprep.subr.mxu0 0.0
      %1366 = vmatpush1.msra.mxu0 0.0
      %1367 = vmatprep.subr.mxu0 0.0
      %1368 = vmatpush1.msra.mxu0 0.0
      %1369 = vmatprep.subr.mxu0 0.0
      %1370 = vmatpush1.msra.mxu0 0.0
      %1371 = vmatprep.subr.mxu0 0.0
      %1372 = vmatpush1.msra.mxu0 0.0
      %1373 = vmatprep.mubr.f32.mxu0 0.0
      %1374 = vmatmul.mubr.f32.gmra.mrb[0].mxu0 %v1258
      %v1375 = vpop.f32.mrb[0].mxu0
      %v1376 = vadd.f32 %v1254, %v1375
      %v1377 = vpop.f32.mrb[0].mxu0
      %v1378 = vadd.f32 %v1254, %v1377
      %1379 = vdwg.mxu0
      %1380 = vmatprep.subr.mxu0 %v1271
      %1381 = vmatpush1.msra.mxu0 %v1268
      %1382 = vmatprep.subr.mxu0 0.0
      %1383 = vmatpush1.msra.mxu0 0.0
      %1384 = vmatprep.subr.mxu0 0.0
      %1385 = vmatpush1.msra.mxu0 0.0
      %1386 = vmatprep.subr.mxu0 0.0
      %1387 = vmatpush1.msra.mxu0 0.0
      %1388 = vmatprep.subr.mxu0 0.0
      %1389 = vmatpush1.msra.mxu0 0.0
      %1390 = vmatprep.subr.mxu0 0.0
      %1391 = vmatpush1.msra.mxu0 0.0
      %1392 = vmatprep.subr.mxu0 0.0
      %1393 = vmatpush1.msra.mxu0 0.0
      %1394 = vmatprep.subr.mxu0 0.0
      %1395 = vmatpush1.msra.mxu0 0.0
      %1396 = vmatprep.subr.mxu0 0.0
      %1397 = vmatpush1.msra.mxu0 0.0
      %1398 = vmatprep.subr.mxu0 0.0
      %1399 = vmatpush1.msra.mxu0 0.0
      %1400 = vmatprep.subr.mxu0 0.0
      %1401 = vmatpush1.msra.mxu0 0.0
      %1402 = vmatprep.subr.mxu0 0.0
      %1403 = vmatpush1.msra.mxu0 0.0
      %1404 = vmatprep.subr.mxu0 0.0
      %1405 = vmatpush1.msra.mxu0 0.0
      %1406 = vmatprep.subr.mxu0 0.0
      %1407 = vmatpush1.msra.mxu0 0.0
      %1408 = vmatprep.subr.mxu0 0.0
      %1409 = vmatpush1.msra.mxu0 0.0
      %1410 = vmatprep.subr.mxu0 0.0
      %1411 = vmatpush1.msra.mxu0 0.0
      %1412 = vmatprep.subr.mxu0 0.0
      %1413 = vmatpush1.msra.mxu0 0.0
      %1414 = vmatprep.subr.mxu0 0.0
      %1415 = vmatpush1.msra.mxu0 0.0
      %1416 = vmatprep.subr.mxu0 0.0
      %1417 = vmatpush1.msra.mxu0 0.0
      %1418 = vmatprep.subr.mxu0 0.0
      %1419 = vmatpush1.msra.mxu0 0.0
      %1420 = vmatprep.subr.mxu0 0.0
      %1421 = vmatpush1.msra.mxu0 0.0
      %1422 = vmatprep.subr.mxu0 0.0
      %1423 = vmatpush1.msra.mxu0 0.0
      %1424 = vmatprep.subr.mxu0 0.0
      %1425 = vmatpush1.msra.mxu0 0.0
      %1426 = vmatprep.subr.mxu0 0.0
      %1427 = vmatpush1.msra.mxu0 0.0
      %1428 = vmatprep.subr.mxu0 0.0
      %1429 = vmatpush1.msra.mxu0 0.0
      %1430 = vmatprep.subr.mxu0 0.0
      %1431 = vmatpush1.msra.mxu0 0.0
      %1432 = vmatprep.subr.mxu0 0.0
      %1433 = vmatpush1.msra.mxu0 0.0
      %1434 = vmatprep.subr.mxu0 0.0
      %1435 = vmatpush1.msra.mxu0 0.0
      %1436 = vmatprep.subr.mxu0 0.0
      %1437 = vmatpush1.msra.mxu0 0.0
      %1438 = vmatprep.subr.mxu0 0.0
      %1439 = vmatpush1.msra.mxu0 0.0
      %1440 = vmatprep.subr.mxu0 0.0
      %1441 = vmatpush1.msra.mxu0 0.0
      %1442 = vmatprep.subr.mxu0 0.0
      %1443 = vmatpush1.msra.mxu0 0.0
      %1444 = vmatprep.mubr.f32.mxu0 0.0
      %1445 = vmatmul.mubr.f32.gmra.mrb[0].mxu0 %v1258
      %v1446 = vpop.f32.mrb[0].mxu0
      %v1447 = vadd.f32 %v1254, %v1446
      %v1448 = vpop.f32.mrb[0].mxu0
      %v1449 = vadd.f32 %v1254, %v1448
      %1450 = vdwg.mxu0
      %1451 = vmatprep.subr.mxu0 %v1277
      %1452 = vmatpush1.msra.mxu0 %v1274
      %1453 = vmatprep.subr.mxu0 0.0
      %1454 = vmatpush1.msra.mxu0 0.0
      %1455 = vmatprep.subr.mxu0 0.0
      %1456 = vmatpush1.msra.mxu0 0.0
      %1457 = vmatprep.subr.mxu0 0.0
      %1458 = vmatpush1.msra.mxu0 0.0
      %1459 = vmatprep.subr.mxu0 0.0
      %1460 = vmatpush1.msra.mxu0 0.0
      %1461 = vmatprep.subr.mxu0 0.0
      %1462 = vmatpush1.msra.mxu0 0.0
      %1463 = vmatprep.subr.mxu0 0.0
      %1464 = vmatpush1.msra.mxu0 0.0
      %1465 = vmatprep.subr.mxu0 0.0
      %1466 = vmatpush1.msra.mxu0 0.0
      %1467 = vmatprep.subr.mxu0 0.0
      %1468 = vmatpush1.msra.mxu0 0.0
      %1469 = vmatprep.subr.mxu0 0.0
      %1470 = vmatpush1.msra.mxu0 0.0
      %1471 = vmatprep.subr.mxu0 0.0
      %1472 = vmatpush1.msra.mxu0 0.0
      %1473 = vmatprep.subr.mxu0 0.0
      %1474 = vmatpush1.msra.mxu0 0.0
      %1475 = vmatprep.subr.mxu0 0.0
      %1476 = vmatpush1.msra.mxu0 0.0
      %1477 = vmatprep.subr.mxu0 0.0
      %1478 = vmatpush1.msra.mxu0 0.0
      %1479 = vmatprep.subr.mxu0 0.0
      %1480 = vmatpush1.msra.mxu0 0.0
      %1481 = vmatprep.subr.mxu0 0.0
      %1482 = vmatpush1.msra.mxu0 0.0
      %1483 = vmatprep.subr.mxu0 0.0
      %1484 = vmatpush1.msra.mxu0 0.0
      %1485 = vmatprep.subr.mxu0 0.0
      %1486 = vmatpush1.msra.mxu0 0.0
      %1487 = vmatprep.subr.mxu0 0.0
      %1488 = vmatpush1.msra.mxu0 0.0
      %1489 = vmatprep.subr.mxu0 0.0
      %1490 = vmatpush1.msra.mxu0 0.0
      %1491 = vmatprep.subr.mxu0 0.0
      %1492 = vmatpush1.msra.mxu0 0.0
      %1493 = vmatprep.subr.mxu0 0.0
      %1494 = vmatpush1.msra.mxu0 0.0
      %1495 = vmatprep.subr.mxu0 0.0
      %1496 = vmatpush1.msra.mxu0 0.0
      %1497 = vmatprep.subr.mxu0 0.0
      %1498 = vmatpush1.msra.mxu0 0.0
      %1499 = vmatprep.subr.mxu0 0.0
      %1500 = vmatpush1.msra.mxu0 0.0
      %1501 = vmatprep.subr.mxu0 0.0
      %1502 = vmatpush1.msra.mxu0 0.0
      %1503 = vmatprep.subr.mxu0 0.0
      %1504 = vmatpush1.msra.mxu0 0.0
      %1505 = vmatprep.subr.mxu0 0.0
      %1506 = vmatpush1.msra.mxu0 0.0
      %1507 = vmatprep.subr.mxu0 0.0
      %1508 = vmatpush1.msra.mxu0 0.0
      %1509 = vmatprep.subr.mxu0 0.0
      %1510 = vmatpush1.msra.mxu0 0.0
      %1511 = vmatprep.subr.mxu0 0.0
      %1512 = vmatpush1.msra.mxu0 0.0
      %1513 = vmatprep.subr.mxu0 0.0
      %1514 = vmatpush1.msra.mxu0 0.0
      %1515 = vmatprep.mubr.f32.mxu0 0.0
      %1516 = vmatmul.mubr.f32.gmra.mrb[0].mxu0 %v1258
      %v1517 = vpop.f32.mrb[0].mxu0
      %v1518 = vadd.f32 %v1254, %v1517
      %v1519 = vpop.f32.mrb[0].mxu0
      %v1520 = vadd.f32 %v1254, %v1519
      %1521 = vdwg.mxu0
      %1522 = vmatprep.subr.mxu0 %v1283
      %1523 = vmatpush1.msra.mxu0 %v1280
      %1524 = vmatprep.subr.mxu0 0.0
      %1525 = vmatpush1.msra.mxu0 0.0
      %1526 = vmatprep.subr.mxu0 0.0
      %1527 = vmatpush1.msra.mxu0 0.0
      %1528 = vmatprep.subr.mxu0 0.0
      %1529 = vmatpush1.msra.mxu0 0.0
      %1530 = vmatprep.subr.mxu0 0.0
      %1531 = vmatpush1.msra.mxu0 0.0
      %1532 = vmatprep.subr.mxu0 0.0
      %1533 = vmatpush1.msra.mxu0 0.0
      %1534 = vmatprep.subr.mxu0 0.0
      %1535 = vmatpush1.msra.mxu0 0.0
      %1536 = vmatprep.subr.mxu0 0.0
      %1537 = vmatpush1.msra.mxu0 0.0
      %1538 = vmatprep.subr.mxu0 0.0
      %1539 = vmatpush1.msra.mxu0 0.0
      %1540 = vmatprep.subr.mxu0 0.0
      %1541 = vmatpush1.msra.mxu0 0.0
      %1542 = vmatprep.subr.mxu0 0.0
      %1543 = vmatpush1.msra.mxu0 0.0
      %1544 = vmatprep.subr.mxu0 0.0
      %1545 = vmatpush1.msra.mxu0 0.0
      %1546 = vmatprep.subr.mxu0 0.0
      %1547 = vmatpush1.msra.mxu0 0.0
      %1548 = vmatprep.subr.mxu0 0.0
      %1549 = vmatpush1.msra.mxu0 0.0
      %1550 = vmatprep.subr.mxu0 0.0
      %1551 = vmatpush1.msra.mxu0 0.0
      %1552 = vmatprep.subr.mxu0 0.0
      %1553 = vmatpush1.msra.mxu0 0.0
      %1554 = vmatprep.subr.mxu0 0.0
      %1555 = vmatpush1.msra.mxu0 0.0
      %1556 = vmatprep.subr.mxu0 0.0
      %1557 = vmatpush1.msra.mxu0 0.0
      %1558 = vmatprep.subr.mxu0 0.0
      %1559 = vmatpush1.msra.mxu0 0.0
      %1560 = vmatprep.subr.mxu0 0.0
      %1561 = vmatpush1.msra.mxu0 0.0
      %1562 = vmatprep.subr.mxu0 0.0
      %1563 = vmatpush1.msra.mxu0 0.0
      %1564 = vmatprep.subr.mxu0 0.0
      %1565 = vmatpush1.msra.mxu0 0.0
      %1566 = vmatprep.subr.mxu0 0.0
      %1567 = vmatpush1.msra.mxu0 0.0
      %1568 = vmatprep.subr.mxu0 0.0
      %1569 = vmatpush1.msra.mxu0 0.0
      %1570 = vmatprep.subr.mxu0 0.0
      %1571 = vmatpush1.msra.mxu0 0.0
      %1572 = vmatprep.subr.mxu0 0.0
      %1573 = vmatpush1.msra.mxu0 0.0
      %1574 = vmatprep.subr.mxu0 0.0
      %1575 = vmatpush1.msra.mxu0 0.0
      %1576 = vmatprep.subr.mxu0 0.0
      %1577 = vmatpush1.msra.mxu0 0.0
      %1578 = vmatprep.subr.mxu0 0.0
      %1579 = vmatpush1.msra.mxu0 0.0
      %1580 = vmatprep.subr.mxu0 0.0
      %1581 = vmatpush1.msra.mxu0 0.0
      %1582 = vmatprep.subr.mxu0 0.0
      %1583 = vmatpush1.msra.mxu0 0.0
      %1584 = vmatprep.subr.mxu0 0.0
      %1585 = vmatpush1.msra.mxu0 0.0
      %1586 = vmatprep.mubr.f32.mxu0 0.0
      %1587 = vmatmul.mubr.f32.gmra.mrb[0].mxu0 %v1258
      %v1588 = vpop.f32.mrb[0].mxu0
      %v1589 = vadd.f32 %v1254, %v1588
      %v1590 = vpop.f32.mrb[0].mxu0
      %v1591 = vadd.f32 %v1254, %v1590
      %1592 = vdwg.mxu0
      %1593 = vmatprep.subr.mxu0 %v1289
      %1594 = vmatpush1.msra.mxu0 %v1286
      %1595 = vmatprep.subr.mxu0 0.0
      %1596 = vmatpush1.msra.mxu0 0.0
      %1597 = vmatprep.subr.mxu0 0.0
      %1598 = vmatpush1.msra.mxu0 0.0
      %1599 = vmatprep.subr.mxu0 0.0
      %1600 = vmatpush1.msra.mxu0 0.0
      %1601 = vmatprep.subr.mxu0 0.0
      %1602 = vmatpush1.msra.mxu0 0.0
      %1603 = vmatprep.subr.mxu0 0.0
      %1604 = vmatpush1.msra.mxu0 0.0
      %1605 = vmatprep.subr.mxu0 0.0
      %1606 = vmatpush1.msra.mxu0 0.0
      %1607 = vmatprep.subr.mxu0 0.0
      %1608 = vmatpush1.msra.mxu0 0.0
      %1609 = vmatprep.subr.mxu0 0.0
      %1610 = vmatpush1.msra.mxu0 0.0
      %1611 = vmatprep.subr.mxu0 0.0
      %1612 = vmatpush1.msra.mxu0 0.0
      %1613 = vmatprep.subr.mxu0 0.0
      %1614 = vmatpush1.msra.mxu0 0.0
      %1615 = vmatprep.subr.mxu0 0.0
      %1616 = vmatpush1.msra.mxu0 0.0
      %1617 = vmatprep.subr.mxu0 0.0
      %1618 = vmatpush1.msra.mxu0 0.0
      %1619 = vmatprep.subr.mxu0 0.0
      %1620 = vmatpush1.msra.mxu0 0.0
      %1621 = vmatprep.subr.mxu0 0.0
      %1622 = vmatpush1.msra.mxu0 0.0
      %1623 = vmatprep.subr.mxu0 0.0
      %1624 = vmatpush1.msra.mxu0 0.0
      %1625 = vmatprep.subr.mxu0 0.0
      %1626 = vmatpush1.msra.mxu0 0.0
      %1627 = vmatprep.subr.mxu0 0.0
      %1628 = vmatpush1.msra.mxu0 0.0
      %1629 = vmatprep.subr.mxu0 0.0
      %1630 = vmatpush1.msra.mxu0 0.0
      %1631 = vmatprep.subr.mxu0 0.0
      %1632 = vmatpush1.msra.mxu0 0.0
      %1633 = vmatprep.subr.mxu0 0.0
      %1634 = vmatpush1.msra.mxu0 0.0
      %1635 = vmatprep.subr.mxu0 0.0
      %1636 = vmatpush1.msra.mxu0 0.0
      %1637 = vmatprep.subr.mxu0 0.0
      %1638 = vmatpush1.msra.mxu0 0.0
      %1639 = vmatprep.subr.mxu0 0.0
      %1640 = vmatpush1.msra.mxu0 0.0
      %1641 = vmatprep.subr.mxu0 0.0
      %1642 = vmatpush1.msra.mxu0 0.0
      %1643 = vmatprep.subr.mxu0 0.0
      %1644 = vmatpush1.msra.mxu0 0.0
      %1645 = vmatprep.subr.mxu0 0.0
      %1646 = vmatpush1.msra.mxu0 0.0
      %1647 = vmatprep.subr.mxu0 0.0
      %1648 = vmatpush1.msra.mxu0 0.0
      %1649 = vmatprep.subr.mxu0 0.0
      %1650 = vmatpush1.msra.mxu0 0.0
      %1651 = vmatprep.subr.mxu0 0.0
      %1652 = vmatpush1.msra.mxu0 0.0
      %1653 = vmatprep.subr.mxu0 0.0
      %1654 = vmatpush1.msra.mxu0 0.0
      %1655 = vmatprep.subr.mxu0 0.0
      %1656 = vmatpush1.msra.mxu0 0.0
      %1657 = vmatprep.mubr.f32.mxu0 0.0
      %1658 = vmatmul.mubr.f32.gmra.mrb[0].mxu0 %v1258
      %v1659 = vpop.f32.mrb[0].mxu0
      %v1660 = vadd.f32 %v1254, %v1659
      %v1661 = vpop.f32.mrb[0].mxu0
      %v1662 = vadd.f32 %v1254, %v1661
      %1663 = vdwg.mxu0
      %1664 = vmatprep.subr.mxu0 %v1295
      %1665 = vmatpush1.msra.mxu0 %v1292
      %1666 = vmatprep.subr.mxu0 0.0
      %1667 = vmatpush1.msra.mxu0 0.0
      %1668 = vmatprep.subr.mxu0 0.0
      %1669 = vmatpush1.msra.mxu0 0.0
      %1670 = vmatprep.subr.mxu0 0.0
      %1671 = vmatpush1.msra.mxu0 0.0
      %1672 = vmatprep.subr.mxu0 0.0
      %1673 = vmatpush1.msra.mxu0 0.0
      %1674 = vmatprep.subr.mxu0 0.0
      %1675 = vmatpush1.msra.mxu0 0.0
      %1676 = vmatprep.subr.mxu0 0.0
      %1677 = vmatpush1.msra.mxu0 0.0
      %1678 = vmatprep.subr.mxu0 0.0
      %1679 = vmatpush1.msra.mxu0 0.0
      %1680 = vmatprep.subr.mxu0 0.0
      %1681 = vmatpush1.msra.mxu0 0.0
      %1682 = vmatprep.subr.mxu0 0.0
      %1683 = vmatpush1.msra.mxu0 0.0
      %1684 = vmatprep.subr.mxu0 0.0
      %1685 = vmatpush1.msra.mxu0 0.0
      %1686 = vmatprep.subr.mxu0 0.0
      %1687 = vmatpush1.msra.mxu0 0.0
      %1688 = vmatprep.subr.mxu0 0.0
      %1689 = vmatpush1.msra.mxu0 0.0
      %1690 = vmatprep.subr.mxu0 0.0
      %1691 = vmatpush1.msra.mxu0 0.0
      %1692 = vmatprep.subr.mxu0 0.0
      %1693 = vmatpush1.msra.mxu0 0.0
      %1694 = vmatprep.subr.mxu0 0.0
      %1695 = vmatpush1.msra.mxu0 0.0
      %1696 = vmatprep.subr.mxu0 0.0
      %1697 = vmatpush1.msra.mxu0 0.0
      %1698 = vmatprep.subr.mxu0 0.0
      %1699 = vmatpush1.msra.mxu0 0.0
      %1700 = vmatprep.subr.mxu0 0.0
      %1701 = vmatpush1.msra.mxu0 0.0
      %1702 = vmatprep.subr.mxu0 0.0
      %1703 = vmatpush1.msra.mxu0 0.0
      %1704 = vmatprep.subr.mxu0 0.0
      %1705 = vmatpush1.msra.mxu0 0.0
      %1706 = vmatprep.subr.mxu0 0.0
      %1707 = vmatpush1.msra.mxu0 0.0
      %1708 = vmatprep.subr.mxu0 0.0
      %1709 = vmatpush1.msra.mxu0 0.0
      %1710 = vmatprep.subr.mxu0 0.0
      %1711 = vmatpush1.msra.mxu0 0.0
      %1712 = vmatprep.subr.mxu0 0.0
      %1713 = vmatpush1.msra.mxu0 0.0
      %1714 = vmatprep.subr.mxu0 0.0
      %1715 = vmatpush1.msra.mxu0 0.0
      %1716 = vmatprep.subr.mxu0 0.0
      %1717 = vmatpush1.msra.mxu0 0.0
      %1718 = vmatprep.subr.mxu0 0.0
      %1719 = vmatpush1.msra.mxu0 0.0
      %1720 = vmatprep.subr.mxu0 0.0
      %1721 = vmatpush1.msra.mxu0 0.0
      %1722 = vmatprep.subr.mxu0 0.0
      %1723 = vmatpush1.msra.mxu0 0.0
      %1724 = vmatprep.subr.mxu0 0.0
      %1725 = vmatpush1.msra.mxu0 0.0
      %1726 = vmatprep.subr.mxu0 0.0
      %1727 = vmatpush1.msra.mxu0 0.0
      %1728 = vmatprep.mubr.f32.mxu0 0.0
      %1729 = vmatmul.mubr.f32.gmra.mrb[0].mxu0 %v1258
      %v1730 = vpop.f32.mrb[0].mxu0
      %v1731 = vadd.f32 %v1254, %v1730
      %v1732 = vpop.f32.mrb[0].mxu0
      %v1733 = vadd.f32 %v1254, %v1732
      %1734 = vdwg.mxu0
      %1735 = vmatprep.subr.mxu0 %v1301
      %1736 = vmatpush1.msra.mxu0 %v1298
      %1737 = vmatprep.subr.mxu0 0.0
      %1738 = vmatpush1.msra.mxu0 0.0
      %1739 = vmatprep.subr.mxu0 0.0
      %1740 = vmatpush1.msra.mxu0 0.0
      %1741 = vmatprep.subr.mxu0 0.0
      %1742 = vmatpush1.msra.mxu0 0.0
      %1743 = vmatprep.subr.mxu0 0.0
      %1744 = vmatpush1.msra.mxu0 0.0
      %1745 = vmatprep.subr.mxu0 0.0
      %1746 = vmatpush1.msra.mxu0 0.0
      %1747 = vmatprep.subr.mxu0 0.0
      %1748 = vmatpush1.msra.mxu0 0.0
      %1749 = vmatprep.subr.mxu0 0.0
      %1750 = vmatpush1.msra.mxu0 0.0
      %1751 = vmatprep.subr.mxu0 0.0
      %1752 = vmatpush1.msra.mxu0 0.0
      %1753 = vmatprep.subr.mxu0 0.0
      %1754 = vmatpush1.msra.mxu0 0.0
      %1755 = vmatprep.subr.mxu0 0.0
      %1756 = vmatpush1.msra.mxu0 0.0
      %1757 = vmatprep.subr.mxu0 0.0
      %1758 = vmatpush1.msra.mxu0 0.0
      %1759 = vmatprep.subr.mxu0 0.0
      %1760 = vmatpush1.msra.mxu0 0.0
      %1761 = vmatprep.subr.mxu0 0.0
      %1762 = vmatpush1.msra.mxu0 0.0
      %1763 = vmatprep.subr.mxu0 0.0
      %1764 = vmatpush1.msra.mxu0 0.0
      %1765 = vmatprep.subr.mxu0 0.0
      %1766 = vmatpush1.msra.mxu0 0.0
      %1767 = vmatprep.subr.mxu0 0.0
      %1768 = vmatpush1.msra.mxu0 0.0
      %1769 = vmatprep.subr.mxu0 0.0
      %1770 = vmatpush1.msra.mxu0 0.0
      %1771 = vmatprep.subr.mxu0 0.0
      %1772 = vmatpush1.msra.mxu0 0.0
      %1773 = vmatprep.subr.mxu0 0.0
      %1774 = vmatpush1.msra.mxu0 0.0
      %1775 = vmatprep.subr.mxu0 0.0
      %1776 = vmatpush1.msra.mxu0 0.0
      %1777 = vmatprep.subr.mxu0 0.0
      %1778 = vmatpush1.msra.mxu0 0.0
      %1779 = vmatprep.subr.mxu0 0.0
      %1780 = vmatpush1.msra.mxu0 0.0
      %1781 = vmatprep.subr.mxu0 0.0
      %1782 = vmatpush1.msra.mxu0 0.0
      %1783 = vmatprep.subr.mxu0 0.0
      %1784 = vmatpush1.msra.mxu0 0.0
      %1785 = vmatprep.subr.mxu0 0.0
      %1786 = vmatpush1.msra.mxu0 0.0
      %1787 = vmatprep.subr.mxu0 0.0
      %1788 = vmatpush1.msra.mxu0 0.0
      %1789 = vmatprep.subr.mxu0 0.0
      %1790 = vmatpush1.msra.mxu0 0.0
      %1791 = vmatprep.subr.mxu0 0.0
      %1792 = vmatpush1.msra.mxu0 0.0
      %1793 = vmatprep.subr.mxu0 0.0
      %1794 = vmatpush1.msra.mxu0 0.0
      %1795 = vmatprep.subr.mxu0 0.0
      %1796 = vmatpush1.msra.mxu0 0.0
      %1797 = vmatprep.subr.mxu0 0.0
      %1798 = vmatpush1.msra.mxu0 0.0
      %1799 = vmatprep.mubr.f32.mxu0 0.0
      %1800 = vmatmul.mubr.f32.gmra.mrb[0].mxu0 %v1258
      %v1801 = vpop.f32.mrb[0].mxu0
      %v1802 = vadd.f32 %v1254, %v1801
      %v1803 = vpop.f32.mrb[0].mxu0
      %v1804 = vadd.f32 %v1254, %v1803
      %1805 = vdwg.mxu0
      %1806 = vmatprep.subr.mxu0 %v1307
      %1807 = vmatpush1.msra.mxu0 %v1304
      %1808 = vmatprep.subr.mxu0 0.0
      %1809 = vmatpush1.msra.mxu0 0.0
      %1810 = vmatprep.subr.mxu0 0.0
      %1811 = vmatpush1.msra.mxu0 0.0
      %1812 = vmatprep.subr.mxu0 0.0
      %1813 = vmatpush1.msra.mxu0 0.0
      %1814 = vmatprep.subr.mxu0 0.0
      %1815 = vmatpush1.msra.mxu0 0.0
      %1816 = vmatprep.subr.mxu0 0.0
      %1817 = vmatpush1.msra.mxu0 0.0
      %1818 = vmatprep.subr.mxu0 0.0
      %1819 = vmatpush1.msra.mxu0 0.0
      %1820 = vmatprep.subr.mxu0 0.0
      %1821 = vmatpush1.msra.mxu0 0.0
      %1822 = vmatprep.subr.mxu0 0.0
      %1823 = vmatpush1.msra.mxu0 0.0
      %1824 = vmatprep.subr.mxu0 0.0
      %1825 = vmatpush1.msra.mxu0 0.0
      %1826 = vmatprep.subr.mxu0 0.0
      %1827 = vmatpush1.msra.mxu0 0.0
      %1828 = vmatprep.subr.mxu0 0.0
      %1829 = vmatpush1.msra.mxu0 0.0
      %1830 = vmatprep.subr.mxu0 0.0
      %1831 = vmatpush1.msra.mxu0 0.0
      %1832 = vmatprep.subr.mxu0 0.0
      %1833 = vmatpush1.msra.mxu0 0.0
      %1834 = vmatprep.subr.mxu0 0.0
      %1835 = vmatpush1.msra.mxu0 0.0
      %1836 = vmatprep.subr.mxu0 0.0
      %1837 = vmatpush1.msra.mxu0 0.0
      %1838 = vmatprep.subr.mxu0 0.0
      %1839 = vmatpush1.msra.mxu0 0.0
      %1840 = vmatprep.subr.mxu0 0.0
      %1841 = vmatpush1.msra.mxu0 0.0
      %1842 = vmatprep.subr.mxu0 0.0
      %1843 = vmatpush1.msra.mxu0 0.0
      %1844 = vmatprep.subr.mxu0 0.0
      %1845 = vmatpush1.msra.mxu0 0.0
      %1846 = vmatprep.subr.mxu0 0.0
      %1847 = vmatpush1.msra.mxu0 0.0
      %1848 = vmatprep.subr.mxu0 0.0
      %1849 = vmatpush1.msra.mxu0 0.0
      %1850 = vmatprep.subr.mxu0 0.0
      %1851 = vmatpush1.msra.mxu0 0.0
      %1852 = vmatprep.subr.mxu0 0.0
      %1853 = vmatpush1.msra.mxu0 0.0
      %1854 = vmatprep.subr.mxu0 0.0
      %1855 = vmatpush1.msra.mxu0 0.0
      %1856 = vmatprep.subr.mxu0 0.0
      %1857 = vmatpush1.msra.mxu0 0.0
      %1858 = vmatprep.subr.mxu0 0.0
      %1859 = vmatpush1.msra.mxu0 0.0
      %1860 = vmatprep.subr.mxu0 0.0
      %1861 = vmatpush1.msra.mxu0 0.0
      %1862 = vmatprep.subr.mxu0 0.0
      %1863 = vmatpush1.msra.mxu0 0.0
      %1864 = vmatprep.subr.mxu0 0.0
      %1865 = vmatpush1.msra.mxu0 0.0
      %1866 = vmatprep.subr.mxu0 0.0
      %1867 = vmatpush1.msra.mxu0 0.0
      %1868 = vmatprep.subr.mxu0 0.0
      %1869 = vmatpush1.msra.mxu0 0.0
      %1870 = vmatprep.mubr.f32.mxu0 0.0
      %1871 = vmatmul.mubr.f32.gmra.mrb[0].mxu0 %v1258
      %v1872 = vpop.f32.mrb[0].mxu0
      %v1873 = vadd.f32 %v1254, %v1872
      %v1874 = vpop.f32.mrb[0].mxu0
      %v1875 = vadd.f32 %v1254, %v1874
      %1876 = vdwg.mxu0
      %v1877 = vld [vmem:[%s3] sm:$0xff]
      %v1878 = vld [vmem:[%s6] sm:$0xff]
      %1880 = vset.pattern.permute.xlu0 0
      %1881 = vperm.xlu0 %1880, %v1878
      %v1882 = vpop.permute.xlu0 %1881
      %vm1884 = vcmask 48128
      %v1886 = vsel %vm1884, %v1877, 0
      %vm1888 = vcmask 1045504
      %v1890 = vsel %vm1888, %v1376, 0
      %v1893 = vsel %vm1888, %v1378, 0
      %v1896 = vsel %vm1888, %v1447, 0
      %v1899 = vsel %vm1888, %v1449, 0
      %v1902 = vsel %vm1888, %v1518, 0
      %v1905 = vsel %vm1888, %v1520, 0
      %v1908 = vsel %vm1888, %v1589, 0
      %v1911 = vsel %vm1888, %v1591, 0
      %v1914 = vsel %vm1888, %v1660, 0
      %v1917 = vsel %vm1888, %v1662, 0
      %v1920 = vsel %vm1888, %v1731, 0
      %v1923 = vsel %vm1888, %v1733, 0
      %v1926 = vsel %vm1888, %v1802, 0
      %v1929 = vsel %vm1888, %v1804, 0
      %v1932 = vsel %vm1888, %v1873, 0
      %v1935 = vsel %vm1888, %v1875, 0
      %1937 = vmatprep.subr.mxu0 %v1893
      %1938 = vmatpush1.msra.mxu0 %v1890
      %1939 = vmatprep.subr.mxu0 0.0
      %1940 = vmatpush1.msra.mxu0 0.0
      %1941 = vmatprep.subr.mxu0 0.0
      %1942 = vmatpush1.msra.mxu0 0.0
      %1943 = vmatprep.subr.mxu0 0.0
      %1944 = vmatpush1.msra.mxu0 0.0
      %1945 = vmatprep.subr.mxu0 0.0
      %1946 = vmatpush1.msra.mxu0 0.0
      %1947 = vmatprep.subr.mxu0 0.0
      %1948 = vmatpush1.msra.mxu0 0.0
      %1949 = vmatprep.subr.mxu0 0.0
      %1950 = vmatpush1.msra.mxu0 0.0
      %1951 = vmatprep.subr.mxu0 0.0
      %1952 = vmatpush1.msra.mxu0 0.0
      %1953 = vmatprep.subr.mxu0 0.0
      %1954 = vmatpush1.msra.mxu0 0.0
      %1955 = vmatprep.subr.mxu0 0.0
      %1956 = vmatpush1.msra.mxu0 0.0
      %1957 = vmatprep.subr.mxu0 0.0
      %1958 = vmatpush1.msra.mxu0 0.0
      %1959 = vmatprep.subr.mxu0 0.0
      %1960 = vmatpush1.msra.mxu0 0.0
      %1961 = vmatprep.subr.mxu0 0.0
      %1962 = vmatpush1.msra.mxu0 0.0
      %1963 = vmatprep.subr.mxu0 0.0
      %1964 = vmatpush1.msra.mxu0 0.0
      %1965 = vmatprep.subr.mxu0 0.0
      %1966 = vmatpush1.msra.mxu0 0.0
      %1967 = vmatprep.subr.mxu0 0.0
      %1968 = vmatpush1.msra.mxu0 0.0
      %1969 = vmatprep.subr.mxu0 0.0
      %1970 = vmatpush1.msra.mxu0 0.0
      %1971 = vmatprep.subr.mxu0 0.0
      %1972 = vmatpush1.msra.mxu0 0.0
      %1973 = vmatprep.subr.mxu0 0.0
      %1974 = vmatpush1.msra.mxu0 0.0
      %1975 = vmatprep.subr.mxu0 0.0
      %1976 = vmatpush1.msra.mxu0 0.0
      %1977 = vmatprep.subr.mxu0 0.0
      %1978 = vmatpush1.msra.mxu0 0.0
      %1979 = vmatprep.subr.mxu0 0.0
      %1980 = vmatpush1.msra.mxu0 0.0
      %1981 = vmatprep.subr.mxu0 0.0
      %1982 = vmatpush1.msra.mxu0 0.0
      %1983 = vmatprep.subr.mxu0 0.0
      %1984 = vmatpush1.msra.mxu0 0.0
      %1985 = vmatprep.subr.mxu0 0.0
      %1986 = vmatpush1.msra.mxu0 0.0
      %1987 = vmatprep.subr.mxu0 0.0
      %1988 = vmatpush1.msra.mxu0 0.0
      %1989 = vmatprep.subr.mxu0 0.0
      %1990 = vmatpush1.msra.mxu0 0.0
      %1991 = vmatprep.subr.mxu0 0.0
      %1992 = vmatpush1.msra.mxu0 0.0
      %1993 = vmatprep.subr.mxu0 0.0
      %1994 = vmatpush1.msra.mxu0 0.0
      %1995 = vmatprep.subr.mxu0 0.0
      %1996 = vmatpush1.msra.mxu0 0.0
      %1997 = vmatprep.subr.mxu0 0.0
      %1998 = vmatpush1.msra.mxu0 0.0
      %1999 = vmatprep.subr.mxu0 0.0
      %2000 = vmatpush1.msra.mxu0 0.0
      %2001 = vmatprep.mubr.f32.mxu0 0.0
      %2002 = vmatmul.mubr.f32.gmra.mrb[0].mxu0 %v1886
      %v2003 = vpop.f32.mrb[0].mxu0
      %v2004 = vadd.f32 %v1882, %v2003
      %v2005 = vpop.f32.mrb[0].mxu0
      %v2006 = vadd.f32 %v1882, %v2005
      %2007 = vdwg.mxu0
      %2008 = vmatprep.subr.mxu0 %v1899
      %2009 = vmatpush1.msra.mxu0 %v1896
      %2010 = vmatprep.subr.mxu0 0.0
      %2011 = vmatpush1.msra.mxu0 0.0
      %2012 = vmatprep.subr.mxu0 0.0
      %2013 = vmatpush1.msra.mxu0 0.0
      %2014 = vmatprep.subr.mxu0 0.0
      %2015 = vmatpush1.msra.mxu0 0.0
      %2016 = vmatprep.subr.mxu0 0.0
      %2017 = vmatpush1.msra.mxu0 0.0
      %2018 = vmatprep.subr.mxu0 0.0
      %2019 = vmatpush1.msra.mxu0 0.0
      %2020 = vmatprep.subr.mxu0 0.0
      %2021 = vmatpush1.msra.mxu0 0.0
      %2022 = vmatprep.subr.mxu0 0.0
      %2023 = vmatpush1.msra.mxu0 0.0
      %2024 = vmatprep.subr.mxu0 0.0
      %2025 = vmatpush1.msra.mxu0 0.0
      %2026 = vmatprep.subr.mxu0 0.0
      %2027 = vmatpush1.msra.mxu0 0.0
      %2028 = vmatprep.subr.mxu0 0.0
      %2029 = vmatpush1.msra.mxu0 0.0
      %2030 = vmatprep.subr.mxu0 0.0
      %2031 = vmatpush1.msra.mxu0 0.0
      %2032 = vmatprep.subr.mxu0 0.0
      %2033 = vmatpush1.msra.mxu0 0.0
      %2034 = vmatprep.subr.mxu0 0.0
      %2035 = vmatpush1.msra.mxu0 0.0
      %2036 = vmatprep.subr.mxu0 0.0
      %2037 = vmatpush1.msra.mxu0 0.0
      %2038 = vmatprep.subr.mxu0 0.0
      %2039 = vmatpush1.msra.mxu0 0.0
      %2040 = vmatprep.subr.mxu0 0.0
      %2041 = vmatpush1.msra.mxu0 0.0
      %2042 = vmatprep.subr.mxu0 0.0
      %2043 = vmatpush1.msra.mxu0 0.0
      %2044 = vmatprep.subr.mxu0 0.0
      %2045 = vmatpush1.msra.mxu0 0.0
      %2046 = vmatprep.subr.mxu0 0.0
      %2047 = vmatpush1.msra.mxu0 0.0
      %2048 = vmatprep.subr.mxu0 0.0
      %2049 = vmatpush1.msra.mxu0 0.0
      %2050 = vmatprep.subr.mxu0 0.0
      %2051 = vmatpush1.msra.mxu0 0.0
      %2052 = vmatprep.subr.mxu0 0.0
      %2053 = vmatpush1.msra.mxu0 0.0
      %2054 = vmatprep.subr.mxu0 0.0
      %2055 = vmatpush1.msra.mxu0 0.0
      %2056 = vmatprep.subr.mxu0 0.0
      %2057 = vmatpush1.msra.mxu0 0.0
      %2058 = vmatprep.subr.mxu0 0.0
      %2059 = vmatpush1.msra.mxu0 0.0
      %2060 = vmatprep.subr.mxu0 0.0
      %2061 = vmatpush1.msra.mxu0 0.0
      %2062 = vmatprep.subr.mxu0 0.0
      %2063 = vmatpush1.msra.mxu0 0.0
      %2064 = vmatprep.subr.mxu0 0.0
      %2065 = vmatpush1.msra.mxu0 0.0
      %2066 = vmatprep.subr.mxu0 0.0
      %2067 = vmatpush1.msra.mxu0 0.0
      %2068 = vmatprep.subr.mxu0 0.0
      %2069 = vmatpush1.msra.mxu0 0.0
      %2070 = vmatprep.subr.mxu0 0.0
      %2071 = vmatpush1.msra.mxu0 0.0
      %2072 = vmatprep.mubr.f32.mxu0 0.0
      %2073 = vmatmul.mubr.f32.gmra.mrb[0].mxu0 %v1886
      %v2074 = vpop.f32.mrb[0].mxu0
      %v2075 = vadd.f32 %v1882, %v2074
      %v2076 = vpop.f32.mrb[0].mxu0
      %v2077 = vadd.f32 %v1882, %v2076
      %2078 = vdwg.mxu0
      %2079 = vmatprep.subr.mxu0 %v1905
      %2080 = vmatpush1.msra.mxu0 %v1902
      %2081 = vmatprep.subr.mxu0 0.0
      %2082 = vmatpush1.msra.mxu0 0.0
      %2083 = vmatprep.subr.mxu0 0.0
      %2084 = vmatpush1.msra.mxu0 0.0
      %2085 = vmatprep.subr.mxu0 0.0
      %2086 = vmatpush1.msra.mxu0 0.0
      %2087 = vmatprep.subr.mxu0 0.0
      %2088 = vmatpush1.msra.mxu0 0.0
      %2089 = vmatprep.subr.mxu0 0.0
      %2090 = vmatpush1.msra.mxu0 0.0
      %2091 = vmatprep.subr.mxu0 0.0
      %2092 = vmatpush1.msra.mxu0 0.0
      %2093 = vmatprep.subr.mxu0 0.0
      %2094 = vmatpush1.msra.mxu0 0.0
      %2095 = vmatprep.subr.mxu0 0.0
      %2096 = vmatpush1.msra.mxu0 0.0
      %2097 = vmatprep.subr.mxu0 0.0
      %2098 = vmatpush1.msra.mxu0 0.0
      %2099 = vmatprep.subr.mxu0 0.0
      %2100 = vmatpush1.msra.mxu0 0.0
      %2101 = vmatprep.subr.mxu0 0.0
      %2102 = vmatpush1.msra.mxu0 0.0
      %2103 = vmatprep.subr.mxu0 0.0
      %2104 = vmatpush1.msra.mxu0 0.0
      %2105 = vmatprep.subr.mxu0 0.0
      %2106 = vmatpush1.msra.mxu0 0.0
      %2107 = vmatprep.subr.mxu0 0.0
      %2108 = vmatpush1.msra.mxu0 0.0
      %2109 = vmatprep.subr.mxu0 0.0
      %2110 = vmatpush1.msra.mxu0 0.0
      %2111 = vmatprep.subr.mxu0 0.0
      %2112 = vmatpush1.msra.mxu0 0.0
      %2113 = vmatprep.subr.mxu0 0.0
      %2114 = vmatpush1.msra.mxu0 0.0
      %2115 = vmatprep.subr.mxu0 0.0
      %2116 = vmatpush1.msra.mxu0 0.0
      %2117 = vmatprep.subr.mxu0 0.0
      %2118 = vmatpush1.msra.mxu0 0.0
      %2119 = vmatprep.subr.mxu0 0.0
      %2120 = vmatpush1.msra.mxu0 0.0
      %2121 = vmatprep.subr.mxu0 0.0
      %2122 = vmatpush1.msra.mxu0 0.0
      %2123 = vmatprep.subr.mxu0 0.0
      %2124 = vmatpush1.msra.mxu0 0.0
      %2125 = vmatprep.subr.mxu0 0.0
      %2126 = vmatpush1.msra.mxu0 0.0
      %2127 = vmatprep.subr.mxu0 0.0
      %2128 = vmatpush1.msra.mxu0 0.0
      %2129 = vmatprep.subr.mxu0 0.0
      %2130 = vmatpush1.msra.mxu0 0.0
      %2131 = vmatprep.subr.mxu0 0.0
      %2132 = vmatpush1.msra.mxu0 0.0
      %2133 = vmatprep.subr.mxu0 0.0
      %2134 = vmatpush1.msra.mxu0 0.0
      %2135 = vmatprep.subr.mxu0 0.0
      %2136 = vmatpush1.msra.mxu0 0.0
      %2137 = vmatprep.subr.mxu0 0.0
      %2138 = vmatpush1.msra.mxu0 0.0
      %2139 = vmatprep.subr.mxu0 0.0
      %2140 = vmatpush1.msra.mxu0 0.0
      %2141 = vmatprep.subr.mxu0 0.0
      %2142 = vmatpush1.msra.mxu0 0.0
      %2143 = vmatprep.mubr.f32.mxu0 0.0
      %2144 = vmatmul.mubr.f32.gmra.mrb[0].mxu0 %v1886
      %v2145 = vpop.f32.mrb[0].mxu0
      %v2146 = vadd.f32 %v1882, %v2145
      %v2147 = vpop.f32.mrb[0].mxu0
      %v2148 = vadd.f32 %v1882, %v2147
      %2149 = vdwg.mxu0
      %2150 = vmatprep.subr.mxu0 %v1911
      %2151 = vmatpush1.msra.mxu0 %v1908
      %2152 = vmatprep.subr.mxu0 0.0
      %2153 = vmatpush1.msra.mxu0 0.0
      %2154 = vmatprep.subr.mxu0 0.0
      %2155 = vmatpush1.msra.mxu0 0.0
      %2156 = vmatprep.subr.mxu0 0.0
      %2157 = vmatpush1.msra.mxu0 0.0
      %2158 = vmatprep.subr.mxu0 0.0
      %2159 = vmatpush1.msra.mxu0 0.0
      %2160 = vmatprep.subr.mxu0 0.0
      %2161 = vmatpush1.msra.mxu0 0.0
      %2162 = vmatprep.subr.mxu0 0.0
      %2163 = vmatpush1.msra.mxu0 0.0
      %2164 = vmatprep.subr.mxu0 0.0
      %2165 = vmatpush1.msra.mxu0 0.0
      %2166 = vmatprep.subr.mxu0 0.0
      %2167 = vmatpush1.msra.mxu0 0.0
      %2168 = vmatprep.subr.mxu0 0.0
      %2169 = vmatpush1.msra.mxu0 0.0
      %2170 = vmatprep.subr.mxu0 0.0
      %2171 = vmatpush1.msra.mxu0 0.0
      %2172 = vmatprep.subr.mxu0 0.0
      %2173 = vmatpush1.msra.mxu0 0.0
      %2174 = vmatprep.subr.mxu0 0.0
      %2175 = vmatpush1.msra.mxu0 0.0
      %2176 = vmatprep.subr.mxu0 0.0
      %2177 = vmatpush1.msra.mxu0 0.0
      %2178 = vmatprep.subr.mxu0 0.0
      %2179 = vmatpush1.msra.mxu0 0.0
      %2180 = vmatprep.subr.mxu0 0.0
      %2181 = vmatpush1.msra.mxu0 0.0
      %2182 = vmatprep.subr.mxu0 0.0
      %2183 = vmatpush1.msra.mxu0 0.0
      %2184 = vmatprep.subr.mxu0 0.0
      %2185 = vmatpush1.msra.mxu0 0.0
      %2186 = vmatprep.subr.mxu0 0.0
      %2187 = vmatpush1.msra.mxu0 0.0
      %2188 = vmatprep.subr.mxu0 0.0
      %2189 = vmatpush1.msra.mxu0 0.0
      %2190 = vmatprep.subr.mxu0 0.0
      %2191 = vmatpush1.msra.mxu0 0.0
      %2192 = vmatprep.subr.mxu0 0.0
      %2193 = vmatpush1.msra.mxu0 0.0
      %2194 = vmatprep.subr.mxu0 0.0
      %2195 = vmatpush1.msra.mxu0 0.0
      %2196 = vmatprep.subr.mxu0 0.0
      %2197 = vmatpush1.msra.mxu0 0.0
      %2198 = vmatprep.subr.mxu0 0.0
      %2199 = vmatpush1.msra.mxu0 0.0
      %2200 = vmatprep.subr.mxu0 0.0
      %2201 = vmatpush1.msra.mxu0 0.0
      %2202 = vmatprep.subr.mxu0 0.0
      %2203 = vmatpush1.msra.mxu0 0.0
      %2204 = vmatprep.subr.mxu0 0.0
      %2205 = vmatpush1.msra.mxu0 0.0
      %2206 = vmatprep.subr.mxu0 0.0
      %2207 = vmatpush1.msra.mxu0 0.0
      %2208 = vmatprep.subr.mxu0 0.0
      %2209 = vmatpush1.msra.mxu0 0.0
      %2210 = vmatprep.subr.mxu0 0.0
      %2211 = vmatpush1.msra.mxu0 0.0
      %2212 = vmatprep.subr.mxu0 0.0
      %2213 = vmatpush1.msra.mxu0 0.0
      %2214 = vmatprep.mubr.f32.mxu0 0.0
      %2215 = vmatmul.mubr.f32.gmra.mrb[0].mxu0 %v1886
      %v2216 = vpop.f32.mrb[0].mxu0
      %v2217 = vadd.f32 %v1882, %v2216
      %v2218 = vpop.f32.mrb[0].mxu0
      %v2219 = vadd.f32 %v1882, %v2218
      %2220 = vdwg.mxu0
      %2221 = vmatprep.subr.mxu0 %v1917
      %2222 = vmatpush1.msra.mxu0 %v1914
      %2223 = vmatprep.subr.mxu0 0.0
      %2224 = vmatpush1.msra.mxu0 0.0
      %2225 = vmatprep.subr.mxu0 0.0
      %2226 = vmatpush1.msra.mxu0 0.0
      %2227 = vmatprep.subr.mxu0 0.0
      %2228 = vmatpush1.msra.mxu0 0.0
      %2229 = vmatprep.subr.mxu0 0.0
      %2230 = vmatpush1.msra.mxu0 0.0
      %2231 = vmatprep.subr.mxu0 0.0
      %2232 = vmatpush1.msra.mxu0 0.0
      %2233 = vmatprep.subr.mxu0 0.0
      %2234 = vmatpush1.msra.mxu0 0.0
      %2235 = vmatprep.subr.mxu0 0.0
      %2236 = vmatpush1.msra.mxu0 0.0
      %2237 = vmatprep.subr.mxu0 0.0
      %2238 = vmatpush1.msra.mxu0 0.0
      %2239 = vmatprep.subr.mxu0 0.0
      %2240 = vmatpush1.msra.mxu0 0.0
      %2241 = vmatprep.subr.mxu0 0.0
      %2242 = vmatpush1.msra.mxu0 0.0
      %2243 = vmatprep.subr.mxu0 0.0
      %2244 = vmatpush1.msra.mxu0 0.0
      %2245 = vmatprep.subr.mxu0 0.0
      %2246 = vmatpush1.msra.mxu0 0.0
      %2247 = vmatprep.subr.mxu0 0.0
      %2248 = vmatpush1.msra.mxu0 0.0
      %2249 = vmatprep.subr.mxu0 0.0
      %2250 = vmatpush1.msra.mxu0 0.0
      %2251 = vmatprep.subr.mxu0 0.0
      %2252 = vmatpush1.msra.mxu0 0.0
      %2253 = vmatprep.subr.mxu0 0.0
      %2254 = vmatpush1.msra.mxu0 0.0
      %2255 = vmatprep.subr.mxu0 0.0
      %2256 = vmatpush1.msra.mxu0 0.0
      %2257 = vmatprep.subr.mxu0 0.0
      %2258 = vmatpush1.msra.mxu0 0.0
      %2259 = vmatprep.subr.mxu0 0.0
      %2260 = vmatpush1.msra.mxu0 0.0
      %2261 = vmatprep.subr.mxu0 0.0
      %2262 = vmatpush1.msra.mxu0 0.0
      %2263 = vmatprep.subr.mxu0 0.0
      %2264 = vmatpush1.msra.mxu0 0.0
      %2265 = vmatprep.subr.mxu0 0.0
      %2266 = vmatpush1.msra.mxu0 0.0
      %2267 = vmatprep.subr.mxu0 0.0
      %2268 = vmatpush1.msra.mxu0 0.0
      %2269 = vmatprep.subr.mxu0 0.0
      %2270 = vmatpush1.msra.mxu0 0.0
      %2271 = vmatprep.subr.mxu0 0.0
      %2272 = vmatpush1.msra.mxu0 0.0
      %2273 = vmatprep.subr.mxu0 0.0
      %2274 = vmatpush1.msra.mxu0 0.0
      %2275 = vmatprep.subr.mxu0 0.0
      %2276 = vmatpush1.msra.mxu0 0.0
      %2277 = vmatprep.subr.mxu0 0.0
      %2278 = vmatpush1.msra.mxu0 0.0
      %2279 = vmatprep.subr.mxu0 0.0
      %2280 = vmatpush1.msra.mxu0 0.0
      %2281 = vmatprep.subr.mxu0 0.0
      %2282 = vmatpush1.msra.mxu0 0.0
      %2283 = vmatprep.subr.mxu0 0.0
      %2284 = vmatpush1.msra.mxu0 0.0
      %2285 = vmatprep.mubr.f32.mxu0 0.0
      %2286 = vmatmul.mubr.f32.gmra.mrb[0].mxu0 %v1886
      %v2287 = vpop.f32.mrb[0].mxu0
      %v2288 = vadd.f32 %v1882, %v2287
      %v2289 = vpop.f32.mrb[0].mxu0
      %v2290 = vadd.f32 %v1882, %v2289
      %2291 = vdwg.mxu0
      %2292 = vmatprep.subr.mxu0 %v1923
      %2293 = vmatpush1.msra.mxu0 %v1920
      %2294 = vmatprep.subr.mxu0 0.0
      %2295 = vmatpush1.msra.mxu0 0.0
      %2296 = vmatprep.subr.mxu0 0.0
      %2297 = vmatpush1.msra.mxu0 0.0
      %2298 = vmatprep.subr.mxu0 0.0
      %2299 = vmatpush1.msra.mxu0 0.0
      %2300 = vmatprep.subr.mxu0 0.0
      %2301 = vmatpush1.msra.mxu0 0.0
      %2302 = vmatprep.subr.mxu0 0.0
      %2303 = vmatpush1.msra.mxu0 0.0
      %2304 = vmatprep.subr.mxu0 0.0
      %2305 = vmatpush1.msra.mxu0 0.0
      %2306 = vmatprep.subr.mxu0 0.0
      %2307 = vmatpush1.msra.mxu0 0.0
      %2308 = vmatprep.subr.mxu0 0.0
      %2309 = vmatpush1.msra.mxu0 0.0
      %2310 = vmatprep.subr.mxu0 0.0
      %2311 = vmatpush1.msra.mxu0 0.0
      %2312 = vmatprep.subr.mxu0 0.0
      %2313 = vmatpush1.msra.mxu0 0.0
      %2314 = vmatprep.subr.mxu0 0.0
      %2315 = vmatpush1.msra.mxu0 0.0
      %2316 = vmatprep.subr.mxu0 0.0
      %2317 = vmatpush1.msra.mxu0 0.0
      %2318 = vmatprep.subr.mxu0 0.0
      %2319 = vmatpush1.msra.mxu0 0.0
      %2320 = vmatprep.subr.mxu0 0.0
      %2321 = vmatpush1.msra.mxu0 0.0
      %2322 = vmatprep.subr.mxu0 0.0
      %2323 = vmatpush1.msra.mxu0 0.0
      %2324 = vmatprep.subr.mxu0 0.0
      %2325 = vmatpush1.msra.mxu0 0.0
      %2326 = vmatprep.subr.mxu0 0.0
      %2327 = vmatpush1.msra.mxu0 0.0
      %2328 = vmatprep.subr.mxu0 0.0
      %2329 = vmatpush1.msra.mxu0 0.0
      %2330 = vmatprep.subr.mxu0 0.0
      %2331 = vmatpush1.msra.mxu0 0.0
      %2332 = vmatprep.subr.mxu0 0.0
      %2333 = vmatpush1.msra.mxu0 0.0
      %2334 = vmatprep.subr.mxu0 0.0
      %2335 = vmatpush1.msra.mxu0 0.0
      %2336 = vmatprep.subr.mxu0 0.0
      %2337 = vmatpush1.msra.mxu0 0.0
      %2338 = vmatprep.subr.mxu0 0.0
      %2339 = vmatpush1.msra.mxu0 0.0
      %2340 = vmatprep.subr.mxu0 0.0
      %2341 = vmatpush1.msra.mxu0 0.0
      %2342 = vmatprep.subr.mxu0 0.0
      %2343 = vmatpush1.msra.mxu0 0.0
      %2344 = vmatprep.subr.mxu0 0.0
      %2345 = vmatpush1.msra.mxu0 0.0
      %2346 = vmatprep.subr.mxu0 0.0
      %2347 = vmatpush1.msra.mxu0 0.0
      %2348 = vmatprep.subr.mxu0 0.0
      %2349 = vmatpush1.msra.mxu0 0.0
      %2350 = vmatprep.subr.mxu0 0.0
      %2351 = vmatpush1.msra.mxu0 0.0
      %2352 = vmatprep.subr.mxu0 0.0
      %2353 = vmatpush1.msra.mxu0 0.0
      %2354 = vmatprep.subr.mxu0 0.0
      %2355 = vmatpush1.msra.mxu0 0.0
      %2356 = vmatprep.mubr.f32.mxu0 0.0
      %2357 = vmatmul.mubr.f32.gmra.mrb[0].mxu0 %v1886
      %v2358 = vpop.f32.mrb[0].mxu0
      %v2359 = vadd.f32 %v1882, %v2358
      %v2360 = vpop.f32.mrb[0].mxu0
      %v2361 = vadd.f32 %v1882, %v2360
      %2362 = vdwg.mxu0
      %2363 = vmatprep.subr.mxu0 %v1929
      %2364 = vmatpush1.msra.mxu0 %v1926
      %2365 = vmatprep.subr.mxu0 0.0
      %2366 = vmatpush1.msra.mxu0 0.0
      %2367 = vmatprep.subr.mxu0 0.0
      %2368 = vmatpush1.msra.mxu0 0.0
      %2369 = vmatprep.subr.mxu0 0.0
      %2370 = vmatpush1.msra.mxu0 0.0
      %2371 = vmatprep.subr.mxu0 0.0
      %2372 = vmatpush1.msra.mxu0 0.0
      %2373 = vmatprep.subr.mxu0 0.0
      %2374 = vmatpush1.msra.mxu0 0.0
      %2375 = vmatprep.subr.mxu0 0.0
      %2376 = vmatpush1.msra.mxu0 0.0
      %2377 = vmatprep.subr.mxu0 0.0
      %2378 = vmatpush1.msra.mxu0 0.0
      %2379 = vmatprep.subr.mxu0 0.0
      %2380 = vmatpush1.msra.mxu0 0.0
      %2381 = vmatprep.subr.mxu0 0.0
      %2382 = vmatpush1.msra.mxu0 0.0
      %2383 = vmatprep.subr.mxu0 0.0
      %2384 = vmatpush1.msra.mxu0 0.0
      %2385 = vmatprep.subr.mxu0 0.0
      %2386 = vmatpush1.msra.mxu0 0.0
      %2387 = vmatprep.subr.mxu0 0.0
      %2388 = vmatpush1.msra.mxu0 0.0
      %2389 = vmatprep.subr.mxu0 0.0
      %2390 = vmatpush1.msra.mxu0 0.0
      %2391 = vmatprep.subr.mxu0 0.0
      %2392 = vmatpush1.msra.mxu0 0.0
      %2393 = vmatprep.subr.mxu0 0.0
      %2394 = vmatpush1.msra.mxu0 0.0
      %2395 = vmatprep.subr.mxu0 0.0
      %2396 = vmatpush1.msra.mxu0 0.0
      %2397 = vmatprep.subr.mxu0 0.0
      %2398 = vmatpush1.msra.mxu0 0.0
      %2399 = vmatprep.subr.mxu0 0.0
      %2400 = vmatpush1.msra.mxu0 0.0
      %2401 = vmatprep.subr.mxu0 0.0
      %2402 = vmatpush1.msra.mxu0 0.0
      %2403 = vmatprep.subr.mxu0 0.0
      %2404 = vmatpush1.msra.mxu0 0.0
      %2405 = vmatprep.subr.mxu0 0.0
      %2406 = vmatpush1.msra.mxu0 0.0
      %2407 = vmatprep.subr.mxu0 0.0
      %2408 = vmatpush1.msra.mxu0 0.0
      %2409 = vmatprep.subr.mxu0 0.0
      %2410 = vmatpush1.msra.mxu0 0.0
      %2411 = vmatprep.subr.mxu0 0.0
      %2412 = vmatpush1.msra.mxu0 0.0
      %2413 = vmatprep.subr.mxu0 0.0
      %2414 = vmatpush1.msra.mxu0 0.0
      %2415 = vmatprep.subr.mxu0 0.0
      %2416 = vmatpush1.msra.mxu0 0.0
      %2417 = vmatprep.subr.mxu0 0.0
      %2418 = vmatpush1.msra.mxu0 0.0
      %2419 = vmatprep.subr.mxu0 0.0
      %2420 = vmatpush1.msra.mxu0 0.0
      %2421 = vmatprep.subr.mxu0 0.0
      %2422 = vmatpush1.msra.mxu0 0.0
      %2423 = vmatprep.subr.mxu0 0.0
      %2424 = vmatpush1.msra.mxu0 0.0
      %2425 = vmatprep.subr.mxu0 0.0
      %2426 = vmatpush1.msra.mxu0 0.0
      %2427 = vmatprep.mubr.f32.mxu0 0.0
      %2428 = vmatmul.mubr.f32.gmra.mrb[0].mxu0 %v1886
      %v2429 = vpop.f32.mrb[0].mxu0
      %v2430 = vadd.f32 %v1882, %v2429
      %v2431 = vpop.f32.mrb[0].mxu0
      %v2432 = vadd.f32 %v1882, %v2431
      %2433 = vdwg.mxu0
      %2434 = vmatprep.subr.mxu0 %v1935
      %2435 = vmatpush1.msra.mxu0 %v1932
      %2436 = vmatprep.subr.mxu0 0.0
      %2437 = vmatpush1.msra.mxu0 0.0
      %2438 = vmatprep.subr.mxu0 0.0
      %2439 = vmatpush1.msra.mxu0 0.0
      %2440 = vmatprep.subr.mxu0 0.0
      %2441 = vmatpush1.msra.mxu0 0.0
      %2442 = vmatprep.subr.mxu0 0.0
      %2443 = vmatpush1.msra.mxu0 0.0
      %2444 = vmatprep.subr.mxu0 0.0
      %2445 = vmatpush1.msra.mxu0 0.0
      %2446 = vmatprep.subr.mxu0 0.0
      %2447 = vmatpush1.msra.mxu0 0.0
      %2448 = vmatprep.subr.mxu0 0.0
      %2449 = vmatpush1.msra.mxu0 0.0
      %2450 = vmatprep.subr.mxu0 0.0
      %2451 = vmatpush1.msra.mxu0 0.0
      %2452 = vmatprep.subr.mxu0 0.0
      %2453 = vmatpush1.msra.mxu0 0.0
      %2454 = vmatprep.subr.mxu0 0.0
      %2455 = vmatpush1.msra.mxu0 0.0
      %2456 = vmatprep.subr.mxu0 0.0
      %2457 = vmatpush1.msra.mxu0 0.0
      %2458 = vmatprep.subr.mxu0 0.0
      %2459 = vmatpush1.msra.mxu0 0.0
      %2460 = vmatprep.subr.mxu0 0.0
      %2461 = vmatpush1.msra.mxu0 0.0
      %2462 = vmatprep.subr.mxu0 0.0
      %2463 = vmatpush1.msra.mxu0 0.0
      %2464 = vmatprep.subr.mxu0 0.0
      %2465 = vmatpush1.msra.mxu0 0.0
      %2466 = vmatprep.subr.mxu0 0.0
      %2467 = vmatpush1.msra.mxu0 0.0
      %2468 = vmatprep.subr.mxu0 0.0
      %2469 = vmatpush1.msra.mxu0 0.0
      %2470 = vmatprep.subr.mxu0 0.0
      %2471 = vmatpush1.msra.mxu0 0.0
      %2472 = vmatprep.subr.mxu0 0.0
      %2473 = vmatpush1.msra.mxu0 0.0
      %2474 = vmatprep.subr.mxu0 0.0
      %2475 = vmatpush1.msra.mxu0 0.0
      %2476 = vmatprep.subr.mxu0 0.0
      %2477 = vmatpush1.msra.mxu0 0.0
      %2478 = vmatprep.subr.mxu0 0.0
      %2479 = vmatpush1.msra.mxu0 0.0
      %2480 = vmatprep.subr.mxu0 0.0
      %2481 = vmatpush1.msra.mxu0 0.0
      %2482 = vmatprep.subr.mxu0 0.0
      %2483 = vmatpush1.msra.mxu0 0.0
      %2484 = vmatprep.subr.mxu0 0.0
      %2485 = vmatpush1.msra.mxu0 0.0
      %2486 = vmatprep.subr.mxu0 0.0
      %2487 = vmatpush1.msra.mxu0 0.0
      %2488 = vmatprep.subr.mxu0 0.0
      %2489 = vmatpush1.msra.mxu0 0.0
      %2490 = vmatprep.subr.mxu0 0.0
      %2491 = vmatpush1.msra.mxu0 0.0
      %2492 = vmatprep.subr.mxu0 0.0
      %2493 = vmatpush1.msra.mxu0 0.0
      %2494 = vmatprep.subr.mxu0 0.0
      %2495 = vmatpush1.msra.mxu0 0.0
      %2496 = vmatprep.subr.mxu0 0.0
      %2497 = vmatpush1.msra.mxu0 0.0
      %2498 = vmatprep.mubr.f32.mxu0 0.0
      %2499 = vmatmul.mubr.f32.gmra.mrb[0].mxu0 %v1886
      %v2500 = vpop.f32.mrb[0].mxu0
      %v2501 = vadd.f32 %v1882, %v2500
      %v2502 = vpop.f32.mrb[0].mxu0
      %v2503 = vadd.f32 %v1882, %v2502
      %2504 = vdwg.mxu0
      %v2505 = vld [vmem:[%s7] sm:$0x3f]
      %v2506 = vld [vmem:[%s10] sm:$0x3f]
      %vm2507 = vcmask 64512
      %v2509 = vsel %vm2507, %v2506, 0
      %2511 = vmatprep.subr.mxu0 %v2006
      %2512 = vmatpush1.msra.mxu0 %v2004
      %2513 = vmatprep.subr.mxu0 0.0
      %2514 = vmatpush1.msra.mxu0 0.0
      %2515 = vmatprep.subr.mxu0 0.0
      %2516 = vmatpush1.msra.mxu0 0.0
      %2517 = vmatprep.subr.mxu0 0.0
      %2518 = vmatpush1.msra.mxu0 0.0
      %2519 = vmatprep.subr.mxu0 0.0
      %2520 = vmatpush1.msra.mxu0 0.0
      %2521 = vmatprep.subr.mxu0 0.0
      %2522 = vmatpush1.msra.mxu0 0.0
      %2523 = vmatprep.subr.mxu0 0.0
      %2524 = vmatpush1.msra.mxu0 0.0
      %2525 = vmatprep.subr.mxu0 0.0
      %2526 = vmatpush1.msra.mxu0 0.0
      %2527 = vmatprep.subr.mxu0 0.0
      %2528 = vmatpush1.msra.mxu0 0.0
      %2529 = vmatprep.subr.mxu0 0.0
      %2530 = vmatpush1.msra.mxu0 0.0
      %2531 = vmatprep.subr.mxu0 0.0
      %2532 = vmatpush1.msra.mxu0 0.0
      %2533 = vmatprep.subr.mxu0 0.0
      %2534 = vmatpush1.msra.mxu0 0.0
      %2535 = vmatprep.subr.mxu0 0.0
      %2536 = vmatpush1.msra.mxu0 0.0
      %2537 = vmatprep.subr.mxu0 0.0
      %2538 = vmatpush1.msra.mxu0 0.0
      %2539 = vmatprep.subr.mxu0 0.0
      %2540 = vmatpush1.msra.mxu0 0.0
      %2541 = vmatprep.subr.mxu0 0.0
      %2542 = vmatpush1.msra.mxu0 0.0
      %2543 = vmatprep.subr.mxu0 0.0
      %2544 = vmatpush1.msra.mxu0 0.0
      %2545 = vmatprep.subr.mxu0 0.0
      %2546 = vmatpush1.msra.mxu0 0.0
      %2547 = vmatprep.subr.mxu0 0.0
      %2548 = vmatpush1.msra.mxu0 0.0
      %2549 = vmatprep.subr.mxu0 0.0
      %2550 = vmatpush1.msra.mxu0 0.0
      %2551 = vmatprep.subr.mxu0 0.0
      %2552 = vmatpush1.msra.mxu0 0.0
      %2553 = vmatprep.subr.mxu0 0.0
      %2554 = vmatpush1.msra.mxu0 0.0
      %2555 = vmatprep.subr.mxu0 0.0
      %2556 = vmatpush1.msra.mxu0 0.0
      %2557 = vmatprep.subr.mxu0 0.0
      %2558 = vmatpush1.msra.mxu0 0.0
      %2559 = vmatprep.subr.mxu0 0.0
      %2560 = vmatpush1.msra.mxu0 0.0
      %2561 = vmatprep.subr.mxu0 0.0
      %2562 = vmatpush1.msra.mxu0 0.0
      %2563 = vmatprep.subr.mxu0 0.0
      %2564 = vmatpush1.msra.mxu0 0.0
      %2565 = vmatprep.subr.mxu0 0.0
      %2566 = vmatpush1.msra.mxu0 0.0
      %2567 = vmatprep.subr.mxu0 0.0
      %2568 = vmatpush1.msra.mxu0 0.0
      %2569 = vmatprep.subr.mxu0 0.0
      %2570 = vmatpush1.msra.mxu0 0.0
      %2571 = vmatprep.subr.mxu0 0.0
      %2572 = vmatpush1.msra.mxu0 0.0
      %2573 = vmatprep.subr.mxu0 0.0
      %2574 = vmatpush1.msra.mxu0 0.0
      %2575 = vmatprep.mubr.f32.mxu0 0.0
      %2576 = vmatmul.mubr.f32.gmra.mrb[0].mxu0 %v2509
      %v2577 = vpop.f32.mrb[0].mxu0
      %v2578 = vadd.f32 0.0, %v2577
      %v2579 = vpop.f32.mrb[0].mxu0
      %v2580 = vadd.f32 0.0, %v2579
      %2581 = vdwg.mxu0
      %2582 = vmatprep.subr.mxu0 %v2077
      %2583 = vmatpush1.msra.mxu0 %v2075
      %2584 = vmatprep.subr.mxu0 0.0
      %2585 = vmatpush1.msra.mxu0 0.0
      %2586 = vmatprep.subr.mxu0 0.0
      %2587 = vmatpush1.msra.mxu0 0.0
      %2588 = vmatprep.subr.mxu0 0.0
      %2589 = vmatpush1.msra.mxu0 0.0
      %2590 = vmatprep.subr.mxu0 0.0
      %2591 = vmatpush1.msra.mxu0 0.0
      %2592 = vmatprep.subr.mxu0 0.0
      %2593 = vmatpush1.msra.mxu0 0.0
      %2594 = vmatprep.subr.mxu0 0.0
      %2595 = vmatpush1.msra.mxu0 0.0
      %2596 = vmatprep.subr.mxu0 0.0
      %2597 = vmatpush1.msra.mxu0 0.0
      %2598 = vmatprep.subr.mxu0 0.0
      %2599 = vmatpush1.msra.mxu0 0.0
      %2600 = vmatprep.subr.mxu0 0.0
      %2601 = vmatpush1.msra.mxu0 0.0
      %2602 = vmatprep.subr.mxu0 0.0
      %2603 = vmatpush1.msra.mxu0 0.0
      %2604 = vmatprep.subr.mxu0 0.0
      %2605 = vmatpush1.msra.mxu0 0.0
      %2606 = vmatprep.subr.mxu0 0.0
      %2607 = vmatpush1.msra.mxu0 0.0
      %2608 = vmatprep.subr.mxu0 0.0
      %2609 = vmatpush1.msra.mxu0 0.0
      %2610 = vmatprep.subr.mxu0 0.0
      %2611 = vmatpush1.msra.mxu0 0.0
      %2612 = vmatprep.subr.mxu0 0.0
      %2613 = vmatpush1.msra.mxu0 0.0
      %2614 = vmatprep.subr.mxu0 0.0
      %2615 = vmatpush1.msra.mxu0 0.0
      %2616 = vmatprep.subr.mxu0 0.0
      %2617 = vmatpush1.msra.mxu0 0.0
      %2618 = vmatprep.subr.mxu0 0.0
      %2619 = vmatpush1.msra.mxu0 0.0
      %2620 = vmatprep.subr.mxu0 0.0
      %2621 = vmatpush1.msra.mxu0 0.0
      %2622 = vmatprep.subr.mxu0 0.0
      %2623 = vmatpush1.msra.mxu0 0.0
      %2624 = vmatprep.subr.mxu0 0.0
      %2625 = vmatpush1.msra.mxu0 0.0
      %2626 = vmatprep.subr.mxu0 0.0
      %2627 = vmatpush1.msra.mxu0 0.0
      %2628 = vmatprep.subr.mxu0 0.0
      %2629 = vmatpush1.msra.mxu0 0.0
      %2630 = vmatprep.subr.mxu0 0.0
      %2631 = vmatpush1.msra.mxu0 0.0
      %2632 = vmatprep.subr.mxu0 0.0
      %2633 = vmatpush1.msra.mxu0 0.0
      %2634 = vmatprep.subr.mxu0 0.0
      %2635 = vmatpush1.msra.mxu0 0.0
      %2636 = vmatprep.subr.mxu0 0.0
      %2637 = vmatpush1.msra.mxu0 0.0
      %2638 = vmatprep.subr.mxu0 0.0
      %2639 = vmatpush1.msra.mxu0 0.0
      %2640 = vmatprep.subr.mxu0 0.0
      %2641 = vmatpush1.msra.mxu0 0.0
      %2642 = vmatprep.subr.mxu0 0.0
      %2643 = vmatpush1.msra.mxu0 0.0
      %2644 = vmatprep.subr.mxu0 0.0
      %2645 = vmatpush1.msra.mxu0 0.0
      %2646 = vmatprep.mubr.f32.mxu0 0.0
      %2647 = vmatmul.mubr.f32.gmra.mrb[0].mxu0 %v2509
      %v2648 = vpop.f32.mrb[0].mxu0
      %v2649 = vadd.f32 0.0, %v2648
      %v2650 = vpop.f32.mrb[0].mxu0
      %v2651 = vadd.f32 0.0, %v2650
      %2652 = vdwg.mxu0
      %2653 = vmatprep.subr.mxu0 %v2148
      %2654 = vmatpush1.msra.mxu0 %v2146
      %2655 = vmatprep.subr.mxu0 0.0
      %2656 = vmatpush1.msra.mxu0 0.0
      %2657 = vmatprep.subr.mxu0 0.0
      %2658 = vmatpush1.msra.mxu0 0.0
      %2659 = vmatprep.subr.mxu0 0.0
      %2660 = vmatpush1.msra.mxu0 0.0
      %2661 = vmatprep.subr.mxu0 0.0
      %2662 = vmatpush1.msra.mxu0 0.0
      %2663 = vmatprep.subr.mxu0 0.0
      %2664 = vmatpush1.msra.mxu0 0.0
      %2665 = vmatprep.subr.mxu0 0.0
      %2666 = vmatpush1.msra.mxu0 0.0
      %2667 = vmatprep.subr.mxu0 0.0
      %2668 = vmatpush1.msra.mxu0 0.0
      %2669 = vmatprep.subr.mxu0 0.0
      %2670 = vmatpush1.msra.mxu0 0.0
      %2671 = vmatprep.subr.mxu0 0.0
      %2672 = vmatpush1.msra.mxu0 0.0
      %2673 = vmatprep.subr.mxu0 0.0
      %2674 = vmatpush1.msra.mxu0 0.0
      %2675 = vmatprep.subr.mxu0 0.0
      %2676 = vmatpush1.msra.mxu0 0.0
      %2677 = vmatprep.subr.mxu0 0.0
      %2678 = vmatpush1.msra.mxu0 0.0
      %2679 = vmatprep.subr.mxu0 0.0
      %2680 = vmatpush1.msra.mxu0 0.0
      %2681 = vmatprep.subr.mxu0 0.0
      %2682 = vmatpush1.msra.mxu0 0.0
      %2683 = vmatprep.subr.mxu0 0.0
      %2684 = vmatpush1.msra.mxu0 0.0
      %2685 = vmatprep.subr.mxu0 0.0
      %2686 = vmatpush1.msra.mxu0 0.0
      %2687 = vmatprep.subr.mxu0 0.0
      %2688 = vmatpush1.msra.mxu0 0.0
      %2689 = vmatprep.subr.mxu0 0.0
      %2690 = vmatpush1.msra.mxu0 0.0
      %2691 = vmatprep.subr.mxu0 0.0
      %2692 = vmatpush1.msra.mxu0 0.0
      %2693 = vmatprep.subr.mxu0 0.0
      %2694 = vmatpush1.msra.mxu0 0.0
      %2695 = vmatprep.subr.mxu0 0.0
      %2696 = vmatpush1.msra.mxu0 0.0
      %2697 = vmatprep.subr.mxu0 0.0
      %2698 = vmatpush1.msra.mxu0 0.0
      %2699 = vmatprep.subr.mxu0 0.0
      %2700 = vmatpush1.msra.mxu0 0.0
      %2701 = vmatprep.subr.mxu0 0.0
      %2702 = vmatpush1.msra.mxu0 0.0
      %2703 = vmatprep.subr.mxu0 0.0
      %2704 = vmatpush1.msra.mxu0 0.0
      %2705 = vmatprep.subr.mxu0 0.0
      %2706 = vmatpush1.msra.mxu0 0.0
      %2707 = vmatprep.subr.mxu0 0.0
      %2708 = vmatpush1.msra.mxu0 0.0
      %2709 = vmatprep.subr.mxu0 0.0
      %2710 = vmatpush1.msra.mxu0 0.0
      %2711 = vmatprep.subr.mxu0 0.0
      %2712 = vmatpush1.msra.mxu0 0.0
      %2713 = vmatprep.subr.mxu0 0.0
      %2714 = vmatpush1.msra.mxu0 0.0
      %2715 = vmatprep.subr.mxu0 0.0
      %2716 = vmatpush1.msra.mxu0 0.0
      %2717 = vmatprep.mubr.f32.mxu0 0.0
      %2718 = vmatmul.mubr.f32.gmra.mrb[0].mxu0 %v2509
      %v2719 = vpop.f32.mrb[0].mxu0
      %v2720 = vadd.f32 0.0, %v2719
      %v2721 = vpop.f32.mrb[0].mxu0
      %v2722 = vadd.f32 0.0, %v2721
      %2723 = vdwg.mxu0
      %2724 = vmatprep.subr.mxu0 %v2219
      %2725 = vmatpush1.msra.mxu0 %v2217
      %2726 = vmatprep.subr.mxu0 0.0
      %2727 = vmatpush1.msra.mxu0 0.0
      %2728 = vmatprep.subr.mxu0 0.0
      %2729 = vmatpush1.msra.mxu0 0.0
      %2730 = vmatprep.subr.mxu0 0.0
      %2731 = vmatpush1.msra.mxu0 0.0
      %2732 = vmatprep.subr.mxu0 0.0
      %2733 = vmatpush1.msra.mxu0 0.0
      %2734 = vmatprep.subr.mxu0 0.0
      %2735 = vmatpush1.msra.mxu0 0.0
      %2736 = vmatprep.subr.mxu0 0.0
      %2737 = vmatpush1.msra.mxu0 0.0
      %2738 = vmatprep.subr.mxu0 0.0
      %2739 = vmatpush1.msra.mxu0 0.0
      %2740 = vmatprep.subr.mxu0 0.0
      %2741 = vmatpush1.msra.mxu0 0.0
      %2742 = vmatprep.subr.mxu0 0.0
      %2743 = vmatpush1.msra.mxu0 0.0
      %2744 = vmatprep.subr.mxu0 0.0
      %2745 = vmatpush1.msra.mxu0 0.0
      %2746 = vmatprep.subr.mxu0 0.0
      %2747 = vmatpush1.msra.mxu0 0.0
      %2748 = vmatprep.subr.mxu0 0.0
      %2749 = vmatpush1.msra.mxu0 0.0
      %2750 = vmatprep.subr.mxu0 0.0
      %2751 = vmatpush1.msra.mxu0 0.0
      %2752 = vmatprep.subr.mxu0 0.0
      %2753 = vmatpush1.msra.mxu0 0.0
      %2754 = vmatprep.subr.mxu0 0.0
      %2755 = vmatpush1.msra.mxu0 0.0
      %2756 = vmatprep.subr.mxu0 0.0
      %2757 = vmatpush1.msra.mxu0 0.0
      %2758 = vmatprep.subr.mxu0 0.0
      %2759 = vmatpush1.msra.mxu0 0.0
      %2760 = vmatprep.subr.mxu0 0.0
      %2761 = vmatpush1.msra.mxu0 0.0
      %2762 = vmatprep.subr.mxu0 0.0
      %2763 = vmatpush1.msra.mxu0 0.0
      %2764 = vmatprep.subr.mxu0 0.0
      %2765 = vmatpush1.msra.mxu0 0.0
      %2766 = vmatprep.subr.mxu0 0.0
      %2767 = vmatpush1.msra.mxu0 0.0
      %2768 = vmatprep.subr.mxu0 0.0
      %2769 = vmatpush1.msra.mxu0 0.0
      %2770 = vmatprep.subr.mxu0 0.0
      %2771 = vmatpush1.msra.mxu0 0.0
      %2772 = vmatprep.subr.mxu0 0.0
      %2773 = vmatpush1.msra.mxu0 0.0
      %2774 = vmatprep.subr.mxu0 0.0
      %2775 = vmatpush1.msra.mxu0 0.0
      %2776 = vmatprep.subr.mxu0 0.0
      %2777 = vmatpush1.msra.mxu0 0.0
      %2778 = vmatprep.subr.mxu0 0.0
      %2779 = vmatpush1.msra.mxu0 0.0
      %2780 = vmatprep.subr.mxu0 0.0
      %2781 = vmatpush1.msra.mxu0 0.0
      %2782 = vmatprep.subr.mxu0 0.0
      %2783 = vmatpush1.msra.mxu0 0.0
      %2784 = vmatprep.subr.mxu0 0.0
      %2785 = vmatpush1.msra.mxu0 0.0
      %2786 = vmatprep.subr.mxu0 0.0
      %2787 = vmatpush1.msra.mxu0 0.0
      %2788 = vmatprep.mubr.f32.mxu0 0.0
      %2789 = vmatmul.mubr.f32.gmra.mrb[0].mxu0 %v2509
      %v2790 = vpop.f32.mrb[0].mxu0
      %v2791 = vadd.f32 0.0, %v2790
      %v2792 = vpop.f32.mrb[0].mxu0
      %v2793 = vadd.f32 0.0, %v2792
      %2794 = vdwg.mxu0
      %2795 = vmatprep.subr.mxu0 %v2290
      %2796 = vmatpush1.msra.mxu0 %v2288
      %2797 = vmatprep.subr.mxu0 0.0
      %2798 = vmatpush1.msra.mxu0 0.0
      %2799 = vmatprep.subr.mxu0 0.0
      %2800 = vmatpush1.msra.mxu0 0.0
      %2801 = vmatprep.subr.mxu0 0.0
      %2802 = vmatpush1.msra.mxu0 0.0
      %2803 = vmatprep.subr.mxu0 0.0
      %2804 = vmatpush1.msra.mxu0 0.0
      %2805 = vmatprep.subr.mxu0 0.0
      %2806 = vmatpush1.msra.mxu0 0.0
      %2807 = vmatprep.subr.mxu0 0.0
      %2808 = vmatpush1.msra.mxu0 0.0
      %2809 = vmatprep.subr.mxu0 0.0
      %2810 = vmatpush1.msra.mxu0 0.0
      %2811 = vmatprep.subr.mxu0 0.0
      %2812 = vmatpush1.msra.mxu0 0.0
      %2813 = vmatprep.subr.mxu0 0.0
      %2814 = vmatpush1.msra.mxu0 0.0
      %2815 = vmatprep.subr.mxu0 0.0
      %2816 = vmatpush1.msra.mxu0 0.0
      %2817 = vmatprep.subr.mxu0 0.0
      %2818 = vmatpush1.msra.mxu0 0.0
      %2819 = vmatprep.subr.mxu0 0.0
      %2820 = vmatpush1.msra.mxu0 0.0
      %2821 = vmatprep.subr.mxu0 0.0
      %2822 = vmatpush1.msra.mxu0 0.0
      %2823 = vmatprep.subr.mxu0 0.0
      %2824 = vmatpush1.msra.mxu0 0.0
      %2825 = vmatprep.subr.mxu0 0.0
      %2826 = vmatpush1.msra.mxu0 0.0
      %2827 = vmatprep.subr.mxu0 0.0
      %2828 = vmatpush1.msra.mxu0 0.0
      %2829 = vmatprep.subr.mxu0 0.0
      %2830 = vmatpush1.msra.mxu0 0.0
      %2831 = vmatprep.subr.mxu0 0.0
      %2832 = vmatpush1.msra.mxu0 0.0
      %2833 = vmatprep.subr.mxu0 0.0
      %2834 = vmatpush1.msra.mxu0 0.0
      %2835 = vmatprep.subr.mxu0 0.0
      %2836 = vmatpush1.msra.mxu0 0.0
      %2837 = vmatprep.subr.mxu0 0.0
      %2838 = vmatpush1.msra.mxu0 0.0
      %2839 = vmatprep.subr.mxu0 0.0
      %2840 = vmatpush1.msra.mxu0 0.0
      %2841 = vmatprep.subr.mxu0 0.0
      %2842 = vmatpush1.msra.mxu0 0.0
      %2843 = vmatprep.subr.mxu0 0.0
      %2844 = vmatpush1.msra.mxu0 0.0
      %2845 = vmatprep.subr.mxu0 0.0
      %2846 = vmatpush1.msra.mxu0 0.0
      %2847 = vmatprep.subr.mxu0 0.0
      %2848 = vmatpush1.msra.mxu0 0.0
      %2849 = vmatprep.subr.mxu0 0.0
      %2850 = vmatpush1.msra.mxu0 0.0
      %2851 = vmatprep.subr.mxu0 0.0
      %2852 = vmatpush1.msra.mxu0 0.0
      %2853 = vmatprep.subr.mxu0 0.0
      %2854 = vmatpush1.msra.mxu0 0.0
      %2855 = vmatprep.subr.mxu0 0.0
      %2856 = vmatpush1.msra.mxu0 0.0
      %2857 = vmatprep.subr.mxu0 0.0
      %2858 = vmatpush1.msra.mxu0 0.0
      %2859 = vmatprep.mubr.f32.mxu0 0.0
      %2860 = vmatmul.mubr.f32.gmra.mrb[0].mxu0 %v2509
      %v2861 = vpop.f32.mrb[0].mxu0
      %v2862 = vadd.f32 0.0, %v2861
      %v2863 = vpop.f32.mrb[0].mxu0
      %v2864 = vadd.f32 0.0, %v2863
      %2865 = vdwg.mxu0
      %2866 = vmatprep.subr.mxu0 %v2361
      %2867 = vmatpush1.msra.mxu0 %v2359
      %2868 = vmatprep.subr.mxu0 0.0
      %2869 = vmatpush1.msra.mxu0 0.0
      %2870 = vmatprep.subr.mxu0 0.0
      %2871 = vmatpush1.msra.mxu0 0.0
      %2872 = vmatprep.subr.mxu0 0.0
      %2873 = vmatpush1.msra.mxu0 0.0
      %2874 = vmatprep.subr.mxu0 0.0
      %2875 = vmatpush1.msra.mxu0 0.0
      %2876 = vmatprep.subr.mxu0 0.0
      %2877 = vmatpush1.msra.mxu0 0.0
      %2878 = vmatprep.subr.mxu0 0.0
      %2879 = vmatpush1.msra.mxu0 0.0
      %2880 = vmatprep.subr.mxu0 0.0
      %2881 = vmatpush1.msra.mxu0 0.0
      %2882 = vmatprep.subr.mxu0 0.0
      %2883 = vmatpush1.msra.mxu0 0.0
      %2884 = vmatprep.subr.mxu0 0.0
      %2885 = vmatpush1.msra.mxu0 0.0
      %2886 = vmatprep.subr.mxu0 0.0
      %2887 = vmatpush1.msra.mxu0 0.0
      %2888 = vmatprep.subr.mxu0 0.0
      %2889 = vmatpush1.msra.mxu0 0.0
      %2890 = vmatprep.subr.mxu0 0.0
      %2891 = vmatpush1.msra.mxu0 0.0
      %2892 = vmatprep.subr.mxu0 0.0
      %2893 = vmatpush1.msra.mxu0 0.0
      %2894 = vmatprep.subr.mxu0 0.0
      %2895 = vmatpush1.msra.mxu0 0.0
      %2896 = vmatprep.subr.mxu0 0.0
      %2897 = vmatpush1.msra.mxu0 0.0
      %2898 = vmatprep.subr.mxu0 0.0
      %2899 = vmatpush1.msra.mxu0 0.0
      %2900 = vmatprep.subr.mxu0 0.0
      %2901 = vmatpush1.msra.mxu0 0.0
      %2902 = vmatprep.subr.mxu0 0.0
      %2903 = vmatpush1.msra.mxu0 0.0
      %2904 = vmatprep.subr.mxu0 0.0
      %2905 = vmatpush1.msra.mxu0 0.0
      %2906 = vmatprep.subr.mxu0 0.0
      %2907 = vmatpush1.msra.mxu0 0.0
      %2908 = vmatprep.subr.mxu0 0.0
      %2909 = vmatpush1.msra.mxu0 0.0
      %2910 = vmatprep.subr.mxu0 0.0
      %2911 = vmatpush1.msra.mxu0 0.0
      %2912 = vmatprep.subr.mxu0 0.0
      %2913 = vmatpush1.msra.mxu0 0.0
      %2914 = vmatprep.subr.mxu0 0.0
      %2915 = vmatpush1.msra.mxu0 0.0
      %2916 = vmatprep.subr.mxu0 0.0
      %2917 = vmatpush1.msra.mxu0 0.0
      %2918 = vmatprep.subr.mxu0 0.0
      %2919 = vmatpush1.msra.mxu0 0.0
      %2920 = vmatprep.subr.mxu0 0.0
      %2921 = vmatpush1.msra.mxu0 0.0
      %2922 = vmatprep.subr.mxu0 0.0
      %2923 = vmatpush1.msra.mxu0 0.0
      %2924 = vmatprep.subr.mxu0 0.0
      %2925 = vmatpush1.msra.mxu0 0.0
      %2926 = vmatprep.subr.mxu0 0.0
      %2927 = vmatpush1.msra.mxu0 0.0
      %2928 = vmatprep.subr.mxu0 0.0
      %2929 = vmatpush1.msra.mxu0 0.0
      %2930 = vmatprep.mubr.f32.mxu0 0.0
      %2931 = vmatmul.mubr.f32.gmra.mrb[0].mxu0 %v2509
      %v2932 = vpop.f32.mrb[0].mxu0
      %v2933 = vadd.f32 0.0, %v2932
      %v2934 = vpop.f32.mrb[0].mxu0
      %v2935 = vadd.f32 0.0, %v2934
      %2936 = vdwg.mxu0
      %2937 = vmatprep.subr.mxu0 %v2432
      %2938 = vmatpush1.msra.mxu0 %v2430
      %2939 = vmatprep.subr.mxu0 0.0
      %2940 = vmatpush1.msra.mxu0 0.0
      %2941 = vmatprep.subr.mxu0 0.0
      %2942 = vmatpush1.msra.mxu0 0.0
      %2943 = vmatprep.subr.mxu0 0.0
      %2944 = vmatpush1.msra.mxu0 0.0
      %2945 = vmatprep.subr.mxu0 0.0
      %2946 = vmatpush1.msra.mxu0 0.0
      %2947 = vmatprep.subr.mxu0 0.0
      %2948 = vmatpush1.msra.mxu0 0.0
      %2949 = vmatprep.subr.mxu0 0.0
      %2950 = vmatpush1.msra.mxu0 0.0
      %2951 = vmatprep.subr.mxu0 0.0
      %2952 = vmatpush1.msra.mxu0 0.0
      %2953 = vmatprep.subr.mxu0 0.0
      %2954 = vmatpush1.msra.mxu0 0.0
      %2955 = vmatprep.subr.mxu0 0.0
      %2956 = vmatpush1.msra.mxu0 0.0
      %2957 = vmatprep.subr.mxu0 0.0
      %2958 = vmatpush1.msra.mxu0 0.0
      %2959 = vmatprep.subr.mxu0 0.0
      %2960 = vmatpush1.msra.mxu0 0.0
      %2961 = vmatprep.subr.mxu0 0.0
      %2962 = vmatpush1.msra.mxu0 0.0
      %2963 = vmatprep.subr.mxu0 0.0
      %2964 = vmatpush1.msra.mxu0 0.0
      %2965 = vmatprep.subr.mxu0 0.0
      %2966 = vmatpush1.msra.mxu0 0.0
      %2967 = vmatprep.subr.mxu0 0.0
      %2968 = vmatpush1.msra.mxu0 0.0
      %2969 = vmatprep.subr.mxu0 0.0
      %2970 = vmatpush1.msra.mxu0 0.0
      %2971 = vmatprep.subr.mxu0 0.0
      %2972 = vmatpush1.msra.mxu0 0.0
      %2973 = vmatprep.subr.mxu0 0.0
      %2974 = vmatpush1.msra.mxu0 0.0
      %2975 = vmatprep.subr.mxu0 0.0
      %2976 = vmatpush1.msra.mxu0 0.0
      %2977 = vmatprep.subr.mxu0 0.0
      %2978 = vmatpush1.msra.mxu0 0.0
      %2979 = vmatprep.subr.mxu0 0.0
      %2980 = vmatpush1.msra.mxu0 0.0
      %2981 = vmatprep.subr.mxu0 0.0
      %2982 = vmatpush1.msra.mxu0 0.0
      %2983 = vmatprep.subr.mxu0 0.0
      %2984 = vmatpush1.msra.mxu0 0.0
      %2985 = vmatprep.subr.mxu0 0.0
      %2986 = vmatpush1.msra.mxu0 0.0
      %2987 = vmatprep.subr.mxu0 0.0
      %2988 = vmatpush1.msra.mxu0 0.0
      %2989 = vmatprep.subr.mxu0 0.0
      %2990 = vmatpush1.msra.mxu0 0.0
      %2991 = vmatprep.subr.mxu0 0.0
      %2992 = vmatpush1.msra.mxu0 0.0
      %2993 = vmatprep.subr.mxu0 0.0
      %2994 = vmatpush1.msra.mxu0 0.0
      %2995 = vmatprep.subr.mxu0 0.0
      %2996 = vmatpush1.msra.mxu0 0.0
      %2997 = vmatprep.subr.mxu0 0.0
      %2998 = vmatpush1.msra.mxu0 0.0
      %2999 = vmatprep.subr.mxu0 0.0
      %3000 = vmatpush1.msra.mxu0 0.0
      %3001 = vmatprep.mubr.f32.mxu0 0.0
      %3002 = vmatmul.mubr.f32.gmra.mrb[0].mxu0 %v2509
      %v3003 = vpop.f32.mrb[0].mxu0
      %v3004 = vadd.f32 0.0, %v3003
      %v3005 = vpop.f32.mrb[0].mxu0
      %v3006 = vadd.f32 0.0, %v3005
      %3007 = vdwg.mxu0
      %3008 = vmatprep.subr.mxu0 %v2503
      %3009 = vmatpush1.msra.mxu0 %v2501
      %3010 = vmatprep.subr.mxu0 0.0
      %3011 = vmatpush1.msra.mxu0 0.0
      %3012 = vmatprep.subr.mxu0 0.0
      %3013 = vmatpush1.msra.mxu0 0.0
      %3014 = vmatprep.subr.mxu0 0.0
      %3015 = vmatpush1.msra.mxu0 0.0
      %3016 = vmatprep.subr.mxu0 0.0
      %3017 = vmatpush1.msra.mxu0 0.0
      %3018 = vmatprep.subr.mxu0 0.0
      %3019 = vmatpush1.msra.mxu0 0.0
      %3020 = vmatprep.subr.mxu0 0.0
      %3021 = vmatpush1.msra.mxu0 0.0
      %3022 = vmatprep.subr.mxu0 0.0
      %3023 = vmatpush1.msra.mxu0 0.0
      %3024 = vmatprep.subr.mxu0 0.0
      %3025 = vmatpush1.msra.mxu0 0.0
      %3026 = vmatprep.subr.mxu0 0.0
      %3027 = vmatpush1.msra.mxu0 0.0
      %3028 = vmatprep.subr.mxu0 0.0
      %3029 = vmatpush1.msra.mxu0 0.0
      %3030 = vmatprep.subr.mxu0 0.0
      %3031 = vmatpush1.msra.mxu0 0.0
      %3032 = vmatprep.subr.mxu0 0.0
      %3033 = vmatpush1.msra.mxu0 0.0
      %3034 = vmatprep.subr.mxu0 0.0
      %3035 = vmatpush1.msra.mxu0 0.0
      %3036 = vmatprep.subr.mxu0 0.0
      %3037 = vmatpush1.msra.mxu0 0.0
      %3038 = vmatprep.subr.mxu0 0.0
      %3039 = vmatpush1.msra.mxu0 0.0
      %3040 = vmatprep.subr.mxu0 0.0
      %3041 = vmatpush1.msra.mxu0 0.0
      %3042 = vmatprep.subr.mxu0 0.0
      %3043 = vmatpush1.msra.mxu0 0.0
      %3044 = vmatprep.subr.mxu0 0.0
      %3045 = vmatpush1.msra.mxu0 0.0
      %3046 = vmatprep.subr.mxu0 0.0
      %3047 = vmatpush1.msra.mxu0 0.0
      %3048 = vmatprep.subr.mxu0 0.0
      %3049 = vmatpush1.msra.mxu0 0.0
      %3050 = vmatprep.subr.mxu0 0.0
      %3051 = vmatpush1.msra.mxu0 0.0
      %3052 = vmatprep.subr.mxu0 0.0
      %3053 = vmatpush1.msra.mxu0 0.0
      %3054 = vmatprep.subr.mxu0 0.0
      %3055 = vmatpush1.msra.mxu0 0.0
      %3056 = vmatprep.subr.mxu0 0.0
      %3057 = vmatpush1.msra.mxu0 0.0
      %3058 = vmatprep.subr.mxu0 0.0
      %3059 = vmatpush1.msra.mxu0 0.0
      %3060 = vmatprep.subr.mxu0 0.0
      %3061 = vmatpush1.msra.mxu0 0.0
      %3062 = vmatprep.subr.mxu0 0.0
      %3063 = vmatpush1.msra.mxu0 0.0
      %3064 = vmatprep.subr.mxu0 0.0
      %3065 = vmatpush1.msra.mxu0 0.0
      %3066 = vmatprep.subr.mxu0 0.0
      %3067 = vmatpush1.msra.mxu0 0.0
      %3068 = vmatprep.subr.mxu0 0.0
      %3069 = vmatpush1.msra.mxu0 0.0
      %3070 = vmatprep.subr.mxu0 0.0
      %3071 = vmatpush1.msra.mxu0 0.0
      %3072 = vmatprep.mubr.f32.mxu0 0.0
      %3073 = vmatmul.mubr.f32.gmra.mrb[0].mxu0 %v2509
      %v3074 = vpop.f32.mrb[0].mxu0
      %v3075 = vadd.f32 0.0, %v3074
      %v3076 = vpop.f32.mrb[0].mxu0
      %v3077 = vadd.f32 0.0, %v3076
      %3078 = vdwg.mxu0
      %v3080 = vsel %vm2507, %v2505, 0
      %3082 = vmatprep.subr.mxu0 %v2006
      %3083 = vmatpush1.msra.mxu0 %v2004
      %3084 = vmatprep.subr.mxu0 0.0
      %3085 = vmatpush1.msra.mxu0 0.0
      %3086 = vmatprep.subr.mxu0 0.0
      %3087 = vmatpush1.msra.mxu0 0.0
      %3088 = vmatprep.subr.mxu0 0.0
      %3089 = vmatpush1.msra.mxu0 0.0
      %3090 = vmatprep.subr.mxu0 0.0
      %3091 = vmatpush1.msra.mxu0 0.0
      %3092 = vmatprep.subr.mxu0 0.0
      %3093 = vmatpush1.msra.mxu0 0.0
      %3094 = vmatprep.subr.mxu0 0.0
      %3095 = vmatpush1.msra.mxu0 0.0
      %3096 = vmatprep.subr.mxu0 0.0
      %3097 = vmatpush1.msra.mxu0 0.0
      %3098 = vmatprep.subr.mxu0 0.0
      %3099 = vmatpush1.msra.mxu0 0.0
      %3100 = vmatprep.subr.mxu0 0.0
      %3101 = vmatpush1.msra.mxu0 0.0
      %3102 = vmatprep.subr.mxu0 0.0
      %3103 = vmatpush1.msra.mxu0 0.0
      %3104 = vmatprep.subr.mxu0 0.0
      %3105 = vmatpush1.msra.mxu0 0.0
      %3106 = vmatprep.subr.mxu0 0.0
      %3107 = vmatpush1.msra.mxu0 0.0
      %3108 = vmatprep.subr.mxu0 0.0
      %3109 = vmatpush1.msra.mxu0 0.0
      %3110 = vmatprep.subr.mxu0 0.0
      %3111 = vmatpush1.msra.mxu0 0.0
      %3112 = vmatprep.subr.mxu0 0.0
      %3113 = vmatpush1.msra.mxu0 0.0
      %3114 = vmatprep.subr.mxu0 0.0
      %3115 = vmatpush1.msra.mxu0 0.0
      %3116 = vmatprep.subr.mxu0 0.0
      %3117 = vmatpush1.msra.mxu0 0.0
      %3118 = vmatprep.subr.mxu0 0.0
      %3119 = vmatpush1.msra.mxu0 0.0
      %3120 = vmatprep.subr.mxu0 0.0
      %3121 = vmatpush1.msra.mxu0 0.0
      %3122 = vmatprep.subr.mxu0 0.0
      %3123 = vmatpush1.msra.mxu0 0.0
      %3124 = vmatprep.subr.mxu0 0.0
      %3125 = vmatpush1.msra.mxu0 0.0
      %3126 = vmatprep.subr.mxu0 0.0
      %3127 = vmatpush1.msra.mxu0 0.0
      %3128 = vmatprep.subr.mxu0 0.0
      %3129 = vmatpush1.msra.mxu0 0.0
      %3130 = vmatprep.subr.mxu0 0.0
      %3131 = vmatpush1.msra.mxu0 0.0
      %3132 = vmatprep.subr.mxu0 0.0
      %3133 = vmatpush1.msra.mxu0 0.0
      %3134 = vmatprep.subr.mxu0 0.0
      %3135 = vmatpush1.msra.mxu0 0.0
      %3136 = vmatprep.subr.mxu0 0.0
      %3137 = vmatpush1.msra.mxu0 0.0
      %3138 = vmatprep.subr.mxu0 0.0
      %3139 = vmatpush1.msra.mxu0 0.0
      %3140 = vmatprep.subr.mxu0 0.0
      %3141 = vmatpush1.msra.mxu0 0.0
      %3142 = vmatprep.subr.mxu0 0.0
      %3143 = vmatpush1.msra.mxu0 0.0
      %3144 = vmatprep.subr.mxu0 0.0
      %3145 = vmatpush1.msra.mxu0 0.0
      %3146 = vmatprep.mubr.f32.mxu0 0.0
      %3147 = vmatmul.mubr.f32.gmra.mrb[0].mxu0 %v3080
      %v3148 = vpop.f32.mrb[0].mxu0
      %v3149 = vadd.f32 %v2578, %v3148
      %v3150 = vpop.f32.mrb[0].mxu0
      %v3151 = vadd.f32 %v2580, %v3150
      %3152 = vdwg.mxu0
      %3153 = vmatprep.subr.mxu0 %v2077
      %3154 = vmatpush1.msra.mxu0 %v2075
      %3155 = vmatprep.subr.mxu0 0.0
      %3156 = vmatpush1.msra.mxu0 0.0
      %3157 = vmatprep.subr.mxu0 0.0
      %3158 = vmatpush1.msra.mxu0 0.0
      %3159 = vmatprep.subr.mxu0 0.0
      %3160 = vmatpush1.msra.mxu0 0.0
      %3161 = vmatprep.subr.mxu0 0.0
      %3162 = vmatpush1.msra.mxu0 0.0
      %3163 = vmatprep.subr.mxu0 0.0
      %3164 = vmatpush1.msra.mxu0 0.0
      %3165 = vmatprep.subr.mxu0 0.0
      %3166 = vmatpush1.msra.mxu0 0.0
      %3167 = vmatprep.subr.mxu0 0.0
      %3168 = vmatpush1.msra.mxu0 0.0
      %3169 = vmatprep.subr.mxu0 0.0
      %3170 = vmatpush1.msra.mxu0 0.0
      %3171 = vmatprep.subr.mxu0 0.0
      %3172 = vmatpush1.msra.mxu0 0.0
      %3173 = vmatprep.subr.mxu0 0.0
      %3174 = vmatpush1.msra.mxu0 0.0
      %3175 = vmatprep.subr.mxu0 0.0
      %3176 = vmatpush1.msra.mxu0 0.0
      %3177 = vmatprep.subr.mxu0 0.0
      %3178 = vmatpush1.msra.mxu0 0.0
      %3179 = vmatprep.subr.mxu0 0.0
      %3180 = vmatpush1.msra.mxu0 0.0
      %3181 = vmatprep.subr.mxu0 0.0
      %3182 = vmatpush1.msra.mxu0 0.0
      %3183 = vmatprep.subr.mxu0 0.0
      %3184 = vmatpush1.msra.mxu0 0.0
      %3185 = vmatprep.subr.mxu0 0.0
      %3186 = vmatpush1.msra.mxu0 0.0
      %3187 = vmatprep.subr.mxu0 0.0
      %3188 = vmatpush1.msra.mxu0 0.0
      %3189 = vmatprep.subr.mxu0 0.0
      %3190 = vmatpush1.msra.mxu0 0.0
      %3191 = vmatprep.subr.mxu0 0.0
      %3192 = vmatpush1.msra.mxu0 0.0
      %3193 = vmatprep.subr.mxu0 0.0
      %3194 = vmatpush1.msra.mxu0 0.0
      %3195 = vmatprep.subr.mxu0 0.0
      %3196 = vmatpush1.msra.mxu0 0.0
      %3197 = vmatprep.subr.mxu0 0.0
      %3198 = vmatpush1.msra.mxu0 0.0
      %3199 = vmatprep.subr.mxu0 0.0
      %3200 = vmatpush1.msra.mxu0 0.0
      %3201 = vmatprep.subr.mxu0 0.0
      %3202 = vmatpush1.msra.mxu0 0.0
      %3203 = vmatprep.subr.mxu0 0.0
      %3204 = vmatpush1.msra.mxu0 0.0
      %3205 = vmatprep.subr.mxu0 0.0
      %3206 = vmatpush1.msra.mxu0 0.0
      %3207 = vmatprep.subr.mxu0 0.0
      %3208 = vmatpush1.msra.mxu0 0.0
      %3209 = vmatprep.subr.mxu0 0.0
      %3210 = vmatpush1.msra.mxu0 0.0
      %3211 = vmatprep.subr.mxu0 0.0
      %3212 = vmatpush1.msra.mxu0 0.0
      %3213 = vmatprep.subr.mxu0 0.0
      %3214 = vmatpush1.msra.mxu0 0.0
      %3215 = vmatprep.subr.mxu0 0.0
      %3216 = vmatpush1.msra.mxu0 0.0
      %3217 = vmatprep.mubr.f32.mxu0 0.0
      %3218 = vmatmul.mubr.f32.gmra.mrb[0].mxu0 %v3080
      %v3219 = vpop.f32.mrb[0].mxu0
      %v3220 = vadd.f32 %v2649, %v3219
      %v3221 = vpop.f32.mrb[0].mxu0
      %v3222 = vadd.f32 %v2651, %v3221
      %3223 = vdwg.mxu0
      %3224 = vmatprep.subr.mxu0 %v2148
      %3225 = vmatpush1.msra.mxu0 %v2146
      %3226 = vmatprep.subr.mxu0 0.0
      %3227 = vmatpush1.msra.mxu0 0.0
      %3228 = vmatprep.subr.mxu0 0.0
      %3229 = vmatpush1.msra.mxu0 0.0
      %3230 = vmatprep.subr.mxu0 0.0
      %3231 = vmatpush1.msra.mxu0 0.0
      %3232 = vmatprep.subr.mxu0 0.0
      %3233 = vmatpush1.msra.mxu0 0.0
      %3234 = vmatprep.subr.mxu0 0.0
      %3235 = vmatpush1.msra.mxu0 0.0
      %3236 = vmatprep.subr.mxu0 0.0
      %3237 = vmatpush1.msra.mxu0 0.0
      %3238 = vmatprep.subr.mxu0 0.0
      %3239 = vmatpush1.msra.mxu0 0.0
      %3240 = vmatprep.subr.mxu0 0.0
      %3241 = vmatpush1.msra.mxu0 0.0
      %3242 = vmatprep.subr.mxu0 0.0
      %3243 = vmatpush1.msra.mxu0 0.0
      %3244 = vmatprep.subr.mxu0 0.0
      %3245 = vmatpush1.msra.mxu0 0.0
      %3246 = vmatprep.subr.mxu0 0.0
      %3247 = vmatpush1.msra.mxu0 0.0
      %3248 = vmatprep.subr.mxu0 0.0
      %3249 = vmatpush1.msra.mxu0 0.0
      %3250 = vmatprep.subr.mxu0 0.0
      %3251 = vmatpush1.msra.mxu0 0.0
      %3252 = vmatprep.subr.mxu0 0.0
      %3253 = vmatpush1.msra.mxu0 0.0
      %3254 = vmatprep.subr.mxu0 0.0
      %3255 = vmatpush1.msra.mxu0 0.0
      %3256 = vmatprep.subr.mxu0 0.0
      %3257 = vmatpush1.msra.mxu0 0.0
      %3258 = vmatprep.subr.mxu0 0.0
      %3259 = vmatpush1.msra.mxu0 0.0
      %3260 = vmatprep.subr.mxu0 0.0
      %3261 = vmatpush1.msra.mxu0 0.0
      %3262 = vmatprep.subr.mxu0 0.0
      %3263 = vmatpush1.msra.mxu0 0.0
      %3264 = vmatprep.subr.mxu0 0.0
      %3265 = vmatpush1.msra.mxu0 0.0
      %3266 = vmatprep.subr.mxu0 0.0
      %3267 = vmatpush1.msra.mxu0 0.0
      %3268 = vmatprep.subr.mxu0 0.0
      %3269 = vmatpush1.msra.mxu0 0.0
      %3270 = vmatprep.subr.mxu0 0.0
      %3271 = vmatpush1.msra.mxu0 0.0
      %3272 = vmatprep.subr.mxu0 0.0
      %3273 = vmatpush1.msra.mxu0 0.0
      %3274 = vmatprep.subr.mxu0 0.0
      %3275 = vmatpush1.msra.mxu0 0.0
      %3276 = vmatprep.subr.mxu0 0.0
      %3277 = vmatpush1.msra.mxu0 0.0
      %3278 = vmatprep.subr.mxu0 0.0
      %3279 = vmatpush1.msra.mxu0 0.0
      %3280 = vmatprep.subr.mxu0 0.0
      %3281 = vmatpush1.msra.mxu0 0.0
      %3282 = vmatprep.subr.mxu0 0.0
      %3283 = vmatpush1.msra.mxu0 0.0
      %3284 = vmatprep.subr.mxu0 0.0
      %3285 = vmatpush1.msra.mxu0 0.0
      %3286 = vmatprep.subr.mxu0 0.0
      %3287 = vmatpush1.msra.mxu0 0.0
      %3288 = vmatprep.mubr.f32.mxu0 0.0
      %3289 = vmatmul.mubr.f32.gmra.mrb[0].mxu0 %v3080
      %v3290 = vpop.f32.mrb[0].mxu0
      %v3291 = vadd.f32 %v2720, %v3290
      %v3292 = vpop.f32.mrb[0].mxu0
      %v3293 = vadd.f32 %v2722, %v3292
      %3294 = vdwg.mxu0
      %3295 = vmatprep.subr.mxu0 %v2219
      %3296 = vmatpush1.msra.mxu0 %v2217
      %3297 = vmatprep.subr.mxu0 0.0
      %3298 = vmatpush1.msra.mxu0 0.0
      %3299 = vmatprep.subr.mxu0 0.0
      %3300 = vmatpush1.msra.mxu0 0.0
      %3301 = vmatprep.subr.mxu0 0.0
      %3302 = vmatpush1.msra.mxu0 0.0
      %3303 = vmatprep.subr.mxu0 0.0
      %3304 = vmatpush1.msra.mxu0 0.0
      %3305 = vmatprep.subr.mxu0 0.0
      %3306 = vmatpush1.msra.mxu0 0.0
      %3307 = vmatprep.subr.mxu0 0.0
      %3308 = vmatpush1.msra.mxu0 0.0
      %3309 = vmatprep.subr.mxu0 0.0
      %3310 = vmatpush1.msra.mxu0 0.0
      %3311 = vmatprep.subr.mxu0 0.0
      %3312 = vmatpush1.msra.mxu0 0.0
      %3313 = vmatprep.subr.mxu0 0.0
      %3314 = vmatpush1.msra.mxu0 0.0
      %3315 = vmatprep.subr.mxu0 0.0
      %3316 = vmatpush1.msra.mxu0 0.0
      %3317 = vmatprep.subr.mxu0 0.0
      %3318 = vmatpush1.msra.mxu0 0.0
      %3319 = vmatprep.subr.mxu0 0.0
      %3320 = vmatpush1.msra.mxu0 0.0
      %3321 = vmatprep.subr.mxu0 0.0
      %3322 = vmatpush1.msra.mxu0 0.0
      %3323 = vmatprep.subr.mxu0 0.0
      %3324 = vmatpush1.msra.mxu0 0.0
      %3325 = vmatprep.subr.mxu0 0.0
      %3326 = vmatpush1.msra.mxu0 0.0
      %3327 = vmatprep.subr.mxu0 0.0
      %3328 = vmatpush1.msra.mxu0 0.0
      %3329 = vmatprep.subr.mxu0 0.0
      %3330 = vmatpush1.msra.mxu0 0.0
      %3331 = vmatprep.subr.mxu0 0.0
      %3332 = vmatpush1.msra.mxu0 0.0
      %3333 = vmatprep.subr.mxu0 0.0
      %3334 = vmatpush1.msra.mxu0 0.0
      %3335 = vmatprep.subr.mxu0 0.0
      %3336 = vmatpush1.msra.mxu0 0.0
      %3337 = vmatprep.subr.mxu0 0.0
      %3338 = vmatpush1.msra.mxu0 0.0
      %3339 = vmatprep.subr.mxu0 0.0
      %3340 = vmatpush1.msra.mxu0 0.0
      %3341 = vmatprep.subr.mxu0 0.0
      %3342 = vmatpush1.msra.mxu0 0.0
      %3343 = vmatprep.subr.mxu0 0.0
      %3344 = vmatpush1.msra.mxu0 0.0
      %3345 = vmatprep.subr.mxu0 0.0
      %3346 = vmatpush1.msra.mxu0 0.0
      %3347 = vmatprep.subr.mxu0 0.0
      %3348 = vmatpush1.msra.mxu0 0.0
      %3349 = vmatprep.subr.mxu0 0.0
      %3350 = vmatpush1.msra.mxu0 0.0
      %3351 = vmatprep.subr.mxu0 0.0
      %3352 = vmatpush1.msra.mxu0 0.0
      %3353 = vmatprep.subr.mxu0 0.0
      %3354 = vmatpush1.msra.mxu0 0.0
      %3355 = vmatprep.subr.mxu0 0.0
      %3356 = vmatpush1.msra.mxu0 0.0
      %3357 = vmatprep.subr.mxu0 0.0
      %3358 = vmatpush1.msra.mxu0 0.0
      %3359 = vmatprep.mubr.f32.mxu0 0.0
      %3360 = vmatmul.mubr.f32.gmra.mrb[0].mxu0 %v3080
      %v3361 = vpop.f32.mrb[0].mxu0
      %v3362 = vadd.f32 %v2791, %v3361
      %v3363 = vpop.f32.mrb[0].mxu0
      %v3364 = vadd.f32 %v2793, %v3363
      %3365 = vdwg.mxu0
      %3366 = vmatprep.subr.mxu0 %v2290
      %3367 = vmatpush1.msra.mxu0 %v2288
      %3368 = vmatprep.subr.mxu0 0.0
      %3369 = vmatpush1.msra.mxu0 0.0
      %3370 = vmatprep.subr.mxu0 0.0
      %3371 = vmatpush1.msra.mxu0 0.0
      %3372 = vmatprep.subr.mxu0 0.0
      %3373 = vmatpush1.msra.mxu0 0.0
      %3374 = vmatprep.subr.mxu0 0.0
      %3375 = vmatpush1.msra.mxu0 0.0
      %3376 = vmatprep.subr.mxu0 0.0
      %3377 = vmatpush1.msra.mxu0 0.0
      %3378 = vmatprep.subr.mxu0 0.0
      %3379 = vmatpush1.msra.mxu0 0.0
      %3380 = vmatprep.subr.mxu0 0.0
      %3381 = vmatpush1.msra.mxu0 0.0
      %3382 = vmatprep.subr.mxu0 0.0
      %3383 = vmatpush1.msra.mxu0 0.0
      %3384 = vmatprep.subr.mxu0 0.0
      %3385 = vmatpush1.msra.mxu0 0.0
      %3386 = vmatprep.subr.mxu0 0.0
      %3387 = vmatpush1.msra.mxu0 0.0
      %3388 = vmatprep.subr.mxu0 0.0
      %3389 = vmatpush1.msra.mxu0 0.0
      %3390 = vmatprep.subr.mxu0 0.0
      %3391 = vmatpush1.msra.mxu0 0.0
      %3392 = vmatprep.subr.mxu0 0.0
      %3393 = vmatpush1.msra.mxu0 0.0
      %3394 = vmatprep.subr.mxu0 0.0
      %3395 = vmatpush1.msra.mxu0 0.0
      %3396 = vmatprep.subr.mxu0 0.0
      %3397 = vmatpush1.msra.mxu0 0.0
      %3398 = vmatprep.subr.mxu0 0.0
      %3399 = vmatpush1.msra.mxu0 0.0
      %3400 = vmatprep.subr.mxu0 0.0
      %3401 = vmatpush1.msra.mxu0 0.0
      %3402 = vmatprep.subr.mxu0 0.0
      %3403 = vmatpush1.msra.mxu0 0.0
      %3404 = vmatprep.subr.mxu0 0.0
      %3405 = vmatpush1.msra.mxu0 0.0
      %3406 = vmatprep.subr.mxu0 0.0
      %3407 = vmatpush1.msra.mxu0 0.0
      %3408 = vmatprep.subr.mxu0 0.0
      %3409 = vmatpush1.msra.mxu0 0.0
      %3410 = vmatprep.subr.mxu0 0.0
      %3411 = vmatpush1.msra.mxu0 0.0
      %3412 = vmatprep.subr.mxu0 0.0
      %3413 = vmatpush1.msra.mxu0 0.0
      %3414 = vmatprep.subr.mxu0 0.0
      %3415 = vmatpush1.msra.mxu0 0.0
      %3416 = vmatprep.subr.mxu0 0.0
      %3417 = vmatpush1.msra.mxu0 0.0
      %3418 = vmatprep.subr.mxu0 0.0
      %3419 = vmatpush1.msra.mxu0 0.0
      %3420 = vmatprep.subr.mxu0 0.0
      %3421 = vmatpush1.msra.mxu0 0.0
      %3422 = vmatprep.subr.mxu0 0.0
      %3423 = vmatpush1.msra.mxu0 0.0
      %3424 = vmatprep.subr.mxu0 0.0
      %3425 = vmatpush1.msra.mxu0 0.0
      %3426 = vmatprep.subr.mxu0 0.0
      %3427 = vmatpush1.msra.mxu0 0.0
      %3428 = vmatprep.subr.mxu0 0.0
      %3429 = vmatpush1.msra.mxu0 0.0
      %3430 = vmatprep.mubr.f32.mxu0 0.0
      %3431 = vmatmul.mubr.f32.gmra.mrb[0].mxu0 %v3080
      %v3432 = vpop.f32.mrb[0].mxu0
      %v3433 = vadd.f32 %v2862, %v3432
      %v3434 = vpop.f32.mrb[0].mxu0
      %v3435 = vadd.f32 %v2864, %v3434
      %3436 = vdwg.mxu0
      %3437 = vmatprep.subr.mxu0 %v2361
      %3438 = vmatpush1.msra.mxu0 %v2359
      %3439 = vmatprep.subr.mxu0 0.0
      %3440 = vmatpush1.msra.mxu0 0.0
      %3441 = vmatprep.subr.mxu0 0.0
      %3442 = vmatpush1.msra.mxu0 0.0
      %3443 = vmatprep.subr.mxu0 0.0
      %3444 = vmatpush1.msra.mxu0 0.0
      %3445 = vmatprep.subr.mxu0 0.0
      %3446 = vmatpush1.msra.mxu0 0.0
      %3447 = vmatprep.subr.mxu0 0.0
      %3448 = vmatpush1.msra.mxu0 0.0
      %3449 = vmatprep.subr.mxu0 0.0
      %3450 = vmatpush1.msra.mxu0 0.0
      %3451 = vmatprep.subr.mxu0 0.0
      %3452 = vmatpush1.msra.mxu0 0.0
      %3453 = vmatprep.subr.mxu0 0.0
      %3454 = vmatpush1.msra.mxu0 0.0
      %3455 = vmatprep.subr.mxu0 0.0
      %3456 = vmatpush1.msra.mxu0 0.0
      %3457 = vmatprep.subr.mxu0 0.0
      %3458 = vmatpush1.msra.mxu0 0.0
      %3459 = vmatprep.subr.mxu0 0.0
      %3460 = vmatpush1.msra.mxu0 0.0
      %3461 = vmatprep.subr.mxu0 0.0
      %3462 = vmatpush1.msra.mxu0 0.0
      %3463 = vmatprep.subr.mxu0 0.0
      %3464 = vmatpush1.msra.mxu0 0.0
      %3465 = vmatprep.subr.mxu0 0.0
      %3466 = vmatpush1.msra.mxu0 0.0
      %3467 = vmatprep.subr.mxu0 0.0
      %3468 = vmatpush1.msra.mxu0 0.0
      %3469 = vmatprep.subr.mxu0 0.0
      %3470 = vmatpush1.msra.mxu0 0.0
      %3471 = vmatprep.subr.mxu0 0.0
      %3472 = vmatpush1.msra.mxu0 0.0
      %3473 = vmatprep.subr.mxu0 0.0
      %3474 = vmatpush1.msra.mxu0 0.0
      %3475 = vmatprep.subr.mxu0 0.0
      %3476 = vmatpush1.msra.mxu0 0.0
      %3477 = vmatprep.subr.mxu0 0.0
      %3478 = vmatpush1.msra.mxu0 0.0
      %3479 = vmatprep.subr.mxu0 0.0
      %3480 = vmatpush1.msra.mxu0 0.0
      %3481 = vmatprep.subr.mxu0 0.0
      %3482 = vmatpush1.msra.mxu0 0.0
      %3483 = vmatprep.subr.mxu0 0.0
      %3484 = vmatpush1.msra.mxu0 0.0
      %3485 = vmatprep.subr.mxu0 0.0
      %3486 = vmatpush1.msra.mxu0 0.0
      %3487 = vmatprep.subr.mxu0 0.0
      %3488 = vmatpush1.msra.mxu0 0.0
      %3489 = vmatprep.subr.mxu0 0.0
      %3490 = vmatpush1.msra.mxu0 0.0
      %3491 = vmatprep.subr.mxu0 0.0
      %3492 = vmatpush1.msra.mxu0 0.0
      %3493 = vmatprep.subr.mxu0 0.0
      %3494 = vmatpush1.msra.mxu0 0.0
      %3495 = vmatprep.subr.mxu0 0.0
      %3496 = vmatpush1.msra.mxu0 0.0
      %3497 = vmatprep.subr.mxu0 0.0
      %3498 = vmatpush1.msra.mxu0 0.0
      %3499 = vmatprep.subr.mxu0 0.0
      %3500 = vmatpush1.msra.mxu0 0.0
      %3501 = vmatprep.mubr.f32.mxu0 0.0
      %3502 = vmatmul.mubr.f32.gmra.mrb[0].mxu0 %v3080
      %v3503 = vpop.f32.mrb[0].mxu0
      %v3504 = vadd.f32 %v2933, %v3503
      %v3505 = vpop.f32.mrb[0].mxu0
      %v3506 = vadd.f32 %v2935, %v3505
      %3507 = vdwg.mxu0
      %3508 = vmatprep.subr.mxu0 %v2432
      %3509 = vmatpush1.msra.mxu0 %v2430
      %3510 = vmatprep.subr.mxu0 0.0
      %3511 = vmatpush1.msra.mxu0 0.0
      %3512 = vmatprep.subr.mxu0 0.0
      %3513 = vmatpush1.msra.mxu0 0.0
      %3514 = vmatprep.subr.mxu0 0.0
      %3515 = vmatpush1.msra.mxu0 0.0
      %3516 = vmatprep.subr.mxu0 0.0
      %3517 = vmatpush1.msra.mxu0 0.0
      %3518 = vmatprep.subr.mxu0 0.0
      %3519 = vmatpush1.msra.mxu0 0.0
      %3520 = vmatprep.subr.mxu0 0.0
      %3521 = vmatpush1.msra.mxu0 0.0
      %3522 = vmatprep.subr.mxu0 0.0
      %3523 = vmatpush1.msra.mxu0 0.0
      %3524 = vmatprep.subr.mxu0 0.0
      %3525 = vmatpush1.msra.mxu0 0.0
      %3526 = vmatprep.subr.mxu0 0.0
      %3527 = vmatpush1.msra.mxu0 0.0
      %3528 = vmatprep.subr.mxu0 0.0
      %3529 = vmatpush1.msra.mxu0 0.0
      %3530 = vmatprep.subr.mxu0 0.0
      %3531 = vmatpush1.msra.mxu0 0.0
      %3532 = vmatprep.subr.mxu0 0.0
      %3533 = vmatpush1.msra.mxu0 0.0
      %3534 = vmatprep.subr.mxu0 0.0
      %3535 = vmatpush1.msra.mxu0 0.0
      %3536 = vmatprep.subr.mxu0 0.0
      %3537 = vmatpush1.msra.mxu0 0.0
      %3538 = vmatprep.subr.mxu0 0.0
      %3539 = vmatpush1.msra.mxu0 0.0
      %3540 = vmatprep.subr.mxu0 0.0
      %3541 = vmatpush1.msra.mxu0 0.0
      %3542 = vmatprep.subr.mxu0 0.0
      %3543 = vmatpush1.msra.mxu0 0.0
      %3544 = vmatprep.subr.mxu0 0.0
      %3545 = vmatpush1.msra.mxu0 0.0
      %3546 = vmatprep.subr.mxu0 0.0
      %3547 = vmatpush1.msra.mxu0 0.0
      %3548 = vmatprep.subr.mxu0 0.0
      %3549 = vmatpush1.msra.mxu0 0.0
      %3550 = vmatprep.subr.mxu0 0.0
      %3551 = vmatpush1.msra.mxu0 0.0
      %3552 = vmatprep.subr.mxu0 0.0
      %3553 = vmatpush1.msra.mxu0 0.0
      %3554 = vmatprep.subr.mxu0 0.0
      %3555 = vmatpush1.msra.mxu0 0.0
      %3556 = vmatprep.subr.mxu0 0.0
      %3557 = vmatpush1.msra.mxu0 0.0
      %3558 = vmatprep.subr.mxu0 0.0
      %3559 = vmatpush1.msra.mxu0 0.0
      %3560 = vmatprep.subr.mxu0 0.0
      %3561 = vmatpush1.msra.mxu0 0.0
      %3562 = vmatprep.subr.mxu0 0.0
      %3563 = vmatpush1.msra.mxu0 0.0
      %3564 = vmatprep.subr.mxu0 0.0
      %3565 = vmatpush1.msra.mxu0 0.0
      %3566 = vmatprep.subr.mxu0 0.0
      %3567 = vmatpush1.msra.mxu0 0.0
      %3568 = vmatprep.subr.mxu0 0.0
      %3569 = vmatpush1.msra.mxu0 0.0
      %3570 = vmatprep.subr.mxu0 0.0
      %3571 = vmatpush1.msra.mxu0 0.0
      %3572 = vmatprep.mubr.f32.mxu0 0.0
      %3573 = vmatmul.mubr.f32.gmra.mrb[0].mxu0 %v3080
      %v3574 = vpop.f32.mrb[0].mxu0
      %v3575 = vadd.f32 %v3004, %v3574
      %v3576 = vpop.f32.mrb[0].mxu0
      %v3577 = vadd.f32 %v3006, %v3576
      %3578 = vdwg.mxu0
      %3579 = vmatprep.subr.mxu0 %v2503
      %3580 = vmatpush1.msra.mxu0 %v2501
      %3581 = vmatprep.subr.mxu0 0.0
      %3582 = vmatpush1.msra.mxu0 0.0
      %3583 = vmatprep.subr.mxu0 0.0
      %3584 = vmatpush1.msra.mxu0 0.0
      %3585 = vmatprep.subr.mxu0 0.0
      %3586 = vmatpush1.msra.mxu0 0.0
      %3587 = vmatprep.subr.mxu0 0.0
      %3588 = vmatpush1.msra.mxu0 0.0
      %3589 = vmatprep.subr.mxu0 0.0
      %3590 = vmatpush1.msra.mxu0 0.0
      %3591 = vmatprep.subr.mxu0 0.0
      %3592 = vmatpush1.msra.mxu0 0.0
      %3593 = vmatprep.subr.mxu0 0.0
      %3594 = vmatpush1.msra.mxu0 0.0
      %3595 = vmatprep.subr.mxu0 0.0
      %3596 = vmatpush1.msra.mxu0 0.0
      %3597 = vmatprep.subr.mxu0 0.0
      %3598 = vmatpush1.msra.mxu0 0.0
      %3599 = vmatprep.subr.mxu0 0.0
      %3600 = vmatpush1.msra.mxu0 0.0
      %3601 = vmatprep.subr.mxu0 0.0
      %3602 = vmatpush1.msra.mxu0 0.0
      %3603 = vmatprep.subr.mxu0 0.0
      %3604 = vmatpush1.msra.mxu0 0.0
      %3605 = vmatprep.subr.mxu0 0.0
      %3606 = vmatpush1.msra.mxu0 0.0
      %3607 = vmatprep.subr.mxu0 0.0
      %3608 = vmatpush1.msra.mxu0 0.0
      %3609 = vmatprep.subr.mxu0 0.0
      %3610 = vmatpush1.msra.mxu0 0.0
      %3611 = vmatprep.subr.mxu0 0.0
      %3612 = vmatpush1.msra.mxu0 0.0
      %3613 = vmatprep.subr.mxu0 0.0
      %3614 = vmatpush1.msra.mxu0 0.0
      %3615 = vmatprep.subr.mxu0 0.0
      %3616 = vmatpush1.msra.mxu0 0.0
      %3617 = vmatprep.subr.mxu0 0.0
      %3618 = vmatpush1.msra.mxu0 0.0
      %3619 = vmatprep.subr.mxu0 0.0
      %3620 = vmatpush1.msra.mxu0 0.0
      %3621 = vmatprep.subr.mxu0 0.0
      %3622 = vmatpush1.msra.mxu0 0.0
      %3623 = vmatprep.subr.mxu0 0.0
      %3624 = vmatpush1.msra.mxu0 0.0
      %3625 = vmatprep.subr.mxu0 0.0
      %3626 = vmatpush1.msra.mxu0 0.0
      %3627 = vmatprep.subr.mxu0 0.0
      %3628 = vmatpush1.msra.mxu0 0.0
      %3629 = vmatprep.subr.mxu0 0.0
      %3630 = vmatpush1.msra.mxu0 0.0
      %3631 = vmatprep.subr.mxu0 0.0
      %3632 = vmatpush1.msra.mxu0 0.0
      %3633 = vmatprep.subr.mxu0 0.0
      %3634 = vmatpush1.msra.mxu0 0.0
      %3635 = vmatprep.subr.mxu0 0.0
      %3636 = vmatpush1.msra.mxu0 0.0
      %3637 = vmatprep.subr.mxu0 0.0
      %3638 = vmatpush1.msra.mxu0 0.0
      %3639 = vmatprep.subr.mxu0 0.0
      %3640 = vmatpush1.msra.mxu0 0.0
      %3641 = vmatprep.subr.mxu0 0.0
      %3642 = vmatpush1.msra.mxu0 0.0
      %3643 = vmatprep.mubr.f32.mxu0 0.0
      %3644 = vmatmul.mubr.f32.gmra.mrb[0].mxu0 %v3080
      %v3645 = vpop.f32.mrb[0].mxu0
      %v3646 = vadd.f32 %v3075, %v3645
      %v3647 = vpop.f32.mrb[0].mxu0
      %v3648 = vadd.f32 %v3077, %v3647
      %3649 = vdwg.mxu0
      %v3650 = vld [vmem:[%s13] sm:$0x3f]
      %3652 = vset.pattern.permute.xlu0 0
      %3653 = vperm.xlu0 %3652, %v3650
      %v3654 = vpop.permute.xlu0 %3653
      %v3656 = vadd.f32 %v3149, %v3654
      %v3657 = vadd.f32 %v3151, %v3654
      %v3658 = vadd.f32 %v3220, %v3654
      %v3659 = vadd.f32 %v3222, %v3654
      %v3660 = vadd.f32 %v3291, %v3654
      %v3661 = vadd.f32 %v3293, %v3654
      %v3662 = vadd.f32 %v3362, %v3654
      %v3663 = vadd.f32 %v3364, %v3654
      %v3664 = vadd.f32 %v3433, %v3654
      %v3665 = vadd.f32 %v3435, %v3654
      %v3666 = vadd.f32 %v3504, %v3654
      %v3667 = vadd.f32 %v3506, %v3654
      %v3668 = vadd.f32 %v3575, %v3654
      %v3669 = vadd.f32 %v3577, %v3654
      %v3670 = vadd.f32 %v3646, %v3654
      %v3671 = vadd.f32 %v3648, %v3654
      %v3672 = vld [vmem:[%s8] sm:$0xf]
      %v3673 = vld [vmem:[%s11] sm:$0xf]
      %v3675 = vsel %vm1884, %v3673, 0
      %3677 = vmatprep.subr.mxu0 %v1893
      %3678 = vmatpush1.msra.mxu0 %v1890
      %3679 = vmatprep.subr.mxu0 0.0
      %3680 = vmatpush1.msra.mxu0 0.0
      %3681 = vmatprep.subr.mxu0 0.0
      %3682 = vmatpush1.msra.mxu0 0.0
      %3683 = vmatprep.subr.mxu0 0.0
      %3684 = vmatpush1.msra.mxu0 0.0
      %3685 = vmatprep.subr.mxu0 0.0
      %3686 = vmatpush1.msra.mxu0 0.0
      %3687 = vmatprep.subr.mxu0 0.0
      %3688 = vmatpush1.msra.mxu0 0.0
      %3689 = vmatprep.subr.mxu0 0.0
      %3690 = vmatpush1.msra.mxu0 0.0
      %3691 = vmatprep.subr.mxu0 0.0
      %3692 = vmatpush1.msra.mxu0 0.0
      %3693 = vmatprep.subr.mxu0 0.0
      %3694 = vmatpush1.msra.mxu0 0.0
      %3695 = vmatprep.subr.mxu0 0.0
      %3696 = vmatpush1.msra.mxu0 0.0
      %3697 = vmatprep.subr.mxu0 0.0
      %3698 = vmatpush1.msra.mxu0 0.0
      %3699 = vmatprep.subr.mxu0 0.0
      %3700 = vmatpush1.msra.mxu0 0.0
      %3701 = vmatprep.subr.mxu0 0.0
      %3702 = vmatpush1.msra.mxu0 0.0
      %3703 = vmatprep.subr.mxu0 0.0
      %3704 = vmatpush1.msra.mxu0 0.0
      %3705 = vmatprep.subr.mxu0 0.0
      %3706 = vmatpush1.msra.mxu0 0.0
      %3707 = vmatprep.subr.mxu0 0.0
      %3708 = vmatpush1.msra.mxu0 0.0
      %3709 = vmatprep.subr.mxu0 0.0
      %3710 = vmatpush1.msra.mxu0 0.0
      %3711 = vmatprep.subr.mxu0 0.0
      %3712 = vmatpush1.msra.mxu0 0.0
      %3713 = vmatprep.subr.mxu0 0.0
      %3714 = vmatpush1.msra.mxu0 0.0
      %3715 = vmatprep.subr.mxu0 0.0
      %3716 = vmatpush1.msra.mxu0 0.0
      %3717 = vmatprep.subr.mxu0 0.0
      %3718 = vmatpush1.msra.mxu0 0.0
      %3719 = vmatprep.subr.mxu0 0.0
      %3720 = vmatpush1.msra.mxu0 0.0
      %3721 = vmatprep.subr.mxu0 0.0
      %3722 = vmatpush1.msra.mxu0 0.0
      %3723 = vmatprep.subr.mxu0 0.0
      %3724 = vmatpush1.msra.mxu0 0.0
      %3725 = vmatprep.subr.mxu0 0.0
      %3726 = vmatpush1.msra.mxu0 0.0
      %3727 = vmatprep.subr.mxu0 0.0
      %3728 = vmatpush1.msra.mxu0 0.0
      %3729 = vmatprep.subr.mxu0 0.0
      %3730 = vmatpush1.msra.mxu0 0.0
      %3731 = vmatprep.subr.mxu0 0.0
      %3732 = vmatpush1.msra.mxu0 0.0
      %3733 = vmatprep.subr.mxu0 0.0
      %3734 = vmatpush1.msra.mxu0 0.0
      %3735 = vmatprep.subr.mxu0 0.0
      %3736 = vmatpush1.msra.mxu0 0.0
      %3737 = vmatprep.subr.mxu0 0.0
      %3738 = vmatpush1.msra.mxu0 0.0
      %3739 = vmatprep.subr.mxu0 0.0
      %3740 = vmatpush1.msra.mxu0 0.0
      %3741 = vmatprep.mubr.f32.mxu0 0.0
      %3742 = vmatmul.mubr.f32.gmra.mrb[0].mxu0 %v3675
      %v3743 = vpop.f32.mrb[0].mxu0
      %v3744 = vadd.f32 0.0, %v3743
      %v3745 = vpop.f32.mrb[0].mxu0
      %v3746 = vadd.f32 0.0, %v3745
      %3747 = vdwg.mxu0
      %3748 = vmatprep.subr.mxu0 %v1899
      %3749 = vmatpush1.msra.mxu0 %v1896
      %3750 = vmatprep.subr.mxu0 0.0
      %3751 = vmatpush1.msra.mxu0 0.0
      %3752 = vmatprep.subr.mxu0 0.0
      %3753 = vmatpush1.msra.mxu0 0.0
      %3754 = vmatprep.subr.mxu0 0.0
      %3755 = vmatpush1.msra.mxu0 0.0
      %3756 = vmatprep.subr.mxu0 0.0
      %3757 = vmatpush1.msra.mxu0 0.0
      %3758 = vmatprep.subr.mxu0 0.0
      %3759 = vmatpush1.msra.mxu0 0.0
      %3760 = vmatprep.subr.mxu0 0.0
      %3761 = vmatpush1.msra.mxu0 0.0
      %3762 = vmatprep.subr.mxu0 0.0
      %3763 = vmatpush1.msra.mxu0 0.0
      %3764 = vmatprep.subr.mxu0 0.0
      %3765 = vmatpush1.msra.mxu0 0.0
      %3766 = vmatprep.subr.mxu0 0.0
      %3767 = vmatpush1.msra.mxu0 0.0
      %3768 = vmatprep.subr.mxu0 0.0
      %3769 = vmatpush1.msra.mxu0 0.0
      %3770 = vmatprep.subr.mxu0 0.0
      %3771 = vmatpush1.msra.mxu0 0.0
      %3772 = vmatprep.subr.mxu0 0.0
      %3773 = vmatpush1.msra.mxu0 0.0
      %3774 = vmatprep.subr.mxu0 0.0
      %3775 = vmatpush1.msra.mxu0 0.0
      %3776 = vmatprep.subr.mxu0 0.0
      %3777 = vmatpush1.msra.mxu0 0.0
      %3778 = vmatprep.subr.mxu0 0.0
      %3779 = vmatpush1.msra.mxu0 0.0
      %3780 = vmatprep.subr.mxu0 0.0
      %3781 = vmatpush1.msra.mxu0 0.0
      %3782 = vmatprep.subr.mxu0 0.0
      %3783 = vmatpush1.msra.mxu0 0.0
      %3784 = vmatprep.subr.mxu0 0.0
      %3785 = vmatpush1.msra.mxu0 0.0
      %3786 = vmatprep.subr.mxu0 0.0
      %3787 = vmatpush1.msra.mxu0 0.0
      %3788 = vmatprep.subr.mxu0 0.0
      %3789 = vmatpush1.msra.mxu0 0.0
      %3790 = vmatprep.subr.mxu0 0.0
      %3791 = vmatpush1.msra.mxu0 0.0
      %3792 = vmatprep.subr.mxu0 0.0
      %3793 = vmatpush1.msra.mxu0 0.0
      %3794 = vmatprep.subr.mxu0 0.0
      %3795 = vmatpush1.msra.mxu0 0.0
      %3796 = vmatprep.subr.mxu0 0.0
      %3797 = vmatpush1.msra.mxu0 0.0
      %3798 = vmatprep.subr.mxu0 0.0
      %3799 = vmatpush1.msra.mxu0 0.0
      %3800 = vmatprep.subr.mxu0 0.0
      %3801 = vmatpush1.msra.mxu0 0.0
      %3802 = vmatprep.subr.mxu0 0.0
      %3803 = vmatpush1.msra.mxu0 0.0
      %3804 = vmatprep.subr.mxu0 0.0
      %3805 = vmatpush1.msra.mxu0 0.0
      %3806 = vmatprep.subr.mxu0 0.0
      %3807 = vmatpush1.msra.mxu0 0.0
      %3808 = vmatprep.subr.mxu0 0.0
      %3809 = vmatpush1.msra.mxu0 0.0
      %3810 = vmatprep.subr.mxu0 0.0
      %3811 = vmatpush1.msra.mxu0 0.0
      %3812 = vmatprep.mubr.f32.mxu0 0.0
      %3813 = vmatmul.mubr.f32.gmra.mrb[0].mxu0 %v3675
      %v3814 = vpop.f32.mrb[0].mxu0
      %v3815 = vadd.f32 0.0, %v3814
      %v3816 = vpop.f32.mrb[0].mxu0
      %v3817 = vadd.f32 0.0, %v3816
      %3818 = vdwg.mxu0
      %3819 = vmatprep.subr.mxu0 %v1905
      %3820 = vmatpush1.msra.mxu0 %v1902
      %3821 = vmatprep.subr.mxu0 0.0
      %3822 = vmatpush1.msra.mxu0 0.0
      %3823 = vmatprep.subr.mxu0 0.0
      %3824 = vmatpush1.msra.mxu0 0.0
      %3825 = vmatprep.subr.mxu0 0.0
      %3826 = vmatpush1.msra.mxu0 0.0
      %3827 = vmatprep.subr.mxu0 0.0
      %3828 = vmatpush1.msra.mxu0 0.0
      %3829 = vmatprep.subr.mxu0 0.0
      %3830 = vmatpush1.msra.mxu0 0.0
      %3831 = vmatprep.subr.mxu0 0.0
      %3832 = vmatpush1.msra.mxu0 0.0
      %3833 = vmatprep.subr.mxu0 0.0
      %3834 = vmatpush1.msra.mxu0 0.0
      %3835 = vmatprep.subr.mxu0 0.0
      %3836 = vmatpush1.msra.mxu0 0.0
      %3837 = vmatprep.subr.mxu0 0.0
      %3838 = vmatpush1.msra.mxu0 0.0
      %3839 = vmatprep.subr.mxu0 0.0
      %3840 = vmatpush1.msra.mxu0 0.0
      %3841 = vmatprep.subr.mxu0 0.0
      %3842 = vmatpush1.msra.mxu0 0.0
      %3843 = vmatprep.subr.mxu0 0.0
      %3844 = vmatpush1.msra.mxu0 0.0
      %3845 = vmatprep.subr.mxu0 0.0
      %3846 = vmatpush1.msra.mxu0 0.0
      %3847 = vmatprep.subr.mxu0 0.0
      %3848 = vmatpush1.msra.mxu0 0.0
      %3849 = vmatprep.subr.mxu0 0.0
      %3850 = vmatpush1.msra.mxu0 0.0
      %3851 = vmatprep.subr.mxu0 0.0
      %3852 = vmatpush1.msra.mxu0 0.0
      %3853 = vmatprep.subr.mxu0 0.0
      %3854 = vmatpush1.msra.mxu0 0.0
      %3855 = vmatprep.subr.mxu0 0.0
      %3856 = vmatpush1.msra.mxu0 0.0
      %3857 = vmatprep.subr.mxu0 0.0
      %3858 = vmatpush1.msra.mxu0 0.0
      %3859 = vmatprep.subr.mxu0 0.0
      %3860 = vmatpush1.msra.mxu0 0.0
      %3861 = vmatprep.subr.mxu0 0.0
      %3862 = vmatpush1.msra.mxu0 0.0
      %3863 = vmatprep.subr.mxu0 0.0
      %3864 = vmatpush1.msra.mxu0 0.0
      %3865 = vmatprep.subr.mxu0 0.0
      %3866 = vmatpush1.msra.mxu0 0.0
      %3867 = vmatprep.subr.mxu0 0.0
      %3868 = vmatpush1.msra.mxu0 0.0
      %3869 = vmatprep.subr.mxu0 0.0
      %3870 = vmatpush1.msra.mxu0 0.0
      %3871 = vmatprep.subr.mxu0 0.0
      %3872 = vmatpush1.msra.mxu0 0.0
      %3873 = vmatprep.subr.mxu0 0.0
      %3874 = vmatpush1.msra.mxu0 0.0
      %3875 = vmatprep.subr.mxu0 0.0
      %3876 = vmatpush1.msra.mxu0 0.0
      %3877 = vmatprep.subr.mxu0 0.0
      %3878 = vmatpush1.msra.mxu0 0.0
      %3879 = vmatprep.subr.mxu0 0.0
      %3880 = vmatpush1.msra.mxu0 0.0
      %3881 = vmatprep.subr.mxu0 0.0
      %3882 = vmatpush1.msra.mxu0 0.0
      %3883 = vmatprep.mubr.f32.mxu0 0.0
      %3884 = vmatmul.mubr.f32.gmra.mrb[0].mxu0 %v3675
      %v3885 = vpop.f32.mrb[0].mxu0
      %v3886 = vadd.f32 0.0, %v3885
      %v3887 = vpop.f32.mrb[0].mxu0
      %v3888 = vadd.f32 0.0, %v3887
      %3889 = vdwg.mxu0
      %3890 = vmatprep.subr.mxu0 %v1911
      %3891 = vmatpush1.msra.mxu0 %v1908
      %3892 = vmatprep.subr.mxu0 0.0
      %3893 = vmatpush1.msra.mxu0 0.0
      %3894 = vmatprep.subr.mxu0 0.0
      %3895 = vmatpush1.msra.mxu0 0.0
      %3896 = vmatprep.subr.mxu0 0.0
      %3897 = vmatpush1.msra.mxu0 0.0
      %3898 = vmatprep.subr.mxu0 0.0
      %3899 = vmatpush1.msra.mxu0 0.0
      %3900 = vmatprep.subr.mxu0 0.0
      %3901 = vmatpush1.msra.mxu0 0.0
      %3902 = vmatprep.subr.mxu0 0.0
      %3903 = vmatpush1.msra.mxu0 0.0
      %3904 = vmatprep.subr.mxu0 0.0
      %3905 = vmatpush1.msra.mxu0 0.0
      %3906 = vmatprep.subr.mxu0 0.0
      %3907 = vmatpush1.msra.mxu0 0.0
      %3908 = vmatprep.subr.mxu0 0.0
      %3909 = vmatpush1.msra.mxu0 0.0
      %3910 = vmatprep.subr.mxu0 0.0
      %3911 = vmatpush1.msra.mxu0 0.0
      %3912 = vmatprep.subr.mxu0 0.0
      %3913 = vmatpush1.msra.mxu0 0.0
      %3914 = vmatprep.subr.mxu0 0.0
      %3915 = vmatpush1.msra.mxu0 0.0
      %3916 = vmatprep.subr.mxu0 0.0
      %3917 = vmatpush1.msra.mxu0 0.0
      %3918 = vmatprep.subr.mxu0 0.0
      %3919 = vmatpush1.msra.mxu0 0.0
      %3920 = vmatprep.subr.mxu0 0.0
      %3921 = vmatpush1.msra.mxu0 0.0
      %3922 = vmatprep.subr.mxu0 0.0
      %3923 = vmatpush1.msra.mxu0 0.0
      %3924 = vmatprep.subr.mxu0 0.0
      %3925 = vmatpush1.msra.mxu0 0.0
      %3926 = vmatprep.subr.mxu0 0.0
      %3927 = vmatpush1.msra.mxu0 0.0
      %3928 = vmatprep.subr.mxu0 0.0
      %3929 = vmatpush1.msra.mxu0 0.0
      %3930 = vmatprep.subr.mxu0 0.0
      %3931 = vmatpush1.msra.mxu0 0.0
      %3932 = vmatprep.subr.mxu0 0.0
      %3933 = vmatpush1.msra.mxu0 0.0
      %3934 = vmatprep.subr.mxu0 0.0
      %3935 = vmatpush1.msra.mxu0 0.0
      %3936 = vmatprep.subr.mxu0 0.0
      %3937 = vmatpush1.msra.mxu0 0.0
      %3938 = vmatprep.subr.mxu0 0.0
      %3939 = vmatpush1.msra.mxu0 0.0
      %3940 = vmatprep.subr.mxu0 0.0
      %3941 = vmatpush1.msra.mxu0 0.0
      %3942 = vmatprep.subr.mxu0 0.0
      %3943 = vmatpush1.msra.mxu0 0.0
      %3944 = vmatprep.subr.mxu0 0.0
      %3945 = vmatpush1.msra.mxu0 0.0
      %3946 = vmatprep.subr.mxu0 0.0
      %3947 = vmatpush1.msra.mxu0 0.0
      %3948 = vmatprep.subr.mxu0 0.0
      %3949 = vmatpush1.msra.mxu0 0.0
      %3950 = vmatprep.subr.mxu0 0.0
      %3951 = vmatpush1.msra.mxu0 0.0
      %3952 = vmatprep.subr.mxu0 0.0
      %3953 = vmatpush1.msra.mxu0 0.0
      %3954 = vmatprep.mubr.f32.mxu0 0.0
      %3955 = vmatmul.mubr.f32.gmra.mrb[0].mxu0 %v3675
      %v3956 = vpop.f32.mrb[0].mxu0
      %v3957 = vadd.f32 0.0, %v3956
      %v3958 = vpop.f32.mrb[0].mxu0
      %v3959 = vadd.f32 0.0, %v3958
      %3960 = vdwg.mxu0
      %3961 = vmatprep.subr.mxu0 %v1917
      %3962 = vmatpush1.msra.mxu0 %v1914
      %3963 = vmatprep.subr.mxu0 0.0
      %3964 = vmatpush1.msra.mxu0 0.0
      %3965 = vmatprep.subr.mxu0 0.0
      %3966 = vmatpush1.msra.mxu0 0.0
      %3967 = vmatprep.subr.mxu0 0.0
      %3968 = vmatpush1.msra.mxu0 0.0
      %3969 = vmatprep.subr.mxu0 0.0
      %3970 = vmatpush1.msra.mxu0 0.0
      %3971 = vmatprep.subr.mxu0 0.0
      %3972 = vmatpush1.msra.mxu0 0.0
      %3973 = vmatprep.subr.mxu0 0.0
      %3974 = vmatpush1.msra.mxu0 0.0
      %3975 = vmatprep.subr.mxu0 0.0
      %3976 = vmatpush1.msra.mxu0 0.0
      %3977 = vmatprep.subr.mxu0 0.0
      %3978 = vmatpush1.msra.mxu0 0.0
      %3979 = vmatprep.subr.mxu0 0.0
      %3980 = vmatpush1.msra.mxu0 0.0
      %3981 = vmatprep.subr.mxu0 0.0
      %3982 = vmatpush1.msra.mxu0 0.0
      %3983 = vmatprep.subr.mxu0 0.0
      %3984 = vmatpush1.msra.mxu0 0.0
      %3985 = vmatprep.subr.mxu0 0.0
      %3986 = vmatpush1.msra.mxu0 0.0
      %3987 = vmatprep.subr.mxu0 0.0
      %3988 = vmatpush1.msra.mxu0 0.0
      %3989 = vmatprep.subr.mxu0 0.0
      %3990 = vmatpush1.msra.mxu0 0.0
      %3991 = vmatprep.subr.mxu0 0.0
      %3992 = vmatpush1.msra.mxu0 0.0
      %3993 = vmatprep.subr.mxu0 0.0
      %3994 = vmatpush1.msra.mxu0 0.0
      %3995 = vmatprep.subr.mxu0 0.0
      %3996 = vmatpush1.msra.mxu0 0.0
      %3997 = vmatprep.subr.mxu0 0.0
      %3998 = vmatpush1.msra.mxu0 0.0
      %3999 = vmatprep.subr.mxu0 0.0
      %4000 = vmatpush1.msra.mxu0 0.0
      %4001 = vmatprep.subr.mxu0 0.0
      %4002 = vmatpush1.msra.mxu0 0.0
      %4003 = vmatprep.subr.mxu0 0.0
      %4004 = vmatpush1.msra.mxu0 0.0
      %4005 = vmatprep.subr.mxu0 0.0
      %4006 = vmatpush1.msra.mxu0 0.0
      %4007 = vmatprep.subr.mxu0 0.0
      %4008 = vmatpush1.msra.mxu0 0.0
      %4009 = vmatprep.subr.mxu0 0.0
      %4010 = vmatpush1.msra.mxu0 0.0
      %4011 = vmatprep.subr.mxu0 0.0
      %4012 = vmatpush1.msra.mxu0 0.0
      %4013 = vmatprep.subr.mxu0 0.0
      %4014 = vmatpush1.msra.mxu0 0.0
      %4015 = vmatprep.subr.mxu0 0.0
      %4016 = vmatpush1.msra.mxu0 0.0
      %4017 = vmatprep.subr.mxu0 0.0
      %4018 = vmatpush1.msra.mxu0 0.0
      %4019 = vmatprep.subr.mxu0 0.0
      %4020 = vmatpush1.msra.mxu0 0.0
      %4021 = vmatprep.subr.mxu0 0.0
      %4022 = vmatpush1.msra.mxu0 0.0
      %4023 = vmatprep.subr.mxu0 0.0
      %4024 = vmatpush1.msra.mxu0 0.0
      %4025 = vmatprep.mubr.f32.mxu0 0.0
      %4026 = vmatmul.mubr.f32.gmra.mrb[0].mxu0 %v3675
      %v4027 = vpop.f32.mrb[0].mxu0
      %v4028 = vadd.f32 0.0, %v4027
      %v4029 = vpop.f32.mrb[0].mxu0
      %v4030 = vadd.f32 0.0, %v4029
      %4031 = vdwg.mxu0
      %4032 = vmatprep.subr.mxu0 %v1923
      %4033 = vmatpush1.msra.mxu0 %v1920
      %4034 = vmatprep.subr.mxu0 0.0
      %4035 = vmatpush1.msra.mxu0 0.0
      %4036 = vmatprep.subr.mxu0 0.0
      %4037 = vmatpush1.msra.mxu0 0.0
      %4038 = vmatprep.subr.mxu0 0.0
      %4039 = vmatpush1.msra.mxu0 0.0
      %4040 = vmatprep.subr.mxu0 0.0
      %4041 = vmatpush1.msra.mxu0 0.0
      %4042 = vmatprep.subr.mxu0 0.0
      %4043 = vmatpush1.msra.mxu0 0.0
      %4044 = vmatprep.subr.mxu0 0.0
      %4045 = vmatpush1.msra.mxu0 0.0
      %4046 = vmatprep.subr.mxu0 0.0
      %4047 = vmatpush1.msra.mxu0 0.0
      %4048 = vmatprep.subr.mxu0 0.0
      %4049 = vmatpush1.msra.mxu0 0.0
      %4050 = vmatprep.subr.mxu0 0.0
      %4051 = vmatpush1.msra.mxu0 0.0
      %4052 = vmatprep.subr.mxu0 0.0
      %4053 = vmatpush1.msra.mxu0 0.0
      %4054 = vmatprep.subr.mxu0 0.0
      %4055 = vmatpush1.msra.mxu0 0.0
      %4056 = vmatprep.subr.mxu0 0.0
      %4057 = vmatpush1.msra.mxu0 0.0
      %4058 = vmatprep.subr.mxu0 0.0
      %4059 = vmatpush1.msra.mxu0 0.0
      %4060 = vmatprep.subr.mxu0 0.0
      %4061 = vmatpush1.msra.mxu0 0.0
      %4062 = vmatprep.subr.mxu0 0.0
      %4063 = vmatpush1.msra.mxu0 0.0
      %4064 = vmatprep.subr.mxu0 0.0
      %4065 = vmatpush1.msra.mxu0 0.0
      %4066 = vmatprep.subr.mxu0 0.0
      %4067 = vmatpush1.msra.mxu0 0.0
      %4068 = vmatprep.subr.mxu0 0.0
      %4069 = vmatpush1.msra.mxu0 0.0
      %4070 = vmatprep.subr.mxu0 0.0
      %4071 = vmatpush1.msra.mxu0 0.0
      %4072 = vmatprep.subr.mxu0 0.0
      %4073 = vmatpush1.msra.mxu0 0.0
      %4074 = vmatprep.subr.mxu0 0.0
      %4075 = vmatpush1.msra.mxu0 0.0
      %4076 = vmatprep.subr.mxu0 0.0
      %4077 = vmatpush1.msra.mxu0 0.0
      %4078 = vmatprep.subr.mxu0 0.0
      %4079 = vmatpush1.msra.mxu0 0.0
      %4080 = vmatprep.subr.mxu0 0.0
      %4081 = vmatpush1.msra.mxu0 0.0
      %4082 = vmatprep.subr.mxu0 0.0
      %4083 = vmatpush1.msra.mxu0 0.0
      %4084 = vmatprep.subr.mxu0 0.0
      %4085 = vmatpush1.msra.mxu0 0.0
      %4086 = vmatprep.subr.mxu0 0.0
      %4087 = vmatpush1.msra.mxu0 0.0
      %4088 = vmatprep.subr.mxu0 0.0
      %4089 = vmatpush1.msra.mxu0 0.0
      %4090 = vmatprep.subr.mxu0 0.0
      %4091 = vmatpush1.msra.mxu0 0.0
      %4092 = vmatprep.subr.mxu0 0.0
      %4093 = vmatpush1.msra.mxu0 0.0
      %4094 = vmatprep.subr.mxu0 0.0
      %4095 = vmatpush1.msra.mxu0 0.0
      %4096 = vmatprep.mubr.f32.mxu0 0.0
      %4097 = vmatmul.mubr.f32.gmra.mrb[0].mxu0 %v3675
      %v4098 = vpop.f32.mrb[0].mxu0
      %v4099 = vadd.f32 0.0, %v4098
      %v4100 = vpop.f32.mrb[0].mxu0
      %v4101 = vadd.f32 0.0, %v4100
      %4102 = vdwg.mxu0
      %4103 = vmatprep.subr.mxu0 %v1929
      %4104 = vmatpush1.msra.mxu0 %v1926
      %4105 = vmatprep.subr.mxu0 0.0
      %4106 = vmatpush1.msra.mxu0 0.0
      %4107 = vmatprep.subr.mxu0 0.0
      %4108 = vmatpush1.msra.mxu0 0.0
      %4109 = vmatprep.subr.mxu0 0.0
      %4110 = vmatpush1.msra.mxu0 0.0
      %4111 = vmatprep.subr.mxu0 0.0
      %4112 = vmatpush1.msra.mxu0 0.0
      %4113 = vmatprep.subr.mxu0 0.0
      %4114 = vmatpush1.msra.mxu0 0.0
      %4115 = vmatprep.subr.mxu0 0.0
      %4116 = vmatpush1.msra.mxu0 0.0
      %4117 = vmatprep.subr.mxu0 0.0
      %4118 = vmatpush1.msra.mxu0 0.0
      %4119 = vmatprep.subr.mxu0 0.0
      %4120 = vmatpush1.msra.mxu0 0.0
      %4121 = vmatprep.subr.mxu0 0.0
      %4122 = vmatpush1.msra.mxu0 0.0
      %4123 = vmatprep.subr.mxu0 0.0
      %4124 = vmatpush1.msra.mxu0 0.0
      %4125 = vmatprep.subr.mxu0 0.0
      %4126 = vmatpush1.msra.mxu0 0.0
      %4127 = vmatprep.subr.mxu0 0.0
      %4128 = vmatpush1.msra.mxu0 0.0
      %4129 = vmatprep.subr.mxu0 0.0
      %4130 = vmatpush1.msra.mxu0 0.0
      %4131 = vmatprep.subr.mxu0 0.0
      %4132 = vmatpush1.msra.mxu0 0.0
      %4133 = vmatprep.subr.mxu0 0.0
      %4134 = vmatpush1.msra.mxu0 0.0
      %4135 = vmatprep.subr.mxu0 0.0
      %4136 = vmatpush1.msra.mxu0 0.0
      %4137 = vmatprep.subr.mxu0 0.0
      %4138 = vmatpush1.msra.mxu0 0.0
      %4139 = vmatprep.subr.mxu0 0.0
      %4140 = vmatpush1.msra.mxu0 0.0
      %4141 = vmatprep.subr.mxu0 0.0
      %4142 = vmatpush1.msra.mxu0 0.0
      %4143 = vmatprep.subr.mxu0 0.0
      %4144 = vmatpush1.msra.mxu0 0.0
      %4145 = vmatprep.subr.mxu0 0.0
      %4146 = vmatpush1.msra.mxu0 0.0
      %4147 = vmatprep.subr.mxu0 0.0
      %4148 = vmatpush1.msra.mxu0 0.0
      %4149 = vmatprep.subr.mxu0 0.0
      %4150 = vmatpush1.msra.mxu0 0.0
      %4151 = vmatprep.subr.mxu0 0.0
      %4152 = vmatpush1.msra.mxu0 0.0
      %4153 = vmatprep.subr.mxu0 0.0
      %4154 = vmatpush1.msra.mxu0 0.0
      %4155 = vmatprep.subr.mxu0 0.0
      %4156 = vmatpush1.msra.mxu0 0.0
      %4157 = vmatprep.subr.mxu0 0.0
      %4158 = vmatpush1.msra.mxu0 0.0
      %4159 = vmatprep.subr.mxu0 0.0
      %4160 = vmatpush1.msra.mxu0 0.0
      %4161 = vmatprep.subr.mxu0 0.0
      %4162 = vmatpush1.msra.mxu0 0.0
      %4163 = vmatprep.subr.mxu0 0.0
      %4164 = vmatpush1.msra.mxu0 0.0
      %4165 = vmatprep.subr.mxu0 0.0
      %4166 = vmatpush1.msra.mxu0 0.0
      %4167 = vmatprep.mubr.f32.mxu0 0.0
      %4168 = vmatmul.mubr.f32.gmra.mrb[0].mxu0 %v3675
      %v4169 = vpop.f32.mrb[0].mxu0
      %v4170 = vadd.f32 0.0, %v4169
      %v4171 = vpop.f32.mrb[0].mxu0
      %v4172 = vadd.f32 0.0, %v4171
      %4173 = vdwg.mxu0
      %4174 = vmatprep.subr.mxu0 %v1935
      %4175 = vmatpush1.msra.mxu0 %v1932
      %4176 = vmatprep.subr.mxu0 0.0
      %4177 = vmatpush1.msra.mxu0 0.0
      %4178 = vmatprep.subr.mxu0 0.0
      %4179 = vmatpush1.msra.mxu0 0.0
      %4180 = vmatprep.subr.mxu0 0.0
      %4181 = vmatpush1.msra.mxu0 0.0
      %4182 = vmatprep.subr.mxu0 0.0
      %4183 = vmatpush1.msra.mxu0 0.0
      %4184 = vmatprep.subr.mxu0 0.0
      %4185 = vmatpush1.msra.mxu0 0.0
      %4186 = vmatprep.subr.mxu0 0.0
      %4187 = vmatpush1.msra.mxu0 0.0
      %4188 = vmatprep.subr.mxu0 0.0
      %4189 = vmatpush1.msra.mxu0 0.0
      %4190 = vmatprep.subr.mxu0 0.0
      %4191 = vmatpush1.msra.mxu0 0.0
      %4192 = vmatprep.subr.mxu0 0.0
      %4193 = vmatpush1.msra.mxu0 0.0
      %4194 = vmatprep.subr.mxu0 0.0
      %4195 = vmatpush1.msra.mxu0 0.0
      %4196 = vmatprep.subr.mxu0 0.0
      %4197 = vmatpush1.msra.mxu0 0.0
      %4198 = vmatprep.subr.mxu0 0.0
      %4199 = vmatpush1.msra.mxu0 0.0
      %4200 = vmatprep.subr.mxu0 0.0
      %4201 = vmatpush1.msra.mxu0 0.0
      %4202 = vmatprep.subr.mxu0 0.0
      %4203 = vmatpush1.msra.mxu0 0.0
      %4204 = vmatprep.subr.mxu0 0.0
      %4205 = vmatpush1.msra.mxu0 0.0
      %4206 = vmatprep.subr.mxu0 0.0
      %4207 = vmatpush1.msra.mxu0 0.0
      %4208 = vmatprep.subr.mxu0 0.0
      %4209 = vmatpush1.msra.mxu0 0.0
      %4210 = vmatprep.subr.mxu0 0.0
      %4211 = vmatpush1.msra.mxu0 0.0
      %4212 = vmatprep.subr.mxu0 0.0
      %4213 = vmatpush1.msra.mxu0 0.0
      %4214 = vmatprep.subr.mxu0 0.0
      %4215 = vmatpush1.msra.mxu0 0.0
      %4216 = vmatprep.subr.mxu0 0.0
      %4217 = vmatpush1.msra.mxu0 0.0
      %4218 = vmatprep.subr.mxu0 0.0
      %4219 = vmatpush1.msra.mxu0 0.0
      %4220 = vmatprep.subr.mxu0 0.0
      %4221 = vmatpush1.msra.mxu0 0.0
      %4222 = vmatprep.subr.mxu0 0.0
      %4223 = vmatpush1.msra.mxu0 0.0
      %4224 = vmatprep.subr.mxu0 0.0
      %4225 = vmatpush1.msra.mxu0 0.0
      %4226 = vmatprep.subr.mxu0 0.0
      %4227 = vmatpush1.msra.mxu0 0.0
      %4228 = vmatprep.subr.mxu0 0.0
      %4229 = vmatpush1.msra.mxu0 0.0
      %4230 = vmatprep.subr.mxu0 0.0
      %4231 = vmatpush1.msra.mxu0 0.0
      %4232 = vmatprep.subr.mxu0 0.0
      %4233 = vmatpush1.msra.mxu0 0.0
      %4234 = vmatprep.subr.mxu0 0.0
      %4235 = vmatpush1.msra.mxu0 0.0
      %4236 = vmatprep.subr.mxu0 0.0
      %4237 = vmatpush1.msra.mxu0 0.0
      %4238 = vmatprep.mubr.f32.mxu0 0.0
      %4239 = vmatmul.mubr.f32.gmra.mrb[0].mxu0 %v3675
      %v4240 = vpop.f32.mrb[0].mxu0
      %v4241 = vadd.f32 0.0, %v4240
      %v4242 = vpop.f32.mrb[0].mxu0
      %v4243 = vadd.f32 0.0, %v4242
      %4244 = vdwg.mxu0
      %v4246 = vsel %vm1884, %v3672, 0
      %v4249 = vsel %vm1888, %v3656, 0
      %v4252 = vsel %vm1888, %v3657, 0
      %v4255 = vsel %vm1888, %v3658, 0
      %v4258 = vsel %vm1888, %v3659, 0
      %v4261 = vsel %vm1888, %v3660, 0
      %v4264 = vsel %vm1888, %v3661, 0
      %v4267 = vsel %vm1888, %v3662, 0
      %v4270 = vsel %vm1888, %v3663, 0
      %v4273 = vsel %vm1888, %v3664, 0
      %v4276 = vsel %vm1888, %v3665, 0
      %v4279 = vsel %vm1888, %v3666, 0
      %v4282 = vsel %vm1888, %v3667, 0
      %v4285 = vsel %vm1888, %v3668, 0
      %v4288 = vsel %vm1888, %v3669, 0
      %v4291 = vsel %vm1888, %v3670, 0
      %v4294 = vsel %vm1888, %v3671, 0
      %4296 = vmatprep.subr.mxu0 %v4252
      %4297 = vmatpush1.msra.mxu0 %v4249
      %4298 = vmatprep.subr.mxu0 0.0
      %4299 = vmatpush1.msra.mxu0 0.0
      %4300 = vmatprep.subr.mxu0 0.0
      %4301 = vmatpush1.msra.mxu0 0.0
      %4302 = vmatprep.subr.mxu0 0.0
      %4303 = vmatpush1.msra.mxu0 0.0
      %4304 = vmatprep.subr.mxu0 0.0
      %4305 = vmatpush1.msra.mxu0 0.0
      %4306 = vmatprep.subr.mxu0 0.0
      %4307 = vmatpush1.msra.mxu0 0.0
      %4308 = vmatprep.subr.mxu0 0.0
      %4309 = vmatpush1.msra.mxu0 0.0
      %4310 = vmatprep.subr.mxu0 0.0
      %4311 = vmatpush1.msra.mxu0 0.0
      %4312 = vmatprep.subr.mxu0 0.0
      %4313 = vmatpush1.msra.mxu0 0.0
      %4314 = vmatprep.subr.mxu0 0.0
      %4315 = vmatpush1.msra.mxu0 0.0
      %4316 = vmatprep.subr.mxu0 0.0
      %4317 = vmatpush1.msra.mxu0 0.0
      %4318 = vmatprep.subr.mxu0 0.0
      %4319 = vmatpush1.msra.mxu0 0.0
      %4320 = vmatprep.subr.mxu0 0.0
      %4321 = vmatpush1.msra.mxu0 0.0
      %4322 = vmatprep.subr.mxu0 0.0
      %4323 = vmatpush1.msra.mxu0 0.0
      %4324 = vmatprep.subr.mxu0 0.0
      %4325 = vmatpush1.msra.mxu0 0.0
      %4326 = vmatprep.subr.mxu0 0.0
      %4327 = vmatpush1.msra.mxu0 0.0
      %4328 = vmatprep.subr.mxu0 0.0
      %4329 = vmatpush1.msra.mxu0 0.0
      %4330 = vmatprep.subr.mxu0 0.0
      %4331 = vmatpush1.msra.mxu0 0.0
      %4332 = vmatprep.subr.mxu0 0.0
      %4333 = vmatpush1.msra.mxu0 0.0
      %4334 = vmatprep.subr.mxu0 0.0
      %4335 = vmatpush1.msra.mxu0 0.0
      %4336 = vmatprep.subr.mxu0 0.0
      %4337 = vmatpush1.msra.mxu0 0.0
      %4338 = vmatprep.subr.mxu0 0.0
      %4339 = vmatpush1.msra.mxu0 0.0
      %4340 = vmatprep.subr.mxu0 0.0
      %4341 = vmatpush1.msra.mxu0 0.0
      %4342 = vmatprep.subr.mxu0 0.0
      %4343 = vmatpush1.msra.mxu0 0.0
      %4344 = vmatprep.subr.mxu0 0.0
      %4345 = vmatpush1.msra.mxu0 0.0
      %4346 = vmatprep.subr.mxu0 0.0
      %4347 = vmatpush1.msra.mxu0 0.0
      %4348 = vmatprep.subr.mxu0 0.0
      %4349 = vmatpush1.msra.mxu0 0.0
      %4350 = vmatprep.subr.mxu0 0.0
      %4351 = vmatpush1.msra.mxu0 0.0
      %4352 = vmatprep.subr.mxu0 0.0
      %4353 = vmatpush1.msra.mxu0 0.0
      %4354 = vmatprep.subr.mxu0 0.0
      %4355 = vmatpush1.msra.mxu0 0.0
      %4356 = vmatprep.subr.mxu0 0.0
      %4357 = vmatpush1.msra.mxu0 0.0
      %4358 = vmatprep.subr.mxu0 0.0
      %4359 = vmatpush1.msra.mxu0 0.0
      %4360 = vmatprep.mubr.f32.mxu0 0.0
      %4361 = vmatmul.mubr.f32.gmra.mrb[0].mxu0 %v4246
      %v4362 = vpop.f32.mrb[0].mxu0
      %v4363 = vadd.f32 %v3744, %v4362
      %v4364 = vpop.f32.mrb[0].mxu0
      %v4365 = vadd.f32 %v3746, %v4364
      %4366 = vdwg.mxu0
      %4367 = vmatprep.subr.mxu0 %v4258
      %4368 = vmatpush1.msra.mxu0 %v4255
      %4369 = vmatprep.subr.mxu0 0.0
      %4370 = vmatpush1.msra.mxu0 0.0
      %4371 = vmatprep.subr.mxu0 0.0
      %4372 = vmatpush1.msra.mxu0 0.0
      %4373 = vmatprep.subr.mxu0 0.0
      %4374 = vmatpush1.msra.mxu0 0.0
      %4375 = vmatprep.subr.mxu0 0.0
      %4376 = vmatpush1.msra.mxu0 0.0
      %4377 = vmatprep.subr.mxu0 0.0
      %4378 = vmatpush1.msra.mxu0 0.0
      %4379 = vmatprep.subr.mxu0 0.0
      %4380 = vmatpush1.msra.mxu0 0.0
      %4381 = vmatprep.subr.mxu0 0.0
      %4382 = vmatpush1.msra.mxu0 0.0
      %4383 = vmatprep.subr.mxu0 0.0
      %4384 = vmatpush1.msra.mxu0 0.0
      %4385 = vmatprep.subr.mxu0 0.0
      %4386 = vmatpush1.msra.mxu0 0.0
      %4387 = vmatprep.subr.mxu0 0.0
      %4388 = vmatpush1.msra.mxu0 0.0
      %4389 = vmatprep.subr.mxu0 0.0
      %4390 = vmatpush1.msra.mxu0 0.0
      %4391 = vmatprep.subr.mxu0 0.0
      %4392 = vmatpush1.msra.mxu0 0.0
      %4393 = vmatprep.subr.mxu0 0.0
      %4394 = vmatpush1.msra.mxu0 0.0
      %4395 = vmatprep.subr.mxu0 0.0
      %4396 = vmatpush1.msra.mxu0 0.0
      %4397 = vmatprep.subr.mxu0 0.0
      %4398 = vmatpush1.msra.mxu0 0.0
      %4399 = vmatprep.subr.mxu0 0.0
      %4400 = vmatpush1.msra.mxu0 0.0
      %4401 = vmatprep.subr.mxu0 0.0
      %4402 = vmatpush1.msra.mxu0 0.0
      %4403 = vmatprep.subr.mxu0 0.0
      %4404 = vmatpush1.msra.mxu0 0.0
      %4405 = vmatprep.subr.mxu0 0.0
      %4406 = vmatpush1.msra.mxu0 0.0
      %4407 = vmatprep.subr.mxu0 0.0
      %4408 = vmatpush1.msra.mxu0 0.0
      %4409 = vmatprep.subr.mxu0 0.0
      %4410 = vmatpush1.msra.mxu0 0.0
      %4411 = vmatprep.subr.mxu0 0.0
      %4412 = vmatpush1.msra.mxu0 0.0
      %4413 = vmatprep.subr.mxu0 0.0
      %4414 = vmatpush1.msra.mxu0 0.0
      %4415 = vmatprep.subr.mxu0 0.0
      %4416 = vmatpush1.msra.mxu0 0.0
      %4417 = vmatprep.subr.mxu0 0.0
      %4418 = vmatpush1.msra.mxu0 0.0
      %4419 = vmatprep.subr.mxu0 0.0
      %4420 = vmatpush1.msra.mxu0 0.0
      %4421 = vmatprep.subr.mxu0 0.0
      %4422 = vmatpush1.msra.mxu0 0.0
      %4423 = vmatprep.subr.mxu0 0.0
      %4424 = vmatpush1.msra.mxu0 0.0
      %4425 = vmatprep.subr.mxu0 0.0
      %4426 = vmatpush1.msra.mxu0 0.0
      %4427 = vmatprep.subr.mxu0 0.0
      %4428 = vmatpush1.msra.mxu0 0.0
      %4429 = vmatprep.subr.mxu0 0.0
      %4430 = vmatpush1.msra.mxu0 0.0
      %4431 = vmatprep.mubr.f32.mxu0 0.0
      %4432 = vmatmul.mubr.f32.gmra.mrb[0].mxu0 %v4246
      %v4433 = vpop.f32.mrb[0].mxu0
      %v4434 = vadd.f32 %v3815, %v4433
      %v4435 = vpop.f32.mrb[0].mxu0
      %v4436 = vadd.f32 %v3817, %v4435
      %4437 = vdwg.mxu0
      %4438 = vmatprep.subr.mxu0 %v4264
      %4439 = vmatpush1.msra.mxu0 %v4261
      %4440 = vmatprep.subr.mxu0 0.0
      %4441 = vmatpush1.msra.mxu0 0.0
      %4442 = vmatprep.subr.mxu0 0.0
      %4443 = vmatpush1.msra.mxu0 0.0
      %4444 = vmatprep.subr.mxu0 0.0
      %4445 = vmatpush1.msra.mxu0 0.0
      %4446 = vmatprep.subr.mxu0 0.0
      %4447 = vmatpush1.msra.mxu0 0.0
      %4448 = vmatprep.subr.mxu0 0.0
      %4449 = vmatpush1.msra.mxu0 0.0
      %4450 = vmatprep.subr.mxu0 0.0
      %4451 = vmatpush1.msra.mxu0 0.0
      %4452 = vmatprep.subr.mxu0 0.0
      %4453 = vmatpush1.msra.mxu0 0.0
      %4454 = vmatprep.subr.mxu0 0.0
      %4455 = vmatpush1.msra.mxu0 0.0
      %4456 = vmatprep.subr.mxu0 0.0
      %4457 = vmatpush1.msra.mxu0 0.0
      %4458 = vmatprep.subr.mxu0 0.0
      %4459 = vmatpush1.msra.mxu0 0.0
      %4460 = vmatprep.subr.mxu0 0.0
      %4461 = vmatpush1.msra.mxu0 0.0
      %4462 = vmatprep.subr.mxu0 0.0
      %4463 = vmatpush1.msra.mxu0 0.0
      %4464 = vmatprep.subr.mxu0 0.0
      %4465 = vmatpush1.msra.mxu0 0.0
      %4466 = vmatprep.subr.mxu0 0.0
      %4467 = vmatpush1.msra.mxu0 0.0
      %4468 = vmatprep.subr.mxu0 0.0
      %4469 = vmatpush1.msra.mxu0 0.0
      %4470 = vmatprep.subr.mxu0 0.0
      %4471 = vmatpush1.msra.mxu0 0.0
      %4472 = vmatprep.subr.mxu0 0.0
      %4473 = vmatpush1.msra.mxu0 0.0
      %4474 = vmatprep.subr.mxu0 0.0
      %4475 = vmatpush1.msra.mxu0 0.0
      %4476 = vmatprep.subr.mxu0 0.0
      %4477 = vmatpush1.msra.mxu0 0.0
      %4478 = vmatprep.subr.mxu0 0.0
      %4479 = vmatpush1.msra.mxu0 0.0
      %4480 = vmatprep.subr.mxu0 0.0
      %4481 = vmatpush1.msra.mxu0 0.0
      %4482 = vmatprep.subr.mxu0 0.0
      %4483 = vmatpush1.msra.mxu0 0.0
      %4484 = vmatprep.subr.mxu0 0.0
      %4485 = vmatpush1.msra.mxu0 0.0
      %4486 = vmatprep.subr.mxu0 0.0
      %4487 = vmatpush1.msra.mxu0 0.0
      %4488 = vmatprep.subr.mxu0 0.0
      %4489 = vmatpush1.msra.mxu0 0.0
      %4490 = vmatprep.subr.mxu0 0.0
      %4491 = vmatpush1.msra.mxu0 0.0
      %4492 = vmatprep.subr.mxu0 0.0
      %4493 = vmatpush1.msra.mxu0 0.0
      %4494 = vmatprep.subr.mxu0 0.0
      %4495 = vmatpush1.msra.mxu0 0.0
      %4496 = vmatprep.subr.mxu0 0.0
      %4497 = vmatpush1.msra.mxu0 0.0
      %4498 = vmatprep.subr.mxu0 0.0
      %4499 = vmatpush1.msra.mxu0 0.0
      %4500 = vmatprep.subr.mxu0 0.0
      %4501 = vmatpush1.msra.mxu0 0.0
      %4502 = vmatprep.mubr.f32.mxu0 0.0
      %4503 = vmatmul.mubr.f32.gmra.mrb[0].mxu0 %v4246
      %v4504 = vpop.f32.mrb[0].mxu0
      %v4505 = vadd.f32 %v3886, %v4504
      %v4506 = vpop.f32.mrb[0].mxu0
      %v4507 = vadd.f32 %v3888, %v4506
      %4508 = vdwg.mxu0
      %4509 = vmatprep.subr.mxu0 %v4270
      %4510 = vmatpush1.msra.mxu0 %v4267
      %4511 = vmatprep.subr.mxu0 0.0
      %4512 = vmatpush1.msra.mxu0 0.0
      %4513 = vmatprep.subr.mxu0 0.0
      %4514 = vmatpush1.msra.mxu0 0.0
      %4515 = vmatprep.subr.mxu0 0.0
      %4516 = vmatpush1.msra.mxu0 0.0
      %4517 = vmatprep.subr.mxu0 0.0
      %4518 = vmatpush1.msra.mxu0 0.0
      %4519 = vmatprep.subr.mxu0 0.0
      %4520 = vmatpush1.msra.mxu0 0.0
      %4521 = vmatprep.subr.mxu0 0.0
      %4522 = vmatpush1.msra.mxu0 0.0
      %4523 = vmatprep.subr.mxu0 0.0
      %4524 = vmatpush1.msra.mxu0 0.0
      %4525 = vmatprep.subr.mxu0 0.0
      %4526 = vmatpush1.msra.mxu0 0.0
      %4527 = vmatprep.subr.mxu0 0.0
      %4528 = vmatpush1.msra.mxu0 0.0
      %4529 = vmatprep.subr.mxu0 0.0
      %4530 = vmatpush1.msra.mxu0 0.0
      %4531 = vmatprep.subr.mxu0 0.0
      %4532 = vmatpush1.msra.mxu0 0.0
      %4533 = vmatprep.subr.mxu0 0.0
      %4534 = vmatpush1.msra.mxu0 0.0
      %4535 = vmatprep.subr.mxu0 0.0
      %4536 = vmatpush1.msra.mxu0 0.0
      %4537 = vmatprep.subr.mxu0 0.0
      %4538 = vmatpush1.msra.mxu0 0.0
      %4539 = vmatprep.subr.mxu0 0.0
      %4540 = vmatpush1.msra.mxu0 0.0
      %4541 = vmatprep.subr.mxu0 0.0
      %4542 = vmatpush1.msra.mxu0 0.0
      %4543 = vmatprep.subr.mxu0 0.0
      %4544 = vmatpush1.msra.mxu0 0.0
      %4545 = vmatprep.subr.mxu0 0.0
      %4546 = vmatpush1.msra.mxu0 0.0
      %4547 = vmatprep.subr.mxu0 0.0
      %4548 = vmatpush1.msra.mxu0 0.0
      %4549 = vmatprep.subr.mxu0 0.0
      %4550 = vmatpush1.msra.mxu0 0.0
      %4551 = vmatprep.subr.mxu0 0.0
      %4552 = vmatpush1.msra.mxu0 0.0
      %4553 = vmatprep.subr.mxu0 0.0
      %4554 = vmatpush1.msra.mxu0 0.0
      %4555 = vmatprep.subr.mxu0 0.0
      %4556 = vmatpush1.msra.mxu0 0.0
      %4557 = vmatprep.subr.mxu0 0.0
      %4558 = vmatpush1.msra.mxu0 0.0
      %4559 = vmatprep.subr.mxu0 0.0
      %4560 = vmatpush1.msra.mxu0 0.0
      %4561 = vmatprep.subr.mxu0 0.0
      %4562 = vmatpush1.msra.mxu0 0.0
      %4563 = vmatprep.subr.mxu0 0.0
      %4564 = vmatpush1.msra.mxu0 0.0
      %4565 = vmatprep.subr.mxu0 0.0
      %4566 = vmatpush1.msra.mxu0 0.0
      %4567 = vmatprep.subr.mxu0 0.0
      %4568 = vmatpush1.msra.mxu0 0.0
      %4569 = vmatprep.subr.mxu0 0.0
      %4570 = vmatpush1.msra.mxu0 0.0
      %4571 = vmatprep.subr.mxu0 0.0
      %4572 = vmatpush1.msra.mxu0 0.0
      %4573 = vmatprep.mubr.f32.mxu0 0.0
      %4574 = vmatmul.mubr.f32.gmra.mrb[0].mxu0 %v4246
      %v4575 = vpop.f32.mrb[0].mxu0
      %v4576 = vadd.f32 %v3957, %v4575
      %v4577 = vpop.f32.mrb[0].mxu0
      %v4578 = vadd.f32 %v3959, %v4577
      %4579 = vdwg.mxu0
      %4580 = vmatprep.subr.mxu0 %v4276
      %4581 = vmatpush1.msra.mxu0 %v4273
      %4582 = vmatprep.subr.mxu0 0.0
      %4583 = vmatpush1.msra.mxu0 0.0
      %4584 = vmatprep.subr.mxu0 0.0
      %4585 = vmatpush1.msra.mxu0 0.0
      %4586 = vmatprep.subr.mxu0 0.0
      %4587 = vmatpush1.msra.mxu0 0.0
      %4588 = vmatprep.subr.mxu0 0.0
      %4589 = vmatpush1.msra.mxu0 0.0
      %4590 = vmatprep.subr.mxu0 0.0
      %4591 = vmatpush1.msra.mxu0 0.0
      %4592 = vmatprep.subr.mxu0 0.0
      %4593 = vmatpush1.msra.mxu0 0.0
      %4594 = vmatprep.subr.mxu0 0.0
      %4595 = vmatpush1.msra.mxu0 0.0
      %4596 = vmatprep.subr.mxu0 0.0
      %4597 = vmatpush1.msra.mxu0 0.0
      %4598 = vmatprep.subr.mxu0 0.0
      %4599 = vmatpush1.msra.mxu0 0.0
      %4600 = vmatprep.subr.mxu0 0.0
      %4601 = vmatpush1.msra.mxu0 0.0
      %4602 = vmatprep.subr.mxu0 0.0
      %4603 = vmatpush1.msra.mxu0 0.0
      %4604 = vmatprep.subr.mxu0 0.0
      %4605 = vmatpush1.msra.mxu0 0.0
      %4606 = vmatprep.subr.mxu0 0.0
      %4607 = vmatpush1.msra.mxu0 0.0
      %4608 = vmatprep.subr.mxu0 0.0
      %4609 = vmatpush1.msra.mxu0 0.0
      %4610 = vmatprep.subr.mxu0 0.0
      %4611 = vmatpush1.msra.mxu0 0.0
      %4612 = vmatprep.subr.mxu0 0.0
      %4613 = vmatpush1.msra.mxu0 0.0
      %4614 = vmatprep.subr.mxu0 0.0
      %4615 = vmatpush1.msra.mxu0 0.0
      %4616 = vmatprep.subr.mxu0 0.0
      %4617 = vmatpush1.msra.mxu0 0.0
      %4618 = vmatprep.subr.mxu0 0.0
      %4619 = vmatpush1.msra.mxu0 0.0
      %4620 = vmatprep.subr.mxu0 0.0
      %4621 = vmatpush1.msra.mxu0 0.0
      %4622 = vmatprep.subr.mxu0 0.0
      %4623 = vmatpush1.msra.mxu0 0.0
      %4624 = vmatprep.subr.mxu0 0.0
      %4625 = vmatpush1.msra.mxu0 0.0
      %4626 = vmatprep.subr.mxu0 0.0
      %4627 = vmatpush1.msra.mxu0 0.0
      %4628 = vmatprep.subr.mxu0 0.0
      %4629 = vmatpush1.msra.mxu0 0.0
      %4630 = vmatprep.subr.mxu0 0.0
      %4631 = vmatpush1.msra.mxu0 0.0
      %4632 = vmatprep.subr.mxu0 0.0
      %4633 = vmatpush1.msra.mxu0 0.0
      %4634 = vmatprep.subr.mxu0 0.0
      %4635 = vmatpush1.msra.mxu0 0.0
      %4636 = vmatprep.subr.mxu0 0.0
      %4637 = vmatpush1.msra.mxu0 0.0
      %4638 = vmatprep.subr.mxu0 0.0
      %4639 = vmatpush1.msra.mxu0 0.0
      %4640 = vmatprep.subr.mxu0 0.0
      %4641 = vmatpush1.msra.mxu0 0.0
      %4642 = vmatprep.subr.mxu0 0.0
      %4643 = vmatpush1.msra.mxu0 0.0
      %4644 = vmatprep.mubr.f32.mxu0 0.0
      %4645 = vmatmul.mubr.f32.gmra.mrb[0].mxu0 %v4246
      %v4646 = vpop.f32.mrb[0].mxu0
      %v4647 = vadd.f32 %v4028, %v4646
      %v4648 = vpop.f32.mrb[0].mxu0
      %v4649 = vadd.f32 %v4030, %v4648
      %4650 = vdwg.mxu0
      %4651 = vmatprep.subr.mxu0 %v4282
      %4652 = vmatpush1.msra.mxu0 %v4279
      %4653 = vmatprep.subr.mxu0 0.0
      %4654 = vmatpush1.msra.mxu0 0.0
      %4655 = vmatprep.subr.mxu0 0.0
      %4656 = vmatpush1.msra.mxu0 0.0
      %4657 = vmatprep.subr.mxu0 0.0
      %4658 = vmatpush1.msra.mxu0 0.0
      %4659 = vmatprep.subr.mxu0 0.0
      %4660 = vmatpush1.msra.mxu0 0.0
      %4661 = vmatprep.subr.mxu0 0.0
      %4662 = vmatpush1.msra.mxu0 0.0
      %4663 = vmatprep.subr.mxu0 0.0
      %4664 = vmatpush1.msra.mxu0 0.0
      %4665 = vmatprep.subr.mxu0 0.0
      %4666 = vmatpush1.msra.mxu0 0.0
      %4667 = vmatprep.subr.mxu0 0.0
      %4668 = vmatpush1.msra.mxu0 0.0
      %4669 = vmatprep.subr.mxu0 0.0
      %4670 = vmatpush1.msra.mxu0 0.0
      %4671 = vmatprep.subr.mxu0 0.0
      %4672 = vmatpush1.msra.mxu0 0.0
      %4673 = vmatprep.subr.mxu0 0.0
      %4674 = vmatpush1.msra.mxu0 0.0
      %4675 = vmatprep.subr.mxu0 0.0
      %4676 = vmatpush1.msra.mxu0 0.0
      %4677 = vmatprep.subr.mxu0 0.0
      %4678 = vmatpush1.msra.mxu0 0.0
      %4679 = vmatprep.subr.mxu0 0.0
      %4680 = vmatpush1.msra.mxu0 0.0
      %4681 = vmatprep.subr.mxu0 0.0
      %4682 = vmatpush1.msra.mxu0 0.0
      %4683 = vmatprep.subr.mxu0 0.0
      %4684 = vmatpush1.msra.mxu0 0.0
      %4685 = vmatprep.subr.mxu0 0.0
      %4686 = vmatpush1.msra.mxu0 0.0
      %4687 = vmatprep.subr.mxu0 0.0
      %4688 = vmatpush1.msra.mxu0 0.0
      %4689 = vmatprep.subr.mxu0 0.0
      %4690 = vmatpush1.msra.mxu0 0.0
      %4691 = vmatprep.subr.mxu0 0.0
      %4692 = vmatpush1.msra.mxu0 0.0
      %4693 = vmatprep.subr.mxu0 0.0
      %4694 = vmatpush1.msra.mxu0 0.0
      %4695 = vmatprep.subr.mxu0 0.0
      %4696 = vmatpush1.msra.mxu0 0.0
      %4697 = vmatprep.subr.mxu0 0.0
      %4698 = vmatpush1.msra.mxu0 0.0
      %4699 = vmatprep.subr.mxu0 0.0
      %4700 = vmatpush1.msra.mxu0 0.0
      %4701 = vmatprep.subr.mxu0 0.0
      %4702 = vmatpush1.msra.mxu0 0.0
      %4703 = vmatprep.subr.mxu0 0.0
      %4704 = vmatpush1.msra.mxu0 0.0
      %4705 = vmatprep.subr.mxu0 0.0
      %4706 = vmatpush1.msra.mxu0 0.0
      %4707 = vmatprep.subr.mxu0 0.0
      %4708 = vmatpush1.msra.mxu0 0.0
      %4709 = vmatprep.subr.mxu0 0.0
      %4710 = vmatpush1.msra.mxu0 0.0
      %4711 = vmatprep.subr.mxu0 0.0
      %4712 = vmatpush1.msra.mxu0 0.0
      %4713 = vmatprep.subr.mxu0 0.0
      %4714 = vmatpush1.msra.mxu0 0.0
      %4715 = vmatprep.mubr.f32.mxu0 0.0
      %4716 = vmatmul.mubr.f32.gmra.mrb[0].mxu0 %v4246
      %v4717 = vpop.f32.mrb[0].mxu0
      %v4718 = vadd.f32 %v4099, %v4717
      %v4719 = vpop.f32.mrb[0].mxu0
      %v4720 = vadd.f32 %v4101, %v4719
      %4721 = vdwg.mxu0
      %4722 = vmatprep.subr.mxu0 %v4288
      %4723 = vmatpush1.msra.mxu0 %v4285
      %4724 = vmatprep.subr.mxu0 0.0
      %4725 = vmatpush1.msra.mxu0 0.0
      %4726 = vmatprep.subr.mxu0 0.0
      %4727 = vmatpush1.msra.mxu0 0.0
      %4728 = vmatprep.subr.mxu0 0.0
      %4729 = vmatpush1.msra.mxu0 0.0
      %4730 = vmatprep.subr.mxu0 0.0
      %4731 = vmatpush1.msra.mxu0 0.0
      %4732 = vmatprep.subr.mxu0 0.0
      %4733 = vmatpush1.msra.mxu0 0.0
      %4734 = vmatprep.subr.mxu0 0.0
      %4735 = vmatpush1.msra.mxu0 0.0
      %4736 = vmatprep.subr.mxu0 0.0
      %4737 = vmatpush1.msra.mxu0 0.0
      %4738 = vmatprep.subr.mxu0 0.0
      %4739 = vmatpush1.msra.mxu0 0.0
      %4740 = vmatprep.subr.mxu0 0.0
      %4741 = vmatpush1.msra.mxu0 0.0
      %4742 = vmatprep.subr.mxu0 0.0
      %4743 = vmatpush1.msra.mxu0 0.0
      %4744 = vmatprep.subr.mxu0 0.0
      %4745 = vmatpush1.msra.mxu0 0.0
      %4746 = vmatprep.subr.mxu0 0.0
      %4747 = vmatpush1.msra.mxu0 0.0
      %4748 = vmatprep.subr.mxu0 0.0
      %4749 = vmatpush1.msra.mxu0 0.0
      %4750 = vmatprep.subr.mxu0 0.0
      %4751 = vmatpush1.msra.mxu0 0.0
      %4752 = vmatprep.subr.mxu0 0.0
      %4753 = vmatpush1.msra.mxu0 0.0
      %4754 = vmatprep.subr.mxu0 0.0
      %4755 = vmatpush1.msra.mxu0 0.0
      %4756 = vmatprep.subr.mxu0 0.0
      %4757 = vmatpush1.msra.mxu0 0.0
      %4758 = vmatprep.subr.mxu0 0.0
      %4759 = vmatpush1.msra.mxu0 0.0
      %4760 = vmatprep.subr.mxu0 0.0
      %4761 = vmatpush1.msra.mxu0 0.0
      %4762 = vmatprep.subr.mxu0 0.0
      %4763 = vmatpush1.msra.mxu0 0.0
      %4764 = vmatprep.subr.mxu0 0.0
      %4765 = vmatpush1.msra.mxu0 0.0
      %4766 = vmatprep.subr.mxu0 0.0
      %4767 = vmatpush1.msra.mxu0 0.0
      %4768 = vmatprep.subr.mxu0 0.0
      %4769 = vmatpush1.msra.mxu0 0.0
      %4770 = vmatprep.subr.mxu0 0.0
      %4771 = vmatpush1.msra.mxu0 0.0
      %4772 = vmatprep.subr.mxu0 0.0
      %4773 = vmatpush1.msra.mxu0 0.0
      %4774 = vmatprep.subr.mxu0 0.0
      %4775 = vmatpush1.msra.mxu0 0.0
      %4776 = vmatprep.subr.mxu0 0.0
      %4777 = vmatpush1.msra.mxu0 0.0
      %4778 = vmatprep.subr.mxu0 0.0
      %4779 = vmatpush1.msra.mxu0 0.0
      %4780 = vmatprep.subr.mxu0 0.0
      %4781 = vmatpush1.msra.mxu0 0.0
      %4782 = vmatprep.subr.mxu0 0.0
      %4783 = vmatpush1.msra.mxu0 0.0
      %4784 = vmatprep.subr.mxu0 0.0
      %4785 = vmatpush1.msra.mxu0 0.0
      %4786 = vmatprep.mubr.f32.mxu0 0.0
      %4787 = vmatmul.mubr.f32.gmra.mrb[0].mxu0 %v4246
      %v4788 = vpop.f32.mrb[0].mxu0
      %v4789 = vadd.f32 %v4170, %v4788
      %v4790 = vpop.f32.mrb[0].mxu0
      %v4791 = vadd.f32 %v4172, %v4790
      %4792 = vdwg.mxu0
      %4793 = vmatprep.subr.mxu0 %v4294
      %4794 = vmatpush1.msra.mxu0 %v4291
      %4795 = vmatprep.subr.mxu0 0.0
      %4796 = vmatpush1.msra.mxu0 0.0
      %4797 = vmatprep.subr.mxu0 0.0
      %4798 = vmatpush1.msra.mxu0 0.0
      %4799 = vmatprep.subr.mxu0 0.0
      %4800 = vmatpush1.msra.mxu0 0.0
      %4801 = vmatprep.subr.mxu0 0.0
      %4802 = vmatpush1.msra.mxu0 0.0
      %4803 = vmatprep.subr.mxu0 0.0
      %4804 = vmatpush1.msra.mxu0 0.0
      %4805 = vmatprep.subr.mxu0 0.0
      %4806 = vmatpush1.msra.mxu0 0.0
      %4807 = vmatprep.subr.mxu0 0.0
      %4808 = vmatpush1.msra.mxu0 0.0
      %4809 = vmatprep.subr.mxu0 0.0
      %4810 = vmatpush1.msra.mxu0 0.0
      %4811 = vmatprep.subr.mxu0 0.0
      %4812 = vmatpush1.msra.mxu0 0.0
      %4813 = vmatprep.subr.mxu0 0.0
      %4814 = vmatpush1.msra.mxu0 0.0
      %4815 = vmatprep.subr.mxu0 0.0
      %4816 = vmatpush1.msra.mxu0 0.0
      %4817 = vmatprep.subr.mxu0 0.0
      %4818 = vmatpush1.msra.mxu0 0.0
      %4819 = vmatprep.subr.mxu0 0.0
      %4820 = vmatpush1.msra.mxu0 0.0
      %4821 = vmatprep.subr.mxu0 0.0
      %4822 = vmatpush1.msra.mxu0 0.0
      %4823 = vmatprep.subr.mxu0 0.0
      %4824 = vmatpush1.msra.mxu0 0.0
      %4825 = vmatprep.subr.mxu0 0.0
      %4826 = vmatpush1.msra.mxu0 0.0
      %4827 = vmatprep.subr.mxu0 0.0
      %4828 = vmatpush1.msra.mxu0 0.0
      %4829 = vmatprep.subr.mxu0 0.0
      %4830 = vmatpush1.msra.mxu0 0.0
      %4831 = vmatprep.subr.mxu0 0.0
      %4832 = vmatpush1.msra.mxu0 0.0
      %4833 = vmatprep.subr.mxu0 0.0
      %4834 = vmatpush1.msra.mxu0 0.0
      %4835 = vmatprep.subr.mxu0 0.0
      %4836 = vmatpush1.msra.mxu0 0.0
      %4837 = vmatprep.subr.mxu0 0.0
      %4838 = vmatpush1.msra.mxu0 0.0
      %4839 = vmatprep.subr.mxu0 0.0
      %4840 = vmatpush1.msra.mxu0 0.0
      %4841 = vmatprep.subr.mxu0 0.0
      %4842 = vmatpush1.msra.mxu0 0.0
      %4843 = vmatprep.subr.mxu0 0.0
      %4844 = vmatpush1.msra.mxu0 0.0
      %4845 = vmatprep.subr.mxu0 0.0
      %4846 = vmatpush1.msra.mxu0 0.0
      %4847 = vmatprep.subr.mxu0 0.0
      %4848 = vmatpush1.msra.mxu0 0.0
      %4849 = vmatprep.subr.mxu0 0.0
      %4850 = vmatpush1.msra.mxu0 0.0
      %4851 = vmatprep.subr.mxu0 0.0
      %4852 = vmatpush1.msra.mxu0 0.0
      %4853 = vmatprep.subr.mxu0 0.0
      %4854 = vmatpush1.msra.mxu0 0.0
      %4855 = vmatprep.subr.mxu0 0.0
      %4856 = vmatpush1.msra.mxu0 0.0
      %4857 = vmatprep.mubr.f32.mxu0 0.0
      %4858 = vmatmul.mubr.f32.gmra.mrb[0].mxu0 %v4246
      %v4859 = vpop.f32.mrb[0].mxu0
      %v4860 = vadd.f32 %v4241, %v4859
      %v4861 = vpop.f32.mrb[0].mxu0
      %v4862 = vadd.f32 %v4243, %v4861
      %4863 = vdwg.mxu0
      %v4864 = vld [vmem:[%s14] sm:$0xf]
      %4866 = vset.pattern.permute.xlu0 0
      %4867 = vperm.xlu0 %4866, %v4864
      %v4868 = vpop.permute.xlu0 %4867
      %v4870 = vadd.f32 %v4363, %v4868
      %v4871 = vadd.f32 %v4365, %v4868
      %v4872 = vadd.f32 %v4434, %v4868
      %v4873 = vadd.f32 %v4436, %v4868
      %v4874 = vadd.f32 %v4505, %v4868
      %v4875 = vadd.f32 %v4507, %v4868
      %v4876 = vadd.f32 %v4576, %v4868
      %v4877 = vadd.f32 %v4578, %v4868
      %v4878 = vadd.f32 %v4647, %v4868
      %v4879 = vadd.f32 %v4649, %v4868
      %v4880 = vadd.f32 %v4718, %v4868
      %v4881 = vadd.f32 %v4720, %v4868
      %v4882 = vadd.f32 %v4789, %v4868
      %v4883 = vadd.f32 %v4791, %v4868
      %v4884 = vadd.f32 %v4860, %v4868
      %v4885 = vadd.f32 %v4862, %v4868
      %v4886 = vld [vmem:[%s9] sm:$0xf]
      %v4887 = vld [vmem:[%s12] sm:$0xf]
      %v4889 = vsel %vm1256, %v4887, 0
      %4891 = vmatprep.subr.mxu0 %v1265
      %4892 = vmatpush1.msra.mxu0 %v1262
      %4893 = vmatprep.subr.mxu0 0.0
      %4894 = vmatpush1.msra.mxu0 0.0
      %4895 = vmatprep.subr.mxu0 0.0
      %4896 = vmatpush1.msra.mxu0 0.0
      %4897 = vmatprep.subr.mxu0 0.0
      %4898 = vmatpush1.msra.mxu0 0.0
      %4899 = vmatprep.subr.mxu0 0.0
      %4900 = vmatpush1.msra.mxu0 0.0
      %4901 = vmatprep.subr.mxu0 0.0
      %4902 = vmatpush1.msra.mxu0 0.0
      %4903 = vmatprep.subr.mxu0 0.0
      %4904 = vmatpush1.msra.mxu0 0.0
      %4905 = vmatprep.subr.mxu0 0.0
      %4906 = vmatpush1.msra.mxu0 0.0
      %4907 = vmatprep.subr.mxu0 0.0
      %4908 = vmatpush1.msra.mxu0 0.0
      %4909 = vmatprep.subr.mxu0 0.0
      %4910 = vmatpush1.msra.mxu0 0.0
      %4911 = vmatprep.subr.mxu0 0.0
      %4912 = vmatpush1.msra.mxu0 0.0
      %4913 = vmatprep.subr.mxu0 0.0
      %4914 = vmatpush1.msra.mxu0 0.0
      %4915 = vmatprep.subr.mxu0 0.0
      %4916 = vmatpush1.msra.mxu0 0.0
      %4917 = vmatprep.subr.mxu0 0.0
      %4918 = vmatpush1.msra.mxu0 0.0
      %4919 = vmatprep.subr.mxu0 0.0
      %4920 = vmatpush1.msra.mxu0 0.0
      %4921 = vmatprep.subr.mxu0 0.0
      %4922 = vmatpush1.msra.mxu0 0.0
      %4923 = vmatprep.subr.mxu0 0.0
      %4924 = vmatpush1.msra.mxu0 0.0
      %4925 = vmatprep.subr.mxu0 0.0
      %4926 = vmatpush1.msra.mxu0 0.0
      %4927 = vmatprep.subr.mxu0 0.0
      %4928 = vmatpush1.msra.mxu0 0.0
      %4929 = vmatprep.subr.mxu0 0.0
      %4930 = vmatpush1.msra.mxu0 0.0
      %4931 = vmatprep.subr.mxu0 0.0
      %4932 = vmatpush1.msra.mxu0 0.0
      %4933 = vmatprep.subr.mxu0 0.0
      %4934 = vmatpush1.msra.mxu0 0.0
      %4935 = vmatprep.subr.mxu0 0.0
      %4936 = vmatpush1.msra.mxu0 0.0
      %4937 = vmatprep.subr.mxu0 0.0
      %4938 = vmatpush1.msra.mxu0 0.0
      %4939 = vmatprep.subr.mxu0 0.0
      %4940 = vmatpush1.msra.mxu0 0.0
      %4941 = vmatprep.subr.mxu0 0.0
      %4942 = vmatpush1.msra.mxu0 0.0
      %4943 = vmatprep.subr.mxu0 0.0
      %4944 = vmatpush1.msra.mxu0 0.0
      %4945 = vmatprep.subr.mxu0 0.0
      %4946 = vmatpush1.msra.mxu0 0.0
      %4947 = vmatprep.subr.mxu0 0.0
      %4948 = vmatpush1.msra.mxu0 0.0
      %4949 = vmatprep.subr.mxu0 0.0
      %4950 = vmatpush1.msra.mxu0 0.0
      %4951 = vmatprep.subr.mxu0 0.0
      %4952 = vmatpush1.msra.mxu0 0.0
      %4953 = vmatprep.subr.mxu0 0.0
      %4954 = vmatpush1.msra.mxu0 0.0
      %4955 = vmatprep.mubr.f32.mxu0 0.0
      %4956 = vmatmul.mubr.f32.gmra.mrb[0].mxu0 %v4889
      %v4957 = vpop.f32.mrb[0].mxu0
      %v4958 = vadd.f32 0.0, %v4957
      %v4959 = vpop.f32.mrb[0].mxu0
      %v4960 = vadd.f32 0.0, %v4959
      %4961 = vdwg.mxu0
      %4962 = vmatprep.subr.mxu0 %v1271
      %4963 = vmatpush1.msra.mxu0 %v1268
      %4964 = vmatprep.subr.mxu0 0.0
      %4965 = vmatpush1.msra.mxu0 0.0
      %4966 = vmatprep.subr.mxu0 0.0
      %4967 = vmatpush1.msra.mxu0 0.0
      %4968 = vmatprep.subr.mxu0 0.0
      %4969 = vmatpush1.msra.mxu0 0.0
      %4970 = vmatprep.subr.mxu0 0.0
      %4971 = vmatpush1.msra.mxu0 0.0
      %4972 = vmatprep.subr.mxu0 0.0
      %4973 = vmatpush1.msra.mxu0 0.0
      %4974 = vmatprep.subr.mxu0 0.0
      %4975 = vmatpush1.msra.mxu0 0.0
      %4976 = vmatprep.subr.mxu0 0.0
      %4977 = vmatpush1.msra.mxu0 0.0
      %4978 = vmatprep.subr.mxu0 0.0
      %4979 = vmatpush1.msra.mxu0 0.0
      %4980 = vmatprep.subr.mxu0 0.0
      %4981 = vmatpush1.msra.mxu0 0.0
      %4982 = vmatprep.subr.mxu0 0.0
      %4983 = vmatpush1.msra.mxu0 0.0
      %4984 = vmatprep.subr.mxu0 0.0
      %4985 = vmatpush1.msra.mxu0 0.0
      %4986 = vmatprep.subr.mxu0 0.0
      %4987 = vmatpush1.msra.mxu0 0.0
      %4988 = vmatprep.subr.mxu0 0.0
      %4989 = vmatpush1.msra.mxu0 0.0
      %4990 = vmatprep.subr.mxu0 0.0
      %4991 = vmatpush1.msra.mxu0 0.0
      %4992 = vmatprep.subr.mxu0 0.0
      %4993 = vmatpush1.msra.mxu0 0.0
      %4994 = vmatprep.subr.mxu0 0.0
      %4995 = vmatpush1.msra.mxu0 0.0
      %4996 = vmatprep.subr.mxu0 0.0
      %4997 = vmatpush1.msra.mxu0 0.0
      %4998 = vmatprep.subr.mxu0 0.0
      %4999 = vmatpush1.msra.mxu0 0.0
      %5000 = vmatprep.subr.mxu0 0.0
      %5001 = vmatpush1.msra.mxu0 0.0
      %5002 = vmatprep.subr.mxu0 0.0
      %5003 = vmatpush1.msra.mxu0 0.0
      %5004 = vmatprep.subr.mxu0 0.0
      %5005 = vmatpush1.msra.mxu0 0.0
      %5006 = vmatprep.subr.mxu0 0.0
      %5007 = vmatpush1.msra.mxu0 0.0
      %5008 = vmatprep.subr.mxu0 0.0
      %5009 = vmatpush1.msra.mxu0 0.0
      %5010 = vmatprep.subr.mxu0 0.0
      %5011 = vmatpush1.msra.mxu0 0.0
      %5012 = vmatprep.subr.mxu0 0.0
      %5013 = vmatpush1.msra.mxu0 0.0
      %5014 = vmatprep.subr.mxu0 0.0
      %5015 = vmatpush1.msra.mxu0 0.0
      %5016 = vmatprep.subr.mxu0 0.0
      %5017 = vmatpush1.msra.mxu0 0.0
      %5018 = vmatprep.subr.mxu0 0.0
      %5019 = vmatpush1.msra.mxu0 0.0
      %5020 = vmatprep.subr.mxu0 0.0
      %5021 = vmatpush1.msra.mxu0 0.0
      %5022 = vmatprep.subr.mxu0 0.0
      %5023 = vmatpush1.msra.mxu0 0.0
      %5024 = vmatprep.subr.mxu0 0.0
      %5025 = vmatpush1.msra.mxu0 0.0
      %5026 = vmatprep.mubr.f32.mxu0 0.0
      %5027 = vmatmul.mubr.f32.gmra.mrb[0].mxu0 %v4889
      %v5028 = vpop.f32.mrb[0].mxu0
      %v5029 = vadd.f32 0.0, %v5028
      %v5030 = vpop.f32.mrb[0].mxu0
      %v5031 = vadd.f32 0.0, %v5030
      %5032 = vdwg.mxu0
      %5033 = vmatprep.subr.mxu0 %v1277
      %5034 = vmatpush1.msra.mxu0 %v1274
      %5035 = vmatprep.subr.mxu0 0.0
      %5036 = vmatpush1.msra.mxu0 0.0
      %5037 = vmatprep.subr.mxu0 0.0
      %5038 = vmatpush1.msra.mxu0 0.0
      %5039 = vmatprep.subr.mxu0 0.0
      %5040 = vmatpush1.msra.mxu0 0.0
      %5041 = vmatprep.subr.mxu0 0.0
      %5042 = vmatpush1.msra.mxu0 0.0
      %5043 = vmatprep.subr.mxu0 0.0
      %5044 = vmatpush1.msra.mxu0 0.0
      %5045 = vmatprep.subr.mxu0 0.0
      %5046 = vmatpush1.msra.mxu0 0.0
      %5047 = vmatprep.subr.mxu0 0.0
      %5048 = vmatpush1.msra.mxu0 0.0
      %5049 = vmatprep.subr.mxu0 0.0
      %5050 = vmatpush1.msra.mxu0 0.0
      %5051 = vmatprep.subr.mxu0 0.0
      %5052 = vmatpush1.msra.mxu0 0.0
      %5053 = vmatprep.subr.mxu0 0.0
      %5054 = vmatpush1.msra.mxu0 0.0
      %5055 = vmatprep.subr.mxu0 0.0
      %5056 = vmatpush1.msra.mxu0 0.0
      %5057 = vmatprep.subr.mxu0 0.0
      %5058 = vmatpush1.msra.mxu0 0.0
      %5059 = vmatprep.subr.mxu0 0.0
      %5060 = vmatpush1.msra.mxu0 0.0
      %5061 = vmatprep.subr.mxu0 0.0
      %5062 = vmatpush1.msra.mxu0 0.0
      %5063 = vmatprep.subr.mxu0 0.0
      %5064 = vmatpush1.msra.mxu0 0.0
      %5065 = vmatprep.subr.mxu0 0.0
      %5066 = vmatpush1.msra.mxu0 0.0
      %5067 = vmatprep.subr.mxu0 0.0
      %5068 = vmatpush1.msra.mxu0 0.0
      %5069 = vmatprep.subr.mxu0 0.0
      %5070 = vmatpush1.msra.mxu0 0.0
      %5071 = vmatprep.subr.mxu0 0.0
      %5072 = vmatpush1.msra.mxu0 0.0
      %5073 = vmatprep.subr.mxu0 0.0
      %5074 = vmatpush1.msra.mxu0 0.0
      %5075 = vmatprep.subr.mxu0 0.0
      %5076 = vmatpush1.msra.mxu0 0.0
      %5077 = vmatprep.subr.mxu0 0.0
      %5078 = vmatpush1.msra.mxu0 0.0
      %5079 = vmatprep.subr.mxu0 0.0
      %5080 = vmatpush1.msra.mxu0 0.0
      %5081 = vmatprep.subr.mxu0 0.0
      %5082 = vmatpush1.msra.mxu0 0.0
      %5083 = vmatprep.subr.mxu0 0.0
      %5084 = vmatpush1.msra.mxu0 0.0
      %5085 = vmatprep.subr.mxu0 0.0
      %5086 = vmatpush1.msra.mxu0 0.0
      %5087 = vmatprep.subr.mxu0 0.0
      %5088 = vmatpush1.msra.mxu0 0.0
      %5089 = vmatprep.subr.mxu0 0.0
      %5090 = vmatpush1.msra.mxu0 0.0
      %5091 = vmatprep.subr.mxu0 0.0
      %5092 = vmatpush1.msra.mxu0 0.0
      %5093 = vmatprep.subr.mxu0 0.0
      %5094 = vmatpush1.msra.mxu0 0.0
      %5095 = vmatprep.subr.mxu0 0.0
      %5096 = vmatpush1.msra.mxu0 0.0
      %5097 = vmatprep.mubr.f32.mxu0 0.0
      %5098 = vmatmul.mubr.f32.gmra.mrb[0].mxu0 %v4889
      %v5099 = vpop.f32.mrb[0].mxu0
      %v5100 = vadd.f32 0.0, %v5099
      %v5101 = vpop.f32.mrb[0].mxu0
      %v5102 = vadd.f32 0.0, %v5101
      %5103 = vdwg.mxu0
      %5104 = vmatprep.subr.mxu0 %v1283
      %5105 = vmatpush1.msra.mxu0 %v1280
      %5106 = vmatprep.subr.mxu0 0.0
      %5107 = vmatpush1.msra.mxu0 0.0
      %5108 = vmatprep.subr.mxu0 0.0
      %5109 = vmatpush1.msra.mxu0 0.0
      %5110 = vmatprep.subr.mxu0 0.0
      %5111 = vmatpush1.msra.mxu0 0.0
      %5112 = vmatprep.subr.mxu0 0.0
      %5113 = vmatpush1.msra.mxu0 0.0
      %5114 = vmatprep.subr.mxu0 0.0
      %5115 = vmatpush1.msra.mxu0 0.0
      %5116 = vmatprep.subr.mxu0 0.0
      %5117 = vmatpush1.msra.mxu0 0.0
      %5118 = vmatprep.subr.mxu0 0.0
      %5119 = vmatpush1.msra.mxu0 0.0
      %5120 = vmatprep.subr.mxu0 0.0
      %5121 = vmatpush1.msra.mxu0 0.0
      %5122 = vmatprep.subr.mxu0 0.0
      %5123 = vmatpush1.msra.mxu0 0.0
      %5124 = vmatprep.subr.mxu0 0.0
      %5125 = vmatpush1.msra.mxu0 0.0
      %5126 = vmatprep.subr.mxu0 0.0
      %5127 = vmatpush1.msra.mxu0 0.0
      %5128 = vmatprep.subr.mxu0 0.0
      %5129 = vmatpush1.msra.mxu0 0.0
      %5130 = vmatprep.subr.mxu0 0.0
      %5131 = vmatpush1.msra.mxu0 0.0
      %5132 = vmatprep.subr.mxu0 0.0
      %5133 = vmatpush1.msra.mxu0 0.0
      %5134 = vmatprep.subr.mxu0 0.0
      %5135 = vmatpush1.msra.mxu0 0.0
      %5136 = vmatprep.subr.mxu0 0.0
      %5137 = vmatpush1.msra.mxu0 0.0
      %5138 = vmatprep.subr.mxu0 0.0
      %5139 = vmatpush1.msra.mxu0 0.0
      %5140 = vmatprep.subr.mxu0 0.0
      %5141 = vmatpush1.msra.mxu0 0.0
      %5142 = vmatprep.subr.mxu0 0.0
      %5143 = vmatpush1.msra.mxu0 0.0
      %5144 = vmatprep.subr.mxu0 0.0
      %5145 = vmatpush1.msra.mxu0 0.0
      %5146 = vmatprep.subr.mxu0 0.0
      %5147 = vmatpush1.msra.mxu0 0.0
      %5148 = vmatprep.subr.mxu0 0.0
      %5149 = vmatpush1.msra.mxu0 0.0
      %5150 = vmatprep.subr.mxu0 0.0
      %5151 = vmatpush1.msra.mxu0 0.0
      %5152 = vmatprep.subr.mxu0 0.0
      %5153 = vmatpush1.msra.mxu0 0.0
      %5154 = vmatprep.subr.mxu0 0.0
      %5155 = vmatpush1.msra.mxu0 0.0
      %5156 = vmatprep.subr.mxu0 0.0
      %5157 = vmatpush1.msra.mxu0 0.0
      %5158 = vmatprep.subr.mxu0 0.0
      %5159 = vmatpush1.msra.mxu0 0.0
      %5160 = vmatprep.subr.mxu0 0.0
      %5161 = vmatpush1.msra.mxu0 0.0
      %5162 = vmatprep.subr.mxu0 0.0
      %5163 = vmatpush1.msra.mxu0 0.0
      %5164 = vmatprep.subr.mxu0 0.0
      %5165 = vmatpush1.msra.mxu0 0.0
      %5166 = vmatprep.subr.mxu0 0.0
      %5167 = vmatpush1.msra.mxu0 0.0
      %5168 = vmatprep.mubr.f32.mxu0 0.0
      %5169 = vmatmul.mubr.f32.gmra.mrb[0].mxu0 %v4889
      %v5170 = vpop.f32.mrb[0].mxu0
      %v5171 = vadd.f32 0.0, %v5170
      %v5172 = vpop.f32.mrb[0].mxu0
      %v5173 = vadd.f32 0.0, %v5172
      %5174 = vdwg.mxu0
      %5175 = vmatprep.subr.mxu0 %v1289
      %5176 = vmatpush1.msra.mxu0 %v1286
      %5177 = vmatprep.subr.mxu0 0.0
      %5178 = vmatpush1.msra.mxu0 0.0
      %5179 = vmatprep.subr.mxu0 0.0
      %5180 = vmatpush1.msra.mxu0 0.0
      %5181 = vmatprep.subr.mxu0 0.0
      %5182 = vmatpush1.msra.mxu0 0.0
      %5183 = vmatprep.subr.mxu0 0.0
      %5184 = vmatpush1.msra.mxu0 0.0
      %5185 = vmatprep.subr.mxu0 0.0
      %5186 = vmatpush1.msra.mxu0 0.0
      %5187 = vmatprep.subr.mxu0 0.0
      %5188 = vmatpush1.msra.mxu0 0.0
      %5189 = vmatprep.subr.mxu0 0.0
      %5190 = vmatpush1.msra.mxu0 0.0
      %5191 = vmatprep.subr.mxu0 0.0
      %5192 = vmatpush1.msra.mxu0 0.0
      %5193 = vmatprep.subr.mxu0 0.0
      %5194 = vmatpush1.msra.mxu0 0.0
      %5195 = vmatprep.subr.mxu0 0.0
      %5196 = vmatpush1.msra.mxu0 0.0
      %5197 = vmatprep.subr.mxu0 0.0
      %5198 = vmatpush1.msra.mxu0 0.0
      %5199 = vmatprep.subr.mxu0 0.0
      %5200 = vmatpush1.msra.mxu0 0.0
      %5201 = vmatprep.subr.mxu0 0.0
      %5202 = vmatpush1.msra.mxu0 0.0
      %5203 = vmatprep.subr.mxu0 0.0
      %5204 = vmatpush1.msra.mxu0 0.0
      %5205 = vmatprep.subr.mxu0 0.0
      %5206 = vmatpush1.msra.mxu0 0.0
      %5207 = vmatprep.subr.mxu0 0.0
      %5208 = vmatpush1.msra.mxu0 0.0
      %5209 = vmatprep.subr.mxu0 0.0
      %5210 = vmatpush1.msra.mxu0 0.0
      %5211 = vmatprep.subr.mxu0 0.0
      %5212 = vmatpush1.msra.mxu0 0.0
      %5213 = vmatprep.subr.mxu0 0.0
      %5214 = vmatpush1.msra.mxu0 0.0
      %5215 = vmatprep.subr.mxu0 0.0
      %5216 = vmatpush1.msra.mxu0 0.0
      %5217 = vmatprep.subr.mxu0 0.0
      %5218 = vmatpush1.msra.mxu0 0.0
      %5219 = vmatprep.subr.mxu0 0.0
      %5220 = vmatpush1.msra.mxu0 0.0
      %5221 = vmatprep.subr.mxu0 0.0
      %5222 = vmatpush1.msra.mxu0 0.0
      %5223 = vmatprep.subr.mxu0 0.0
      %5224 = vmatpush1.msra.mxu0 0.0
      %5225 = vmatprep.subr.mxu0 0.0
      %5226 = vmatpush1.msra.mxu0 0.0
      %5227 = vmatprep.subr.mxu0 0.0
      %5228 = vmatpush1.msra.mxu0 0.0
      %5229 = vmatprep.subr.mxu0 0.0
      %5230 = vmatpush1.msra.mxu0 0.0
      %5231 = vmatprep.subr.mxu0 0.0
      %5232 = vmatpush1.msra.mxu0 0.0
      %5233 = vmatprep.subr.mxu0 0.0
      %5234 = vmatpush1.msra.mxu0 0.0
      %5235 = vmatprep.subr.mxu0 0.0
      %5236 = vmatpush1.msra.mxu0 0.0
      %5237 = vmatprep.subr.mxu0 0.0
      %5238 = vmatpush1.msra.mxu0 0.0
      %5239 = vmatprep.mubr.f32.mxu0 0.0
      %5240 = vmatmul.mubr.f32.gmra.mrb[0].mxu0 %v4889
      %v5241 = vpop.f32.mrb[0].mxu0
      %v5242 = vadd.f32 0.0, %v5241
      %v5243 = vpop.f32.mrb[0].mxu0
      %v5244 = vadd.f32 0.0, %v5243
      %5245 = vdwg.mxu0
      %5246 = vmatprep.subr.mxu0 %v1295
      %5247 = vmatpush1.msra.mxu0 %v1292
      %5248 = vmatprep.subr.mxu0 0.0
      %5249 = vmatpush1.msra.mxu0 0.0
      %5250 = vmatprep.subr.mxu0 0.0
      %5251 = vmatpush1.msra.mxu0 0.0
      %5252 = vmatprep.subr.mxu0 0.0
      %5253 = vmatpush1.msra.mxu0 0.0
      %5254 = vmatprep.subr.mxu0 0.0
      %5255 = vmatpush1.msra.mxu0 0.0
      %5256 = vmatprep.subr.mxu0 0.0
      %5257 = vmatpush1.msra.mxu0 0.0
      %5258 = vmatprep.subr.mxu0 0.0
      %5259 = vmatpush1.msra.mxu0 0.0
      %5260 = vmatprep.subr.mxu0 0.0
      %5261 = vmatpush1.msra.mxu0 0.0
      %5262 = vmatprep.subr.mxu0 0.0
      %5263 = vmatpush1.msra.mxu0 0.0
      %5264 = vmatprep.subr.mxu0 0.0
      %5265 = vmatpush1.msra.mxu0 0.0
      %5266 = vmatprep.subr.mxu0 0.0
      %5267 = vmatpush1.msra.mxu0 0.0
      %5268 = vmatprep.subr.mxu0 0.0
      %5269 = vmatpush1.msra.mxu0 0.0
      %5270 = vmatprep.subr.mxu0 0.0
      %5271 = vmatpush1.msra.mxu0 0.0
      %5272 = vmatprep.subr.mxu0 0.0
      %5273 = vmatpush1.msra.mxu0 0.0
      %5274 = vmatprep.subr.mxu0 0.0
      %5275 = vmatpush1.msra.mxu0 0.0
      %5276 = vmatprep.subr.mxu0 0.0
      %5277 = vmatpush1.msra.mxu0 0.0
      %5278 = vmatprep.subr.mxu0 0.0
      %5279 = vmatpush1.msra.mxu0 0.0
      %5280 = vmatprep.subr.mxu0 0.0
      %5281 = vmatpush1.msra.mxu0 0.0
      %5282 = vmatprep.subr.mxu0 0.0
      %5283 = vmatpush1.msra.mxu0 0.0
      %5284 = vmatprep.subr.mxu0 0.0
      %5285 = vmatpush1.msra.mxu0 0.0
      %5286 = vmatprep.subr.mxu0 0.0
      %5287 = vmatpush1.msra.mxu0 0.0
      %5288 = vmatprep.subr.mxu0 0.0
      %5289 = vmatpush1.msra.mxu0 0.0
      %5290 = vmatprep.subr.mxu0 0.0
      %5291 = vmatpush1.msra.mxu0 0.0
      %5292 = vmatprep.subr.mxu0 0.0
      %5293 = vmatpush1.msra.mxu0 0.0
      %5294 = vmatprep.subr.mxu0 0.0
      %5295 = vmatpush1.msra.mxu0 0.0
      %5296 = vmatprep.subr.mxu0 0.0
      %5297 = vmatpush1.msra.mxu0 0.0
      %5298 = vmatprep.subr.mxu0 0.0
      %5299 = vmatpush1.msra.mxu0 0.0
      %5300 = vmatprep.subr.mxu0 0.0
      %5301 = vmatpush1.msra.mxu0 0.0
      %5302 = vmatprep.subr.mxu0 0.0
      %5303 = vmatpush1.msra.mxu0 0.0
      %5304 = vmatprep.subr.mxu0 0.0
      %5305 = vmatpush1.msra.mxu0 0.0
      %5306 = vmatprep.subr.mxu0 0.0
      %5307 = vmatpush1.msra.mxu0 0.0
      %5308 = vmatprep.subr.mxu0 0.0
      %5309 = vmatpush1.msra.mxu0 0.0
      %5310 = vmatprep.mubr.f32.mxu0 0.0
      %5311 = vmatmul.mubr.f32.gmra.mrb[0].mxu0 %v4889
      %v5312 = vpop.f32.mrb[0].mxu0
      %v5313 = vadd.f32 0.0, %v5312
      %v5314 = vpop.f32.mrb[0].mxu0
      %v5315 = vadd.f32 0.0, %v5314
      %5316 = vdwg.mxu0
      %5317 = vmatprep.subr.mxu0 %v1301
      %5318 = vmatpush1.msra.mxu0 %v1298
      %5319 = vmatprep.subr.mxu0 0.0
      %5320 = vmatpush1.msra.mxu0 0.0
      %5321 = vmatprep.subr.mxu0 0.0
      %5322 = vmatpush1.msra.mxu0 0.0
      %5323 = vmatprep.subr.mxu0 0.0
      %5324 = vmatpush1.msra.mxu0 0.0
      %5325 = vmatprep.subr.mxu0 0.0
      %5326 = vmatpush1.msra.mxu0 0.0
      %5327 = vmatprep.subr.mxu0 0.0
      %5328 = vmatpush1.msra.mxu0 0.0
      %5329 = vmatprep.subr.mxu0 0.0
      %5330 = vmatpush1.msra.mxu0 0.0
      %5331 = vmatprep.subr.mxu0 0.0
      %5332 = vmatpush1.msra.mxu0 0.0
      %5333 = vmatprep.subr.mxu0 0.0
      %5334 = vmatpush1.msra.mxu0 0.0
      %5335 = vmatprep.subr.mxu0 0.0
      %5336 = vmatpush1.msra.mxu0 0.0
      %5337 = vmatprep.subr.mxu0 0.0
      %5338 = vmatpush1.msra.mxu0 0.0
      %5339 = vmatprep.subr.mxu0 0.0
      %5340 = vmatpush1.msra.mxu0 0.0
      %5341 = vmatprep.subr.mxu0 0.0
      %5342 = vmatpush1.msra.mxu0 0.0
      %5343 = vmatprep.subr.mxu0 0.0
      %5344 = vmatpush1.msra.mxu0 0.0
      %5345 = vmatprep.subr.mxu0 0.0
      %5346 = vmatpush1.msra.mxu0 0.0
      %5347 = vmatprep.subr.mxu0 0.0
      %5348 = vmatpush1.msra.mxu0 0.0
      %5349 = vmatprep.subr.mxu0 0.0
      %5350 = vmatpush1.msra.mxu0 0.0
      %5351 = vmatprep.subr.mxu0 0.0
      %5352 = vmatpush1.msra.mxu0 0.0
      %5353 = vmatprep.subr.mxu0 0.0
      %5354 = vmatpush1.msra.mxu0 0.0
      %5355 = vmatprep.subr.mxu0 0.0
      %5356 = vmatpush1.msra.mxu0 0.0
      %5357 = vmatprep.subr.mxu0 0.0
      %5358 = vmatpush1.msra.mxu0 0.0
      %5359 = vmatprep.subr.mxu0 0.0
      %5360 = vmatpush1.msra.mxu0 0.0
      %5361 = vmatprep.subr.mxu0 0.0
      %5362 = vmatpush1.msra.mxu0 0.0
      %5363 = vmatprep.subr.mxu0 0.0
      %5364 = vmatpush1.msra.mxu0 0.0
      %5365 = vmatprep.subr.mxu0 0.0
      %5366 = vmatpush1.msra.mxu0 0.0
      %5367 = vmatprep.subr.mxu0 0.0
      %5368 = vmatpush1.msra.mxu0 0.0
      %5369 = vmatprep.subr.mxu0 0.0
      %5370 = vmatpush1.msra.mxu0 0.0
      %5371 = vmatprep.subr.mxu0 0.0
      %5372 = vmatpush1.msra.mxu0 0.0
      %5373 = vmatprep.subr.mxu0 0.0
      %5374 = vmatpush1.msra.mxu0 0.0
      %5375 = vmatprep.subr.mxu0 0.0
      %5376 = vmatpush1.msra.mxu0 0.0
      %5377 = vmatprep.subr.mxu0 0.0
      %5378 = vmatpush1.msra.mxu0 0.0
      %5379 = vmatprep.subr.mxu0 0.0
      %5380 = vmatpush1.msra.mxu0 0.0
      %5381 = vmatprep.mubr.f32.mxu0 0.0
      %5382 = vmatmul.mubr.f32.gmra.mrb[0].mxu0 %v4889
      %v5383 = vpop.f32.mrb[0].mxu0
      %v5384 = vadd.f32 0.0, %v5383
      %v5385 = vpop.f32.mrb[0].mxu0
      %v5386 = vadd.f32 0.0, %v5385
      %5387 = vdwg.mxu0
      %5388 = vmatprep.subr.mxu0 %v1307
      %5389 = vmatpush1.msra.mxu0 %v1304
      %5390 = vmatprep.subr.mxu0 0.0
      %5391 = vmatpush1.msra.mxu0 0.0
      %5392 = vmatprep.subr.mxu0 0.0
      %5393 = vmatpush1.msra.mxu0 0.0
      %5394 = vmatprep.subr.mxu0 0.0
      %5395 = vmatpush1.msra.mxu0 0.0
      %5396 = vmatprep.subr.mxu0 0.0
      %5397 = vmatpush1.msra.mxu0 0.0
      %5398 = vmatprep.subr.mxu0 0.0
      %5399 = vmatpush1.msra.mxu0 0.0
      %5400 = vmatprep.subr.mxu0 0.0
      %5401 = vmatpush1.msra.mxu0 0.0
      %5402 = vmatprep.subr.mxu0 0.0
      %5403 = vmatpush1.msra.mxu0 0.0
      %5404 = vmatprep.subr.mxu0 0.0
      %5405 = vmatpush1.msra.mxu0 0.0
      %5406 = vmatprep.subr.mxu0 0.0
      %5407 = vmatpush1.msra.mxu0 0.0
      %5408 = vmatprep.subr.mxu0 0.0
      %5409 = vmatpush1.msra.mxu0 0.0
      %5410 = vmatprep.subr.mxu0 0.0
      %5411 = vmatpush1.msra.mxu0 0.0
      %5412 = vmatprep.subr.mxu0 0.0
      %5413 = vmatpush1.msra.mxu0 0.0
      %5414 = vmatprep.subr.mxu0 0.0
      %5415 = vmatpush1.msra.mxu0 0.0
      %5416 = vmatprep.subr.mxu0 0.0
      %5417 = vmatpush1.msra.mxu0 0.0
      %5418 = vmatprep.subr.mxu0 0.0
      %5419 = vmatpush1.msra.mxu0 0.0
      %5420 = vmatprep.subr.mxu0 0.0
      %5421 = vmatpush1.msra.mxu0 0.0
      %5422 = vmatprep.subr.mxu0 0.0
      %5423 = vmatpush1.msra.mxu0 0.0
      %5424 = vmatprep.subr.mxu0 0.0
      %5425 = vmatpush1.msra.mxu0 0.0
      %5426 = vmatprep.subr.mxu0 0.0
      %5427 = vmatpush1.msra.mxu0 0.0
      %5428 = vmatprep.subr.mxu0 0.0
      %5429 = vmatpush1.msra.mxu0 0.0
      %5430 = vmatprep.subr.mxu0 0.0
      %5431 = vmatpush1.msra.mxu0 0.0
      %5432 = vmatprep.subr.mxu0 0.0
      %5433 = vmatpush1.msra.mxu0 0.0
      %5434 = vmatprep.subr.mxu0 0.0
      %5435 = vmatpush1.msra.mxu0 0.0
      %5436 = vmatprep.subr.mxu0 0.0
      %5437 = vmatpush1.msra.mxu0 0.0
      %5438 = vmatprep.subr.mxu0 0.0
      %5439 = vmatpush1.msra.mxu0 0.0
      %5440 = vmatprep.subr.mxu0 0.0
      %5441 = vmatpush1.msra.mxu0 0.0
      %5442 = vmatprep.subr.mxu0 0.0
      %5443 = vmatpush1.msra.mxu0 0.0
      %5444 = vmatprep.subr.mxu0 0.0
      %5445 = vmatpush1.msra.mxu0 0.0
      %5446 = vmatprep.subr.mxu0 0.0
      %5447 = vmatpush1.msra.mxu0 0.0
      %5448 = vmatprep.subr.mxu0 0.0
      %5449 = vmatpush1.msra.mxu0 0.0
      %5450 = vmatprep.subr.mxu0 0.0
      %5451 = vmatpush1.msra.mxu0 0.0
      %5452 = vmatprep.mubr.f32.mxu0 0.0
      %5453 = vmatmul.mubr.f32.gmra.mrb[0].mxu0 %v4889
      %v5454 = vpop.f32.mrb[0].mxu0
      %v5455 = vadd.f32 0.0, %v5454
      %v5456 = vpop.f32.mrb[0].mxu0
      %v5457 = vadd.f32 0.0, %v5456
      %5458 = vdwg.mxu0
      %v5460 = vsel %vm1256, %v4886, 0
      %v5463 = vsel %vm1260, %v4870, 0
      %v5466 = vsel %vm1260, %v4871, 0
      %v5469 = vsel %vm1260, %v4872, 0
      %v5472 = vsel %vm1260, %v4873, 0
      %v5475 = vsel %vm1260, %v4874, 0
      %v5478 = vsel %vm1260, %v4875, 0
      %v5481 = vsel %vm1260, %v4876, 0
      %v5484 = vsel %vm1260, %v4877, 0
      %v5487 = vsel %vm1260, %v4878, 0
      %v5490 = vsel %vm1260, %v4879, 0
      %v5493 = vsel %vm1260, %v4880, 0
      %v5496 = vsel %vm1260, %v4881, 0
      %v5499 = vsel %vm1260, %v4882, 0
      %v5502 = vsel %vm1260, %v4883, 0
      %v5505 = vsel %vm1260, %v4884, 0
      %v5508 = vsel %vm1260, %v4885, 0
      %5510 = vmatprep.subr.mxu0 %v5466
      %5511 = vmatpush1.msra.mxu0 %v5463
      %5512 = vmatprep.subr.mxu0 0.0
      %5513 = vmatpush1.msra.mxu0 0.0
      %5514 = vmatprep.subr.mxu0 0.0
      %5515 = vmatpush1.msra.mxu0 0.0
      %5516 = vmatprep.subr.mxu0 0.0
      %5517 = vmatpush1.msra.mxu0 0.0
      %5518 = vmatprep.subr.mxu0 0.0
      %5519 = vmatpush1.msra.mxu0 0.0
      %5520 = vmatprep.subr.mxu0 0.0
      %5521 = vmatpush1.msra.mxu0 0.0
      %5522 = vmatprep.subr.mxu0 0.0
      %5523 = vmatpush1.msra.mxu0 0.0
      %5524 = vmatprep.subr.mxu0 0.0
      %5525 = vmatpush1.msra.mxu0 0.0
      %5526 = vmatprep.subr.mxu0 0.0
      %5527 = vmatpush1.msra.mxu0 0.0
      %5528 = vmatprep.subr.mxu0 0.0
      %5529 = vmatpush1.msra.mxu0 0.0
      %5530 = vmatprep.subr.mxu0 0.0
      %5531 = vmatpush1.msra.mxu0 0.0
      %5532 = vmatprep.subr.mxu0 0.0
      %5533 = vmatpush1.msra.mxu0 0.0
      %5534 = vmatprep.subr.mxu0 0.0
      %5535 = vmatpush1.msra.mxu0 0.0
      %5536 = vmatprep.subr.mxu0 0.0
      %5537 = vmatpush1.msra.mxu0 0.0
      %5538 = vmatprep.subr.mxu0 0.0
      %5539 = vmatpush1.msra.mxu0 0.0
      %5540 = vmatprep.subr.mxu0 0.0
      %5541 = vmatpush1.msra.mxu0 0.0
      %5542 = vmatprep.subr.mxu0 0.0
      %5543 = vmatpush1.msra.mxu0 0.0
      %5544 = vmatprep.subr.mxu0 0.0
      %5545 = vmatpush1.msra.mxu0 0.0
      %5546 = vmatprep.subr.mxu0 0.0
      %5547 = vmatpush1.msra.mxu0 0.0
      %5548 = vmatprep.subr.mxu0 0.0
      %5549 = vmatpush1.msra.mxu0 0.0
      %5550 = vmatprep.subr.mxu0 0.0
      %5551 = vmatpush1.msra.mxu0 0.0
      %5552 = vmatprep.subr.mxu0 0.0
      %5553 = vmatpush1.msra.mxu0 0.0
      %5554 = vmatprep.subr.mxu0 0.0
      %5555 = vmatpush1.msra.mxu0 0.0
      %5556 = vmatprep.subr.mxu0 0.0
      %5557 = vmatpush1.msra.mxu0 0.0
      %5558 = vmatprep.subr.mxu0 0.0
      %5559 = vmatpush1.msra.mxu0 0.0
      %5560 = vmatprep.subr.mxu0 0.0
      %5561 = vmatpush1.msra.mxu0 0.0
      %5562 = vmatprep.subr.mxu0 0.0
      %5563 = vmatpush1.msra.mxu0 0.0
      %5564 = vmatprep.subr.mxu0 0.0
      %5565 = vmatpush1.msra.mxu0 0.0
      %5566 = vmatprep.subr.mxu0 0.0
      %5567 = vmatpush1.msra.mxu0 0.0
      %5568 = vmatprep.subr.mxu0 0.0
      %5569 = vmatpush1.msra.mxu0 0.0
      %5570 = vmatprep.subr.mxu0 0.0
      %5571 = vmatpush1.msra.mxu0 0.0
      %5572 = vmatprep.subr.mxu0 0.0
      %5573 = vmatpush1.msra.mxu0 0.0
      %5574 = vmatprep.mubr.f32.mxu0 0.0
      %5575 = vmatmul.mubr.f32.gmra.mrb[0].mxu0 %v5460
      %v5576 = vpop.f32.mrb[0].mxu0
      %v5577 = vadd.f32 %v4958, %v5576
      %v5578 = vpop.f32.mrb[0].mxu0
      %v5579 = vadd.f32 %v4960, %v5578
      %5580 = vdwg.mxu0
      %5581 = vmatprep.subr.mxu0 %v5472
      %5582 = vmatpush1.msra.mxu0 %v5469
      %5583 = vmatprep.subr.mxu0 0.0
      %5584 = vmatpush1.msra.mxu0 0.0
      %5585 = vmatprep.subr.mxu0 0.0
      %5586 = vmatpush1.msra.mxu0 0.0
      %5587 = vmatprep.subr.mxu0 0.0
      %5588 = vmatpush1.msra.mxu0 0.0
      %5589 = vmatprep.subr.mxu0 0.0
      %5590 = vmatpush1.msra.mxu0 0.0
      %5591 = vmatprep.subr.mxu0 0.0
      %5592 = vmatpush1.msra.mxu0 0.0
      %5593 = vmatprep.subr.mxu0 0.0
      %5594 = vmatpush1.msra.mxu0 0.0
      %5595 = vmatprep.subr.mxu0 0.0
      %5596 = vmatpush1.msra.mxu0 0.0
      %5597 = vmatprep.subr.mxu0 0.0
      %5598 = vmatpush1.msra.mxu0 0.0
      %5599 = vmatprep.subr.mxu0 0.0
      %5600 = vmatpush1.msra.mxu0 0.0
      %5601 = vmatprep.subr.mxu0 0.0
      %5602 = vmatpush1.msra.mxu0 0.0
      %5603 = vmatprep.subr.mxu0 0.0
      %5604 = vmatpush1.msra.mxu0 0.0
      %5605 = vmatprep.subr.mxu0 0.0
      %5606 = vmatpush1.msra.mxu0 0.0
      %5607 = vmatprep.subr.mxu0 0.0
      %5608 = vmatpush1.msra.mxu0 0.0
      %5609 = vmatprep.subr.mxu0 0.0
      %5610 = vmatpush1.msra.mxu0 0.0
      %5611 = vmatprep.subr.mxu0 0.0
      %5612 = vmatpush1.msra.mxu0 0.0
      %5613 = vmatprep.subr.mxu0 0.0
      %5614 = vmatpush1.msra.mxu0 0.0
      %5615 = vmatprep.subr.mxu0 0.0
      %5616 = vmatpush1.msra.mxu0 0.0
      %5617 = vmatprep.subr.mxu0 0.0
      %5618 = vmatpush1.msra.mxu0 0.0
      %5619 = vmatprep.subr.mxu0 0.0
      %5620 = vmatpush1.msra.mxu0 0.0
      %5621 = vmatprep.subr.mxu0 0.0
      %5622 = vmatpush1.msra.mxu0 0.0
      %5623 = vmatprep.subr.mxu0 0.0
      %5624 = vmatpush1.msra.mxu0 0.0
      %5625 = vmatprep.subr.mxu0 0.0
      %5626 = vmatpush1.msra.mxu0 0.0
      %5627 = vmatprep.subr.mxu0 0.0
      %5628 = vmatpush1.msra.mxu0 0.0
      %5629 = vmatprep.subr.mxu0 0.0
      %5630 = vmatpush1.msra.mxu0 0.0
      %5631 = vmatprep.subr.mxu0 0.0
      %5632 = vmatpush1.msra.mxu0 0.0
      %5633 = vmatprep.subr.mxu0 0.0
      %5634 = vmatpush1.msra.mxu0 0.0
      %5635 = vmatprep.subr.mxu0 0.0
      %5636 = vmatpush1.msra.mxu0 0.0
      %5637 = vmatprep.subr.mxu0 0.0
      %5638 = vmatpush1.msra.mxu0 0.0
      %5639 = vmatprep.subr.mxu0 0.0
      %5640 = vmatpush1.msra.mxu0 0.0
      %5641 = vmatprep.subr.mxu0 0.0
      %5642 = vmatpush1.msra.mxu0 0.0
      %5643 = vmatprep.subr.mxu0 0.0
      %5644 = vmatpush1.msra.mxu0 0.0
      %5645 = vmatprep.mubr.f32.mxu0 0.0
      %5646 = vmatmul.mubr.f32.gmra.mrb[0].mxu0 %v5460
      %v5647 = vpop.f32.mrb[0].mxu0
      %v5648 = vadd.f32 %v5029, %v5647
      %v5649 = vpop.f32.mrb[0].mxu0
      %v5650 = vadd.f32 %v5031, %v5649
      %5651 = vdwg.mxu0
      %5652 = vmatprep.subr.mxu0 %v5478
      %5653 = vmatpush1.msra.mxu0 %v5475
      %5654 = vmatprep.subr.mxu0 0.0
      %5655 = vmatpush1.msra.mxu0 0.0
      %5656 = vmatprep.subr.mxu0 0.0
      %5657 = vmatpush1.msra.mxu0 0.0
      %5658 = vmatprep.subr.mxu0 0.0
      %5659 = vmatpush1.msra.mxu0 0.0
      %5660 = vmatprep.subr.mxu0 0.0
      %5661 = vmatpush1.msra.mxu0 0.0
      %5662 = vmatprep.subr.mxu0 0.0
      %5663 = vmatpush1.msra.mxu0 0.0
      %5664 = vmatprep.subr.mxu0 0.0
      %5665 = vmatpush1.msra.mxu0 0.0
      %5666 = vmatprep.subr.mxu0 0.0
      %5667 = vmatpush1.msra.mxu0 0.0
      %5668 = vmatprep.subr.mxu0 0.0
      %5669 = vmatpush1.msra.mxu0 0.0
      %5670 = vmatprep.subr.mxu0 0.0
      %5671 = vmatpush1.msra.mxu0 0.0
      %5672 = vmatprep.subr.mxu0 0.0
      %5673 = vmatpush1.msra.mxu0 0.0
      %5674 = vmatprep.subr.mxu0 0.0
      %5675 = vmatpush1.msra.mxu0 0.0
      %5676 = vmatprep.subr.mxu0 0.0
      %5677 = vmatpush1.msra.mxu0 0.0
      %5678 = vmatprep.subr.mxu0 0.0
      %5679 = vmatpush1.msra.mxu0 0.0
      %5680 = vmatprep.subr.mxu0 0.0
      %5681 = vmatpush1.msra.mxu0 0.0
      %5682 = vmatprep.subr.mxu0 0.0
      %5683 = vmatpush1.msra.mxu0 0.0
      %5684 = vmatprep.subr.mxu0 0.0
      %5685 = vmatpush1.msra.mxu0 0.0
      %5686 = vmatprep.subr.mxu0 0.0
      %5687 = vmatpush1.msra.mxu0 0.0
      %5688 = vmatprep.subr.mxu0 0.0
      %5689 = vmatpush1.msra.mxu0 0.0
      %5690 = vmatprep.subr.mxu0 0.0
      %5691 = vmatpush1.msra.mxu0 0.0
      %5692 = vmatprep.subr.mxu0 0.0
      %5693 = vmatpush1.msra.mxu0 0.0
      %5694 = vmatprep.subr.mxu0 0.0
      %5695 = vmatpush1.msra.mxu0 0.0
      %5696 = vmatprep.subr.mxu0 0.0
      %5697 = vmatpush1.msra.mxu0 0.0
      %5698 = vmatprep.subr.mxu0 0.0
      %5699 = vmatpush1.msra.mxu0 0.0
      %5700 = vmatprep.subr.mxu0 0.0
      %5701 = vmatpush1.msra.mxu0 0.0
      %5702 = vmatprep.subr.mxu0 0.0
      %5703 = vmatpush1.msra.mxu0 0.0
      %5704 = vmatprep.subr.mxu0 0.0
      %5705 = vmatpush1.msra.mxu0 0.0
      %5706 = vmatprep.subr.mxu0 0.0
      %5707 = vmatpush1.msra.mxu0 0.0
      %5708 = vmatprep.subr.mxu0 0.0
      %5709 = vmatpush1.msra.mxu0 0.0
      %5710 = vmatprep.subr.mxu0 0.0
      %5711 = vmatpush1.msra.mxu0 0.0
      %5712 = vmatprep.subr.mxu0 0.0
      %5713 = vmatpush1.msra.mxu0 0.0
      %5714 = vmatprep.subr.mxu0 0.0
      %5715 = vmatpush1.msra.mxu0 0.0
      %5716 = vmatprep.mubr.f32.mxu0 0.0
      %5717 = vmatmul.mubr.f32.gmra.mrb[0].mxu0 %v5460
      %v5718 = vpop.f32.mrb[0].mxu0
      %v5719 = vadd.f32 %v5100, %v5718
      %v5720 = vpop.f32.mrb[0].mxu0
      %v5721 = vadd.f32 %v5102, %v5720
      %5722 = vdwg.mxu0
      %5723 = vmatprep.subr.mxu0 %v5484
      %5724 = vmatpush1.msra.mxu0 %v5481
      %5725 = vmatprep.subr.mxu0 0.0
      %5726 = vmatpush1.msra.mxu0 0.0
      %5727 = vmatprep.subr.mxu0 0.0
      %5728 = vmatpush1.msra.mxu0 0.0
      %5729 = vmatprep.subr.mxu0 0.0
      %5730 = vmatpush1.msra.mxu0 0.0
      %5731 = vmatprep.subr.mxu0 0.0
      %5732 = vmatpush1.msra.mxu0 0.0
      %5733 = vmatprep.subr.mxu0 0.0
      %5734 = vmatpush1.msra.mxu0 0.0
      %5735 = vmatprep.subr.mxu0 0.0
      %5736 = vmatpush1.msra.mxu0 0.0
      %5737 = vmatprep.subr.mxu0 0.0
      %5738 = vmatpush1.msra.mxu0 0.0
      %5739 = vmatprep.subr.mxu0 0.0
      %5740 = vmatpush1.msra.mxu0 0.0
      %5741 = vmatprep.subr.mxu0 0.0
      %5742 = vmatpush1.msra.mxu0 0.0
      %5743 = vmatprep.subr.mxu0 0.0
      %5744 = vmatpush1.msra.mxu0 0.0
      %5745 = vmatprep.subr.mxu0 0.0
      %5746 = vmatpush1.msra.mxu0 0.0
      %5747 = vmatprep.subr.mxu0 0.0
      %5748 = vmatpush1.msra.mxu0 0.0
      %5749 = vmatprep.subr.mxu0 0.0
      %5750 = vmatpush1.msra.mxu0 0.0
      %5751 = vmatprep.subr.mxu0 0.0
      %5752 = vmatpush1.msra.mxu0 0.0
      %5753 = vmatprep.subr.mxu0 0.0
      %5754 = vmatpush1.msra.mxu0 0.0
      %5755 = vmatprep.subr.mxu0 0.0
      %5756 = vmatpush1.msra.mxu0 0.0
      %5757 = vmatprep.subr.mxu0 0.0
      %5758 = vmatpush1.msra.mxu0 0.0
      %5759 = vmatprep.subr.mxu0 0.0
      %5760 = vmatpush1.msra.mxu0 0.0
      %5761 = vmatprep.subr.mxu0 0.0
      %5762 = vmatpush1.msra.mxu0 0.0
      %5763 = vmatprep.subr.mxu0 0.0
      %5764 = vmatpush1.msra.mxu0 0.0
      %5765 = vmatprep.subr.mxu0 0.0
      %5766 = vmatpush1.msra.mxu0 0.0
      %5767 = vmatprep.subr.mxu0 0.0
      %5768 = vmatpush1.msra.mxu0 0.0
      %5769 = vmatprep.subr.mxu0 0.0
      %5770 = vmatpush1.msra.mxu0 0.0
      %5771 = vmatprep.subr.mxu0 0.0
      %5772 = vmatpush1.msra.mxu0 0.0
      %5773 = vmatprep.subr.mxu0 0.0
      %5774 = vmatpush1.msra.mxu0 0.0
      %5775 = vmatprep.subr.mxu0 0.0
      %5776 = vmatpush1.msra.mxu0 0.0
      %5777 = vmatprep.subr.mxu0 0.0
      %5778 = vmatpush1.msra.mxu0 0.0
      %5779 = vmatprep.subr.mxu0 0.0
      %5780 = vmatpush1.msra.mxu0 0.0
      %5781 = vmatprep.subr.mxu0 0.0
      %5782 = vmatpush1.msra.mxu0 0.0
      %5783 = vmatprep.subr.mxu0 0.0
      %5784 = vmatpush1.msra.mxu0 0.0
      %5785 = vmatprep.subr.mxu0 0.0
      %5786 = vmatpush1.msra.mxu0 0.0
      %5787 = vmatprep.mubr.f32.mxu0 0.0
      %5788 = vmatmul.mubr.f32.gmra.mrb[0].mxu0 %v5460
      %v5789 = vpop.f32.mrb[0].mxu0
      %v5790 = vadd.f32 %v5171, %v5789
      %v5791 = vpop.f32.mrb[0].mxu0
      %v5792 = vadd.f32 %v5173, %v5791
      %5793 = vdwg.mxu0
      %5794 = vmatprep.subr.mxu0 %v5490
      %5795 = vmatpush1.msra.mxu0 %v5487
      %5796 = vmatprep.subr.mxu0 0.0
      %5797 = vmatpush1.msra.mxu0 0.0
      %5798 = vmatprep.subr.mxu0 0.0
      %5799 = vmatpush1.msra.mxu0 0.0
      %5800 = vmatprep.subr.mxu0 0.0
      %5801 = vmatpush1.msra.mxu0 0.0
      %5802 = vmatprep.subr.mxu0 0.0
      %5803 = vmatpush1.msra.mxu0 0.0
      %5804 = vmatprep.subr.mxu0 0.0
      %5805 = vmatpush1.msra.mxu0 0.0
      %5806 = vmatprep.subr.mxu0 0.0
      %5807 = vmatpush1.msra.mxu0 0.0
      %5808 = vmatprep.subr.mxu0 0.0
      %5809 = vmatpush1.msra.mxu0 0.0
      %5810 = vmatprep.subr.mxu0 0.0
      %5811 = vmatpush1.msra.mxu0 0.0
      %5812 = vmatprep.subr.mxu0 0.0
      %5813 = vmatpush1.msra.mxu0 0.0
      %5814 = vmatprep.subr.mxu0 0.0
      %5815 = vmatpush1.msra.mxu0 0.0
      %5816 = vmatprep.subr.mxu0 0.0
      %5817 = vmatpush1.msra.mxu0 0.0
      %5818 = vmatprep.subr.mxu0 0.0
      %5819 = vmatpush1.msra.mxu0 0.0
      %5820 = vmatprep.subr.mxu0 0.0
      %5821 = vmatpush1.msra.mxu0 0.0
      %5822 = vmatprep.subr.mxu0 0.0
      %5823 = vmatpush1.msra.mxu0 0.0
      %5824 = vmatprep.subr.mxu0 0.0
      %5825 = vmatpush1.msra.mxu0 0.0
      %5826 = vmatprep.subr.mxu0 0.0
      %5827 = vmatpush1.msra.mxu0 0.0
      %5828 = vmatprep.subr.mxu0 0.0
      %5829 = vmatpush1.msra.mxu0 0.0
      %5830 = vmatprep.subr.mxu0 0.0
      %5831 = vmatpush1.msra.mxu0 0.0
      %5832 = vmatprep.subr.mxu0 0.0
      %5833 = vmatpush1.msra.mxu0 0.0
      %5834 = vmatprep.subr.mxu0 0.0
      %5835 = vmatpush1.msra.mxu0 0.0
      %5836 = vmatprep.subr.mxu0 0.0
      %5837 = vmatpush1.msra.mxu0 0.0
      %5838 = vmatprep.subr.mxu0 0.0
      %5839 = vmatpush1.msra.mxu0 0.0
      %5840 = vmatprep.subr.mxu0 0.0
      %5841 = vmatpush1.msra.mxu0 0.0
      %5842 = vmatprep.subr.mxu0 0.0
      %5843 = vmatpush1.msra.mxu0 0.0
      %5844 = vmatprep.subr.mxu0 0.0
      %5845 = vmatpush1.msra.mxu0 0.0
      %5846 = vmatprep.subr.mxu0 0.0
      %5847 = vmatpush1.msra.mxu0 0.0
      %5848 = vmatprep.subr.mxu0 0.0
      %5849 = vmatpush1.msra.mxu0 0.0
      %5850 = vmatprep.subr.mxu0 0.0
      %5851 = vmatpush1.msra.mxu0 0.0
      %5852 = vmatprep.subr.mxu0 0.0
      %5853 = vmatpush1.msra.mxu0 0.0
      %5854 = vmatprep.subr.mxu0 0.0
      %5855 = vmatpush1.msra.mxu0 0.0
      %5856 = vmatprep.subr.mxu0 0.0
      %5857 = vmatpush1.msra.mxu0 0.0
      %5858 = vmatprep.mubr.f32.mxu0 0.0
      %5859 = vmatmul.mubr.f32.gmra.mrb[0].mxu0 %v5460
      %v5860 = vpop.f32.mrb[0].mxu0
      %v5861 = vadd.f32 %v5242, %v5860
      %v5862 = vpop.f32.mrb[0].mxu0
      %v5863 = vadd.f32 %v5244, %v5862
      %5864 = vdwg.mxu0
      %5865 = vmatprep.subr.mxu0 %v5496
      %5866 = vmatpush1.msra.mxu0 %v5493
      %5867 = vmatprep.subr.mxu0 0.0
      %5868 = vmatpush1.msra.mxu0 0.0
      %5869 = vmatprep.subr.mxu0 0.0
      %5870 = vmatpush1.msra.mxu0 0.0
      %5871 = vmatprep.subr.mxu0 0.0
      %5872 = vmatpush1.msra.mxu0 0.0
      %5873 = vmatprep.subr.mxu0 0.0
      %5874 = vmatpush1.msra.mxu0 0.0
      %5875 = vmatprep.subr.mxu0 0.0
      %5876 = vmatpush1.msra.mxu0 0.0
      %5877 = vmatprep.subr.mxu0 0.0
      %5878 = vmatpush1.msra.mxu0 0.0
      %5879 = vmatprep.subr.mxu0 0.0
      %5880 = vmatpush1.msra.mxu0 0.0
      %5881 = vmatprep.subr.mxu0 0.0
      %5882 = vmatpush1.msra.mxu0 0.0
      %5883 = vmatprep.subr.mxu0 0.0
      %5884 = vmatpush1.msra.mxu0 0.0
      %5885 = vmatprep.subr.mxu0 0.0
      %5886 = vmatpush1.msra.mxu0 0.0
      %5887 = vmatprep.subr.mxu0 0.0
      %5888 = vmatpush1.msra.mxu0 0.0
      %5889 = vmatprep.subr.mxu0 0.0
      %5890 = vmatpush1.msra.mxu0 0.0
      %5891 = vmatprep.subr.mxu0 0.0
      %5892 = vmatpush1.msra.mxu0 0.0
      %5893 = vmatprep.subr.mxu0 0.0
      %5894 = vmatpush1.msra.mxu0 0.0
      %5895 = vmatprep.subr.mxu0 0.0
      %5896 = vmatpush1.msra.mxu0 0.0
      %5897 = vmatprep.subr.mxu0 0.0
      %5898 = vmatpush1.msra.mxu0 0.0
      %5899 = vmatprep.subr.mxu0 0.0
      %5900 = vmatpush1.msra.mxu0 0.0
      %5901 = vmatprep.subr.mxu0 0.0
      %5902 = vmatpush1.msra.mxu0 0.0
      %5903 = vmatprep.subr.mxu0 0.0
      %5904 = vmatpush1.msra.mxu0 0.0
      %5905 = vmatprep.subr.mxu0 0.0
      %5906 = vmatpush1.msra.mxu0 0.0
      %5907 = vmatprep.subr.mxu0 0.0
      %5908 = vmatpush1.msra.mxu0 0.0
      %5909 = vmatprep.subr.mxu0 0.0
      %5910 = vmatpush1.msra.mxu0 0.0
      %5911 = vmatprep.subr.mxu0 0.0
      %5912 = vmatpush1.msra.mxu0 0.0
      %5913 = vmatprep.subr.mxu0 0.0
      %5914 = vmatpush1.msra.mxu0 0.0
      %5915 = vmatprep.subr.mxu0 0.0
      %5916 = vmatpush1.msra.mxu0 0.0
      %5917 = vmatprep.subr.mxu0 0.0
      %5918 = vmatpush1.msra.mxu0 0.0
      %5919 = vmatprep.subr.mxu0 0.0
      %5920 = vmatpush1.msra.mxu0 0.0
      %5921 = vmatprep.subr.mxu0 0.0
      %5922 = vmatpush1.msra.mxu0 0.0
      %5923 = vmatprep.subr.mxu0 0.0
      %5924 = vmatpush1.msra.mxu0 0.0
      %5925 = vmatprep.subr.mxu0 0.0
      %5926 = vmatpush1.msra.mxu0 0.0
      %5927 = vmatprep.subr.mxu0 0.0
      %5928 = vmatpush1.msra.mxu0 0.0
      %5929 = vmatprep.mubr.f32.mxu0 0.0
      %5930 = vmatmul.mubr.f32.gmra.mrb[0].mxu0 %v5460
      %v5931 = vpop.f32.mrb[0].mxu0
      %v5932 = vadd.f32 %v5313, %v5931
      %v5933 = vpop.f32.mrb[0].mxu0
      %v5934 = vadd.f32 %v5315, %v5933
      %5935 = vdwg.mxu0
      %5936 = vmatprep.subr.mxu0 %v5502
      %5937 = vmatpush1.msra.mxu0 %v5499
      %5938 = vmatprep.subr.mxu0 0.0
      %5939 = vmatpush1.msra.mxu0 0.0
      %5940 = vmatprep.subr.mxu0 0.0
      %5941 = vmatpush1.msra.mxu0 0.0
      %5942 = vmatprep.subr.mxu0 0.0
      %5943 = vmatpush1.msra.mxu0 0.0
      %5944 = vmatprep.subr.mxu0 0.0
      %5945 = vmatpush1.msra.mxu0 0.0
      %5946 = vmatprep.subr.mxu0 0.0
      %5947 = vmatpush1.msra.mxu0 0.0
      %5948 = vmatprep.subr.mxu0 0.0
      %5949 = vmatpush1.msra.mxu0 0.0
      %5950 = vmatprep.subr.mxu0 0.0
      %5951 = vmatpush1.msra.mxu0 0.0
      %5952 = vmatprep.subr.mxu0 0.0
      %5953 = vmatpush1.msra.mxu0 0.0
      %5954 = vmatprep.subr.mxu0 0.0
      %5955 = vmatpush1.msra.mxu0 0.0
      %5956 = vmatprep.subr.mxu0 0.0
      %5957 = vmatpush1.msra.mxu0 0.0
      %5958 = vmatprep.subr.mxu0 0.0
      %5959 = vmatpush1.msra.mxu0 0.0
      %5960 = vmatprep.subr.mxu0 0.0
      %5961 = vmatpush1.msra.mxu0 0.0
      %5962 = vmatprep.subr.mxu0 0.0
      %5963 = vmatpush1.msra.mxu0 0.0
      %5964 = vmatprep.subr.mxu0 0.0
      %5965 = vmatpush1.msra.mxu0 0.0
      %5966 = vmatprep.subr.mxu0 0.0
      %5967 = vmatpush1.msra.mxu0 0.0
      %5968 = vmatprep.subr.mxu0 0.0
      %5969 = vmatpush1.msra.mxu0 0.0
      %5970 = vmatprep.subr.mxu0 0.0
      %5971 = vmatpush1.msra.mxu0 0.0
      %5972 = vmatprep.subr.mxu0 0.0
      %5973 = vmatpush1.msra.mxu0 0.0
      %5974 = vmatprep.subr.mxu0 0.0
      %5975 = vmatpush1.msra.mxu0 0.0
      %5976 = vmatprep.subr.mxu0 0.0
      %5977 = vmatpush1.msra.mxu0 0.0
      %5978 = vmatprep.subr.mxu0 0.0
      %5979 = vmatpush1.msra.mxu0 0.0
      %5980 = vmatprep.subr.mxu0 0.0
      %5981 = vmatpush1.msra.mxu0 0.0
      %5982 = vmatprep.subr.mxu0 0.0
      %5983 = vmatpush1.msra.mxu0 0.0
      %5984 = vmatprep.subr.mxu0 0.0
      %5985 = vmatpush1.msra.mxu0 0.0
      %5986 = vmatprep.subr.mxu0 0.0
      %5987 = vmatpush1.msra.mxu0 0.0
      %5988 = vmatprep.subr.mxu0 0.0
      %5989 = vmatpush1.msra.mxu0 0.0
      %5990 = vmatprep.subr.mxu0 0.0
      %5991 = vmatpush1.msra.mxu0 0.0
      %5992 = vmatprep.subr.mxu0 0.0
      %5993 = vmatpush1.msra.mxu0 0.0
      %5994 = vmatprep.subr.mxu0 0.0
      %5995 = vmatpush1.msra.mxu0 0.0
      %5996 = vmatprep.subr.mxu0 0.0
      %5997 = vmatpush1.msra.mxu0 0.0
      %5998 = vmatprep.subr.mxu0 0.0
      %5999 = vmatpush1.msra.mxu0 0.0
      %6000 = vmatprep.mubr.f32.mxu0 0.0
      %6001 = vmatmul.mubr.f32.gmra.mrb[0].mxu0 %v5460
      %v6002 = vpop.f32.mrb[0].mxu0
      %v6003 = vadd.f32 %v5384, %v6002
      %v6004 = vpop.f32.mrb[0].mxu0
      %v6005 = vadd.f32 %v5386, %v6004
      %6006 = vdwg.mxu0
      %6007 = vmatprep.subr.mxu0 %v5508
      %6008 = vmatpush1.msra.mxu0 %v5505
      %6009 = vmatprep.subr.mxu0 0.0
      %6010 = vmatpush1.msra.mxu0 0.0
      %6011 = vmatprep.subr.mxu0 0.0
      %6012 = vmatpush1.msra.mxu0 0.0
      %6013 = vmatprep.subr.mxu0 0.0
      %6014 = vmatpush1.msra.mxu0 0.0
      %6015 = vmatprep.subr.mxu0 0.0
      %6016 = vmatpush1.msra.mxu0 0.0
      %6017 = vmatprep.subr.mxu0 0.0
      %6018 = vmatpush1.msra.mxu0 0.0
      %6019 = vmatprep.subr.mxu0 0.0
      %6020 = vmatpush1.msra.mxu0 0.0
      %6021 = vmatprep.subr.mxu0 0.0
      %6022 = vmatpush1.msra.mxu0 0.0
      %6023 = vmatprep.subr.mxu0 0.0
      %6024 = vmatpush1.msra.mxu0 0.0
      %6025 = vmatprep.subr.mxu0 0.0
      %6026 = vmatpush1.msra.mxu0 0.0
      %6027 = vmatprep.subr.mxu0 0.0
      %6028 = vmatpush1.msra.mxu0 0.0
      %6029 = vmatprep.subr.mxu0 0.0
      %6030 = vmatpush1.msra.mxu0 0.0
      %6031 = vmatprep.subr.mxu0 0.0
      %6032 = vmatpush1.msra.mxu0 0.0
      %6033 = vmatprep.subr.mxu0 0.0
      %6034 = vmatpush1.msra.mxu0 0.0
      %6035 = vmatprep.subr.mxu0 0.0
      %6036 = vmatpush1.msra.mxu0 0.0
      %6037 = vmatprep.subr.mxu0 0.0
      %6038 = vmatpush1.msra.mxu0 0.0
      %6039 = vmatprep.subr.mxu0 0.0
      %6040 = vmatpush1.msra.mxu0 0.0
      %6041 = vmatprep.subr.mxu0 0.0
      %6042 = vmatpush1.msra.mxu0 0.0
      %6043 = vmatprep.subr.mxu0 0.0
      %6044 = vmatpush1.msra.mxu0 0.0
      %6045 = vmatprep.subr.mxu0 0.0
      %6046 = vmatpush1.msra.mxu0 0.0
      %6047 = vmatprep.subr.mxu0 0.0
      %6048 = vmatpush1.msra.mxu0 0.0
      %6049 = vmatprep.subr.mxu0 0.0
      %6050 = vmatpush1.msra.mxu0 0.0
      %6051 = vmatprep.subr.mxu0 0.0
      %6052 = vmatpush1.msra.mxu0 0.0
      %6053 = vmatprep.subr.mxu0 0.0
      %6054 = vmatpush1.msra.mxu0 0.0
      %6055 = vmatprep.subr.mxu0 0.0
      %6056 = vmatpush1.msra.mxu0 0.0
      %6057 = vmatprep.subr.mxu0 0.0
      %6058 = vmatpush1.msra.mxu0 0.0
      %6059 = vmatprep.subr.mxu0 0.0
      %6060 = vmatpush1.msra.mxu0 0.0
      %6061 = vmatprep.subr.mxu0 0.0
      %6062 = vmatpush1.msra.mxu0 0.0
      %6063 = vmatprep.subr.mxu0 0.0
      %6064 = vmatpush1.msra.mxu0 0.0
      %6065 = vmatprep.subr.mxu0 0.0
      %6066 = vmatpush1.msra.mxu0 0.0
      %6067 = vmatprep.subr.mxu0 0.0
      %6068 = vmatpush1.msra.mxu0 0.0
      %6069 = vmatprep.subr.mxu0 0.0
      %6070 = vmatpush1.msra.mxu0 0.0
      %6071 = vmatprep.mubr.f32.mxu0 0.0
      %6072 = vmatmul.mubr.f32.gmra.mrb[0].mxu0 %v5460
      %v6073 = vpop.f32.mrb[0].mxu0
      %v6074 = vadd.f32 %v5455, %v6073
      %v6075 = vpop.f32.mrb[0].mxu0
      %v6076 = vadd.f32 %v5457, %v6075
      %6077 = vdwg.mxu0
      %v6078 = vld [vmem:[%s15] sm:$0xf]
      %6080 = vset.pattern.permute.xlu0 0
      %6081 = vperm.xlu0 %6080, %v6078
      %v6082 = vpop.permute.xlu0 %6081
      %v6084 = vadd.f32 %v5577, %v6082
      %v6085 = vadd.f32 %v5579, %v6082
      %v6086 = vadd.f32 %v5648, %v6082
      %v6087 = vadd.f32 %v5650, %v6082
      %v6088 = vadd.f32 %v5719, %v6082
      %v6089 = vadd.f32 %v5721, %v6082
      %v6090 = vadd.f32 %v5790, %v6082
      %v6091 = vadd.f32 %v5792, %v6082
      %v6092 = vadd.f32 %v5861, %v6082
      %v6093 = vadd.f32 %v5863, %v6082
      %v6094 = vadd.f32 %v5932, %v6082
      %v6095 = vadd.f32 %v5934, %v6082
      %v6096 = vadd.f32 %v6003, %v6082
      %v6097 = vadd.f32 %v6005, %v6082
      %v6098 = vadd.f32 %v6074, %v6082
      %v6099 = vadd.f32 %v6076, %v6082
      %v6116 = vcombine.low %v6084, %v6085
      %v6117 = vcombine.low %v6086, %v6087
      %v6118 = vcombine.low %v6088, %v6089
      %v6119 = vcombine.low %v6090, %v6091
      %v6120 = vcombine.low %v6092, %v6093
      %v6121 = vcombine.low %v6094, %v6095
      %v6122 = vcombine.low %v6096, %v6097
      %v6123 = vcombine.low %v6098, %v6099
      %6132 = vst [vmem:[%s559] sm:$0xff] %v6116
      %6133 = vst [vmem:[%s559 + $0x8] sm:$0xff] %v6117
      %6134 = vst [vmem:[%s559 + $0x10] sm:$0xff] %v6118
      %6135 = vst [vmem:[%s559 + $0x18] sm:$0xff] %v6119
      %6136 = vst [vmem:[%s559 + $0x20] sm:$0xff] %v6120
      %6137 = vst [vmem:[%s559 + $0x28] sm:$0xff] %v6121
      %6138 = vst [vmem:[%s559 + $0x30] sm:$0xff] %v6122
      %6139 = vst [vmem:[%s559 + $0x38] sm:$0xff] %v6123
      %s6140 = smul.u32 16, %s32
      %p6141 = scmp.lt.s32.totalorder %s31, 1
      %s6142 = scalar_select %p6141, %s31, 1
      %p6143 = scmp.lt.s32.totalorder %s6140, 63
      %s6144 = scalar_select %p6143, %s6140, 63
      %s6145 = smul.addr %s6142, 64
      %s6146 = sadd.s32 %s6144, %s6145
      %s6147 = smul.addr %s6146, 4
      %s6148 = scalar_lea.vmem %s16, %s6147
      // Predicated region
      $region85: #{mtfaa_forward.4} parent=83 // pred_check
        %p6149 = pneg %p402
      $region86: #{mtfaa_forward.4} parent=83 // pred_check_branch
        %6151 = sbr.rel (%p6149) target = $region88
      $region87: #{mtfaa_forward.4} parent=83 // pred_region
        %s6152 = smul.u32 16, %s32
      $region88: #{mtfaa_forward.4} parent=83 // pred_fallthru
        _
    $region84: #{mtfaa_forward.4} parent=5 // pred_fallthru
      _
    %p6153 = scmp.le.s32.totalorder 2, %s22
    // Predicated region
    $region89: #{mtfaa_forward.4} parent=5 // pred_check
      %p6154 = pneg %p6153
    $region90: #{mtfaa_forward.4} parent=5 // pred_check_branch
      %6156 = sbr.rel (%p6154) target = $region92
    $region91: #{mtfaa_forward.4} parent=5 // pred_region
      %s6157 = ssub.s32 %s22, 2
      // Predicated region
      $region93: #{mtfaa_forward.4} parent=91 // pred_check
        %p6158 = pneg %p408
      $region94: #{mtfaa_forward.4} parent=91 // pred_check_branch
        %6160 = sbr.rel (%p6158) target = $region96
      $region95: #{mtfaa_forward.4} parent=91 // pred_region
        %s6161 = smul.u32 16, %s34
        %p6162 = scmp.lt.s32.totalorder %s33, 1
        %s6163 = scalar_select %p6162, %s33, 1
        %p6164 = scmp.lt.s32.totalorder %s6161, 63
        %s6165 = scalar_select %p6164, %s6161, 63
        %s6166 = smul.addr %s6163, 64
        %s6167 = sadd.s32 %s6165, %s6166
        %s6168 = smul.addr %s6167, 4
        %s6169 = scalar_lea.vmem %s16, %s6168
      $region96: #{mtfaa_forward.4} parent=91 // pred_fallthru
        _
    $region92: #{mtfaa_forward.4} parent=5 // pred_fallthru
      _
  $region6: #{mtfaa_forward.4} parent=0 // loop_footer
    %s26 = sadd.s32 1, %s22
  $region7: #{mtfaa_forward.4} parent=0 // loop_footer_branch
    %21 = sbr.rel target = $region3
  $region8: #{mtfaa_forward.4} parent=0 // loop_exit
    _

// kernel: mtfaa_forward.5
$region0: #{mtfaa_forward.5}
  #allocation0 [shape = 'u32[]', space=smem, size = 0x4, offset = 0x4, fixed_abs, tag = 'smem constant byte address 0x4 - core index']
  #allocation1 [shape = 'u32[144,128]{1,0:T(1,128)}', space=vmem, size = 0x12000, scoped, tag = 'internal scratch']
  %s0 = inlined_call_operand.vmem [shape: f32[2,2,64,256], index: 0, kind: input, shape index: {}]
  %s1 = inlined_call_operand.vmem [shape: f32[2,128,256], index: 1, kind: input, shape index: {}]
  %s2 = inlined_call_operand.vmem [shape: f32[320,128], index: 2, kind: input, shape index: {}]
  %s3 = inlined_call_operand.vmem [shape: f32[320,1], index: 3, kind: input, shape index: {}]
  %s4 = inlined_call_operand.vmem [shape: f32[192,64], index: 4, kind: input, shape index: {}]
  %s5 = inlined_call_operand.vmem [shape: f32[2,64,256], index: 5, kind: output, shape index: {0}]
  %s6 = inlined_call_operand.vmem [shape: f32[2,64,256], index: 6, kind: output, shape index: {1}]
  %7 = xla_tuple %s5, %s6
  %s8 = sld [smem:[#allocation0]]
  $region61: #{mtfaa_forward.5} parent=0
    _
  %s10 = ssub.s32 1, %s8
  %s11 = scalar_select 0, %s10, %s8
  loop: start=0, step=1, limit=4
  $region2: #{mtfaa_forward.5} parent=0 // loop_pre_header
    _
  $region3: #{mtfaa_forward.5} parent=0 // loop_header
    %s13 = sphi 0, %s17
    %p14 = scmp.ge.s32.totalorder %s13, 4
    %s20 = sphi 0, %s32
    %s21 = sphi 0, %s28
    %s22 = sphi 0, %s20
    %s23 = sphi 0, %s21
    %s24 = sphi 0, %s22
    %s25 = sphi 0, %s23
    %s37 = sphi 0, %s39
    %s40 = sphi 0, %s37
    %s41 = sphi 0, %s40
    %s57 = sphi 0, %s41
    %s65 = sphi 0, %s67
    %s68 = sphi 0, %s65
    %s69 = sphi 0, %s68
    %s85 = sphi 0, %s69
    %s89 = sphi 0, %s89
    %s91 = sphi 0, %s89
    %s92 = sphi 0, %s91
    %s106 = sphi 0, %s92
    %s110 = sphi 0, %s110
    %s112 = sphi 0, %s110
    %s113 = sphi 0, %s112
    %s127 = sphi 0, %s113
    %s131 = sphi 0, %s131
    %s133 = sphi 0, %s131
    %s134 = sphi 0, %s133
    %s148 = sphi 0, %s134
    %s156 = sphi 0, %s158
    %s159 = sphi 0, %s156
    %s160 = sphi 0, %s159
    %s176 = sphi 0, %s160
    %s184 = sphi 0, %s186
    %s187 = sphi 0, %s184
    %s188 = sphi 0, %s187
    %s204 = sphi 0, %s188
  $region4: #{mtfaa_forward.5} parent=0 // loop_header_branch
    %16 = sbr.rel (%p14) target = $region8
  $region5: #{mtfaa_forward.5} parent=0 // loop_body
    %s18 = ssub.s32 %s13, 1
    %s19 = ssub.s32 %s13, 2
    %s26 = sadd.s32 1, %s21
    %p27 = scmp.ge.s32.totalorder %s26, 1
    %s28 = scalar_select %p27, 0, %s26
    %s29 = sadd.s32 1, %s20
    %s30 = scalar_select %p27, %s29, %s20
    %p31 = scmp.ge.s32.totalorder %s30, 2
    %s32 = scalar_select %p31, 0, %s30
    %s33 = ssub.s32 %s20, %s32
    %s34 = ssub.s32 %s21, %s28
    %s35 = sor.u32 %s33, %s34
    %p36 = scmp.eq.s32.totalorder %s35, 0
    %s38 = sadd.s32 %s37, 1
    %s39 = scalar_select %p36, %s37, %s38
    %p42 = pneg %p36
    %p43 = scmp.eq.s32.totalorder %s13, 1
    %p44 = por %p42, %p43
    %p45 = scmp.ne.s32.totalorder %s37, %s40
    %p46 = scmp.eq.s32.totalorder %s13, 0
    %p47 = por %p45, %p46
    %p48 = scmp.ne.s32.totalorder %s37, %s40
    %p49 = scmp.eq.s32.totalorder %s18, 1
    %p50 = por %p48, %p49
    %p51 = scmp.ne.s32.totalorder %s40, %s41
    %p52 = scmp.eq.s32.totalorder %s18, 0
    %p53 = por %p51, %p52
    %p54 = scmp.ne.s32.totalorder %s40, %s41
    %p55 = scmp.eq.s32.totalorder %s19, 1
    %p56 = por %p54, %p55
    %p58 = scmp.ne.s32.totalorder %s41, %s57
    %p59 = scmp.eq.s32.totalorder %s19, 0
    %p60 = por %p58, %p59
    %s61 = ssub.s32 %s20, %s32
    %s62 = ssub.s32 %s21, %s28
    %s63 = sor.u32 %s61, %s62
    %p64 = scmp.eq.s32.totalorder %s63, 0
    %s66 = sadd.s32 %s65, 1
    %s67 = scalar_select %p64, %s65, %s66
    %p70 = pneg %p64
    %p71 = scmp.eq.s32.totalorder %s13, 1
    %p72 = por %p70, %p71
    %p73 = scmp.ne.s32.totalorder %s65, %s68
    %p74 = scmp.eq.s32.totalorder %s13, 0
    %p75 = por %p73, %p74
    %p76 = scmp.ne.s32.totalorder %s65, %s68
    %p77 = scmp.eq.s32.totalorder %s18, 1
    %p78 = por %p76, %p77
    %p79 = scmp.ne.s32.totalorder %s68, %s69
    %p80 = scmp.eq.s32.totalorder %s18, 0
    %p81 = por %p79, %p80
    %p82 = scmp.ne.s32.totalorder %s68, %s69
    %p83 = scmp.eq.s32.totalorder %s19, 1
    %p84 = por %p82, %p83
    %p86 = scmp.ne.s32.totalorder %s69, %s85
    %p87 = scmp.eq.s32.totalorder %s19, 0
    %p88 = por %p86, %p87
    %s90 = sadd.s32 %s89, 1
    %p93 = scmp.eq.s32.totalorder %s13, 1
    %p94 = scmp.ne.s32.totalorder %s89, %s91
    %p95 = scmp.eq.s32.totalorder %s13, 0
    %p96 = por %p94, %p95
    %p97 = scmp.ne.s32.totalorder %s89, %s91
    %p98 = scmp.eq.s32.totalorder %s18, 1
    %p99 = por %p97, %p98
    %p100 = scmp.ne.s32.totalorder %s91, %s92
    %p101 = scmp.eq.s32.totalorder %s18, 0
    %p102 = por %p100, %p101
    %p103 = scmp.ne.s32.totalorder %s91, %s92
    %p104 = scmp.eq.s32.totalorder %s19, 1
    %p105 = por %p103, %p104
    %p107 = scmp.ne.s32.totalorder %s92, %s106
    %p108 = scmp.eq.s32.totalorder %s19, 0
    %p109 = por %p107, %p108
    %s111 = sadd.s32 %s110, 1
    %p114 = scmp.eq.s32.totalorder %s13, 1
    %p115 = scmp.ne.s32.totalorder %s110, %s112
    %p116 = scmp.eq.s32.totalorder %s13, 0
    %p117 = por %p115, %p116
    %p118 = scmp.ne.s32.totalorder %s110, %s112
    %p119 = scmp.eq.s32.totalorder %s18, 1
    %p120 = por %p118, %p119
    %p121 = scmp.ne.s32.totalorder %s112, %s113
    %p122 = scmp.eq.s32.totalorder %s18, 0
    %p123 = por %p121, %p122
    %p124 = scmp.ne.s32.totalorder %s112, %s113
    %p125 = scmp.eq.s32.totalorder %s19, 1
    %p126 = por %p124, %p125
    %p128 = scmp.ne.s32.totalorder %s113, %s127
    %p129 = scmp.eq.s32.totalorder %s19, 0
    %p130 = por %p128, %p129
    %s132 = sadd.s32 %s131, 1
    %p135 = scmp.eq.s32.totalorder %s13, 1
    %p136 = scmp.ne.s32.totalorder %s131, %s133
    %p137 = scmp.eq.s32.totalorder %s13, 0
    %p138 = por %p136, %p137
    %p139 = scmp.ne.s32.totalorder %s131, %s133
    %p140 = scmp.eq.s32.totalorder %s18, 1
    %p141 = por %p139, %p140
    %p142 = scmp.ne.s32.totalorder %s133, %s134
    %p143 = scmp.eq.s32.totalorder %s18, 0
    %p144 = por %p142, %p143
    %p145 = scmp.ne.s32.totalorder %s133, %s134
    %p146 = scmp.eq.s32.totalorder %s19, 1
    %p147 = por %p145, %p146
    %p149 = scmp.ne.s32.totalorder %s134, %s148
    %p150 = scmp.eq.s32.totalorder %s19, 0
    %p151 = por %p149, %p150
    %s152 = ssub.s32 %s20, %s32
    %s153 = ssub.s32 %s21, %s28
    %s154 = sor.u32 %s152, %s153
    %p155 = scmp.eq.s32.totalorder %s154, 0
    %s157 = sadd.s32 %s156, 1
    %s158 = scalar_select %p155, %s156, %s157
    %p161 = pneg %p155
    %p162 = scmp.eq.s32.totalorder %s13, 1
    %p163 = por %p161, %p162
    %p164 = scmp.ne.s32.totalorder %s156, %s159
    %p165 = scmp.eq.s32.totalorder %s13, 0
    %p166 = por %p164, %p165
    %p167 = scmp.ne.s32.totalorder %s156, %s159
    %p168 = scmp.eq.s32.totalorder %s18, 1
    %p169 = por %p167, %p168
    %p170 = scmp.ne.s32.totalorder %s159, %s160
    %p171 = scmp.eq.s32.totalorder %s18, 0
    %p172 = por %p170, %p171
    %p173 = scmp.ne.s32.totalorder %s159, %s160
    %p174 = scmp.eq.s32.totalorder %s19, 1
    %p175 = por %p173, %p174
    %p177 = scmp.ne.s32.totalorder %s160, %s176
    %p178 = scmp.eq.s32.totalorder %s19, 0
    %p179 = por %p177, %p178
    %s180 = ssub.s32 %s20, %s32
    %s181 = ssub.s32 %s21, %s28
    %s182 = sor.u32 %s180, %s181
    %p183 = scmp.eq.s32.totalorder %s182, 0
    %s185 = sadd.s32 %s184, 1
    %s186 = scalar_select %p183, %s184, %s185
    %p189 = pneg %p183
    %p190 = scmp.eq.s32.totalorder %s13, 1
    %p191 = por %p189, %p190
    %p192 = scmp.ne.s32.totalorder %s184, %s187
    %p193 = scmp.eq.s32.totalorder %s13, 0
    %p194 = por %p192, %p193
    %p195 = scmp.ne.s32.totalorder %s184, %s187
    %p196 = scmp.eq.s32.totalorder %s18, 1
    %p197 = por %p195, %p196
    %p198 = scmp.ne.s32.totalorder %s187, %s188
    %p199 = scmp.eq.s32.totalorder %s18, 0
    %p200 = por %p198, %p199
    %p201 = scmp.ne.s32.totalorder %s187, %s188
    %p202 = scmp.eq.s32.totalorder %s19, 1
    %p203 = por %p201, %p202
    %p205 = scmp.ne.s32.totalorder %s188, %s204
    %p206 = scmp.eq.s32.totalorder %s19, 0
    %p207 = por %p205, %p206
    %p208 = scmp.le.s32.totalorder 1, %s13
    %p209 = scmp.lt.s32.totalorder %s13, 3
    %p210 = pnand %p208, %p209
    %p211 = pneg %p210
    // Predicated region
    $region9: #{mtfaa_forward.5} parent=5 // pred_check
      _
    $region10: #{mtfaa_forward.5} parent=5 // pred_check_branch
      %213 = sbr.rel (%p210) target = $region12
    $region11: #{mtfaa_forward.5} parent=5 // pred_region
      %s214 = ssub.s32 %s13, 1
      // Predicated region
      $region13: #{mtfaa_forward.5} parent=11 // pred_check
        %p215 = pneg %p102
      $region14: #{mtfaa_forward.5} parent=11 // pred_check_branch
        %217 = sbr.rel (%p215) target = $region16
      $region15: #{mtfaa_forward.5} parent=11 // pred_region
        _
      $region16: #{mtfaa_forward.5} parent=11 // pred_fallthru
        _
      // Predicated region
      $region17: #{mtfaa_forward.5} parent=11 // pred_check
        %p218 = pneg %p123
      $region18: #{mtfaa_forward.5} parent=11 // pred_check_branch
        %220 = sbr.rel (%p218) target = $region20
      $region19: #{mtfaa_forward.5} parent=11 // pred_region
        _
      $region20: #{mtfaa_forward.5} parent=11 // pred_fallthru
        _
      // Predicated region
      $region21: #{mtfaa_forward.5} parent=11 // pred_check
        %p221 = pneg %p144
      $region22: #{mtfaa_forward.5} parent=11 // pred_check_branch
        %223 = sbr.rel (%p221) target = $region24
      $region23: #{mtfaa_forward.5} parent=11 // pred_region
        _
      $region24: #{mtfaa_forward.5} parent=11 // pred_fallthru
        _
    $region12: #{mtfaa_forward.5} parent=5 // pred_fallthru
      _
    %p224 = scmp.lt.s32.totalorder %s13, 2
    // Predicated region
    $region25: #{mtfaa_forward.5} parent=5 // pred_check
      %p225 = pneg %p224
    $region26: #{mtfaa_forward.5} parent=5 // pred_check_branch
      %227 = sbr.rel (%p225) target = $region28
    $region27: #{mtfaa_forward.5} parent=5 // pred_region
      // Predicated region
      $region29: #{mtfaa_forward.5} parent=27 // pred_check
        %p228 = pneg %p47
      $region30: #{mtfaa_forward.5} parent=27 // pred_check_branch
        %230 = sbr.rel (%p228) target = $region32
      $region31: #{mtfaa_forward.5} parent=27 // pred_region
        %s231 = smul.u32 2, %s21
        %p232 = scmp.lt.s32.totalorder %s20, 1
        %s233 = scalar_select %p232, %s20, 1
        %p234 = scmp.lt.s32.totalorder %s231, 1
        %s235 = scalar_select %p234, %s231, 1
        %s236 = smul.addr %s233, 32
        %s237 = sadd.s32 %s235, %s236
        %s238 = smul.addr %s237, 8
        %s239 = scalar_lea.vmem %s0, %s238
        %s240 = smul.u32 2, %s21
      $region32: #{mtfaa_forward.5} parent=27 // pred_fallthru
        _
      // Predicated region
      $region33: #{mtfaa_forward.5} parent=27 // pred_check
        %p241 = pneg %p75
      $region34: #{mtfaa_forward.5} parent=27 // pred_check_branch
        %243 = sbr.rel (%p241) target = $region36
      $region35: #{mtfaa_forward.5} parent=27 // pred_region
        %s244 = smul.u32 2, %s21
        %p245 = scmp.lt.s32.totalorder %s20, 1
        %s246 = scalar_select %p245, %s20, 1
        %p247 = scmp.lt.s32.totalorder %s244, 1
        %s248 = scalar_select %p247, %s244, 1
        %s249 = smul.addr %s246, 32
        %s250 = sadd.s32 %s248, %s249
        %s251 = smul.addr %s250, 8
        %s252 = scalar_lea.vmem %s1, %s251
        %s253 = smul.u32 2, %s21
      $region36: #{mtfaa_forward.5} parent=27 // pred_fallthru
        _
    $region28: #{mtfaa_forward.5} parent=5 // pred_fallthru
      _
    %p254 = scmp.le.s32.totalorder 1, %s13
    %p255 = scmp.lt.s32.totalorder %s13, 3
    %p256 = pnand %p254, %p255
    %p257 = pneg %p256
    // Predicated region
    $region37: #{mtfaa_forward.5} parent=5 // pred_check
      _
    $region38: #{mtfaa_forward.5} parent=5 // pred_check_branch
      %259 = sbr.rel (%p256) target = $region40
    $region39: #{mtfaa_forward.5} parent=5 // pred_region
      %s260 = ssub.s32 %s13, 1
      %s261 = smul.u32 2, %s23
      %p262 = scmp.lt.s32.totalorder %s22, 1
      %s263 = scalar_select %p262, %s22, 1
      %p264 = scmp.lt.s32.totalorder %s261, 1
      %s265 = scalar_select %p264, %s261, 1
      %s266 = smul.addr %s263, 32
      %s267 = sadd.s32 %s265, %s266
      %s268 = smul.addr %s267, 8
      %s269 = scalar_lea.vmem %s0, %s268
      %p270 = pneg %p53
      %p271 = pneg %p50
      %s272 = smul.u32 2, %s23
      %p273 = scmp.lt.s32.totalorder %s22, 1
      %s274 = scalar_select %p273, %s22, 1
      %p275 = scmp.lt.s32.totalorder %s272, 1
      %s276 = scalar_select %p275, %s272, 1
      %s277 = smul.addr %s274, 32
      %s278 = sadd.s32 %s276, %s277
      %s279 = smul.addr %s278, 8
      %s280 = scalar_lea.vmem %s1, %s279
      %p281 = pneg %p81
      %p282 = pneg %p78
      %p283 = pneg %p102
      %p284 = pneg %p99
      %p285 = pneg %p123
      %p286 = pneg %p120
      %p287 = pneg %p144
      %p288 = pneg %p141
      %p289 = pneg %p172
      %p290 = pneg %p169
      %s291 = smul.u32 2, %s23
      %p292 = scmp.lt.s32.totalorder %s22, 1
      %s293 = scalar_select %p292, %s22, 1
      %p294 = scmp.lt.s32.totalorder %s291, 1
      %s295 = scalar_select %p294, %s291, 1
      %s296 = smul.addr %s293, 16
      %s297 = sadd.s32 %s295, %s296
      %s298 = smul.addr %s297, 8
      %s299 = scalar_lea.vmem %s5, %s298
      %p300 = pneg %p200
      %p301 = pneg %p197
      %s302 = smul.u32 2, %s23
      %p303 = scmp.lt.s32.totalorder %s22, 1
      %s304 = scalar_select %p303, %s22, 1
      %p305 = scmp.lt.s32.totalorder %s302, 1
      %s306 = scalar_select %p305, %s302, 1
      %s307 = smul.addr %s304, 16
      %s308 = sadd.s32 %s306, %s307
      %s309 = smul.addr %s308, 8
      %s310 = scalar_lea.vmem %s6, %s309
      %s311 = smul.u32 2, %s23
      %p312 = scmp.lt.s32.totalorder %s22, 1
      %s313 = scalar_select %p312, %s22, 1
      %p314 = scmp.lt.s32.totalorder %s311, 1
      %s315 = scalar_select %p314, %s311, 1
      %s316 = smul.addr %s313, 32
      %s317 = sadd.s32 %s315, %s316
      %s318 = smul.addr %s317, 8
      %s319 = scalar_lea.vmem %s0, %s318
      %s320 = smul.u32 2, %s23
      %s321 = smul.u32 2, %s23
      %p322 = scmp.lt.s32.totalorder %s22, 1
      %s323 = scalar_select %p322, %s22, 1
      %p324 = scmp.lt.s32.totalorder %s321, 1
      %s325 = scalar_select %p324, %s321, 1
      %s326 = smul.addr %s323, 32
      %s327 = sadd.s32 %s325, %s326
      %s328 = smul.addr %s327, 8
      %s329 = scalar_lea.vmem %s1, %s328
      %s330 = smul.u32 2, %s23
      %s331 = smul.u32 2, %s23
      %p332 = scmp.lt.s32.totalorder %s22, 1
      %s333 = scalar_select %p332, %s22, 1
      %p334 = scmp.lt.s32.totalorder %s331, 1
      %s335 = scalar_select %p334, %s331, 1
      %s336 = smul.addr %s333, 16
      %s337 = sadd.s32 %s335, %s336
      %s338 = smul.addr %s337, 8
      %s339 = scalar_lea.vmem %s5, %s338
      %s340 = smul.u32 2, %s23
      %s341 = smul.u32 2, %s23
      %p342 = scmp.lt.s32.totalorder %s22, 1
      %s343 = scalar_select %p342, %s22, 1
      %p344 = scmp.lt.s32.totalorder %s341, 1
      %s345 = scalar_select %p344, %s341, 1
      %s346 = smul.addr %s343, 16
      %s347 = sadd.s32 %s345, %s346
      %s348 = smul.addr %s347, 8
      %s349 = scalar_lea.vmem %s6, %s348
      %s350 = smul.u32 2, %s23
      %v351 = vld [vmem:[%s319] sm:$0xff]
      %v352 = vld [vmem:[%s319 + $0x8] sm:$0xff]
      %v353 = vld [vmem:[%s319 + $0x10] sm:$0xff]
      %v354 = vld [vmem:[%s319 + $0x18] sm:$0xff]
      %v355 = vld [vmem:[%s319 + $0x20] sm:$0xff]
      %v356 = vld [vmem:[%s319 + $0x28] sm:$0xff]
      %v357 = vld [vmem:[%s319 + $0x30] sm:$0xff]
      %v358 = vld [vmem:[%s319 + $0x38] sm:$0xff]
      %v359 = vld [vmem:[%s319 + $0x40] sm:$0xff]
      %v360 = vld [vmem:[%s319 + $0x48] sm:$0xff]
      %v361 = vld [vmem:[%s319 + $0x50] sm:$0xff]
      %v362 = vld [vmem:[%s319 + $0x58] sm:$0xff]
      %v363 = vld [vmem:[%s319 + $0x60] sm:$0xff]
      %v364 = vld [vmem:[%s319 + $0x68] sm:$0xff]
      %v365 = vld [vmem:[%s319 + $0x70] sm:$0xff]
      %v366 = vld [vmem:[%s319 + $0x78] sm:$0xff]
      %s367 = scalar_lea.vmem %s319, 128
      %v368 = vld [vmem:[%s367] sm:$0xff]
      %v369 = vld [vmem:[%s367 + $0x8] sm:$0xff]
      %v370 = vld [vmem:[%s367 + $0x10] sm:$0xff]
      %v371 = vld [vmem:[%s367 + $0x18] sm:$0xff]
      %v372 = vld [vmem:[%s367 + $0x20] sm:$0xff]
      %v373 = vld [vmem:[%s367 + $0x28] sm:$0xff]
      %v374 = vld [vmem:[%s367 + $0x30] sm:$0xff]
      %v375 = vld [vmem:[%s367 + $0x38] sm:$0xff]
      %v376 = vld [vmem:[%s367 + $0x40] sm:$0xff]
      %v377 = vld [vmem:[%s367 + $0x48] sm:$0xff]
      %v378 = vld [vmem:[%s367 + $0x50] sm:$0xff]
      %v379 = vld [vmem:[%s367 + $0x58] sm:$0xff]
      %v380 = vld [vmem:[%s367 + $0x60] sm:$0xff]
      %v381 = vld [vmem:[%s367 + $0x68] sm:$0xff]
      %v382 = vld [vmem:[%s367 + $0x70] sm:$0xff]
      %v383 = vld [vmem:[%s367 + $0x78] sm:$0xff]
      %v384 = vmul.f32 %v351, %v351
      %v385 = vmul.f32 %v352, %v352
      %v386 = vmul.f32 %v353, %v353
      %v387 = vmul.f32 %v354, %v354
      %v388 = vmul.f32 %v355, %v355
      %v389 = vmul.f32 %v356, %v356
      %v390 = vmul.f32 %v357, %v357
      %v391 = vmul.f32 %v358, %v358
      %v392 = vmul.f32 %v359, %v359
      %v393 = vmul.f32 %v360, %v360
      %v394 = vmul.f32 %v361, %v361
      %v395 = vmul.f32 %v362, %v362
      %v396 = vmul.f32 %v363, %v363
      %v397 = vmul.f32 %v364, %v364
      %v398 = vmul.f32 %v365, %v365
      %v399 = vmul.f32 %v366, %v366
      %v400 = vmul.f32 %v368, %v368
      %v401 = vmul.f32 %v369, %v369
      %v402 = vmul.f32 %v370, %v370
      %v403 = vmul.f32 %v371, %v371
      %v404 = vmul.f32 %v372, %v372
      %v405 = vmul.f32 %v373, %v373
      %v406 = vmul.f32 %v374, %v374
      %v407 = vmul.f32 %v375, %v375
      %v408 = vmul.f32 %v376, %v376
      %v409 = vmul.f32 %v377, %v377
      %v410 = vmul.f32 %v378, %v378
      %v411 = vmul.f32 %v379, %v379
      %v412 = vmul.f32 %v380, %v380
      %v413 = vmul.f32 %v381, %v381
      %v414 = vmul.f32 %v382, %v382
      %v415 = vmul.f32 %v383, %v383
      %v416 = vadd.f32 %v384, %v400
      %v417 = vadd.f32 %v385, %v401
      %v418 = vadd.f32 %v386, %v402
      %v419 = vadd.f32 %v387, %v403
      %v420 = vadd.f32 %v388, %v404
      %v421 = vadd.f32 %v389, %v405
      %v422 = vadd.f32 %v390, %v406
      %v423 = vadd.f32 %v391, %v407
      %v424 = vadd.f32 %v392, %v408
      %v425 = vadd.f32 %v393, %v409
      %v426 = vadd.f32 %v394, %v410
      %v427 = vadd.f32 %v395, %v411
      %v428 = vadd.f32 %v396, %v412
      %v429 = vadd.f32 %v397, %v413
      %v430 = vadd.f32 %v398, %v414
      %v431 = vadd.f32 %v399, %v415
      %v432 = vmax.f32 %v416, 1e-30
      %v433 = vmax.f32 %v417, 1e-30
      %v434 = vmax.f32 %v418, 1e-30
      %v435 = vmax.f32 %v419, 1e-30
      %v436 = vmax.f32 %v420, 1e-30
      %v437 = vmax.f32 %v421, 1e-30
      %v438 = vmax.f32 %v422, 1e-30
      %v439 = vmax.f32 %v423, 1e-30
      %v440 = vmax.f32 %v424, 1e-30
      %v441 = vmax.f32 %v425, 1e-30
      %v442 = vmax.f32 %v426, 1e-30
      %v443 = vmax.f32 %v427, 1e-30
      %v444 = vmax.f32 %v428, 1e-30
      %v445 = vmax.f32 %v429, 1e-30
      %v446 = vmax.f32 %v430, 1e-30
      %v447 = vmax.f32 %v431, 1e-30
      %v448 = vrsqrt.pop %v432
      %v449 = vrsqrt.pop %v433
      %v450 = vrsqrt.pop %v434
      %v451 = vrsqrt.pop %v435
      %v452 = vrsqrt.pop %v436
      %v453 = vrsqrt.pop %v437
      %v454 = vrsqrt.pop %v438
      %v455 = vrsqrt.pop %v439
      %v456 = vrsqrt.pop %v440
      %v457 = vrsqrt.pop %v441
      %v458 = vrsqrt.pop %v442
      %v459 = vrsqrt.pop %v443
      %v460 = vrsqrt.pop %v444
      %v461 = vrsqrt.pop %v445
      %v462 = vrsqrt.pop %v446
      %v463 = vrsqrt.pop %v447
      %vm464 = vcmp.gt.f32.partialorder %v416, 0.0
      %vm465 = vcmp.gt.f32.partialorder %v417, 0.0
      %vm466 = vcmp.gt.f32.partialorder %v418, 0.0
      %vm467 = vcmp.gt.f32.partialorder %v419, 0.0
      %vm468 = vcmp.gt.f32.partialorder %v420, 0.0
      %vm469 = vcmp.gt.f32.partialorder %v421, 0.0
      %vm470 = vcmp.gt.f32.partialorder %v422, 0.0
      %vm471 = vcmp.gt.f32.partialorder %v423, 0.0
      %vm472 = vcmp.gt.f32.partialorder %v424, 0.0
      %vm473 = vcmp.gt.f32.partialorder %v425, 0.0
      %vm474 = vcmp.gt.f32.partialorder %v426, 0.0
      %vm475 = vcmp.gt.f32.partialorder %v427, 0.0
      %vm476 = vcmp.gt.f32.partialorder %v428, 0.0
      %vm477 = vcmp.gt.f32.partialorder %v429, 0.0
      %vm478 = vcmp.gt.f32.partialorder %v430, 0.0
      %vm479 = vcmp.gt.f32.partialorder %v431, 0.0
      %v480 = vmul.f32 %v416, %v448
      %v481 = vmul.f32 %v417, %v449
      %v482 = vmul.f32 %v418, %v450
      %v483 = vmul.f32 %v419, %v451
      %v484 = vmul.f32 %v420, %v452
      %v485 = vmul.f32 %v421, %v453
      %v486 = vmul.f32 %v422, %v454
      %v487 = vmul.f32 %v423, %v455
      %v488 = vmul.f32 %v424, %v456
      %v489 = vmul.f32 %v425, %v457
      %v490 = vmul.f32 %v426, %v458
      %v491 = vmul.f32 %v427, %v459
      %v492 = vmul.f32 %v428, %v460
      %v493 = vmul.f32 %v429, %v461
      %v494 = vmul.f32 %v430, %v462
      %v495 = vmul.f32 %v431, %v463
      %v496 = vmul.f32 %v351, %v448
      %v497 = vmul.f32 %v352, %v449
      %v498 = vmul.f32 %v353, %v450
      %v499 = vmul.f32 %v354, %v451
      %v500 = vmul.f32 %v355, %v452
      %v501 = vmul.f32 %v356, %v453
      %v502 = vmul.f32 %v357, %v454
      %v503 = vmul.f32 %v358, %v455
      %v504 = vmul.f32 %v359, %v456
      %v505 = vmul.f32 %v360, %v457
      %v506 = vmul.f32 %v361, %v458
      %v507 = vmul.f32 %v362, %v459
      %v508 = vmul.f32 %v363, %v460
      %v509 = vmul.f32 %v364, %v461
      %v510 = vmul.f32 %v365, %v462
      %v511 = vmul.f32 %v366, %v463
      %v512 = vsel %vm464, %v496, 1.0
      %v513 = vsel %vm465, %v497, 1.0
      %v514 = vsel %vm466, %v498, 1.0
      %v515 = vsel %vm467, %v499, 1.0
      %v516 = vsel %vm468, %v500, 1.0
      %v517 = vsel %vm469, %v501, 1.0
      %v518 = vsel %vm470, %v502, 1.0
      %v519 = vsel %vm471, %v503, 1.0
      %v520 = vsel %vm472, %v504, 1.0
      %v521 = vsel %vm473, %v505, 1.0
      %v522 = vsel %vm474, %v506, 1.0
      %v523 = vsel %vm475, %v507, 1.0
      %v524 = vsel %vm476, %v508, 1.0
      %v525 = vsel %vm477, %v509, 1.0
      %v526 = vsel %vm478, %v510, 1.0
      %v527 = vsel %vm479, %v511, 1.0
      %v528 = vmul.f32 %v368, %v448
      %v529 = vmul.f32 %v369, %v449
      %v530 = vmul.f32 %v370, %v450
      %v531 = vmul.f32 %v371, %v451
      %v532 = vmul.f32 %v372, %v452
      %v533 = vmul.f32 %v373, %v453
      %v534 = vmul.f32 %v374, %v454
      %v535 = vmul.f32 %v375, %v455
      %v536 = vmul.f32 %v376, %v456
      %v537 = vmul.f32 %v377, %v457
      %v538 = vmul.f32 %v378, %v458
      %v539 = vmul.f32 %v379, %v459
      %v540 = vmul.f32 %v380, %v460
      %v541 = vmul.f32 %v381, %v461
      %v542 = vmul.f32 %v382, %v462
      %v543 = vmul.f32 %v383, %v463
      %v544 = vsel %vm464, %v528, 0.0
      %v545 = vsel %vm465, %v529, 0.0
      %v546 = vsel %vm466, %v530, 0.0
      %v547 = vsel %vm467, %v531, 0.0
      %v548 = vsel %vm468, %v532, 0.0
      %v549 = vsel %vm469, %v533, 0.0
      %v550 = vsel %vm470, %v534, 0.0
      %v551 = vsel %vm471, %v535, 0.0
      %v552 = vsel %vm472, %v536, 0.0
      %v553 = vsel %vm473, %v537, 0.0
      %v554 = vsel %vm474, %v538, 0.0
      %v555 = vsel %vm475, %v539, 0.0
      %v556 = vsel %vm476, %v540, 0.0
      %v557 = vsel %vm477, %v541, 0.0
      %v558 = vsel %vm478, %v542, 0.0
      %v559 = vsel %vm479, %v543, 0.0
      %v560 = vld [vmem:[%s2] sm:$0xff]
      %v561 = vld [vmem:[%s2 + $0x8] sm:$0xff]
      %v562 = vld [vmem:[%s2 + $0x10] sm:$0xff]
      %v563 = vld [vmem:[%s2 + $0x18] sm:$0xff]
      %v564 = vld [vmem:[%s2 + $0x20] sm:$0xff]
      %v565 = vld [vmem:[%s2 + $0x28] sm:$0xff]
      %v566 = vld [vmem:[%s2 + $0x30] sm:$0xff]
      %v567 = vld [vmem:[%s2 + $0x38] sm:$0xff]
      %v568 = vld [vmem:[%s2 + $0x40] sm:$0xff]
      %v569 = vld [vmem:[%s2 + $0x48] sm:$0xff]
      %v570 = vld [vmem:[%s2 + $0x50] sm:$0xff]
      %v571 = vld [vmem:[%s2 + $0x58] sm:$0xff]
      %v572 = vld [vmem:[%s2 + $0x60] sm:$0xff]
      %v573 = vld [vmem:[%s2 + $0x68] sm:$0xff]
      %v574 = vld [vmem:[%s2 + $0x70] sm:$0xff]
      %v575 = vld [vmem:[%s2 + $0x78] sm:$0xff]
      %v576 = vld [vmem:[%s2 + $0x80] sm:$0xff]
      %v577 = vld [vmem:[%s2 + $0x88] sm:$0xff]
      %v578 = vld [vmem:[%s2 + $0x90] sm:$0xff]
      %v579 = vld [vmem:[%s2 + $0x98] sm:$0xff]
      %v580 = vld [vmem:[%s2 + $0xa0] sm:$0xff]
      %v581 = vld [vmem:[%s2 + $0xa8] sm:$0xff]
      %v582 = vld [vmem:[%s2 + $0xb0] sm:$0xff]
      %v583 = vld [vmem:[%s2 + $0xb8] sm:$0xff]
      %v584 = vld [vmem:[%s2 + $0xc0] sm:$0xff]
      %v585 = vld [vmem:[%s2 + $0xc8] sm:$0xff]
      %v586 = vld [vmem:[%s2 + $0xd0] sm:$0xff]
      %v587 = vld [vmem:[%s2 + $0xd8] sm:$0xff]
      %v588 = vld [vmem:[%s2 + $0xe0] sm:$0xff]
      %v589 = vld [vmem:[%s2 + $0xe8] sm:$0xff]
      %v590 = vld [vmem:[%s2 + $0xf0] sm:$0xff]
      %v591 = vld [vmem:[%s2 + $0xf8] sm:$0xff]
      %v592 = vld [vmem:[%s2 + $0x100] sm:$0xff]
      %v593 = vld [vmem:[%s2 + $0x108] sm:$0xff]
      %v594 = vld [vmem:[%s2 + $0x110] sm:$0xff]
      %v595 = vld [vmem:[%s2 + $0x118] sm:$0xff]
      %v596 = vld [vmem:[%s2 + $0x120] sm:$0xff]
      %v597 = vld [vmem:[%s2 + $0x128] sm:$0xff]
      %v598 = vld [vmem:[%s2 + $0x130] sm:$0xff]
      %v599 = vld [vmem:[%s2 + $0x138] sm:$0xff]
      %v600 = vld [vmem:[%s329] sm:$0xff]
      %v601 = vld [vmem:[%s329 + $0x8] sm:$0xff]
      %v602 = vld [vmem:[%s329 + $0x10] sm:$0xff]
      %v603 = vld [vmem:[%s329 + $0x18] sm:$0xff]
      %v604 = vld [vmem:[%s329 + $0x20] sm:$0xff]
      %v605 = vld [vmem:[%s329 + $0x28] sm:$0xff]
      %v606 = vld [vmem:[%s329 + $0x30] sm:$0xff]
      %v607 = vld [vmem:[%s329 + $0x38] sm:$0xff]
      %v608 = vld [vmem:[%s329 + $0x40] sm:$0xff]
      %v609 = vld [vmem:[%s329 + $0x48] sm:$0xff]
      %v610 = vld [vmem:[%s329 + $0x50] sm:$0xff]
      %v611 = vld [vmem:[%s329 + $0x58] sm:$0xff]
      %v612 = vld [vmem:[%s329 + $0x60] sm:$0xff]
      %v613 = vld [vmem:[%s329 + $0x68] sm:$0xff]
      %v614 = vld [vmem:[%s329 + $0x70] sm:$0xff]
      %v615 = vld [vmem:[%s329 + $0x78] sm:$0xff]
      %v616 = vld [vmem:[%s329 + $0x80] sm:$0xff]
      %v617 = vld [vmem:[%s329 + $0x88] sm:$0xff]
      %v618 = vld [vmem:[%s329 + $0x90] sm:$0xff]
      %v619 = vld [vmem:[%s329 + $0x98] sm:$0xff]
      %v620 = vld [vmem:[%s329 + $0xa0] sm:$0xff]
      %v621 = vld [vmem:[%s329 + $0xa8] sm:$0xff]
      %v622 = vld [vmem:[%s329 + $0xb0] sm:$0xff]
      %v623 = vld [vmem:[%s329 + $0xb8] sm:$0xff]
      %v624 = vld [vmem:[%s329 + $0xc0] sm:$0xff]
      %v625 = vld [vmem:[%s329 + $0xc8] sm:$0xff]
      %v626 = vld [vmem:[%s329 + $0xd0] sm:$0xff]
      %v627 = vld [vmem:[%s329 + $0xd8] sm:$0xff]
      %v628 = vld [vmem:[%s329 + $0xe0] sm:$0xff]
      %v629 = vld [vmem:[%s329 + $0xe8] sm:$0xff]
      %v630 = vld [vmem:[%s329 + $0xf0] sm:$0xff]
      %v631 = vld [vmem:[%s329 + $0xf8] sm:$0xff]
      %v632 = vld [vmem:[%s3] sm:$0xff]
      %v633 = vld [vmem:[%s3 + $0x8] sm:$0xff]
      %v634 = vld [vmem:[%s3 + $0x10] sm:$0xff]
      %v635 = vld [vmem:[%s3 + $0x18] sm:$0xff]
      %v636 = vld [vmem:[%s3 + $0x20] sm:$0xff]
      %v637 = vld [vmem:[%s3 + $0x28] sm:$0xff]
      %v638 = vld [vmem:[%s3 + $0x30] sm:$0xff]
      %v639 = vld [vmem:[%s3 + $0x38] sm:$0xff]
      %v640 = vld [vmem:[%s3 + $0x40] sm:$0xff]
      %v641 = vld [vmem:[%s3 + $0x48] sm:$0xff]
      %v642 = vld [vmem:[%s3 + $0x50] sm:$0xff]
      %v643 = vld [vmem:[%s3 + $0x58] sm:$0xff]
      %v644 = vld [vmem:[%s3 + $0x60] sm:$0xff]
      %v645 = vld [vmem:[%s3 + $0x68] sm:$0xff]
      %v646 = vld [vmem:[%s3 + $0x70] sm:$0xff]
      %v647 = vld [vmem:[%s3 + $0x78] sm:$0xff]
      %v648 = vld [vmem:[%s3 + $0x80] sm:$0xff]
      %v649 = vld [vmem:[%s3 + $0x88] sm:$0xff]
      %v650 = vld [vmem:[%s3 + $0x90] sm:$0xff]
      %v651 = vld [vmem:[%s3 + $0x98] sm:$0xff]
      %v652 = vld [vmem:[%s3 + $0xa0] sm:$0xff]
      %v653 = vld [vmem:[%s3 + $0xa8] sm:$0xff]
      %v654 = vld [vmem:[%s3 + $0xb0] sm:$0xff]
      %v655 = vld [vmem:[%s3 + $0xb8] sm:$0xff]
      %v656 = vld [vmem:[%s3 + $0xc0] sm:$0xff]
      %v657 = vld [vmem:[%s3 + $0xc8] sm:$0xff]
      %v658 = vld [vmem:[%s3 + $0xd0] sm:$0xff]
      %v659 = vld [vmem:[%s3 + $0xd8] sm:$0xff]
      %v660 = vld [vmem:[%s3 + $0xe0] sm:$0xff]
      %v661 = vld [vmem:[%s3 + $0xe8] sm:$0xff]
      %v662 = vld [vmem:[%s3 + $0xf0] sm:$0xff]
      %v663 = vld [vmem:[%s3 + $0xf8] sm:$0xff]
      %v664 = vld [vmem:[%s3 + $0x100] sm:$0xff]
      %v665 = vld [vmem:[%s3 + $0x108] sm:$0xff]
      %v666 = vld [vmem:[%s3 + $0x110] sm:$0xff]
      %v667 = vld [vmem:[%s3 + $0x118] sm:$0xff]
      %v668 = vld [vmem:[%s3 + $0x120] sm:$0xff]
      %v669 = vld [vmem:[%s3 + $0x128] sm:$0xff]
      %v670 = vld [vmem:[%s3 + $0x130] sm:$0xff]
      %v671 = vld [vmem:[%s3 + $0x138] sm:$0xff]
      %673 = vset.pattern.permute.xlu0 0
      %674 = vperm.xlu0 %673, %v632
      %v675 = vpop.permute.xlu0 %674
      %678 = vset.pattern.permute.xlu0 0
      %679 = vperm.xlu0 %678, %v633
      %v680 = vpop.permute.xlu0 %679
      %683 = vset.pattern.permute.xlu0 0
      %684 = vperm.xlu0 %683, %v634
      %v685 = vpop.permute.xlu0 %684
      %688 = vset.pattern.permute.xlu0 0
      %689 = vperm.xlu0 %688, %v635
      %v690 = vpop.permute.xlu0 %689
      %693 = vset.pattern.permute.xlu0 0
      %694 = vperm.xlu0 %693, %v636
      %v695 = vpop.permute.xlu0 %694
      %698 = vset.pattern.permute.xlu0 0
      %699 = vperm.xlu0 %698, %v637
      %v700 = vpop.permute.xlu0 %699
      %703 = vset.pattern.permute.xlu0 0
      %704 = vperm.xlu0 %703, %v638
      %v705 = vpop.permute.xlu0 %704
      %708 = vset.pattern.permute.xlu0 0
      %709 = vperm.xlu0 %708, %v639
      %v710 = vpop.permute.xlu0 %709
      %713 = vset.pattern.permute.xlu0 0
      %714 = vperm.xlu0 %713, %v640
      %v715 = vpop.permute.xlu0 %714
      %718 = vset.pattern.permute.xlu0 0
      %719 = vperm.xlu0 %718, %v641
      %v720 = vpop.permute.xlu0 %719
      %723 = vset.pattern.permute.xlu0 0
      %724 = vperm.xlu0 %723, %v642
      %v725 = vpop.permute.xlu0 %724
      %728 = vset.pattern.permute.xlu0 0
      %729 = vperm.xlu0 %728, %v643
      %v730 = vpop.permute.xlu0 %729
      %733 = vset.pattern.permute.xlu0 0
      %734 = vperm.xlu0 %733, %v644
      %v735 = vpop.permute.xlu0 %734
      %738 = vset.pattern.permute.xlu0 0
      %739 = vperm.xlu0 %738, %v645
      %v740 = vpop.permute.xlu0 %739
      %743 = vset.pattern.permute.xlu0 0
      %744 = vperm.xlu0 %743, %v646
      %v745 = vpop.permute.xlu0 %744
      %748 = vset.pattern.permute.xlu0 0
      %749 = vperm.xlu0 %748, %v647
      %v750 = vpop.permute.xlu0 %749
      %753 = vset.pattern.permute.xlu0 0
      %754 = vperm.xlu0 %753, %v648
      %v755 = vpop.permute.xlu0 %754
      %758 = vset.pattern.permute.xlu0 0
      %759 = vperm.xlu0 %758, %v649
      %v760 = vpop.permute.xlu0 %759
      %763 = vset.pattern.permute.xlu0 0
      %764 = vperm.xlu0 %763, %v650
      %v765 = vpop.permute.xlu0 %764
      %768 = vset.pattern.permute.xlu0 0
      %769 = vperm.xlu0 %768, %v651
      %v770 = vpop.permute.xlu0 %769
      %773 = vset.pattern.permute.xlu0 0
      %774 = vperm.xlu0 %773, %v652
      %v775 = vpop.permute.xlu0 %774
      %778 = vset.pattern.permute.xlu0 0
      %779 = vperm.xlu0 %778, %v653
      %v780 = vpop.permute.xlu0 %779
      %783 = vset.pattern.permute.xlu0 0
      %784 = vperm.xlu0 %783, %v654
      %v785 = vpop.permute.xlu0 %784
      %788 = vset.pattern.permute.xlu0 0
      %789 = vperm.xlu0 %788, %v655
      %v790 = vpop.permute.xlu0 %789
      %793 = vset.pattern.permute.xlu0 0
      %794 = vperm.xlu0 %793, %v656
      %v795 = vpop.permute.xlu0 %794
      %798 = vset.pattern.permute.xlu0 0
      %799 = vperm.xlu0 %798, %v657
      %v800 = vpop.permute.xlu0 %799
      %803 = vset.pattern.permute.xlu0 0
      %804 = vperm.xlu0 %803, %v658
      %v805 = vpop.permute.xlu0 %804
      %808 = vset.pattern.permute.xlu0 0
      %809 = vperm.xlu0 %808, %v659
      %v810 = vpop.permute.xlu0 %809
      %813 = vset.pattern.permute.xlu0 0
      %814 = vperm.xlu0 %813, %v660
      %v815 = vpop.permute.xlu0 %814
      %818 = vset.pattern.permute.xlu0 0
      %819 = vperm.xlu0 %818, %v661
      %v820 = vpop.permute.xlu0 %819
      %823 = vset.pattern.permute.xlu0 0
      %824 = vperm.xlu0 %823, %v662
      %v825 = vpop.permute.xlu0 %824
      %828 = vset.pattern.permute.xlu0 0
      %829 = vperm.xlu0 %828, %v663
      %v830 = vpop.permute.xlu0 %829
      %833 = vset.pattern.permute.xlu0 0
      %834 = vperm.xlu0 %833, %v664
      %v835 = vpop.permute.xlu0 %834
      %838 = vset.pattern.permute.xlu0 0
      %839 = vperm.xlu0 %838, %v665
      %v840 = vpop.permute.xlu0 %839
      %843 = vset.pattern.permute.xlu0 0
      %844 = vperm.xlu0 %843, %v666
      %v845 = vpop.permute.xlu0 %844
      %848 = vset.pattern.permute.xlu0 0
      %849 = vperm.xlu0 %848, %v667
      %v850 = vpop.permute.xlu0 %849
      %853 = vset.pattern.permute.xlu0 0
      %854 = vperm.xlu0 %853, %v668
      %v855 = vpop.permute.xlu0 %854
      %858 = vset.pattern.permute.xlu0 0
      %859 = vperm.xlu0 %858, %v669
      %v860 = vpop.permute.xlu0 %859
      %863 = vset.pattern.permute.xlu0 0
      %864 = vperm.xlu0 %863, %v670
      %v865 = vpop.permute.xlu0 %864
      %868 = vset.pattern.permute.xlu0 0
      %869 = vperm.xlu0 %868, %v671
      %v870 = vpop.permute.xlu0 %869
      %872 = vmatprep.subr.mxu0 %v601
      %873 = vmatpush1.msra.mxu0 %v600
      %874 = vmatprep.subr.mxu0 %v603
      %875 = vmatpush1.msra.mxu0 %v602
      %876 = vmatprep.subr.mxu0 %v605
      %877 = vmatpush1.msra.mxu0 %v604
      %878 = vmatprep.subr.mxu0 %v607
      %879 = vmatpush1.msra.mxu0 %v606
      %880 = vmatprep.subr.mxu0 %v609
      %881 = vmatpush1.msra.mxu0 %v608
      %882 = vmatprep.subr.mxu0 %v611
      %883 = vmatpush1.msra.mxu0 %v610
      %884 = vmatprep.subr.mxu0 %v613
      %885 = vmatpush1.msra.mxu0 %v612
      %886 = vmatprep.subr.mxu0 %v615
      %887 = vmatpush1.msra.mxu0 %v614
      %888 = vmatprep.subr.mxu0 %v617
      %889 = vmatpush1.msra.mxu0 %v616
      %890 = vmatprep.subr.mxu0 %v619
      %891 = vmatpush1.msra.mxu0 %v618
      %892 = vmatprep.subr.mxu0 %v621
      %893 = vmatpush1.msra.mxu0 %v620
      %894 = vmatprep.subr.mxu0 %v623
      %895 = vmatpush1.msra.mxu0 %v622
      %896 = vmatprep.subr.mxu0 %v625
      %897 = vmatpush1.msra.mxu0 %v624
      %898 = vmatprep.subr.mxu0 %v627
      %899 = vmatpush1.msra.mxu0 %v626
      %900 = vmatprep.subr.mxu0 %v629
      %901 = vmatpush1.msra.mxu0 %v628
      %902 = vmatprep.subr.mxu0 %v631
      %903 = vmatpush1.msra.mxu0 %v630
      %904 = vmatprep.subr.mxu0 0.0
      %905 = vmatpush1.msra.mxu0 0.0
      %906 = vmatprep.subr.mxu0 0.0
      %907 = vmatpush1.msra.mxu0 0.0
      %908 = vmatprep.subr.mxu0 0.0
      %909 = vmatpush1.msra.mxu0 0.0
      %910 = vmatprep.subr.mxu0 0.0
      %911 = vmatpush1.msra.mxu0 0.0
      %912 = vmatprep.subr.mxu0 0.0
      %913 = vmatpush1.msra.mxu0 0.0
      %914 = vmatprep.subr.mxu0 0.0
      %915 = vmatpush1.msra.mxu0 0.0
      %916 = vmatprep.subr.mxu0 0.0
      %917 = vmatpush1.msra.mxu0 0.0
      %918 = vmatprep.subr.mxu0 0.0
      %919 = vmatpush1.msra.mxu0 0.0
      %920 = vmatprep.subr.mxu0 0.0
      %921 = vmatpush1.msra.mxu0 0.0
      %922 = vmatprep.subr.mxu0 0.0
      %923 = vmatpush1.msra.mxu0 0.0
      %924 = vmatprep.subr.mxu0 0.0
      %925 = vmatpush1.msra.mxu0 0.0
      %926 = vmatprep.subr.mxu0 0.0
      %927 = vmatpush1.msra.mxu0 0.0
      %928 = vmatprep.subr.mxu0 0.0
      %929 = vmatpush1.msra.mxu0 0.0
      %930 = vmatprep.subr.mxu0 0.0
      %931 = vmatpush1.msra.mxu0 0.0
      %932 = vmatprep.subr.mxu0 0.0
      %933 = vmatpush1.msra.mxu0 0.0
      %934 = vmatprep.subr.mxu0 0.0
      %935 = vmatpush1.msra.mxu0 0.0
      %936 = vmatprep.mubr.f32.mxu0 0.0
      %937 = vmatmul.mubr.f32.gmra.mrb[0].mxu0 %v560
      %v938 = vpop.f32.mrb[0].mxu0
      %v939 = vadd.f32 %v675, %v938
      %v940 = vpop.f32.mrb[0].mxu0
      %v941 = vadd.f32 %v675, %v940
      %942 = vmatprep.mubr.f32.mxu0 0.0
      %943 = vmatmul.mubr.f32.gmra.mrb[0].mxu0 %v561
      %v944 = vpop.f32.mrb[0].mxu0
      %v945 = vadd.f32 %v680, %v944
      %v946 = vpop.f32.mrb[0].mxu0
      %v947 = vadd.f32 %v680, %v946
      %948 = vmatprep.mubr.f32.mxu0 0.0
      %949 = vmatmul.mubr.f32.gmra.mrb[0].mxu0 %v562
      %v950 = vpop.f32.mrb[0].mxu0
      %v951 = vadd.f32 %v685, %v950
      %v952 = vpop.f32.mrb[0].mxu0
      %v953 = vadd.f32 %v685, %v952
      %954 = vmatprep.mubr.f32.mxu0 0.0
      %955 = vmatmul.mubr.f32.gmra.mrb[0].mxu0 %v563
      %v956 = vpop.f32.mrb[0].mxu0
      %v957 = vadd.f32 %v690, %v956
      %v958 = vpop.f32.mrb[0].mxu0
      %v959 = vadd.f32 %v690, %v958
      %960 = vmatprep.mubr.f32.mxu0 0.0
      %961 = vmatmul.mubr.f32.gmra.mrb[0].mxu0 %v564
      %v962 = vpop.f32.mrb[0].mxu0
      %v963 = vadd.f32 %v695, %v962
      %v964 = vpop.f32.mrb[0].mxu0
      %v965 = vadd.f32 %v695, %v964
      %966 = vmatprep.mubr.f32.mxu0 0.0
      %967 = vmatmul.mubr.f32.gmra.mrb[0].mxu0 %v565
      %v968 = vpop.f32.mrb[0].mxu0
      %v969 = vadd.f32 %v700, %v968
      %v970 = vpop.f32.mrb[0].mxu0
      %v971 = vadd.f32 %v700, %v970
      %972 = vmatprep.mubr.f32.mxu0 0.0
      %973 = vmatmul.mubr.f32.gmra.mrb[0].mxu0 %v566
      %v974 = vpop.f32.mrb[0].mxu0
      %v975 = vadd.f32 %v705, %v974
      %v976 = vpop.f32.mrb[0].mxu0
      %v977 = vadd.f32 %v705, %v976
      %978 = vmatprep.mubr.f32.mxu0 0.0
      %979 = vmatmul.mubr.f32.gmra.mrb[0].mxu0 %v567
      %v980 = vpop.f32.mrb[0].mxu0
      %v981 = vadd.f32 %v710, %v980
      %v982 = vpop.f32.mrb[0].mxu0
      %v983 = vadd.f32 %v710, %v982
      %984 = vmatprep.mubr.f32.mxu0 0.0
      %985 = vmatmul.mubr.f32.gmra.mrb[0].mxu0 %v568
      %v986 = vpop.f32.mrb[0].mxu0
      %v987 = vadd.f32 %v715, %v986
      %v988 = vpop.f32.mrb[0].mxu0
      %v989 = vadd.f32 %v715, %v988
      %990 = vmatprep.mubr.f32.mxu0 0.0
      %991 = vmatmul.mubr.f32.gmra.mrb[0].mxu0 %v569
      %v992 = vpop.f32.mrb[0].mxu0
      %v993 = vadd.f32 %v720, %v992
      %v994 = vpop.f32.mrb[0].mxu0
      %v995 = vadd.f32 %v720, %v994
      %996 = vmatprep.mubr.f32.mxu0 0.0
      %997 = vmatmul.mubr.f32.gmra.mrb[0].mxu0 %v570
      %v998 = vpop.f32.mrb[0].mxu0
      %v999 = vadd.f32 %v725, %v998
      %v1000 = vpop.f32.mrb[0].mxu0
      %v1001 = vadd.f32 %v725, %v1000
      %1002 = vmatprep.mubr.f32.mxu0 0.0
      %1003 = vmatmul.mubr.f32.gmra.mrb[0].mxu0 %v571
      %v1004 = vpop.f32.mrb[0].mxu0
      %v1005 = vadd.f32 %v730, %v1004
      %v1006 = vpop.f32.mrb[0].mxu0
      %v1007 = vadd.f32 %v730, %v1006
      %1008 = vmatprep.mubr.f32.mxu0 0.0
      %1009 = vmatmul.mubr.f32.gmra.mrb[0].mxu0 %v572
      %v1010 = vpop.f32.mrb[0].mxu0
      %v1011 = vadd.f32 %v735, %v1010
      %v1012 = vpop.f32.mrb[0].mxu0
      %v1013 = vadd.f32 %v735, %v1012
      %1014 = vmatprep.mubr.f32.mxu0 0.0
      %1015 = vmatmul.mubr.f32.gmra.mrb[0].mxu0 %v573
      %v1016 = vpop.f32.mrb[0].mxu0
      %v1017 = vadd.f32 %v740, %v1016
      %v1018 = vpop.f32.mrb[0].mxu0
      %v1019 = vadd.f32 %v740, %v1018
      %1020 = vmatprep.mubr.f32.mxu0 0.0
      %1021 = vmatmul.mubr.f32.gmra.mrb[0].mxu0 %v574
      %v1022 = vpop.f32.mrb[0].mxu0
      %v1023 = vadd.f32 %v745, %v1022
      %v1024 = vpop.f32.mrb[0].mxu0
      %v1025 = vadd.f32 %v745, %v1024
      %1026 = vmatprep.mubr.f32.mxu0 0.0
      %1027 = vmatmul.mubr.f32.gmra.mrb[0].mxu0 %v575
      %v1028 = vpop.f32.mrb[0].mxu0
      %v1029 = vadd.f32 %v750, %v1028
      %v1030 = vpop.f32.mrb[0].mxu0
      %v1031 = vadd.f32 %v750, %v1030
      %1032 = vmatprep.mubr.f32.mxu0 0.0
      %1033 = vmatmul.mubr.f32.gmra.mrb[0].mxu0 %v576
      %v1034 = vpop.f32.mrb[0].mxu0
      %v1035 = vadd.f32 %v755, %v1034
      %v1036 = vpop.f32.mrb[0].mxu0
      %v1037 = vadd.f32 %v755, %v1036
      %1038 = vmatprep.mubr.f32.mxu0 0.0
      %1039 = vmatmul.mubr.f32.gmra.mrb[0].mxu0 %v577
      %v1040 = vpop.f32.mrb[0].mxu0
      %v1041 = vadd.f32 %v760, %v1040
      %v1042 = vpop.f32.mrb[0].mxu0
      %v1043 = vadd.f32 %v760, %v1042
      %1044 = vmatprep.mubr.f32.mxu0 0.0
      %1045 = vmatmul.mubr.f32.gmra.mrb[0].mxu0 %v578
      %v1046 = vpop.f32.mrb[0].mxu0
      %v1047 = vadd.f32 %v765, %v1046
      %v1048 = vpop.f32.mrb[0].mxu0
      %v1049 = vadd.f32 %v765, %v1048
      %1050 = vmatprep.mubr.f32.mxu0 0.0
      %1051 = vmatmul.mubr.f32.gmra.mrb[0].mxu0 %v579
      %v1052 = vpop.f32.mrb[0].mxu0
      %v1053 = vadd.f32 %v770, %v1052
      %v1054 = vpop.f32.mrb[0].mxu0
      %v1055 = vadd.f32 %v770, %v1054
      %1056 = vmatprep.mubr.f32.mxu0 0.0
      %1057 = vmatmul.mubr.f32.gmra.mrb[0].mxu0 %v580
      %v1058 = vpop.f32.mrb[0].mxu0
      %v1059 = vadd.f32 %v775, %v1058
      %v1060 = vpop.f32.mrb[0].mxu0
      %v1061 = vadd.f32 %v775, %v1060
      %1062 = vmatprep.mubr.f32.mxu0 0.0
      %1063 = vmatmul.mubr.f32.gmra.mrb[0].mxu0 %v581
      %v1064 = vpop.f32.mrb[0].mxu0
      %v1065 = vadd.f32 %v780, %v1064
      %v1066 = vpop.f32.mrb[0].mxu0
      %v1067 = vadd.f32 %v780, %v1066
      %1068 = vmatprep.mubr.f32.mxu0 0.0
      %1069 = vmatmul.mubr.f32.gmra.mrb[0].mxu0 %v582
      %v1070 = vpop.f32.mrb[0].mxu0
      %v1071 = vadd.f32 %v785, %v1070
      %v1072 = vpop.f32.mrb[0].mxu0
      %v1073 = vadd.f32 %v785, %v1072
      %1074 = vmatprep.mubr.f32.mxu0 0.0
      %1075 = vmatmul.mubr.f32.gmra.mrb[0].mxu0 %v583
      %v1076 = vpop.f32.mrb[0].mxu0
      %v1077 = vadd.f32 %v790, %v1076
      %v1078 = vpop.f32.mrb[0].mxu0
      %v1079 = vadd.f32 %v790, %v1078
      %1080 = vmatprep.mubr.f32.mxu0 0.0
      %1081 = vmatmul.mubr.f32.gmra.mrb[0].mxu0 %v584
      %v1082 = vpop.f32.mrb[0].mxu0
      %v1083 = vadd.f32 %v795, %v1082
      %v1084 = vpop.f32.mrb[0].mxu0
      %v1085 = vadd.f32 %v795, %v1084
      %1086 = vmatprep.mubr.f32.mxu0 0.0
      %1087 = vmatmul.mubr.f32.gmra.mrb[0].mxu0 %v585
      %v1088 = vpop.f32.mrb[0].mxu0
      %v1089 = vadd.f32 %v800, %v1088
      %v1090 = vpop.f32.mrb[0].mxu0
      %v1091 = vadd.f32 %v800, %v1090
      %1092 = vmatprep.mubr.f32.mxu0 0.0
      %1093 = vmatmul.mubr.f32.gmra.mrb[0].mxu0 %v586
      %v1094 = vpop.f32.mrb[0].mxu0
      %v1095 = vadd.f32 %v805, %v1094
      %v1096 = vpop.f32.mrb[0].mxu0
      %v1097 = vadd.f32 %v805, %v1096
      %1098 = vmatprep.mubr.f32.mxu0 0.0
      %1099 = vmatmul.mubr.f32.gmra.mrb[0].mxu0 %v587
      %v1100 = vpop.f32.mrb[0].mxu0
      %v1101 = vadd.f32 %v810, %v1100
      %v1102 = vpop.f32.mrb[0].mxu0
      %v1103 = vadd.f32 %v810, %v1102
      %1104 = vmatprep.mubr.f32.mxu0 0.0
      %1105 = vmatmul.mubr.f32.gmra.mrb[0].mxu0 %v588
      %v1106 = vpop.f32.mrb[0].mxu0
      %v1107 = vadd.f32 %v815, %v1106
      %v1108 = vpop.f32.mrb[0].mxu0
      %v1109 = vadd.f32 %v815, %v1108
      %1110 = vmatprep.mubr.f32.mxu0 0.0
      %1111 = vmatmul.mubr.f32.gmra.mrb[0].mxu0 %v589
      %v1112 = vpop.f32.mrb[0].mxu0
      %v1113 = vadd.f32 %v820, %v1112
      %v1114 = vpop.f32.mrb[0].mxu0
      %v1115 = vadd.f32 %v820, %v1114
      %1116 = vmatprep.mubr.f32.mxu0 0.0
      %1117 = vmatmul.mubr.f32.gmra.mrb[0].mxu0 %v590
      %v1118 = vpop.f32.mrb[0].mxu0
      %v1119 = vadd.f32 %v825, %v1118
      %v1120 = vpop.f32.mrb[0].mxu0
      %v1121 = vadd.f32 %v825, %v1120
      %1122 = vmatprep.mubr.f32.mxu0 0.0
      %1123 = vmatmul.mubr.f32.gmra.mrb[0].mxu0 %v591
      %v1124 = vpop.f32.mrb[0].mxu0
      %v1125 = vadd.f32 %v830, %v1124
      %v1126 = vpop.f32.mrb[0].mxu0
      %v1127 = vadd.f32 %v830, %v1126
      %1128 = vmatprep.mubr.f32.mxu0 0.0
      %1129 = vmatmul.mubr.f32.gmra.mrb[0].mxu0 %v592
      %v1130 = vpop.f32.mrb[0].mxu0
      %v1131 = vadd.f32 %v835, %v1130
      %v1132 = vpop.f32.mrb[0].mxu0
      %v1133 = vadd.f32 %v835, %v1132
      %1134 = vmatprep.mubr.f32.mxu0 0.0
      %1135 = vmatmul.mubr.f32.gmra.mrb[0].mxu0 %v593
      %v1136 = vpop.f32.mrb[0].mxu0
      %v1137 = vadd.f32 %v840, %v1136
      %v1138 = vpop.f32.mrb[0].mxu0
      %v1139 = vadd.f32 %v840, %v1138
      %1140 = vmatprep.mubr.f32.mxu0 0.0
      %1141 = vmatmul.mubr.f32.gmra.mrb[0].mxu0 %v594
      %v1142 = vpop.f32.mrb[0].mxu0
      %v1143 = vadd.f32 %v845, %v1142
      %v1144 = vpop.f32.mrb[0].mxu0
      %v1145 = vadd.f32 %v845, %v1144
      %1146 = vmatprep.mubr.f32.mxu0 0.0
      %1147 = vmatmul.mubr.f32.gmra.mrb[0].mxu0 %v595
      %v1148 = vpop.f32.mrb[0].mxu0
      %v1149 = vadd.f32 %v850, %v1148
      %v1150 = vpop.f32.mrb[0].mxu0
      %v1151 = vadd.f32 %v850, %v1150
      %1152 = vmatprep.mubr.f32.mxu0 0.0
      %1153 = vmatmul.mubr.f32.gmra.mrb[0].mxu0 %v596
      %v1154 = vpop.f32.mrb[0].mxu0
      %v1155 = vadd.f32 %v855, %v1154
      %v1156 = vpop.f32.mrb[0].mxu0
      %v1157 = vadd.f32 %v855, %v1156
      %1158 = vmatprep.mubr.f32.mxu0 0.0
      %1159 = vmatmul.mubr.f32.gmra.mrb[0].mxu0 %v597
      %v1160 = vpop.f32.mrb[0].mxu0
      %v1161 = vadd.f32 %v860, %v1160
      %v1162 = vpop.f32.mrb[0].mxu0
      %v1163 = vadd.f32 %v860, %v1162
      %1164 = vmatprep.mubr.f32.mxu0 0.0
      %1165 = vmatmul.mubr.f32.gmra.mrb[0].mxu0 %v598
      %v1166 = vpop.f32.mrb[0].mxu0
      %v1167 = vadd.f32 %v865, %v1166
      %v1168 = vpop.f32.mrb[0].mxu0
      %v1169 = vadd.f32 %v865, %v1168
      %1170 = vmatprep.mubr.f32.mxu0 0.0
      %1171 = vmatmul.mubr.f32.gmra.mrb[0].mxu0 %v599
      %v1172 = vpop.f32.mrb[0].mxu0
      %v1173 = vadd.f32 %v870, %v1172
      %v1174 = vpop.f32.mrb[0].mxu0
      %v1175 = vadd.f32 %v870, %v1174
      %1176 = vdwg.mxu0
      %v1177 = vld [vmem:[%s4] sm:$0xff]
      %v1178 = vld [vmem:[%s4 + $0x8] sm:$0xff]
      %v1179 = vld [vmem:[%s4 + $0x10] sm:$0xff]
      %v1180 = vld [vmem:[%s4 + $0x18] sm:$0xff]
      %v1181 = vld [vmem:[%s4 + $0x20] sm:$0xff]
      %v1182 = vld [vmem:[%s4 + $0x28] sm:$0xff]
      %v1183 = vld [vmem:[%s4 + $0x30] sm:$0xff]
      %v1184 = vld [vmem:[%s4 + $0x38] sm:$0xff]
      %v1185 = vld [vmem:[%s4 + $0x40] sm:$0xff]
      %v1186 = vld [vmem:[%s4 + $0x48] sm:$0xff]
      %v1187 = vld [vmem:[%s4 + $0x50] sm:$0xff]
      %v1188 = vld [vmem:[%s4 + $0x58] sm:$0xff]
      %v1189 = vld [vmem:[%s4 + $0x60] sm:$0xff]
      %v1190 = vld [vmem:[%s4 + $0x68] sm:$0xff]
      %v1191 = vld [vmem:[%s4 + $0x70] sm:$0xff]
      %v1192 = vld [vmem:[%s4 + $0x78] sm:$0xff]
      %v1193 = vld [vmem:[%s4 + $0x80] sm:$0xff]
      %v1194 = vld [vmem:[%s4 + $0x88] sm:$0xff]
      %v1195 = vld [vmem:[%s4 + $0x90] sm:$0xff]
      %v1196 = vld [vmem:[%s4 + $0x98] sm:$0xff]
      %v1197 = vld [vmem:[%s4 + $0xa0] sm:$0xff]
      %v1198 = vld [vmem:[%s4 + $0xa8] sm:$0xff]
      %v1199 = vld [vmem:[%s4 + $0xb0] sm:$0xff]
      %v1200 = vld [vmem:[%s4 + $0xb8] sm:$0xff]
      %vm1201 = vcmask 523264
      %v1203 = vsel %vm1201, %v1177, 0
      %v1206 = vsel %vm1201, %v1178, 0
      %v1209 = vsel %vm1201, %v1179, 0
      %v1212 = vsel %vm1201, %v1180, 0
      %v1215 = vsel %vm1201, %v1181, 0
      %v1218 = vsel %vm1201, %v1182, 0
      %v1221 = vsel %vm1201, %v1183, 0
      %v1224 = vsel %vm1201, %v1184, 0
      %v1227 = vsel %vm1201, %v1185, 0
      %v1230 = vsel %vm1201, %v1186, 0
      %v1233 = vsel %vm1201, %v1187, 0
      %v1236 = vsel %vm1201, %v1188, 0
      %v1239 = vsel %vm1201, %v1189, 0
      %v1242 = vsel %vm1201, %v1190, 0
      %v1245 = vsel %vm1201, %v1191, 0
      %v1248 = vsel %vm1201, %v1192, 0
      %v1251 = vsel %vm1201, %v1193, 0
      %v1254 = vsel %vm1201, %v1194, 0
      %v1257 = vsel %vm1201, %v1195, 0
      %v1260 = vsel %vm1201, %v1196, 0
      %v1263 = vsel %vm1201, %v1197, 0
      %v1266 = vsel %vm1201, %v1198, 0
      %v1269 = vsel %vm1201, %v1199, 0
      %v1272 = vsel %vm1201, %v1200, 0
      %1274 = vmatprep.subr.mxu0 %v481
      %1275 = vmatpush1.msra.mxu0 %v480
      %1276 = vmatprep.subr.mxu0 %v483
      %1277 = vmatpush1.msra.mxu0 %v482
      %1278 = vmatprep.subr.mxu0 %v485
      %1279 = vmatpush1.msra.mxu0 %v484
      %1280 = vmatprep.subr.mxu0 %v487
      %1281 = vmatpush1.msra.mxu0 %v486
      %1282 = vmatprep.subr.mxu0 %v489
      %1283 = vmatpush1.msra.mxu0 %v488
      %1284 = vmatprep.subr.mxu0 %v491
      %1285 = vmatpush1.msra.mxu0 %v490
      %1286 = vmatprep.subr.mxu0 %v493
      %1287 = vmatpush1.msra.mxu0 %v492
      %1288 = vmatprep.subr.mxu0 %v495
      %1289 = vmatpush1.msra.mxu0 %v494
      %1290 = vmatprep.subr.mxu0 0.0
      %1291 = vmatpush1.msra.mxu0 0.0
      %1292 = vmatprep.subr.mxu0 0.0
      %1293 = vmatpush1.msra.mxu0 0.0
      %1294 = vmatprep.subr.mxu0 0.0
      %1295 = vmatpush1.msra.mxu0 0.0
      %1296 = vmatprep.subr.mxu0 0.0
      %1297 = vmatpush1.msra.mxu0 0.0
      %1298 = vmatprep.subr.mxu0 0.0
      %1299 = vmatpush1.msra.mxu0 0.0
      %1300 = vmatprep.subr.mxu0 0.0
      %1301 = vmatpush1.msra.mxu0 0.0
      %1302 = vmatprep.subr.mxu0 0.0
      %1303 = vmatpush1.msra.mxu0 0.0
      %1304 = vmatprep.subr.mxu0 0.0
      %1305 = vmatpush1.msra.mxu0 0.0
      %1306 = vmatprep.subr.mxu0 0.0
      %1307 = vmatpush1.msra.mxu0 0.0
      %1308 = vmatprep.subr.mxu0 0.0
      %1309 = vmatpush1.msra.mxu0 0.0
      %1310 = vmatprep.subr.mxu0 0.0
      %1311 = vmatpush1.msra.mxu0 0.0
      %1312 = vmatprep.subr.mxu0 0.0
      %1313 = vmatpush1.msra.mxu0 0.0
      %1314 = vmatprep.subr.mxu0 0.0
      %1315 = vmatpush1.msra.mxu0 0.0
      %1316 = vmatprep.subr.mxu0 0.0
      %1317 = vmatpush1.msra.mxu0 0.0
      %1318 = vmatprep.subr.mxu0 0.0
      %1319 = vmatpush1.msra.mxu0 0.0
      %1320 = vmatprep.subr.mxu0 0.0
      %1321 = vmatpush1.msra.mxu0 0.0
      %1322 = vmatprep.subr.mxu0 0.0
      %1323 = vmatpush1.msra.mxu0 0.0
      %1324 = vmatprep.subr.mxu0 0.0
      %1325 = vmatpush1.msra.mxu0 0.0
      %1326 = vmatprep.subr.mxu0 0.0
      %1327 = vmatpush1.msra.mxu0 0.0
      %1328 = vmatprep.subr.mxu0 0.0
      %1329 = vmatpush1.msra.mxu0 0.0
      %1330 = vmatprep.subr.mxu0 0.0
      %1331 = vmatpush1.msra.mxu0 0.0
      %1332 = vmatprep.subr.mxu0 0.0
      %1333 = vmatpush1.msra.mxu0 0.0
      %1334 = vmatprep.subr.mxu0 0.0
      %1335 = vmatpush1.msra.mxu0 0.0
      %1336 = vmatprep.subr.mxu0 0.0
      %1337 = vmatpush1.msra.mxu0 0.0
      %1338 = vmatprep.mubr.f32.mxu0 0.0
      %1339 = vmatmul.mubr.f32.gmra.mrb[0].mxu0 %v1203
      %v1340 = vpop.f32.mrb[0].mxu0
      %v1341 = vadd.f32 0.0, %v1340
      %v1342 = vpop.f32.mrb[0].mxu0
      %v1343 = vadd.f32 0.0, %v1342
      %1344 = vmatprep.mubr.f32.mxu0 0.0
      %1345 = vmatmul.mubr.f32.gmra.mrb[0].mxu0 %v1206
      %v1346 = vpop.f32.mrb[0].mxu0
      %v1347 = vadd.f32 0.0, %v1346
      %v1348 = vpop.f32.mrb[0].mxu0
      %v1349 = vadd.f32 0.0, %v1348
      %1350 = vmatprep.mubr.f32.mxu0 0.0
      %1351 = vmatmul.mubr.f32.gmra.mrb[0].mxu0 %v1209
      %v1352 = vpop.f32.mrb[0].mxu0
      %v1353 = vadd.f32 0.0, %v1352
      %v1354 = vpop.f32.mrb[0].mxu0
      %v1355 = vadd.f32 0.0, %v1354
      %1356 = vmatprep.mubr.f32.mxu0 0.0
      %1357 = vmatmul.mubr.f32.gmra.mrb[0].mxu0 %v1212
      %v1358 = vpop.f32.mrb[0].mxu0
      %v1359 = vadd.f32 0.0, %v1358
      %v1360 = vpop.f32.mrb[0].mxu0
      %v1361 = vadd.f32 0.0, %v1360
      %1362 = vmatprep.mubr.f32.mxu0 0.0
      %1363 = vmatmul.mubr.f32.gmra.mrb[0].mxu0 %v1215
      %v1364 = vpop.f32.mrb[0].mxu0
      %v1365 = vadd.f32 0.0, %v1364
      %v1366 = vpop.f32.mrb[0].mxu0
      %v1367 = vadd.f32 0.0, %v1366
      %1368 = vmatprep.mubr.f32.mxu0 0.0
      %1369 = vmatmul.mubr.f32.gmra.mrb[0].mxu0 %v1218
      %v1370 = vpop.f32.mrb[0].mxu0
      %v1371 = vadd.f32 0.0, %v1370
      %v1372 = vpop.f32.mrb[0].mxu0
      %v1373 = vadd.f32 0.0, %v1372
      %1374 = vmatprep.mubr.f32.mxu0 0.0
      %1375 = vmatmul.mubr.f32.gmra.mrb[0].mxu0 %v1221
      %v1376 = vpop.f32.mrb[0].mxu0
      %v1377 = vadd.f32 0.0, %v1376
      %v1378 = vpop.f32.mrb[0].mxu0
      %v1379 = vadd.f32 0.0, %v1378
      %1380 = vmatprep.mubr.f32.mxu0 0.0
      %1381 = vmatmul.mubr.f32.gmra.mrb[0].mxu0 %v1224
      %v1382 = vpop.f32.mrb[0].mxu0
      %v1383 = vadd.f32 0.0, %v1382
      %v1384 = vpop.f32.mrb[0].mxu0
      %v1385 = vadd.f32 0.0, %v1384
      %1386 = vmatprep.mubr.f32.mxu0 0.0
      %1387 = vmatmul.mubr.f32.gmra.mrb[0].mxu0 %v1227
      %v1388 = vpop.f32.mrb[0].mxu0
      %v1389 = vadd.f32 0.0, %v1388
      %v1390 = vpop.f32.mrb[0].mxu0
      %v1391 = vadd.f32 0.0, %v1390
      %1392 = vmatprep.mubr.f32.mxu0 0.0
      %1393 = vmatmul.mubr.f32.gmra.mrb[0].mxu0 %v1230
      %v1394 = vpop.f32.mrb[0].mxu0
      %v1395 = vadd.f32 0.0, %v1394
      %v1396 = vpop.f32.mrb[0].mxu0
      %v1397 = vadd.f32 0.0, %v1396
      %1398 = vmatprep.mubr.f32.mxu0 0.0
      %1399 = vmatmul.mubr.f32.gmra.mrb[0].mxu0 %v1233
      %v1400 = vpop.f32.mrb[0].mxu0
      %v1401 = vadd.f32 0.0, %v1400
      %v1402 = vpop.f32.mrb[0].mxu0
      %v1403 = vadd.f32 0.0, %v1402
      %1404 = vmatprep.mubr.f32.mxu0 0.0
      %1405 = vmatmul.mubr.f32.gmra.mrb[0].mxu0 %v1236
      %v1406 = vpop.f32.mrb[0].mxu0
      %v1407 = vadd.f32 0.0, %v1406
      %v1408 = vpop.f32.mrb[0].mxu0
      %v1409 = vadd.f32 0.0, %v1408
      %1410 = vmatprep.mubr.f32.mxu0 0.0
      %1411 = vmatmul.mubr.f32.gmra.mrb[0].mxu0 %v1239
      %v1412 = vpop.f32.mrb[0].mxu0
      %v1413 = vadd.f32 0.0, %v1412
      %v1414 = vpop.f32.mrb[0].mxu0
      %v1415 = vadd.f32 0.0, %v1414
      %1416 = vmatprep.mubr.f32.mxu0 0.0
      %1417 = vmatmul.mubr.f32.gmra.mrb[0].mxu0 %v1242
      %v1418 = vpop.f32.mrb[0].mxu0
      %v1419 = vadd.f32 0.0, %v1418
      %v1420 = vpop.f32.mrb[0].mxu0
      %v1421 = vadd.f32 0.0, %v1420
      %1422 = vmatprep.mubr.f32.mxu0 0.0
      %1423 = vmatmul.mubr.f32.gmra.mrb[0].mxu0 %v1245
      %v1424 = vpop.f32.mrb[0].mxu0
      %v1425 = vadd.f32 0.0, %v1424
      %v1426 = vpop.f32.mrb[0].mxu0
      %v1427 = vadd.f32 0.0, %v1426
      %1428 = vmatprep.mubr.f32.mxu0 0.0
      %1429 = vmatmul.mubr.f32.gmra.mrb[0].mxu0 %v1248
      %v1430 = vpop.f32.mrb[0].mxu0
      %v1431 = vadd.f32 0.0, %v1430
      %v1432 = vpop.f32.mrb[0].mxu0
      %v1433 = vadd.f32 0.0, %v1432
      %1434 = vmatprep.mubr.f32.mxu0 0.0
      %1435 = vmatmul.mubr.f32.gmra.mrb[0].mxu0 %v1251
      %v1436 = vpop.f32.mrb[0].mxu0
      %v1437 = vadd.f32 0.0, %v1436
      %v1438 = vpop.f32.mrb[0].mxu0
      %v1439 = vadd.f32 0.0, %v1438
      %1440 = vmatprep.mubr.f32.mxu0 0.0
      %1441 = vmatmul.mubr.f32.gmra.mrb[0].mxu0 %v1254
      %v1442 = vpop.f32.mrb[0].mxu0
      %v1443 = vadd.f32 0.0, %v1442
      %v1444 = vpop.f32.mrb[0].mxu0
      %v1445 = vadd.f32 0.0, %v1444
      %1446 = vmatprep.mubr.f32.mxu0 0.0
      %1447 = vmatmul.mubr.f32.gmra.mrb[0].mxu0 %v1257
      %v1448 = vpop.f32.mrb[0].mxu0
      %v1449 = vadd.f32 0.0, %v1448
      %v1450 = vpop.f32.mrb[0].mxu0
      %v1451 = vadd.f32 0.0, %v1450
      %1452 = vmatprep.mubr.f32.mxu0 0.0
      %1453 = vmatmul.mubr.f32.gmra.mrb[0].mxu0 %v1260
      %v1454 = vpop.f32.mrb[0].mxu0
      %v1455 = vadd.f32 0.0, %v1454
      %v1456 = vpop.f32.mrb[0].mxu0
      %v1457 = vadd.f32 0.0, %v1456
      %1458 = vmatprep.mubr.f32.mxu0 0.0
      %1459 = vmatmul.mubr.f32.gmra.mrb[0].mxu0 %v1263
      %v1460 = vpop.f32.mrb[0].mxu0
      %v1461 = vadd.f32 0.0, %v1460
      %v1462 = vpop.f32.mrb[0].mxu0
      %v1463 = vadd.f32 0.0, %v1462
      %1464 = vmatprep.mubr.f32.mxu0 0.0
      %1465 = vmatmul.mubr.f32.gmra.mrb[0].mxu0 %v1266
      %v1466 = vpop.f32.mrb[0].mxu0
      %v1467 = vadd.f32 0.0, %v1466
      %v1468 = vpop.f32.mrb[0].mxu0
      %v1469 = vadd.f32 0.0, %v1468
      %1470 = vmatprep.mubr.f32.mxu0 0.0
      %1471 = vmatmul.mubr.f32.gmra.mrb[0].mxu0 %v1269
      %v1472 = vpop.f32.mrb[0].mxu0
      %v1473 = vadd.f32 0.0, %v1472
      %v1474 = vpop.f32.mrb[0].mxu0
      %v1475 = vadd.f32 0.0, %v1474
      %1476 = vmatprep.mubr.f32.mxu0 0.0
      %1477 = vmatmul.mubr.f32.gmra.mrb[0].mxu0 %v1272
      %v1478 = vpop.f32.mrb[0].mxu0
      %v1479 = vadd.f32 0.0, %v1478
      %v1480 = vpop.f32.mrb[0].mxu0
      %v1481 = vadd.f32 0.0, %v1480
      %1482 = vdwg.mxu0
      %v1483 = vmul.f32 %v939, 0.5
      %v1484 = vmul.f32 %v941, 0.5
      %v1485 = vmul.f32 %v945, 0.5
      %v1486 = vmul.f32 %v947, 0.5
      %v1487 = vmul.f32 %v951, 0.5
      %v1488 = vmul.f32 %v953, 0.5
      %v1489 = vmul.f32 %v957, 0.5
      %v1490 = vmul.f32 %v959, 0.5
      %v1491 = vmul.f32 %v963, 0.5
      %v1492 = vmul.f32 %v965, 0.5
      %v1493 = vmul.f32 %v969, 0.5
      %v1494 = vmul.f32 %v971, 0.5
      %v1495 = vmul.f32 %v975, 0.5
      %v1496 = vmul.f32 %v977, 0.5
      %v1497 = vmul.f32 %v981, 0.5
      %v1498 = vmul.f32 %v983, 0.5
      %v1499 = vtanh.pop %v1483
      %v1500 = vtanh.pop %v1484
      %v1501 = vtanh.pop %v1485
      %v1502 = vtanh.pop %v1486
      %v1503 = vtanh.pop %v1487
      %v1504 = vtanh.pop %v1488
      %v1505 = vtanh.pop %v1489
      %v1506 = vtanh.pop %v1490
      %v1507 = vtanh.pop %v1491
      %v1508 = vtanh.pop %v1492
      %v1509 = vtanh.pop %v1493
      %v1510 = vtanh.pop %v1494
      %v1511 = vtanh.pop %v1495
      %v1512 = vtanh.pop %v1496
      %v1513 = vtanh.pop %v1497
      %v1514 = vtanh.pop %v1498
      %v1515 = vadd.f32 %v1499, 1.0
      %v1516 = vadd.f32 %v1500, 1.0
      %v1517 = vadd.f32 %v1501, 1.0
      %v1518 = vadd.f32 %v1502, 1.0
      %v1519 = vadd.f32 %v1503, 1.0
      %v1520 = vadd.f32 %v1504, 1.0
      %v1521 = vadd.f32 %v1505, 1.0
      %v1522 = vadd.f32 %v1506, 1.0
      %v1523 = vadd.f32 %v1507, 1.0
      %v1524 = vadd.f32 %v1508, 1.0
      %v1525 = vadd.f32 %v1509, 1.0
      %v1526 = vadd.f32 %v1510, 1.0
      %v1527 = vadd.f32 %v1511, 1.0
      %v1528 = vadd.f32 %v1512, 1.0
      %v1529 = vadd.f32 %v1513, 1.0
      %v1530 = vadd.f32 %v1514, 1.0
      %v1531 = vmul.f32 %v1515, 0.5
      %v1532 = vmul.f32 %v1516, 0.5
      %v1533 = vmul.f32 %v1517, 0.5
      %v1534 = vmul.f32 %v1518, 0.5
      %v1535 = vmul.f32 %v1519, 0.5
      %v1536 = vmul.f32 %v1520, 0.5
      %v1537 = vmul.f32 %v1521, 0.5
      %v1538 = vmul.f32 %v1522, 0.5
      %v1539 = vmul.f32 %v1523, 0.5
      %v1540 = vmul.f32 %v1524, 0.5
      %v1541 = vmul.f32 %v1525, 0.5
      %v1542 = vmul.f32 %v1526, 0.5
      %v1543 = vmul.f32 %v1527, 0.5
      %v1544 = vmul.f32 %v1528, 0.5
      %v1545 = vmul.f32 %v1529, 0.5
      %v1546 = vmul.f32 %v1530, 0.5
      %v1547 = vmul.f32 %v1341, %v1531
      %v1548 = vmul.f32 %v1343, %v1532
      %v1549 = vmul.f32 %v1347, %v1533
      %v1550 = vmul.f32 %v1349, %v1534
      %v1551 = vmul.f32 %v1353, %v1535
      %v1552 = vmul.f32 %v1355, %v1536
      %v1553 = vmul.f32 %v1359, %v1537
      %v1554 = vmul.f32 %v1361, %v1538
      %v1555 = vmul.f32 %v1365, %v1539
      %v1556 = vmul.f32 %v1367, %v1540
      %v1557 = vmul.f32 %v1371, %v1541
      %v1558 = vmul.f32 %v1373, %v1542
      %v1559 = vmul.f32 %v1377, %v1543
      %v1560 = vmul.f32 %v1379, %v1544
      %v1561 = vmul.f32 %v1383, %v1545
      %v1562 = vmul.f32 %v1385, %v1546
      %v1563 = vadd.f32 %v1547, 0.0
      %v1564 = vadd.f32 %v1548, 0.0
      %v1565 = vadd.f32 %v1549, 0.0
      %v1566 = vadd.f32 %v1550, 0.0
      %v1567 = vadd.f32 %v1551, 0.0
      %v1568 = vadd.f32 %v1552, 0.0
      %v1569 = vadd.f32 %v1553, 0.0
      %v1570 = vadd.f32 %v1554, 0.0
      %v1571 = vadd.f32 %v1555, 0.0
      %v1572 = vadd.f32 %v1556, 0.0
      %v1573 = vadd.f32 %v1557, 0.0
      %v1574 = vadd.f32 %v1558, 0.0
      %v1575 = vadd.f32 %v1559, 0.0
      %v1576 = vadd.f32 %v1560, 0.0
      %v1577 = vadd.f32 %v1561, 0.0
      %v1578 = vadd.f32 %v1562, 0.0
      %v1579 = vmul.f32 %v987, 0.5
      %v1580 = vmul.f32 %v989, 0.5
      %v1581 = vmul.f32 %v993, 0.5
      %v1582 = vmul.f32 %v995, 0.5
      %v1583 = vmul.f32 %v999, 0.5
      %v1584 = vmul.f32 %v1001, 0.5
      %v1585 = vmul.f32 %v1005, 0.5
      %v1586 = vmul.f32 %v1007, 0.5
      %v1587 = vmul.f32 %v1011, 0.5
      %v1588 = vmul.f32 %v1013, 0.5
      %v1589 = vmul.f32 %v1017, 0.5
      %v1590 = vmul.f32 %v1019, 0.5
      %v1591 = vmul.f32 %v1023, 0.5
      %v1592 = vmul.f32 %v1025, 0.5
      %v1593 = vmul.f32 %v1029, 0.5
      %v1594 = vmul.f32 %v1031, 0.5
      %v1595 = vtanh.pop %v1579
      %v1596 = vtanh.pop %v1580
      %v1597 = vtanh.pop %v1581
      %v1598 = vtanh.pop %v1582
      %v1599 = vtanh.pop %v1583
      %v1600 = vtanh.pop %v1584
      %v1601 = vtanh.pop %v1585
      %v1602 = vtanh.pop %v1586
      %v1603 = vtanh.pop %v1587
      %v1604 = vtanh.pop %v1588
      %v1605 = vtanh.pop %v1589
      %v1606 = vtanh.pop %v1590
      %v1607 = vtanh.pop %v1591
      %v1608 = vtanh.pop %v1592
      %v1609 = vtanh.pop %v1593
      %v1610 = vtanh.pop %v1594
      %v1611 = vadd.f32 %v1595, 1.0
      %v1612 = vadd.f32 %v1596, 1.0
      %v1613 = vadd.f32 %v1597, 1.0
      %v1614 = vadd.f32 %v1598, 1.0
      %v1615 = vadd.f32 %v1599, 1.0
      %v1616 = vadd.f32 %v1600, 1.0
      %v1617 = vadd.f32 %v1601, 1.0
      %v1618 = vadd.f32 %v1602, 1.0
      %v1619 = vadd.f32 %v1603, 1.0
      %v1620 = vadd.f32 %v1604, 1.0
      %v1621 = vadd.f32 %v1605, 1.0
      %v1622 = vadd.f32 %v1606, 1.0
      %v1623 = vadd.f32 %v1607, 1.0
      %v1624 = vadd.f32 %v1608, 1.0
      %v1625 = vadd.f32 %v1609, 1.0
      %v1626 = vadd.f32 %v1610, 1.0
      %v1627 = vmul.f32 %v1611, 0.5
      %v1628 = vmul.f32 %v1612, 0.5
      %v1629 = vmul.f32 %v1613, 0.5
      %v1630 = vmul.f32 %v1614, 0.5
      %v1631 = vmul.f32 %v1615, 0.5
      %v1632 = vmul.f32 %v1616, 0.5
      %v1633 = vmul.f32 %v1617, 0.5
      %v1634 = vmul.f32 %v1618, 0.5
      %v1635 = vmul.f32 %v1619, 0.5
      %v1636 = vmul.f32 %v1620, 0.5
      %v1637 = vmul.f32 %v1621, 0.5
      %v1638 = vmul.f32 %v1622, 0.5
      %v1639 = vmul.f32 %v1623, 0.5
      %v1640 = vmul.f32 %v1624, 0.5
      %v1641 = vmul.f32 %v1625, 0.5
      %v1642 = vmul.f32 %v1626, 0.5
      %v1643 = vmul.f32 %v1389, %v1627
      %v1644 = vmul.f32 %v1391, %v1628
      %v1645 = vmul.f32 %v1395, %v1629
      %v1646 = vmul.f32 %v1397, %v1630
      %v1647 = vmul.f32 %v1401, %v1631
      %v1648 = vmul.f32 %v1403, %v1632
      %v1649 = vmul.f32 %v1407, %v1633
      %v1650 = vmul.f32 %v1409, %v1634
      %v1651 = vmul.f32 %v1413, %v1635
      %v1652 = vmul.f32 %v1415, %v1636
      %v1653 = vmul.f32 %v1419, %v1637
      %v1654 = vmul.f32 %v1421, %v1638
      %v1655 = vmul.f32 %v1425, %v1639
      %v1656 = vmul.f32 %v1427, %v1640
      %v1657 = vmul.f32 %v1431, %v1641
      %v1658 = vmul.f32 %v1433, %v1642
      %v1659 = vadd.f32 %v1563, %v1643
      %v1660 = vadd.f32 %v1564, %v1644
      %v1661 = vadd.f32 %v1565, %v1645
      %v1662 = vadd.f32 %v1566, %v1646
      %v1663 = vadd.f32 %v1567, %v1647
      %v1664 = vadd.f32 %v1568, %v1648
      %v1665 = vadd.f32 %v1569, %v1649
      %v1666 = vadd.f32 %v1570, %v1650
      %v1667 = vadd.f32 %v1571, %v1651
      %v1668 = vadd.f32 %v1572, %v1652
      %v1669 = vadd.f32 %v1573, %v1653
      %v1670 = vadd.f32 %v1574, %v1654
      %v1671 = vadd.f32 %v1575, %v1655
      %v1672 = vadd.f32 %v1576, %v1656
      %v1673 = vadd.f32 %v1577, %v1657
      %v1674 = vadd.f32 %v1578, %v1658
      %v1675 = vmul.f32 %v1035, 0.5
      %v1676 = vmul.f32 %v1037, 0.5
      %v1677 = vmul.f32 %v1041, 0.5
      %v1678 = vmul.f32 %v1043, 0.5
      %v1679 = vmul.f32 %v1047, 0.5
      %v1680 = vmul.f32 %v1049, 0.5
      %v1681 = vmul.f32 %v1053, 0.5
      %v1682 = vmul.f32 %v1055, 0.5
      %v1683 = vmul.f32 %v1059, 0.5
      %v1684 = vmul.f32 %v1061, 0.5
      %v1685 = vmul.f32 %v1065, 0.5
      %v1686 = vmul.f32 %v1067, 0.5
      %v1687 = vmul.f32 %v1071, 0.5
      %v1688 = vmul.f32 %v1073, 0.5
      %v1689 = vmul.f32 %v1077, 0.5
      %v1690 = vmul.f32 %v1079, 0.5
      %v1691 = vtanh.pop %v1675
      %v1692 = vtanh.pop %v1676
      %v1693 = vtanh.pop %v1677
      %v1694 = vtanh.pop %v1678
      %v1695 = vtanh.pop %v1679
      %v1696 = vtanh.pop %v1680
      %v1697 = vtanh.pop %v1681
      %v1698 = vtanh.pop %v1682
      %v1699 = vtanh.pop %v1683
      %v1700 = vtanh.pop %v1684
      %v1701 = vtanh.pop %v1685
      %v1702 = vtanh.pop %v1686
      %v1703 = vtanh.pop %v1687
      %v1704 = vtanh.pop %v1688
      %v1705 = vtanh.pop %v1689
      %v1706 = vtanh.pop %v1690
      %v1707 = vadd.f32 %v1691, 1.0
      %v1708 = vadd.f32 %v1692, 1.0
      %v1709 = vadd.f32 %v1693, 1.0
      %v1710 = vadd.f32 %v1694, 1.0
      %v1711 = vadd.f32 %v1695, 1.0
      %v1712 = vadd.f32 %v1696, 1.0
      %v1713 = vadd.f32 %v1697, 1.0
      %v1714 = vadd.f32 %v1698, 1.0
      %v1715 = vadd.f32 %v1699, 1.0
      %v1716 = vadd.f32 %v1700, 1.0
      %v1717 = vadd.f32 %v1701, 1.0
      %v1718 = vadd.f32 %v1702, 1.0
      %v1719 = vadd.f32 %v1703, 1.0
      %v1720 = vadd.f32 %v1704, 1.0
      %v1721 = vadd.f32 %v1705, 1.0
      %v1722 = vadd.f32 %v1706, 1.0
      %v1723 = vmul.f32 %v1707, 0.5
      %v1724 = vmul.f32 %v1708, 0.5
      %v1725 = vmul.f32 %v1709, 0.5
      %v1726 = vmul.f32 %v1710, 0.5
      %v1727 = vmul.f32 %v1711, 0.5
      %v1728 = vmul.f32 %v1712, 0.5
      %v1729 = vmul.f32 %v1713, 0.5
      %v1730 = vmul.f32 %v1714, 0.5
      %v1731 = vmul.f32 %v1715, 0.5
      %v1732 = vmul.f32 %v1716, 0.5
      %v1733 = vmul.f32 %v1717, 0.5
      %v1734 = vmul.f32 %v1718, 0.5
      %v1735 = vmul.f32 %v1719, 0.5
      %v1736 = vmul.f32 %v1720, 0.5
      %v1737 = vmul.f32 %v1721, 0.5
      %v1738 = vmul.f32 %v1722, 0.5
      %v1739 = vmul.f32 %v1437, %v1723
      %v1740 = vmul.f32 %v1439, %v1724
      %v1741 = vmul.f32 %v1443, %v1725
      %v1742 = vmul.f32 %v1445, %v1726
      %v1743 = vmul.f32 %v1449, %v1727
      %v1744 = vmul.f32 %v1451, %v1728
      %v1745 = vmul.f32 %v1455, %v1729
      %v1746 = vmul.f32 %v1457, %v1730
      %v1747 = vmul.f32 %v1461, %v1731
      %v1748 = vmul.f32 %v1463, %v1732
      %v1749 = vmul.f32 %v1467, %v1733
      %v1750 = vmul.f32 %v1469, %v1734
      %v1751 = vmul.f32 %v1473, %v1735
      %v1752 = vmul.f32 %v1475, %v1736
      %v1753 = vmul.f32 %v1479, %v1737
      %v1754 = vmul.f32 %v1481, %v1738
      %v1755 = vadd.f32 %v1659, %v1739
      %v1756 = vadd.f32 %v1660, %v1740
      %v1757 = vadd.f32 %v1661, %v1741
      %v1758 = vadd.f32 %v1662, %v1742
      %v1759 = vadd.f32 %v1663, %v1743
      %v1760 = vadd.f32 %v1664, %v1744
      %v1761 = vadd.f32 %v1665, %v1745
      %v1762 = vadd.f32 %v1666, %v1746
      %v1763 = vadd.f32 %v1667, %v1747
      %v1764 = vadd.f32 %v1668, %v1748
      %v1765 = vadd.f32 %v1669, %v1749
      %v1766 = vadd.f32 %v1670, %v1750
      %v1767 = vadd.f32 %v1671, %v1751
      %v1768 = vadd.f32 %v1672, %v1752
      %v1769 = vadd.f32 %v1673, %v1753
      %v1770 = vadd.f32 %v1674, %v1754
      %v1771 = vmul.f32 %v1083, %v1083
      %v1772 = vmul.f32 %v1085, %v1085
      %v1773 = vmul.f32 %v1089, %v1089
      %v1774 = vmul.f32 %v1091, %v1091
      %v1775 = vmul.f32 %v1095, %v1095
      %v1776 = vmul.f32 %v1097, %v1097
      %v1777 = vmul.f32 %v1101, %v1101
      %v1778 = vmul.f32 %v1103, %v1103
      %v1779 = vmul.f32 %v1107, %v1107
      %v1780 = vmul.f32 %v1109, %v1109
      %v1781 = vmul.f32 %v1113, %v1113
      %v1782 = vmul.f32 %v1115, %v1115
      %v1783 = vmul.f32 %v1119, %v1119
      %v1784 = vmul.f32 %v1121, %v1121
      %v1785 = vmul.f32 %v1125, %v1125
      %v1786 = vmul.f32 %v1127, %v1127
      %v1787 = vmul.f32 %v1131, %v1131
      %v1788 = vmul.f32 %v1133, %v1133
      %v1789 = vmul.f32 %v1137, %v1137
      %v1790 = vmul.f32 %v1139, %v1139
      %v1791 = vmul.f32 %v1143, %v1143
      %v1792 = vmul.f32 %v1145, %v1145
      %v1793 = vmul.f32 %v1149, %v1149
      %v1794 = vmul.f32 %v1151, %v1151
      %v1795 = vmul.f32 %v1155, %v1155
      %v1796 = vmul.f32 %v1157, %v1157
      %v1797 = vmul.f32 %v1161, %v1161
      %v1798 = vmul.f32 %v1163, %v1163
      %v1799 = vmul.f32 %v1167, %v1167
      %v1800 = vmul.f32 %v1169, %v1169
      %v1801 = vmul.f32 %v1173, %v1173
      %v1802 = vmul.f32 %v1175, %v1175
      %v1803 = vadd.f32 %v1771, %v1787
      %v1804 = vadd.f32 %v1772, %v1788
      %v1805 = vadd.f32 %v1773, %v1789
      %v1806 = vadd.f32 %v1774, %v1790
      %v1807 = vadd.f32 %v1775, %v1791
      %v1808 = vadd.f32 %v1776, %v1792
      %v1809 = vadd.f32 %v1777, %v1793
      %v1810 = vadd.f32 %v1778, %v1794
      %v1811 = vadd.f32 %v1779, %v1795
      %v1812 = vadd.f32 %v1780, %v1796
      %v1813 = vadd.f32 %v1781, %v1797
      %v1814 = vadd.f32 %v1782, %v1798
      %v1815 = vadd.f32 %v1783, %v1799
      %v1816 = vadd.f32 %v1784, %v1800
      %v1817 = vadd.f32 %v1785, %v1801
      %v1818 = vadd.f32 %v1786, %v1802
      %v1819 = vmax.f32 %v1803, 1e-10
      %v1820 = vmax.f32 %v1804, 1e-10
      %v1821 = vmax.f32 %v1805, 1e-10
      %v1822 = vmax.f32 %v1806, 1e-10
      %v1823 = vmax.f32 %v1807, 1e-10
      %v1824 = vmax.f32 %v1808, 1e-10
      %v1825 = vmax.f32 %v1809, 1e-10
      %v1826 = vmax.f32 %v1810, 1e-10
      %v1827 = vmax.f32 %v1811, 1e-10
      %v1828 = vmax.f32 %v1812, 1e-10
      %v1829 = vmax.f32 %v1813, 1e-10
      %v1830 = vmax.f32 %v1814, 1e-10
      %v1831 = vmax.f32 %v1815, 1e-10
      %v1832 = vmax.f32 %v1816, 1e-10
      %v1833 = vmax.f32 %v1817, 1e-10
      %v1834 = vmax.f32 %v1818, 1e-10
      %v1835 = vrsqrt.pop %v1819
      %v1836 = vmul.f32 %v1819, %v1835
      %vm1837 = vcmp.eq.f32.partialorder %v1819, inf
      %v1838 = vsel %vm1837, %v1819, %v1836
      %vm1839 = vcmp.eq.f32.partialorder %v1819, 0.0
      %v1840 = vand.u32 %v1819, 2147483648
      %v1841 = vsel %vm1839, %v1840, %v1838
      %v1842 = vrsqrt.pop %v1820
      %v1843 = vmul.f32 %v1820, %v1842
      %vm1844 = vcmp.eq.f32.partialorder %v1820, inf
      %v1845 = vsel %vm1844, %v1820, %v1843
      %vm1846 = vcmp.eq.f32.partialorder %v1820, 0.0
      %v1847 = vand.u32 %v1820, 2147483648
      %v1848 = vsel %vm1846, %v1847, %v1845
      %v1849 = vrsqrt.pop %v1821
      %v1850 = vmul.f32 %v1821, %v1849
      %vm1851 = vcmp.eq.f32.partialorder %v1821, inf
      %v1852 = vsel %vm1851, %v1821, %v1850
      %vm1853 = vcmp.eq.f32.partialorder %v1821, 0.0
      %v1854 = vand.u32 %v1821, 2147483648
      %v1855 = vsel %vm1853, %v1854, %v1852
      %v1856 = vrsqrt.pop %v1822
      %v1857 = vmul.f32 %v1822, %v1856
      %vm1858 = vcmp.eq.f32.partialorder %v1822, inf
      %v1859 = vsel %vm1858, %v1822, %v1857
      %vm1860 = vcmp.eq.f32.partialorder %v1822, 0.0
      %v1861 = vand.u32 %v1822, 2147483648
      %v1862 = vsel %vm1860, %v1861, %v1859
      %v1863 = vrsqrt.pop %v1823
      %v1864 = vmul.f32 %v1823, %v1863
      %vm1865 = vcmp.eq.f32.partialorder %v1823, inf
      %v1866 = vsel %vm1865, %v1823, %v1864
      %vm1867 = vcmp.eq.f32.partialorder %v1823, 0.0
      %v1868 = vand.u32 %v1823, 2147483648
      %v1869 = vsel %vm1867, %v1868, %v1866
      %v1870 = vrsqrt.pop %v1824
      %v1871 = vmul.f32 %v1824, %v1870
      %vm1872 = vcmp.eq.f32.partialorder %v1824, inf
      %v1873 = vsel %vm1872, %v1824, %v1871
      %vm1874 = vcmp.eq.f32.partialorder %v1824, 0.0
      %v1875 = vand.u32 %v1824, 2147483648
      %v1876 = vsel %vm1874, %v1875, %v1873
      %v1877 = vrsqrt.pop %v1825
      %v1878 = vmul.f32 %v1825, %v1877
      %vm1879 = vcmp.eq.f32.partialorder %v1825, inf
      %v1880 = vsel %vm1879, %v1825, %v1878
      %vm1881 = vcmp.eq.f32.partialorder %v1825, 0.0
      %v1882 = vand.u32 %v1825, 2147483648
      %v1883 = vsel %vm1881, %v1882, %v1880
      %v1884 = vrsqrt.pop %v1826
      %v1885 = vmul.f32 %v1826, %v1884
      %vm1886 = vcmp.eq.f32.partialorder %v1826, inf
      %v1887 = vsel %vm1886, %v1826, %v1885
      %vm1888 = vcmp.eq.f32.partialorder %v1826, 0.0
      %v1889 = vand.u32 %v1826, 2147483648
      %v1890 = vsel %vm1888, %v1889, %v1887
      %v1891 = vrsqrt.pop %v1827
      %v1892 = vmul.f32 %v1827, %v1891
      %vm1893 = vcmp.eq.f32.partialorder %v1827, inf
      %v1894 = vsel %vm1893, %v1827, %v1892
      %vm1895 = vcmp.eq.f32.partialorder %v1827, 0.0
      %v1896 = vand.u32 %v1827, 2147483648
      %v1897 = vsel %vm1895, %v1896, %v1894
      %v1898 = vrsqrt.pop %v1828
      %v1899 = vmul.f32 %v1828, %v1898
      %vm1900 = vcmp.eq.f32.partialorder %v1828, inf
      %v1901 = vsel %vm1900, %v1828, %v1899
      %vm1902 = vcmp.eq.f32.partialorder %v1828, 0.0
      %v1903 = vand.u32 %v1828, 2147483648
      %v1904 = vsel %vm1902, %v1903, %v1901
      %v1905 = vrsqrt.pop %v1829
      %v1906 = vmul.f32 %v1829, %v1905
      %vm1907 = vcmp.eq.f32.partialorder %v1829, inf
      %v1908 = vsel %vm1907, %v1829, %v1906
      %vm1909 = vcmp.eq.f32.partialorder %v1829, 0.0
      %v1910 = vand.u32 %v1829, 2147483648
      %v1911 = vsel %vm1909, %v1910, %v1908
      %v1912 = vrsqrt.pop %v1830
      %v1913 = vmul.f32 %v1830, %v1912
      %vm1914 = vcmp.eq.f32.partialorder %v1830, inf
      %v1915 = vsel %vm1914, %v1830, %v1913
      %vm1916 = vcmp.eq.f32.partialorder %v1830, 0.0
      %v1917 = vand.u32 %v1830, 2147483648
      %v1918 = vsel %vm1916, %v1917, %v1915
      %v1919 = vrsqrt.pop %v1831
      %v1920 = vmul.f32 %v1831, %v1919
      %vm1921 = vcmp.eq.f32.partialorder %v1831, inf
      %v1922 = vsel %vm1921, %v1831, %v1920
      %vm1923 = vcmp.eq.f32.partialorder %v1831, 0.0
      %v1924 = vand.u32 %v1831, 2147483648
      %v1925 = vsel %vm1923, %v1924, %v1922
      %v1926 = vrsqrt.pop %v1832
      %v1927 = vmul.f32 %v1832, %v1926
      %vm1928 = vcmp.eq.f32.partialorder %v1832, inf
      %v1929 = vsel %vm1928, %v1832, %v1927
      %vm1930 = vcmp.eq.f32.partialorder %v1832, 0.0
      %v1931 = vand.u32 %v1832, 2147483648
      %v1932 = vsel %vm1930, %v1931, %v1929
      %v1933 = vrsqrt.pop %v1833
      %v1934 = vmul.f32 %v1833, %v1933
      %vm1935 = vcmp.eq.f32.partialorder %v1833, inf
      %v1936 = vsel %vm1935, %v1833, %v1934
      %vm1937 = vcmp.eq.f32.partialorder %v1833, 0.0
      %v1938 = vand.u32 %v1833, 2147483648
      %v1939 = vsel %vm1937, %v1938, %v1936
      %v1940 = vrsqrt.pop %v1834
      %v1941 = vmul.f32 %v1834, %v1940
      %vm1942 = vcmp.eq.f32.partialorder %v1834, inf
      %v1943 = vsel %vm1942, %v1834, %v1941
      %vm1944 = vcmp.eq.f32.partialorder %v1834, 0.0
      %v1945 = vand.u32 %v1834, 2147483648
      %v1946 = vsel %vm1944, %v1945, %v1943
      %v1947 = vadd.f32 %v1083, 1e-10
      %v1948 = vadd.f32 %v1085, 1e-10
      %v1949 = vadd.f32 %v1089, 1e-10
      %v1950 = vadd.f32 %v1091, 1e-10
      %v1951 = vadd.f32 %v1095, 1e-10
      %v1952 = vadd.f32 %v1097, 1e-10
      %v1953 = vadd.f32 %v1101, 1e-10
      %v1954 = vadd.f32 %v1103, 1e-10
      %v1955 = vadd.f32 %v1107, 1e-10
      %v1956 = vadd.f32 %v1109, 1e-10
      %v1957 = vadd.f32 %v1113, 1e-10
      %v1958 = vadd.f32 %v1115, 1e-10
      %v1959 = vadd.f32 %v1119, 1e-10
      %v1960 = vadd.f32 %v1121, 1e-10
      %v1961 = vadd.f32 %v1125, 1e-10
      %v1962 = vadd.f32 %v1127, 1e-10
      %v1963 = vadd.f32 %v1131, 1e-10
      %v1964 = vadd.f32 %v1133, 1e-10
      %v1965 = vadd.f32 %v1137, 1e-10
      %v1966 = vadd.f32 %v1139, 1e-10
      %v1967 = vadd.f32 %v1143, 1e-10
      %v1968 = vadd.f32 %v1145, 1e-10
      %v1969 = vadd.f32 %v1149, 1e-10
      %v1970 = vadd.f32 %v1151, 1e-10
      %v1971 = vadd.f32 %v1155, 1e-10
      %v1972 = vadd.f32 %v1157, 1e-10
      %v1973 = vadd.f32 %v1161, 1e-10
      %v1974 = vadd.f32 %v1163, 1e-10
      %v1975 = vadd.f32 %v1167, 1e-10
      %v1976 = vadd.f32 %v1169, 1e-10
      %v1977 = vadd.f32 %v1173, 1e-10
      %v1978 = vadd.f32 %v1175, 1e-10
      %v1979 = vmul.f32 %v1947, %v1947
      %v1980 = vmul.f32 %v1948, %v1948
      %v1981 = vmul.f32 %v1949, %v1949
      %v1982 = vmul.f32 %v1950, %v1950
      %v1983 = vmul.f32 %v1951, %v1951
      %v1984 = vmul.f32 %v1952, %v1952
      %v1985 = vmul.f32 %v1953, %v1953
      %v1986 = vmul.f32 %v1954, %v1954
      %v1987 = vmul.f32 %v1955, %v1955
      %v1988 = vmul.f32 %v1956, %v1956
      %v1989 = vmul.f32 %v1957, %v1957
      %v1990 = vmul.f32 %v1958, %v1958
      %v1991 = vmul.f32 %v1959, %v1959
      %v1992 = vmul.f32 %v1960, %v1960
      %v1993 = vmul.f32 %v1961, %v1961
      %v1994 = vmul.f32 %v1962, %v1962
      %v1995 = vmul.f32 %v1963, %v1963
      %v1996 = vmul.f32 %v1964, %v1964
      %v1997 = vmul.f32 %v1965, %v1965
      %v1998 = vmul.f32 %v1966, %v1966
      %v1999 = vmul.f32 %v1967, %v1967
      %v2000 = vmul.f32 %v1968, %v1968
      %v2001 = vmul.f32 %v1969, %v1969
      %v2002 = vmul.f32 %v1970, %v1970
      %v2003 = vmul.f32 %v1971, %v1971
      %v2004 = vmul.f32 %v1972, %v1972
      %v2005 = vmul.f32 %v1973, %v1973
      %v2006 = vmul.f32 %v1974, %v1974
      %v2007 = vmul.f32 %v1975, %v1975
      %v2008 = vmul.f32 %v1976, %v1976
      %v2009 = vmul.f32 %v1977, %v1977
      %v2010 = vmul.f32 %v1978, %v1978
      %v2011 = vadd.f32 %v1979, %v1995
      %v2012 = vadd.f32 %v1980, %v1996
      %v2013 = vadd.f32 %v1981, %v1997
      %v2014 = vadd.f32 %v1982, %v1998
      %v2015 = vadd.f32 %v1983, %v1999
      %v2016 = vadd.f32 %v1984, %v2000
      %v2017 = vadd.f32 %v1985, %v2001
      %v2018 = vadd.f32 %v1986, %v2002
      %v2019 = vadd.f32 %v1987, %v2003
      %v2020 = vadd.f32 %v1988, %v2004
      %v2021 = vadd.f32 %v1989, %v2005
      %v2022 = vadd.f32 %v1990, %v2006
      %v2023 = vadd.f32 %v1991, %v2007
      %v2024 = vadd.f32 %v1992, %v2008
      %v2025 = vadd.f32 %v1993, %v2009
      %v2026 = vadd.f32 %v1994, %v2010
      %v2027 = vmax.f32 %v2011, 1e-30
      %v2028 = vmax.f32 %v2012, 1e-30
      %v2029 = vmax.f32 %v2013, 1e-30
      %v2030 = vmax.f32 %v2014, 1e-30
      %v2031 = vmax.f32 %v2015, 1e-30
      %v2032 = vmax.f32 %v2016, 1e-30
      %v2033 = vmax.f32 %v2017, 1e-30
      %v2034 = vmax.f32 %v2018, 1e-30
      %v2035 = vmax.f32 %v2019, 1e-30
      %v2036 = vmax.f32 %v2020, 1e-30
      %v2037 = vmax.f32 %v2021, 1e-30
      %v2038 = vmax.f32 %v2022, 1e-30
      %v2039 = vmax.f32 %v2023, 1e-30
      %v2040 = vmax.f32 %v2024, 1e-30
      %v2041 = vmax.f32 %v2025, 1e-30
      %v2042 = vmax.f32 %v2026, 1e-30
      %v2043 = vrsqrt.pop %v2027
      %v2044 = vrsqrt.pop %v2028
      %v2045 = vrsqrt.pop %v2029
      %v2046 = vrsqrt.pop %v2030
      %v2047 = vrsqrt.pop %v2031
      %v2048 = vrsqrt.pop %v2032
      %v2049 = vrsqrt.pop %v2033
      %v2050 = vrsqrt.pop %v2034
      %v2051 = vrsqrt.pop %v2035
      %v2052 = vrsqrt.pop %v2036
      %v2053 = vrsqrt.pop %v2037
      %v2054 = vrsqrt.pop %v2038
      %v2055 = vrsqrt.pop %v2039
      %v2056 = vrsqrt.pop %v2040
      %v2057 = vrsqrt.pop %v2041
      %v2058 = vrsqrt.pop %v2042
      %vm2059 = vcmp.gt.f32.partialorder %v2011, 0.0
      %vm2060 = vcmp.gt.f32.partialorder %v2012, 0.0
      %vm2061 = vcmp.gt.f32.partialorder %v2013, 0.0
      %vm2062 = vcmp.gt.f32.partialorder %v2014, 0.0
      %vm2063 = vcmp.gt.f32.partialorder %v2015, 0.0
      %vm2064 = vcmp.gt.f32.partialorder %v2016, 0.0
      %vm2065 = vcmp.gt.f32.partialorder %v2017, 0.0
      %vm2066 = vcmp.gt.f32.partialorder %v2018, 0.0
      %vm2067 = vcmp.gt.f32.partialorder %v2019, 0.0
      %vm2068 = vcmp.gt.f32.partialorder %v2020, 0.0
      %vm2069 = vcmp.gt.f32.partialorder %v2021, 0.0
      %vm2070 = vcmp.gt.f32.partialorder %v2022, 0.0
      %vm2071 = vcmp.gt.f32.partialorder %v2023, 0.0
      %vm2072 = vcmp.gt.f32.partialorder %v2024, 0.0
      %vm2073 = vcmp.gt.f32.partialorder %v2025, 0.0
      %vm2074 = vcmp.gt.f32.partialorder %v2026, 0.0
      %v2075 = vmul.f32 %v1947, %v2043
      %v2076 = vmul.f32 %v1948, %v2044
      %v2077 = vmul.f32 %v1949, %v2045
      %v2078 = vmul.f32 %v1950, %v2046
      %v2079 = vmul.f32 %v1951, %v2047
      %v2080 = vmul.f32 %v1952, %v2048
      %v2081 = vmul.f32 %v1953, %v2049
      %v2082 = vmul.f32 %v1954, %v2050
      %v2083 = vmul.f32 %v1955, %v2051
      %v2084 = vmul.f32 %v1956, %v2052
      %v2085 = vmul.f32 %v1957, %v2053
      %v2086 = vmul.f32 %v1958, %v2054
      %v2087 = vmul.f32 %v1959, %v2055
      %v2088 = vmul.f32 %v1960, %v2056
      %v2089 = vmul.f32 %v1961, %v2057
      %v2090 = vmul.f32 %v1962, %v2058
      %v2091 = vsel %vm2059, %v2075, 1.0
      %v2092 = vsel %vm2060, %v2076, 1.0
      %v2093 = vsel %vm2061, %v2077, 1.0
      %v2094 = vsel %vm2062, %v2078, 1.0
      %v2095 = vsel %vm2063, %v2079, 1.0
      %v2096 = vsel %vm2064, %v2080, 1.0
      %v2097 = vsel %vm2065, %v2081, 1.0
      %v2098 = vsel %vm2066, %v2082, 1.0
      %v2099 = vsel %vm2067, %v2083, 1.0
      %v2100 = vsel %vm2068, %v2084, 1.0
      %v2101 = vsel %vm2069, %v2085, 1.0
      %v2102 = vsel %vm2070, %v2086, 1.0
      %v2103 = vsel %vm2071, %v2087, 1.0
      %v2104 = vsel %vm2072, %v2088, 1.0
      %v2105 = vsel %vm2073, %v2089, 1.0
      %v2106 = vsel %vm2074, %v2090, 1.0
      %v2107 = vmul.f32 %v1963, %v2043
      %v2108 = vmul.f32 %v1964, %v2044
      %v2109 = vmul.f32 %v1965, %v2045
      %v2110 = vmul.f32 %v1966, %v2046
      %v2111 = vmul.f32 %v1967, %v2047
      %v2112 = vmul.f32 %v1968, %v2048
      %v2113 = vmul.f32 %v1969, %v2049
      %v2114 = vmul.f32 %v1970, %v2050
      %v2115 = vmul.f32 %v1971, %v2051
      %v2116 = vmul.f32 %v1972, %v2052
      %v2117 = vmul.f32 %v1973, %v2053
      %v2118 = vmul.f32 %v1974, %v2054
      %v2119 = vmul.f32 %v1975, %v2055
      %v2120 = vmul.f32 %v1976, %v2056
      %v2121 = vmul.f32 %v1977, %v2057
      %v2122 = vmul.f32 %v1978, %v2058
      %v2123 = vsel %vm2059, %v2107, 0.0
      %v2124 = vsel %vm2060, %v2108, 0.0
      %v2125 = vsel %vm2061, %v2109, 0.0
      %v2126 = vsel %vm2062, %v2110, 0.0
      %v2127 = vsel %vm2063, %v2111, 0.0
      %v2128 = vsel %vm2064, %v2112, 0.0
      %v2129 = vsel %vm2065, %v2113, 0.0
      %v2130 = vsel %vm2066, %v2114, 0.0
      %v2131 = vsel %vm2067, %v2115, 0.0
      %v2132 = vsel %vm2068, %v2116, 0.0
      %v2133 = vsel %vm2069, %v2117, 0.0
      %v2134 = vsel %vm2070, %v2118, 0.0
      %v2135 = vsel %vm2071, %v2119, 0.0
      %v2136 = vsel %vm2072, %v2120, 0.0
      %v2137 = vsel %vm2073, %v2121, 0.0
      %v2138 = vsel %vm2074, %v2122, 0.0
      %v2139 = vtanh.pop %v1841
      %v2140 = vtanh.pop %v1848
      %v2141 = vtanh.pop %v1855
      %v2142 = vtanh.pop %v1862
      %v2143 = vtanh.pop %v1869
      %v2144 = vtanh.pop %v1876
      %v2145 = vtanh.pop %v1883
      %v2146 = vtanh.pop %v1890
      %v2147 = vtanh.pop %v1897
      %v2148 = vtanh.pop %v1904
      %v2149 = vtanh.pop %v1911
      %v2150 = vtanh.pop %v1918
      %v2151 = vtanh.pop %v1925
      %v2152 = vtanh.pop %v1932
      %v2153 = vtanh.pop %v1939
      %v2154 = vtanh.pop %v1946
      %v2155 = vmul.f32 %v1755, %v2139
      %v2156 = vmul.f32 %v1756, %v2140
      %v2157 = vmul.f32 %v1757, %v2141
      %v2158 = vmul.f32 %v1758, %v2142
      %v2159 = vmul.f32 %v1759, %v2143
      %v2160 = vmul.f32 %v1760, %v2144
      %v2161 = vmul.f32 %v1761, %v2145
      %v2162 = vmul.f32 %v1762, %v2146
      %v2163 = vmul.f32 %v1763, %v2147
      %v2164 = vmul.f32 %v1764, %v2148
      %v2165 = vmul.f32 %v1765, %v2149
      %v2166 = vmul.f32 %v1766, %v2150
      %v2167 = vmul.f32 %v1767, %v2151
      %v2168 = vmul.f32 %v1768, %v2152
      %v2169 = vmul.f32 %v1769, %v2153
      %v2170 = vmul.f32 %v1770, %v2154
      %v2171 = vmul.f32 %v512, %v2091
      %v2172 = vmul.f32 %v513, %v2092
      %v2173 = vmul.f32 %v514, %v2093
      %v2174 = vmul.f32 %v515, %v2094
      %v2175 = vmul.f32 %v516, %v2095
      %v2176 = vmul.f32 %v517, %v2096
      %v2177 = vmul.f32 %v518, %v2097
      %v2178 = vmul.f32 %v519, %v2098
      %v2179 = vmul.f32 %v520, %v2099
      %v2180 = vmul.f32 %v521, %v2100
      %v2181 = vmul.f32 %v522, %v2101
      %v2182 = vmul.f32 %v523, %v2102
      %v2183 = vmul.f32 %v524, %v2103
      %v2184 = vmul.f32 %v525, %v2104
      %v2185 = vmul.f32 %v526, %v2105
      %v2186 = vmul.f32 %v527, %v2106
      %v2187 = vmul.f32 %v544, %v2123
      %v2188 = vmul.f32 %v545, %v2124
      %v2189 = vmul.f32 %v546, %v2125
      %v2190 = vmul.f32 %v547, %v2126
      %v2191 = vmul.f32 %v548, %v2127
      %v2192 = vmul.f32 %v549, %v2128
      %v2193 = vmul.f32 %v550, %v2129
      %v2194 = vmul.f32 %v551, %v2130
      %v2195 = vmul.f32 %v552, %v2131
      %v2196 = vmul.f32 %v553, %v2132
      %v2197 = vmul.f32 %v554, %v2133
      %v2198 = vmul.f32 %v555, %v2134
      %v2199 = vmul.f32 %v556, %v2135
      %v2200 = vmul.f32 %v557, %v2136
      %v2201 = vmul.f32 %v558, %v2137
      %v2202 = vmul.f32 %v559, %v2138
      %v2203 = vsub.f32 %v2171, %v2187
      %v2204 = vsub.f32 %v2172, %v2188
      %v2205 = vsub.f32 %v2173, %v2189
      %v2206 = vsub.f32 %v2174, %v2190
      %v2207 = vsub.f32 %v2175, %v2191
      %v2208 = vsub.f32 %v2176, %v2192
      %v2209 = vsub.f32 %v2177, %v2193
      %v2210 = vsub.f32 %v2178, %v2194
      %v2211 = vsub.f32 %v2179, %v2195
      %v2212 = vsub.f32 %v2180, %v2196
      %v2213 = vsub.f32 %v2181, %v2197
      %v2214 = vsub.f32 %v2182, %v2198
      %v2215 = vsub.f32 %v2183, %v2199
      %v2216 = vsub.f32 %v2184, %v2200
      %v2217 = vsub.f32 %v2185, %v2201
      %v2218 = vsub.f32 %v2186, %v2202
      %v2219 = vmul.f32 %v2155, %v2203
      %v2220 = vmul.f32 %v2156, %v2204
      %v2221 = vmul.f32 %v2157, %v2205
      %v2222 = vmul.f32 %v2158, %v2206
      %v2223 = vmul.f32 %v2159, %v2207
      %v2224 = vmul.f32 %v2160, %v2208
      %v2225 = vmul.f32 %v2161, %v2209
      %v2226 = vmul.f32 %v2162, %v2210
      %v2227 = vmul.f32 %v2163, %v2211
      %v2228 = vmul.f32 %v2164, %v2212
      %v2229 = vmul.f32 %v2165, %v2213
      %v2230 = vmul.f32 %v2166, %v2214
      %v2231 = vmul.f32 %v2167, %v2215
      %v2232 = vmul.f32 %v2168, %v2216
      %v2233 = vmul.f32 %v2169, %v2217
      %v2234 = vmul.f32 %v2170, %v2218
      %2235 = vst [vmem:[%s339] sm:$0xff] %v2219
      %2236 = vst [vmem:[%s339 + $0x8] sm:$0xff] %v2220
      %2237 = vst [vmem:[%s339 + $0x10] sm:$0xff] %v2221
      %2238 = vst [vmem:[%s339 + $0x18] sm:$0xff] %v2222
      %2239 = vst [vmem:[%s339 + $0x20] sm:$0xff] %v2223
      %2240 = vst [vmem:[%s339 + $0x28] sm:$0xff] %v2224
      %2241 = vst [vmem:[%s339 + $0x30] sm:$0xff] %v2225
      %2242 = vst [vmem:[%s339 + $0x38] sm:$0xff] %v2226
      %2243 = vst [vmem:[%s339 + $0x40] sm:$0xff] %v2227
      %2244 = vst [vmem:[%s339 + $0x48] sm:$0xff] %v2228
      %2245 = vst [vmem:[%s339 + $0x50] sm:$0xff] %v2229
      %2246 = vst [vmem:[%s339 + $0x58] sm:$0xff] %v2230
      %2247 = vst [vmem:[%s339 + $0x60] sm:$0xff] %v2231
      %2248 = vst [vmem:[%s339 + $0x68] sm:$0xff] %v2232
      %2249 = vst [vmem:[%s339 + $0x70] sm:$0xff] %v2233
      %2250 = vst [vmem:[%s339 + $0x78] sm:$0xff] %v2234
      %v2251 = vmul.f32 %v544, %v2091
      %v2252 = vmul.f32 %v545, %v2092
      %v2253 = vmul.f32 %v546, %v2093
      %v2254 = vmul.f32 %v547, %v2094
      %v2255 = vmul.f32 %v548, %v2095
      %v2256 = vmul.f32 %v549, %v2096
      %v2257 = vmul.f32 %v550, %v2097
      %v2258 = vmul.f32 %v551, %v2098
      %v2259 = vmul.f32 %v552, %v2099
      %v2260 = vmul.f32 %v553, %v2100
      %v2261 = vmul.f32 %v554, %v2101
      %v2262 = vmul.f32 %v555, %v2102
      %v2263 = vmul.f32 %v556, %v2103
      %v2264 = vmul.f32 %v557, %v2104
      %v2265 = vmul.f32 %v558, %v2105
      %v2266 = vmul.f32 %v559, %v2106
      %v2267 = vmul.f32 %v512, %v2123
      %v2268 = vmul.f32 %v513, %v2124
      %v2269 = vmul.f32 %v514, %v2125
      %v2270 = vmul.f32 %v515, %v2126
      %v2271 = vmul.f32 %v516, %v2127
      %v2272 = vmul.f32 %v517, %v2128
      %v2273 = vmul.f32 %v518, %v2129
      %v2274 = vmul.f32 %v519, %v2130
      %v2275 = vmul.f32 %v520, %v2131
      %v2276 = vmul.f32 %v521, %v2132
      %v2277 = vmul.f32 %v522, %v2133
      %v2278 = vmul.f32 %v523, %v2134
      %v2279 = vmul.f32 %v524, %v2135
      %v2280 = vmul.f32 %v525, %v2136
      %v2281 = vmul.f32 %v526, %v2137
      %v2282 = vmul.f32 %v527, %v2138
      %v2283 = vadd.f32 %v2251, %v2267
      %v2284 = vadd.f32 %v2252, %v2268
      %v2285 = vadd.f32 %v2253, %v2269
      %v2286 = vadd.f32 %v2254, %v2270
      %v2287 = vadd.f32 %v2255, %v2271
      %v2288 = vadd.f32 %v2256, %v2272
      %v2289 = vadd.f32 %v2257, %v2273
      %v2290 = vadd.f32 %v2258, %v2274
      %v2291 = vadd.f32 %v2259, %v2275
      %v2292 = vadd.f32 %v2260, %v2276
      %v2293 = vadd.f32 %v2261, %v2277
      %v2294 = vadd.f32 %v2262, %v2278
      %v2295 = vadd.f32 %v2263, %v2279
      %v2296 = vadd.f32 %v2264, %v2280
      %v2297 = vadd.f32 %v2265, %v2281
      %v2298 = vadd.f32 %v2266, %v2282
      %v2299 = vmul.f32 %v2155, %v2283
      %v2300 = vmul.f32 %v2156, %v2284
      %v2301 = vmul.f32 %v2157, %v2285
      %v2302 = vmul.f32 %v2158, %v2286
      %v2303 = vmul.f32 %v2159, %v2287
      %v2304 = vmul.f32 %v2160, %v2288
      %v2305 = vmul.f32 %v2161, %v2289
      %v2306 = vmul.f32 %v2162, %v2290
      %v2307 = vmul.f32 %v2163, %v2291
      %v2308 = vmul.f32 %v2164, %v2292
      %v2309 = vmul.f32 %v2165, %v2293
      %v2310 = vmul.f32 %v2166, %v2294
      %v2311 = vmul.f32 %v2167, %v2295
      %v2312 = vmul.f32 %v2168, %v2296
      %v2313 = vmul.f32 %v2169, %v2297
      %v2314 = vmul.f32 %v2170, %v2298
      %2315 = vst [vmem:[%s349] sm:$0xff] %v2299
      %2316 = vst [vmem:[%s349 + $0x8] sm:$0xff] %v2300
      %2317 = vst [vmem:[%s349 + $0x10] sm:$0xff] %v2301
      %2318 = vst [vmem:[%s349 + $0x18] sm:$0xff] %v2302
      %2319 = vst [vmem:[%s349 + $0x20] sm:$0xff] %v2303
      %2320 = vst [vmem:[%s349 + $0x28] sm:$0xff] %v2304
      %2321 = vst [vmem:[%s349 + $0x30] sm:$0xff] %v2305
      %2322 = vst [vmem:[%s349 + $0x38] sm:$0xff] %v2306
      %2323 = vst [vmem:[%s349 + $0x40] sm:$0xff] %v2307
      %2324 = vst [vmem:[%s349 + $0x48] sm:$0xff] %v2308
      %2325 = vst [vmem:[%s349 + $0x50] sm:$0xff] %v2309
      %2326 = vst [vmem:[%s349 + $0x58] sm:$0xff] %v2310
      %2327 = vst [vmem:[%s349 + $0x60] sm:$0xff] %v2311
      %2328 = vst [vmem:[%s349 + $0x68] sm:$0xff] %v2312
      %2329 = vst [vmem:[%s349 + $0x70] sm:$0xff] %v2313
      %2330 = vst [vmem:[%s349 + $0x78] sm:$0xff] %v2314
      %s2331 = smul.u32 2, %s23
      %p2332 = scmp.lt.s32.totalorder %s22, 1
      %s2333 = scalar_select %p2332, %s22, 1
      %p2334 = scmp.lt.s32.totalorder %s2331, 1
      %s2335 = scalar_select %p2334, %s2331, 1
      %s2336 = smul.addr %s2333, 16
      %s2337 = sadd.s32 %s2335, %s2336
      %s2338 = smul.addr %s2337, 8
      %s2339 = scalar_lea.vmem %s5, %s2338
      %s2340 = smul.u32 2, %s23
      %p2341 = scmp.lt.s32.totalorder %s22, 1
      %s2342 = scalar_select %p2341, %s22, 1
      %p2343 = scmp.lt.s32.totalorder %s2340, 1
      %s2344 = scalar_select %p2343, %s2340, 1
      %s2345 = smul.addr %s2342, 16
      %s2346 = sadd.s32 %s2344, %s2345
      %s2347 = smul.addr %s2346, 8
      %s2348 = scalar_lea.vmem %s6, %s2347
      // Predicated region
      $region41: #{mtfaa_forward.5} parent=39 // pred_check
        %p2349 = pneg %p169
      $region42: #{mtfaa_forward.5} parent=39 // pred_check_branch
        %2351 = sbr.rel (%p2349) target = $region44
      $region43: #{mtfaa_forward.5} parent=39 // pred_region
        %s2352 = smul.u32 2, %s23
      $region44: #{mtfaa_forward.5} parent=39 // pred_fallthru
        _
      // Predicated region
      $region45: #{mtfaa_forward.5} parent=39 // pred_check
        %p2353 = pneg %p197
      $region46: #{mtfaa_forward.5} parent=39 // pred_check_branch
        %2355 = sbr.rel (%p2353) target = $region48
      $region47: #{mtfaa_forward.5} parent=39 // pred_region
        %s2356 = smul.u32 2, %s23
      $region48: #{mtfaa_forward.5} parent=39 // pred_fallthru
        _
    $region40: #{mtfaa_forward.5} parent=5 // pred_fallthru
      _
    %p2357 = scmp.le.s32.totalorder 2, %s13
    // Predicated region
    $region49: #{mtfaa_forward.5} parent=5 // pred_check
      %p2358 = pneg %p2357
    $region50: #{mtfaa_forward.5} parent=5 // pred_check_branch
      %2360 = sbr.rel (%p2358) target = $region52
    $region51: #{mtfaa_forward.5} parent=5 // pred_region
      %s2361 = ssub.s32 %s13, 2
      // Predicated region
      $region53: #{mtfaa_forward.5} parent=51 // pred_check
        %p2362 = pneg %p175
      $region54: #{mtfaa_forward.5} parent=51 // pred_check_branch
        %2364 = sbr.rel (%p2362) target = $region56
      $region55: #{mtfaa_forward.5} parent=51 // pred_region
        %s2365 = smul.u32 2, %s25
        %p2366 = scmp.lt.s32.totalorder %s24, 1
        %s2367 = scalar_select %p2366, %s24, 1
        %p2368 = scmp.lt.s32.totalorder %s2365, 1
        %s2369 = scalar_select %p2368, %s2365, 1
        %s2370 = smul.addr %s2367, 16
        %s2371 = sadd.s32 %s2369, %s2370
        %s2372 = smul.addr %s2371, 8
        %s2373 = scalar_lea.vmem %s5, %s2372
      $region56: #{mtfaa_forward.5} parent=51 // pred_fallthru
        _
      // Predicated region
      $region57: #{mtfaa_forward.5} parent=51 // pred_check
        %p2374 = pneg %p203
      $region58: #{mtfaa_forward.5} parent=51 // pred_check_branch
        %2376 = sbr.rel (%p2374) target = $region60
      $region59: #{mtfaa_forward.5} parent=51 // pred_region
        %s2377 = smul.u32 2, %s25
        %p2378 = scmp.lt.s32.totalorder %s24, 1
        %s2379 = scalar_select %p2378, %s24, 1
        %p2380 = scmp.lt.s32.totalorder %s2377, 1
        %s2381 = scalar_select %p2380, %s2377, 1
        %s2382 = smul.addr %s2379, 16
        %s2383 = sadd.s32 %s2381, %s2382
        %s2384 = smul.addr %s2383, 8
        %s2385 = scalar_lea.vmem %s6, %s2384
      $region60: #{mtfaa_forward.5} parent=51 // pred_fallthru
        _
    $region52: #{mtfaa_forward.5} parent=5 // pred_fallthru
      _
  $region6: #{mtfaa_forward.5} parent=0 // loop_footer
    %s17 = sadd.s32 1, %s13
  $region7: #{mtfaa_forward.5} parent=0 // loop_footer_branch
    %12 = sbr.rel target = $region3
  $region8: #{mtfaa_forward.5} parent=0 // loop_exit
    _

</llo_original>
